<compile_context>
chip_gen: v7x
topology: tpu7x:2x2x1
jax: 0.10.0
libtpu: 0.0.40
codegen_flags: <defaults>
</compile_context>

<pallas_src>
import functools

import jax
import jax.numpy as jnp
from jax import lax
from jax.experimental import pallas as pl
from jax.experimental.pallas import tpu as pltpu


# ----------------------- in-kernel building blocks -------------------------
# Only "safe" Mosaic ops are used: static slices, reshapes that touch leading
# dims only, leading/sublane broadcasts, sublane/leading reductions, exp/where.


def _vec(row2d, n):
    """(1, N) weight/bias row -> (1, 1, 1, N) broadcastable against NHWC."""
    return row2d.reshape(1, 1, 1, n)


def _mix1x1(x4, w2d, b_row):
    """Pointwise (1x1-conv) channel mix on the VPU: y[..., co] = sum_ci x*w + b."""
    cin, cout = w2d.shape
    acc = jnp.zeros(x4.shape[:-1] + (cout,), jnp.float32)
    for ci in range(cin):
        acc = acc + x4[..., ci:ci + 1] * _vec(w2d[ci:ci + 1, :], cout)
    return acc + _vec(b_row, cout)


def _conv3x1_s2(x4, w_rows, b_row):
    """Conv2d(kernel=(3,1), stride=(2,1), padding=(1,0)) in NHWC, on the VPU.

    x4: (B, Hin, W, Cin);  w_rows: (3*Cin, Cout) with row t*Cin+ci = w[:, ci, t, 0];
    returns (B, Hout, W, Cout) with Hout = (Hin - 1)//2 + 1.
    """
    bsz, hin, wdim, cin = x4.shape
    cout = w_rows.shape[1]
    hout = (hin - 1) // 2 + 1
    pad_bot = 2 * hout + 1 - hin                      # 1 for even Hin, 2 for odd
    ztop = jnp.zeros((bsz, 1, wdim, cin), jnp.float32)
    zbot = jnp.zeros((bsz, pad_bot, wdim, cin), jnp.float32)
    xp = jnp.concatenate([ztop, x4, zbot], axis=1)    # (B, 2*hout + 2, W, Cin)

    # De-interleave the stride-2 taps with leading-dim reshapes (no strided DMA).
    body = xp[:, 0:2 * hout].reshape(bsz, hout, 2, wdim, cin)
    tail = xp[:, 2:2 * hout + 2].reshape(bsz, hout, 2, wdim, cin)
    taps = (body[:, :, 0], body[:, :, 1], tail[:, :, 0])   # padded rows 2h, 2h+1, 2h+2

    acc = jnp.zeros((bsz, hout, wdim, cout), jnp.float32)
    for t in range(3):
        xt = taps[t]
        for ci in range(cin):
            r = t * cin + ci
            acc = acc + xt[..., ci:ci + 1] * _vec(w_rows[r:r + 1, :], cout)
    return acc + _vec(b_row, cout)


def _attention(q4, k4, v4):
    """A = softmax(Q^T K, -1); fo = V A, per (b, c) slice, all on the VPU.

    q4/k4/v4: (B, Hp, W, C) channel-last.  Statically unrolled over the W query
    positions so no transposes / second-minor expands are ever needed.
    """
    bsz, hp, wdim, cdim = q4.shape
    fo = jnp.zeros((bsz, hp, wdim, cdim), jnp.float32)
    for w in range(wdim):
        qw = q4[:, :, w:w + 1, :]                       # (B, Hp, 1, C)
        s = jnp.sum(qw * k4, axis=1)                    # (B, W', C): sum over Hp
        m = jnp.max(s, axis=1, keepdims=True)           # stable softmax over w'
        e = jnp.exp(s - m)
        p = e / jnp.sum(e, axis=1, keepdims=True)       # (B, W', C)
        vw = v4[:, :, w:w + 1, :]                       # (B, Hp, 1, C)
        fo = fo + vw * p[:, None, :, :]                 # (B, Hp, W', C)
    return fo


def _upx2_bn_prelu(x4, w0, w1, b_row, a_row):
    """ConvTranspose2d((2,1), stride=(2,1)) + folded BatchNorm(eval) + PReLU.

    w0/w1 are the two kernel-row weights with the BN scale pre-folded; b_row is
    the BN-folded bias; a_row the per-channel PReLU alpha.  Output H doubles.
    """
    bsz, hz, wdim, _ = x4.shape
    cout = w0.shape[1]

    def branch(wk):
        y = _mix1x1(x4, wk, b_row)
        return jnp.where(y >= 0.0, y, _vec(a_row, cout) * y)

    y_even = branch(w0)                                 # output rows 2h
    y_odd = branch(w1)                                  # output rows 2h + 1
    z = jnp.stack([y_even, y_odd], axis=2)              # (B, Hz, 2, W, C)
    return z.reshape(bsz, 2 * hz, wdim, cout)


def _att_mechanism_kernel(x_ref, w1_ref, b1_ref, w2_ref, b2_ref,
                          wq_ref, bq_ref, wk_ref, bk_ref, wv_ref, bv_ref,
                          wu0_ref, wu1_ref, bu_ref, al_ref, o_ref,
                          *, two_convs, two_ups):
    x = x_ref[...].astype(jnp.float32)                  # (b, Hin, W, Cin) NHWC

    # ----- AttentionModule: downsampling convs -----
    fds = _conv3x1_s2(x, w1_ref[...], b1_ref[...])
    if two_convs:
        fds = _conv3x1_s2(fds, w2_ref[...], b2_ref[...])

    # ----- Q / K / V 1x1 convs -----
    q = _mix1x1(fds, wq_ref[...], bq_ref[...])
    k = _mix1x1(fds, wk_ref[...], bk_ref[...])
    v = _mix1x1(fds, wv_ref[...], bv_ref[...])

    # ----- attention -----
    fo = _attention(q, k, v)

    # ----- UPx2 (deconv + BN + PReLU), applied once or twice -----
    wu0 = wu0_ref[...]
    wu1 = wu1_ref[...]
    bu = bu_ref[...]
    al = al_ref[...]
    out = _upx2_bn_prelu(fo, wu0, wu1, bu, al)
    if two_ups:
        out = _upx2_bn_prelu(out, wu0, wu1, bu, al)

    o_ref[...] = out.astype(o_ref.dtype)


# ------------------------------ host wrapper -------------------------------

def _two_tensorcores():
    # Split the grid over batch only when the chip actually has two TensorCores
    # (v7x); on v5e/v6e the extra grid step would be pure overhead.
    try:
        return "v7" in jax.devices()[0].device_kind.lower()
    except Exception:
        return False


def prepare_params(p, eps=1e-3):
    """One-time weight preprocessing, hoisted out of the jitted forward.

    eps=1e-3 matches nn.BatchNorm2d(nOut, eps=0.001) in the module.
    """
    cin = p["conv1_w"].shape[1]
    cout = p["convq_w"].shape[0]

    def conv3_rows(w):          # (Cout, Cin, 3, 1) -> (3*Cin, Cout), row t*Cin+ci
        return jnp.transpose(w[:, :, :, 0], (2, 1, 0)).reshape(3 * w.shape[1], w.shape[0])

    scale = p["bn_gamma"] / jnp.sqrt(p["bn_var"] + eps)
    shift = p["bn_beta"] - p["bn_mean"] * scale

    return dict(
        w1=conv3_rows(p["conv1_w"]), b1=p["conv1_b"].reshape(1, cin),
        w2=conv3_rows(p["conv2_w"]), b2=p["conv2_b"].reshape(1, cin),
        wq=p["convq_w"][:, :, 0, 0].T, bq=p["convq_b"].reshape(1, cout),
        wk=p["convk_w"][:, :, 0, 0].T, bk=p["convk_b"].reshape(1, cout),
        wv=p["convv_w"][:, :, 0, 0].T, bv=p["convv_b"].reshape(1, cout),
        # ConvTranspose weights (ci, co) per kernel row, BN scale pre-folded.
        wu0=p["deconv_w"][:, :, 0, 0] * scale[None, :],
        wu1=p["deconv_w"][:, :, 1, 0] * scale[None, :],
        bu=(p["deconv_b"] * scale + shift).reshape(1, cout),
        alpha=p["prelu_alpha"].reshape(1, cout),
    )


def att_mechanism_forward_pallas(x, pp):
    """x: (B, Cin, H, W) NCHW float32; pp: output of prepare_params."""
    bsz, cin, hin, wdim = x.shape
    cout = pp["wq"].shape[1]

    two_convs = (hin != 10)
    hp = (hin - 1) // 2 + 1
    if two_convs:
        hp = (hp - 1) // 2 + 1
    two_ups = (hp != 5)
    hout = hp * (4 if two_ups else 2)

    x_cl = jnp.transpose(x, (0, 2, 3, 1))               # NCHW -> NHWC (one XLA op)

    nblk = bsz if (_two_tensorcores() and bsz > 1) else 1
    if bsz % nblk != 0:
        nblk = 1
    bb = bsz // nblk

    def wspec(shape):
        return pl.BlockSpec(shape, lambda i: tuple(0 for _ in shape))

    kernel = functools.partial(_att_mechanism_kernel,
                               two_convs=two_convs, two_ups=two_ups)

    out_cl = pl.pallas_call(
        kernel,
        out_shape=jax.ShapeDtypeStruct((bsz, hout, wdim, cout), jnp.float32),
        grid=(nblk,),
        in_specs=[pl.BlockSpec((bb, hin, wdim, cin), lambda i: (i, 0, 0, 0)),
                  wspec(pp["w1"].shape), wspec(pp["b1"].shape),
                  wspec(pp["w2"].shape), wspec(pp["b2"].shape),
                  wspec(pp["wq"].shape), wspec(pp["bq"].shape),
                  wspec(pp["wk"].shape), wspec(pp["bk"].shape),
                  wspec(pp["wv"].shape), wspec(pp["bv"].shape),
                  wspec(pp["wu0"].shape), wspec(pp["wu1"].shape),
                  wspec(pp["bu"].shape), wspec(pp["alpha"].shape)],
        out_specs=pl.BlockSpec((bb, hout, wdim, cout), lambda i: (i, 0, 0, 0)),
        compiler_params=pltpu.CompilerParams(dimension_semantics=("parallel",)),
    )(x_cl, pp["w1"], pp["b1"], pp["w2"], pp["b2"],
      pp["wq"], pp["bq"], pp["wk"], pp["bk"], pp["wv"], pp["bv"],
      pp["wu0"], pp["wu1"], pp["bu"], pp["alpha"])

    return jnp.transpose(out_cl, (0, 3, 1, 2))           # NHWC -> NCHW


# ---------------- independent pure-JAX (XLA conv) reference ----------------

def att_mechanism_forward_reference(x, p):
    dn = ("NCHW", "OIHW", "NCHW")
    hp = lax.Precision.HIGHEST

    def conv(z, w, b, stride, pad):
        y = lax.conv_general_dilated(z, w, window_strides=stride, padding=pad,
                                     dimension_numbers=dn, precision=hp)
        return y + b.reshape(1, -1, 1, 1)

    def conv_t_2x1(z, w, b):
        # ConvTranspose2d(kernel=(2,1), stride=(2,1), padding=0) via dilated conv.
        wr = jnp.flip(jnp.transpose(w, (1, 0, 2, 3)), axis=(2, 3))      # (O, I, 2, 1)
        y = lax.conv_general_dilated(z, wr, window_strides=(1, 1),
                                     padding=((1, 1), (0, 0)),
                                     lhs_dilation=(2, 1),
                                     dimension_numbers=dn, precision=hp)
        return y + b.reshape(1, -1, 1, 1)

    if x.shape[2] == 10:
        fds = conv(x, p["conv1_w"], p["conv1_b"], (2, 1), ((1, 1), (0, 0)))
    else:
        fds = conv(x, p["conv1_w"], p["conv1_b"], (2, 1), ((1, 1), (0, 0)))
        fds = conv(fds, p["conv2_w"], p["conv2_b"], (2, 1), ((1, 1), (0, 0)))
    Q = conv(fds, p["convq_w"], p["convq_b"], (1, 1), ((0, 0), (0, 0)))
    K = conv(fds, p["convk_w"], p["convk_b"], (1, 1), ((0, 0), (0, 0)))
    V = conv(fds, p["convv_w"], p["convv_b"], (1, 1), ((0, 0), (0, 0)))
    A = jnp.einsum("bchw,bchv->bcwv", Q, K, precision=hp)
    A = jax.nn.softmax(A, axis=-1)
    fo = jnp.einsum("bchw,bcwv->bchv", V, A, precision=hp)

    eps = 1e-3

    def upx2(z):
        y = conv_t_2x1(z, p["deconv_w"], p["deconv_b"])
        mean = p["bn_mean"].reshape(1, -1, 1, 1)
        var = p["bn_var"].reshape(1, -1, 1, 1)
        gamma = p["bn_gamma"].reshape(1, -1, 1, 1)
        beta = p["bn_beta"].reshape(1, -1, 1, 1)
        y = gamma * (y - mean) / jnp.sqrt(var + eps) + beta
        a = p["prelu_alpha"].reshape(1, -1, 1, 1)
        return jnp.where(y >= 0, y, a * y)

    if fo.shape[2] == 5:
        fo = upx2(fo)
    else:
        fo = upx2(upx2(fo))
    return fo


# ----------------------------- parameter init -----------------------------

def init_params(key, cin, cout):
    ks = jax.random.split(key, 16)

    def w(k, shape, s=0.1):
        return s * jax.random.normal(k, shape, jnp.float32)

    return dict(
        conv1_w=w(ks[0], (cin, cin, 3, 1)),
        conv1_b=w(ks[1], (cin,), 0.05),
        conv2_w=w(ks[2], (cin, cin, 3, 1)),
        conv2_b=w(ks[3], (cin,), 0.05),
        convq_w=w(ks[4], (cout, cin, 1, 1)),
        convq_b=w(ks[5], (cout,), 0.05),
        convk_w=w(ks[6], (cout, cin, 1, 1)),
        convk_b=w(ks[7], (cout,), 0.05),
        convv_w=w(ks[8], (cout, cin, 1, 1)),
        convv_b=w(ks[9], (cout,), 0.05),
        deconv_w=w(ks[10], (cout, cout, 2, 1)),
        deconv_b=w(ks[11], (cout,), 0.05),
        bn_gamma=1.0 + 0.1 * jax.random.normal(ks[12], (cout,), jnp.float32),
        bn_beta=0.05 * jax.random.normal(ks[13], (cout,), jnp.float32),
        bn_mean=0.05 * jax.random.normal(ks[14], (cout,), jnp.float32),
        bn_var=1.0 + 0.1 * jnp.abs(jax.random.normal(ks[15], (cout,), jnp.float32)),
        prelu_alpha=0.25 * jnp.ones((cout,), jnp.float32),   # PyTorch PReLU default
    )


# --------------------------------- main ---------------------------------

if __name__ == "__main__":
    key = jax.random.PRNGKey(0)
    kx, kp = jax.random.split(key)

    B, Cin, Cout, H, Wd = 2, 4, 8, 16, 16
    x = jax.random.normal(kx, (B, Cin, H, Wd), jnp.float32)
    params = init_params(kp, Cin, Cout)
    prepped = prepare_params(params)          # one-time prep, outside the jit

    out = jax.jit(att_mechanism_forward_pallas)(x, prepped)
    out = jax.block_until_ready(out)

    ref = jax.jit(att_mechanism_forward_reference)(x, params)
    ref = jax.block_until_ready(ref)

    assert out.shape == (B, Cout, H, Wd), out.shape
    assert bool(jnp.all(jnp.isfinite(out)))
    max_err = float(jnp.max(jnp.abs(out - ref)))
    assert max_err < 1e-3, f"max abs error vs reference: {max_err}"

    print("KERNEL_OK")
</pallas_src>

<mosaic_0001>
module attributes {stable_mosaic.version = 11 : i64} {
  func.func @_att_mechanism_kernel(%arg0: i32, %arg1: memref<2x16x16x4xf32, #tpu.memory_space<vmem>>, %arg2: memref<12x4xf32, #tpu.memory_space<vmem>>, %arg3: memref<1x4xf32, #tpu.memory_space<vmem>>, %arg4: memref<12x4xf32, #tpu.memory_space<vmem>>, %arg5: memref<1x4xf32, #tpu.memory_space<vmem>>, %arg6: memref<4x8xf32, #tpu.memory_space<vmem>>, %arg7: memref<1x8xf32, #tpu.memory_space<vmem>>, %arg8: memref<4x8xf32, #tpu.memory_space<vmem>>, %arg9: memref<1x8xf32, #tpu.memory_space<vmem>>, %arg10: memref<4x8xf32, #tpu.memory_space<vmem>>, %arg11: memref<1x8xf32, #tpu.memory_space<vmem>>, %arg12: memref<8x8xf32, #tpu.memory_space<vmem>>, %arg13: memref<8x8xf32, #tpu.memory_space<vmem>>, %arg14: memref<1x8xf32, #tpu.memory_space<vmem>>, %arg15: memref<1x8xf32, #tpu.memory_space<vmem>>, %arg16: memref<2x16x16x8xf32, #tpu.memory_space<vmem>>) attributes {dimension_semantics = [#tpu.dimension_semantics<parallel>], iteration_bounds = array<i64: 1>, scalar_prefetch = 0 : i64, scratch_operands = 0 : i64, tpu.core_type = #tpu.core_type<tc>, window_params = [{transform_indices = @transform_0, window_bounds = array<i64: 2, 16, 16, 4>}, {pipeline_mode = #tpu.pipeline_mode<synchronous>, transform_indices = @transform_1, window_bounds = array<i64: 12, 4>}, {pipeline_mode = #tpu.pipeline_mode<synchronous>, transform_indices = @transform_2, window_bounds = array<i64: 1, 4>}, {pipeline_mode = #tpu.pipeline_mode<synchronous>, transform_indices = @transform_3, window_bounds = array<i64: 12, 4>}, {pipeline_mode = #tpu.pipeline_mode<synchronous>, transform_indices = @transform_4, window_bounds = array<i64: 1, 4>}, {pipeline_mode = #tpu.pipeline_mode<synchronous>, transform_indices = @transform_5, window_bounds = array<i64: 4, 8>}, {pipeline_mode = #tpu.pipeline_mode<synchronous>, transform_indices = @transform_6, window_bounds = array<i64: 1, 8>}, {pipeline_mode = #tpu.pipeline_mode<synchronous>, transform_indices = @transform_7, window_bounds = array<i64: 4, 8>}, {pipeline_mode = #tpu.pipeline_mode<synchronous>, transform_indices = @transform_8, window_bounds = array<i64: 1, 8>}, {pipeline_mode = #tpu.pipeline_mode<synchronous>, transform_indices = @transform_9, window_bounds = array<i64: 4, 8>}, {pipeline_mode = #tpu.pipeline_mode<synchronous>, transform_indices = @transform_10, window_bounds = array<i64: 1, 8>}, {pipeline_mode = #tpu.pipeline_mode<synchronous>, transform_indices = @transform_11, window_bounds = array<i64: 8, 8>}, {pipeline_mode = #tpu.pipeline_mode<synchronous>, transform_indices = @transform_12, window_bounds = array<i64: 8, 8>}, {pipeline_mode = #tpu.pipeline_mode<synchronous>, transform_indices = @transform_13, window_bounds = array<i64: 1, 8>}, {pipeline_mode = #tpu.pipeline_mode<synchronous>, transform_indices = @transform_14, window_bounds = array<i64: 1, 8>}, {transform_indices = @transform_15, window_bounds = array<i64: 2, 16, 16, 8>}]} {
    %c0 = arith.constant 0 : index
    %c0_0 = arith.constant 0 : index
    %c0_1 = arith.constant 0 : index
    %c0_2 = arith.constant 0 : index
    %0 = vector.load %arg1[%c0, %c0_0, %c0_1, %c0_2] : memref<2x16x16x4xf32, #tpu.memory_space<vmem>>, vector<2x16x16x4xf32>
    %c0_3 = arith.constant 0 : index
    %c0_4 = arith.constant 0 : index
    %1 = vector.load %arg2[%c0_3, %c0_4] : memref<12x4xf32, #tpu.memory_space<vmem>>, vector<12x4xf32>
    %c0_5 = arith.constant 0 : index
    %c0_6 = arith.constant 0 : index
    %2 = vector.load %arg3[%c0_5, %c0_6] : memref<1x4xf32, #tpu.memory_space<vmem>>, vector<1x4xf32>
    %cst = arith.constant 0.000000e+00 : f32
    %3 = vector.broadcast %cst : f32 to vector<2x1x16x4xf32>
    %cst_7 = arith.constant 0.000000e+00 : f32
    %4 = vector.broadcast %cst_7 : f32 to vector<2x1x16x4xf32>
    %5 = tpu.concatenate %3, %0, %4 in 1 : vector<2x1x16x4xf32>, vector<2x16x16x4xf32>, vector<2x1x16x4xf32> -> vector<2x18x16x4xf32>
    %6 = vector.extract_strided_slice %5 {offsets = [0, 0, 0, 0], sizes = [2, 16, 16, 4], strides = [1, 1, 1, 1]} : vector<2x18x16x4xf32> to vector<2x16x16x4xf32>
    %7 = vector.shape_cast %6 : vector<2x16x16x4xf32> to vector<2x8x2x16x4xf32>
    %8 = vector.extract_strided_slice %5 {offsets = [0, 2, 0, 0], sizes = [2, 16, 16, 4], strides = [1, 1, 1, 1]} : vector<2x18x16x4xf32> to vector<2x16x16x4xf32>
    %9 = vector.shape_cast %8 : vector<2x16x16x4xf32> to vector<2x8x2x16x4xf32>
    %10 = vector.extract_strided_slice %7 {offsets = [0, 0, 0, 0, 0], sizes = [2, 8, 1, 16, 4], strides = [1, 1, 1, 1, 1]} : vector<2x8x2x16x4xf32> to vector<2x8x1x16x4xf32>
    %11 = vector.shape_cast %10 : vector<2x8x1x16x4xf32> to vector<2x8x16x4xf32>
    %12 = vector.extract_strided_slice %7 {offsets = [0, 0, 1, 0, 0], sizes = [2, 8, 1, 16, 4], strides = [1, 1, 1, 1, 1]} : vector<2x8x2x16x4xf32> to vector<2x8x1x16x4xf32>
    %13 = vector.shape_cast %12 : vector<2x8x1x16x4xf32> to vector<2x8x16x4xf32>
    %14 = vector.extract_strided_slice %9 {offsets = [0, 0, 0, 0, 0], sizes = [2, 8, 1, 16, 4], strides = [1, 1, 1, 1, 1]} : vector<2x8x2x16x4xf32> to vector<2x8x1x16x4xf32>
    %15 = vector.shape_cast %14 : vector<2x8x1x16x4xf32> to vector<2x8x16x4xf32>
    %cst_8 = arith.constant 0.000000e+00 : f32
    %16 = vector.broadcast %cst_8 : f32 to vector<2x8x16x4xf32>
    %17 = vector.extract_strided_slice %11 {offsets = [0, 0, 0, 0], sizes = [2, 8, 16, 1], strides = [1, 1, 1, 1]} : vector<2x8x16x4xf32> to vector<2x8x16x1xf32>
    %18 = vector.extract_strided_slice %1 {offsets = [0, 0], sizes = [1, 4], strides = [1, 1]} : vector<12x4xf32> to vector<1x4xf32>
    %19 = vector.shape_cast %18 : vector<1x4xf32> to vector<1x1x1x4xf32>
    %20 = vector.broadcast %17 : vector<2x8x16x1xf32> to vector<2x8x16x4xf32>
    %21 = vector.broadcast %19 : vector<1x1x1x4xf32> to vector<2x8x16x4xf32>
    %22 = arith.mulf %20, %21 : vector<2x8x16x4xf32>
    %23 = arith.addf %16, %22 : vector<2x8x16x4xf32>
    %24 = vector.extract_strided_slice %11 {offsets = [0, 0, 0, 1], sizes = [2, 8, 16, 1], strides = [1, 1, 1, 1]} : vector<2x8x16x4xf32> to vector<2x8x16x1xf32>
    %25 = vector.extract_strided_slice %1 {offsets = [1, 0], sizes = [1, 4], strides = [1, 1]} : vector<12x4xf32> to vector<1x4xf32>
    %26 = vector.shape_cast %25 : vector<1x4xf32> to vector<1x1x1x4xf32>
    %27 = vector.broadcast %24 : vector<2x8x16x1xf32> to vector<2x8x16x4xf32>
    %28 = vector.broadcast %26 : vector<1x1x1x4xf32> to vector<2x8x16x4xf32>
    %29 = arith.mulf %27, %28 : vector<2x8x16x4xf32>
    %30 = arith.addf %23, %29 : vector<2x8x16x4xf32>
    %31 = vector.extract_strided_slice %11 {offsets = [0, 0, 0, 2], sizes = [2, 8, 16, 1], strides = [1, 1, 1, 1]} : vector<2x8x16x4xf32> to vector<2x8x16x1xf32>
    %32 = vector.extract_strided_slice %1 {offsets = [2, 0], sizes = [1, 4], strides = [1, 1]} : vector<12x4xf32> to vector<1x4xf32>
    %33 = vector.shape_cast %32 : vector<1x4xf32> to vector<1x1x1x4xf32>
    %34 = vector.broadcast %31 : vector<2x8x16x1xf32> to vector<2x8x16x4xf32>
    %35 = vector.broadcast %33 : vector<1x1x1x4xf32> to vector<2x8x16x4xf32>
    %36 = arith.mulf %34, %35 : vector<2x8x16x4xf32>
    %37 = arith.addf %30, %36 : vector<2x8x16x4xf32>
    %38 = vector.extract_strided_slice %11 {offsets = [0, 0, 0, 3], sizes = [2, 8, 16, 1], strides = [1, 1, 1, 1]} : vector<2x8x16x4xf32> to vector<2x8x16x1xf32>
    %39 = vector.extract_strided_slice %1 {offsets = [3, 0], sizes = [1, 4], strides = [1, 1]} : vector<12x4xf32> to vector<1x4xf32>
    %40 = vector.shape_cast %39 : vector<1x4xf32> to vector<1x1x1x4xf32>
    %41 = vector.broadcast %38 : vector<2x8x16x1xf32> to vector<2x8x16x4xf32>
    %42 = vector.broadcast %40 : vector<1x1x1x4xf32> to vector<2x8x16x4xf32>
    %43 = arith.mulf %41, %42 : vector<2x8x16x4xf32>
    %44 = arith.addf %37, %43 : vector<2x8x16x4xf32>
    %45 = vector.extract_strided_slice %13 {offsets = [0, 0, 0, 0], sizes = [2, 8, 16, 1], strides = [1, 1, 1, 1]} : vector<2x8x16x4xf32> to vector<2x8x16x1xf32>
    %46 = vector.extract_strided_slice %1 {offsets = [4, 0], sizes = [1, 4], strides = [1, 1]} : vector<12x4xf32> to vector<1x4xf32>
    %47 = vector.shape_cast %46 : vector<1x4xf32> to vector<1x1x1x4xf32>
    %48 = vector.broadcast %45 : vector<2x8x16x1xf32> to vector<2x8x16x4xf32>
    %49 = vector.broadcast %47 : vector<1x1x1x4xf32> to vector<2x8x16x4xf32>
    %50 = arith.mulf %48, %49 : vector<2x8x16x4xf32>
    %51 = arith.addf %44, %50 : vector<2x8x16x4xf32>
    %52 = vector.extract_strided_slice %13 {offsets = [0, 0, 0, 1], sizes = [2, 8, 16, 1], strides = [1, 1, 1, 1]} : vector<2x8x16x4xf32> to vector<2x8x16x1xf32>
    %53 = vector.extract_strided_slice %1 {offsets = [5, 0], sizes = [1, 4], strides = [1, 1]} : vector<12x4xf32> to vector<1x4xf32>
    %54 = vector.shape_cast %53 : vector<1x4xf32> to vector<1x1x1x4xf32>
    %55 = vector.broadcast %52 : vector<2x8x16x1xf32> to vector<2x8x16x4xf32>
    %56 = vector.broadcast %54 : vector<1x1x1x4xf32> to vector<2x8x16x4xf32>
    %57 = arith.mulf %55, %56 : vector<2x8x16x4xf32>
    %58 = arith.addf %51, %57 : vector<2x8x16x4xf32>
    %59 = vector.extract_strided_slice %13 {offsets = [0, 0, 0, 2], sizes = [2, 8, 16, 1], strides = [1, 1, 1, 1]} : vector<2x8x16x4xf32> to vector<2x8x16x1xf32>
    %60 = vector.extract_strided_slice %1 {offsets = [6, 0], sizes = [1, 4], strides = [1, 1]} : vector<12x4xf32> to vector<1x4xf32>
    %61 = vector.shape_cast %60 : vector<1x4xf32> to vector<1x1x1x4xf32>
    %62 = vector.broadcast %59 : vector<2x8x16x1xf32> to vector<2x8x16x4xf32>
    %63 = vector.broadcast %61 : vector<1x1x1x4xf32> to vector<2x8x16x4xf32>
    %64 = arith.mulf %62, %63 : vector<2x8x16x4xf32>
    %65 = arith.addf %58, %64 : vector<2x8x16x4xf32>
    %66 = vector.extract_strided_slice %13 {offsets = [0, 0, 0, 3], sizes = [2, 8, 16, 1], strides = [1, 1, 1, 1]} : vector<2x8x16x4xf32> to vector<2x8x16x1xf32>
    %67 = vector.extract_strided_slice %1 {offsets = [7, 0], sizes = [1, 4], strides = [1, 1]} : vector<12x4xf32> to vector<1x4xf32>
    %68 = vector.shape_cast %67 : vector<1x4xf32> to vector<1x1x1x4xf32>
    %69 = vector.broadcast %66 : vector<2x8x16x1xf32> to vector<2x8x16x4xf32>
    %70 = vector.broadcast %68 : vector<1x1x1x4xf32> to vector<2x8x16x4xf32>
    %71 = arith.mulf %69, %70 : vector<2x8x16x4xf32>
    %72 = arith.addf %65, %71 : vector<2x8x16x4xf32>
    %73 = vector.extract_strided_slice %15 {offsets = [0, 0, 0, 0], sizes = [2, 8, 16, 1], strides = [1, 1, 1, 1]} : vector<2x8x16x4xf32> to vector<2x8x16x1xf32>
    %74 = vector.extract_strided_slice %1 {offsets = [8, 0], sizes = [1, 4], strides = [1, 1]} : vector<12x4xf32> to vector<1x4xf32>
    %75 = vector.shape_cast %74 : vector<1x4xf32> to vector<1x1x1x4xf32>
    %76 = vector.broadcast %73 : vector<2x8x16x1xf32> to vector<2x8x16x4xf32>
    %77 = vector.broadcast %75 : vector<1x1x1x4xf32> to vector<2x8x16x4xf32>
    %78 = arith.mulf %76, %77 : vector<2x8x16x4xf32>
    %79 = arith.addf %72, %78 : vector<2x8x16x4xf32>
    %80 = vector.extract_strided_slice %15 {offsets = [0, 0, 0, 1], sizes = [2, 8, 16, 1], strides = [1, 1, 1, 1]} : vector<2x8x16x4xf32> to vector<2x8x16x1xf32>
    %81 = vector.extract_strided_slice %1 {offsets = [9, 0], sizes = [1, 4], strides = [1, 1]} : vector<12x4xf32> to vector<1x4xf32>
    %82 = vector.shape_cast %81 : vector<1x4xf32> to vector<1x1x1x4xf32>
    %83 = vector.broadcast %80 : vector<2x8x16x1xf32> to vector<2x8x16x4xf32>
    %84 = vector.broadcast %82 : vector<1x1x1x4xf32> to vector<2x8x16x4xf32>
    %85 = arith.mulf %83, %84 : vector<2x8x16x4xf32>
    %86 = arith.addf %79, %85 : vector<2x8x16x4xf32>
    %87 = vector.extract_strided_slice %15 {offsets = [0, 0, 0, 2], sizes = [2, 8, 16, 1], strides = [1, 1, 1, 1]} : vector<2x8x16x4xf32> to vector<2x8x16x1xf32>
    %88 = vector.extract_strided_slice %1 {offsets = [10, 0], sizes = [1, 4], strides = [1, 1]} : vector<12x4xf32> to vector<1x4xf32>
    %89 = vector.shape_cast %88 : vector<1x4xf32> to vector<1x1x1x4xf32>
    %90 = vector.broadcast %87 : vector<2x8x16x1xf32> to vector<2x8x16x4xf32>
    %91 = vector.broadcast %89 : vector<1x1x1x4xf32> to vector<2x8x16x4xf32>
    %92 = arith.mulf %90, %91 : vector<2x8x16x4xf32>
    %93 = arith.addf %86, %92 : vector<2x8x16x4xf32>
    %94 = vector.extract_strided_slice %15 {offsets = [0, 0, 0, 3], sizes = [2, 8, 16, 1], strides = [1, 1, 1, 1]} : vector<2x8x16x4xf32> to vector<2x8x16x1xf32>
    %95 = vector.extract_strided_slice %1 {offsets = [11, 0], sizes = [1, 4], strides = [1, 1]} : vector<12x4xf32> to vector<1x4xf32>
    %96 = vector.shape_cast %95 : vector<1x4xf32> to vector<1x1x1x4xf32>
    %97 = vector.broadcast %94 : vector<2x8x16x1xf32> to vector<2x8x16x4xf32>
    %98 = vector.broadcast %96 : vector<1x1x1x4xf32> to vector<2x8x16x4xf32>
    %99 = arith.mulf %97, %98 : vector<2x8x16x4xf32>
    %100 = arith.addf %93, %99 : vector<2x8x16x4xf32>
    %101 = vector.shape_cast %2 : vector<1x4xf32> to vector<1x1x1x4xf32>
    %102 = vector.broadcast %101 : vector<1x1x1x4xf32> to vector<2x8x16x4xf32>
    %103 = arith.addf %100, %102 : vector<2x8x16x4xf32>
    %c0_9 = arith.constant 0 : index
    %c0_10 = arith.constant 0 : index
    %104 = vector.load %arg4[%c0_9, %c0_10] : memref<12x4xf32, #tpu.memory_space<vmem>>, vector<12x4xf32>
    %c0_11 = arith.constant 0 : index
    %c0_12 = arith.constant 0 : index
    %105 = vector.load %arg5[%c0_11, %c0_12] : memref<1x4xf32, #tpu.memory_space<vmem>>, vector<1x4xf32>
    %cst_13 = arith.constant 0.000000e+00 : f32
    %106 = vector.broadcast %cst_13 : f32 to vector<2x1x16x4xf32>
    %cst_14 = arith.constant 0.000000e+00 : f32
    %107 = vector.broadcast %cst_14 : f32 to vector<2x1x16x4xf32>
    %108 = tpu.concatenate %106, %103, %107 in 1 : vector<2x1x16x4xf32>, vector<2x8x16x4xf32>, vector<2x1x16x4xf32> -> vector<2x10x16x4xf32>
    %109 = vector.extract_strided_slice %108 {offsets = [0, 0, 0, 0], sizes = [2, 8, 16, 4], strides = [1, 1, 1, 1]} : vector<2x10x16x4xf32> to vector<2x8x16x4xf32>
    %110 = vector.shape_cast %109 : vector<2x8x16x4xf32> to vector<2x4x2x16x4xf32>
    %111 = vector.extract_strided_slice %108 {offsets = [0, 2, 0, 0], sizes = [2, 8, 16, 4], strides = [1, 1, 1, 1]} : vector<2x10x16x4xf32> to vector<2x8x16x4xf32>
    %112 = vector.shape_cast %111 : vector<2x8x16x4xf32> to vector<2x4x2x16x4xf32>
    %113 = vector.extract_strided_slice %110 {offsets = [0, 0, 0, 0, 0], sizes = [2, 4, 1, 16, 4], strides = [1, 1, 1, 1, 1]} : vector<2x4x2x16x4xf32> to vector<2x4x1x16x4xf32>
    %114 = vector.shape_cast %113 : vector<2x4x1x16x4xf32> to vector<2x4x16x4xf32>
    %115 = vector.extract_strided_slice %110 {offsets = [0, 0, 1, 0, 0], sizes = [2, 4, 1, 16, 4], strides = [1, 1, 1, 1, 1]} : vector<2x4x2x16x4xf32> to vector<2x4x1x16x4xf32>
    %116 = vector.shape_cast %115 : vector<2x4x1x16x4xf32> to vector<2x4x16x4xf32>
    %117 = vector.extract_strided_slice %112 {offsets = [0, 0, 0, 0, 0], sizes = [2, 4, 1, 16, 4], strides = [1, 1, 1, 1, 1]} : vector<2x4x2x16x4xf32> to vector<2x4x1x16x4xf32>
    %118 = vector.shape_cast %117 : vector<2x4x1x16x4xf32> to vector<2x4x16x4xf32>
    %cst_15 = arith.constant 0.000000e+00 : f32
    %119 = vector.broadcast %cst_15 : f32 to vector<2x4x16x4xf32>
    %120 = vector.extract_strided_slice %114 {offsets = [0, 0, 0, 0], sizes = [2, 4, 16, 1], strides = [1, 1, 1, 1]} : vector<2x4x16x4xf32> to vector<2x4x16x1xf32>
    %121 = vector.extract_strided_slice %104 {offsets = [0, 0], sizes = [1, 4], strides = [1, 1]} : vector<12x4xf32> to vector<1x4xf32>
    %122 = vector.shape_cast %121 : vector<1x4xf32> to vector<1x1x1x4xf32>
    %123 = vector.broadcast %120 : vector<2x4x16x1xf32> to vector<2x4x16x4xf32>
    %124 = vector.broadcast %122 : vector<1x1x1x4xf32> to vector<2x4x16x4xf32>
    %125 = arith.mulf %123, %124 : vector<2x4x16x4xf32>
    %126 = arith.addf %119, %125 : vector<2x4x16x4xf32>
    %127 = vector.extract_strided_slice %114 {offsets = [0, 0, 0, 1], sizes = [2, 4, 16, 1], strides = [1, 1, 1, 1]} : vector<2x4x16x4xf32> to vector<2x4x16x1xf32>
    %128 = vector.extract_strided_slice %104 {offsets = [1, 0], sizes = [1, 4], strides = [1, 1]} : vector<12x4xf32> to vector<1x4xf32>
    %129 = vector.shape_cast %128 : vector<1x4xf32> to vector<1x1x1x4xf32>
    %130 = vector.broadcast %127 : vector<2x4x16x1xf32> to vector<2x4x16x4xf32>
    %131 = vector.broadcast %129 : vector<1x1x1x4xf32> to vector<2x4x16x4xf32>
    %132 = arith.mulf %130, %131 : vector<2x4x16x4xf32>
    %133 = arith.addf %126, %132 : vector<2x4x16x4xf32>
    %134 = vector.extract_strided_slice %114 {offsets = [0, 0, 0, 2], sizes = [2, 4, 16, 1], strides = [1, 1, 1, 1]} : vector<2x4x16x4xf32> to vector<2x4x16x1xf32>
    %135 = vector.extract_strided_slice %104 {offsets = [2, 0], sizes = [1, 4], strides = [1, 1]} : vector<12x4xf32> to vector<1x4xf32>
    %136 = vector.shape_cast %135 : vector<1x4xf32> to vector<1x1x1x4xf32>
    %137 = vector.broadcast %134 : vector<2x4x16x1xf32> to vector<2x4x16x4xf32>
    %138 = vector.broadcast %136 : vector<1x1x1x4xf32> to vector<2x4x16x4xf32>
    %139 = arith.mulf %137, %138 : vector<2x4x16x4xf32>
    %140 = arith.addf %133, %139 : vector<2x4x16x4xf32>
    %141 = vector.extract_strided_slice %114 {offsets = [0, 0, 0, 3], sizes = [2, 4, 16, 1], strides = [1, 1, 1, 1]} : vector<2x4x16x4xf32> to vector<2x4x16x1xf32>
    %142 = vector.extract_strided_slice %104 {offsets = [3, 0], sizes = [1, 4], strides = [1, 1]} : vector<12x4xf32> to vector<1x4xf32>
    %143 = vector.shape_cast %142 : vector<1x4xf32> to vector<1x1x1x4xf32>
    %144 = vector.broadcast %141 : vector<2x4x16x1xf32> to vector<2x4x16x4xf32>
    %145 = vector.broadcast %143 : vector<1x1x1x4xf32> to vector<2x4x16x4xf32>
    %146 = arith.mulf %144, %145 : vector<2x4x16x4xf32>
    %147 = arith.addf %140, %146 : vector<2x4x16x4xf32>
    %148 = vector.extract_strided_slice %116 {offsets = [0, 0, 0, 0], sizes = [2, 4, 16, 1], strides = [1, 1, 1, 1]} : vector<2x4x16x4xf32> to vector<2x4x16x1xf32>
    %149 = vector.extract_strided_slice %104 {offsets = [4, 0], sizes = [1, 4], strides = [1, 1]} : vector<12x4xf32> to vector<1x4xf32>
    %150 = vector.shape_cast %149 : vector<1x4xf32> to vector<1x1x1x4xf32>
    %151 = vector.broadcast %148 : vector<2x4x16x1xf32> to vector<2x4x16x4xf32>
    %152 = vector.broadcast %150 : vector<1x1x1x4xf32> to vector<2x4x16x4xf32>
    %153 = arith.mulf %151, %152 : vector<2x4x16x4xf32>
    %154 = arith.addf %147, %153 : vector<2x4x16x4xf32>
    %155 = vector.extract_strided_slice %116 {offsets = [0, 0, 0, 1], sizes = [2, 4, 16, 1], strides = [1, 1, 1, 1]} : vector<2x4x16x4xf32> to vector<2x4x16x1xf32>
    %156 = vector.extract_strided_slice %104 {offsets = [5, 0], sizes = [1, 4], strides = [1, 1]} : vector<12x4xf32> to vector<1x4xf32>
    %157 = vector.shape_cast %156 : vector<1x4xf32> to vector<1x1x1x4xf32>
    %158 = vector.broadcast %155 : vector<2x4x16x1xf32> to vector<2x4x16x4xf32>
    %159 = vector.broadcast %157 : vector<1x1x1x4xf32> to vector<2x4x16x4xf32>
    %160 = arith.mulf %158, %159 : vector<2x4x16x4xf32>
    %161 = arith.addf %154, %160 : vector<2x4x16x4xf32>
    %162 = vector.extract_strided_slice %116 {offsets = [0, 0, 0, 2], sizes = [2, 4, 16, 1], strides = [1, 1, 1, 1]} : vector<2x4x16x4xf32> to vector<2x4x16x1xf32>
    %163 = vector.extract_strided_slice %104 {offsets = [6, 0], sizes = [1, 4], strides = [1, 1]} : vector<12x4xf32> to vector<1x4xf32>
    %164 = vector.shape_cast %163 : vector<1x4xf32> to vector<1x1x1x4xf32>
    %165 = vector.broadcast %162 : vector<2x4x16x1xf32> to vector<2x4x16x4xf32>
    %166 = vector.broadcast %164 : vector<1x1x1x4xf32> to vector<2x4x16x4xf32>
    %167 = arith.mulf %165, %166 : vector<2x4x16x4xf32>
    %168 = arith.addf %161, %167 : vector<2x4x16x4xf32>
    %169 = vector.extract_strided_slice %116 {offsets = [0, 0, 0, 3], sizes = [2, 4, 16, 1], strides = [1, 1, 1, 1]} : vector<2x4x16x4xf32> to vector<2x4x16x1xf32>
    %170 = vector.extract_strided_slice %104 {offsets = [7, 0], sizes = [1, 4], strides = [1, 1]} : vector<12x4xf32> to vector<1x4xf32>
    %171 = vector.shape_cast %170 : vector<1x4xf32> to vector<1x1x1x4xf32>
    %172 = vector.broadcast %169 : vector<2x4x16x1xf32> to vector<2x4x16x4xf32>
    %173 = vector.broadcast %171 : vector<1x1x1x4xf32> to vector<2x4x16x4xf32>
    %174 = arith.mulf %172, %173 : vector<2x4x16x4xf32>
    %175 = arith.addf %168, %174 : vector<2x4x16x4xf32>
    %176 = vector.extract_strided_slice %118 {offsets = [0, 0, 0, 0], sizes = [2, 4, 16, 1], strides = [1, 1, 1, 1]} : vector<2x4x16x4xf32> to vector<2x4x16x1xf32>
    %177 = vector.extract_strided_slice %104 {offsets = [8, 0], sizes = [1, 4], strides = [1, 1]} : vector<12x4xf32> to vector<1x4xf32>
    %178 = vector.shape_cast %177 : vector<1x4xf32> to vector<1x1x1x4xf32>
    %179 = vector.broadcast %176 : vector<2x4x16x1xf32> to vector<2x4x16x4xf32>
    %180 = vector.broadcast %178 : vector<1x1x1x4xf32> to vector<2x4x16x4xf32>
    %181 = arith.mulf %179, %180 : vector<2x4x16x4xf32>
    %182 = arith.addf %175, %181 : vector<2x4x16x4xf32>
    %183 = vector.extract_strided_slice %118 {offsets = [0, 0, 0, 1], sizes = [2, 4, 16, 1], strides = [1, 1, 1, 1]} : vector<2x4x16x4xf32> to vector<2x4x16x1xf32>
    %184 = vector.extract_strided_slice %104 {offsets = [9, 0], sizes = [1, 4], strides = [1, 1]} : vector<12x4xf32> to vector<1x4xf32>
    %185 = vector.shape_cast %184 : vector<1x4xf32> to vector<1x1x1x4xf32>
    %186 = vector.broadcast %183 : vector<2x4x16x1xf32> to vector<2x4x16x4xf32>
    %187 = vector.broadcast %185 : vector<1x1x1x4xf32> to vector<2x4x16x4xf32>
    %188 = arith.mulf %186, %187 : vector<2x4x16x4xf32>
    %189 = arith.addf %182, %188 : vector<2x4x16x4xf32>
    %190 = vector.extract_strided_slice %118 {offsets = [0, 0, 0, 2], sizes = [2, 4, 16, 1], strides = [1, 1, 1, 1]} : vector<2x4x16x4xf32> to vector<2x4x16x1xf32>
    %191 = vector.extract_strided_slice %104 {offsets = [10, 0], sizes = [1, 4], strides = [1, 1]} : vector<12x4xf32> to vector<1x4xf32>
    %192 = vector.shape_cast %191 : vector<1x4xf32> to vector<1x1x1x4xf32>
    %193 = vector.broadcast %190 : vector<2x4x16x1xf32> to vector<2x4x16x4xf32>
    %194 = vector.broadcast %192 : vector<1x1x1x4xf32> to vector<2x4x16x4xf32>
    %195 = arith.mulf %193, %194 : vector<2x4x16x4xf32>
    %196 = arith.addf %189, %195 : vector<2x4x16x4xf32>
    %197 = vector.extract_strided_slice %118 {offsets = [0, 0, 0, 3], sizes = [2, 4, 16, 1], strides = [1, 1, 1, 1]} : vector<2x4x16x4xf32> to vector<2x4x16x1xf32>
    %198 = vector.extract_strided_slice %104 {offsets = [11, 0], sizes = [1, 4], strides = [1, 1]} : vector<12x4xf32> to vector<1x4xf32>
    %199 = vector.shape_cast %198 : vector<1x4xf32> to vector<1x1x1x4xf32>
    %200 = vector.broadcast %197 : vector<2x4x16x1xf32> to vector<2x4x16x4xf32>
    %201 = vector.broadcast %199 : vector<1x1x1x4xf32> to vector<2x4x16x4xf32>
    %202 = arith.mulf %200, %201 : vector<2x4x16x4xf32>
    %203 = arith.addf %196, %202 : vector<2x4x16x4xf32>
    %204 = vector.shape_cast %105 : vector<1x4xf32> to vector<1x1x1x4xf32>
    %205 = vector.broadcast %204 : vector<1x1x1x4xf32> to vector<2x4x16x4xf32>
    %206 = arith.addf %203, %205 : vector<2x4x16x4xf32>
    %c0_16 = arith.constant 0 : index
    %c0_17 = arith.constant 0 : index
    %207 = vector.load %arg6[%c0_16, %c0_17] : memref<4x8xf32, #tpu.memory_space<vmem>>, vector<4x8xf32>
    %c0_18 = arith.constant 0 : index
    %c0_19 = arith.constant 0 : index
    %208 = vector.load %arg7[%c0_18, %c0_19] : memref<1x8xf32, #tpu.memory_space<vmem>>, vector<1x8xf32>
    %cst_20 = arith.constant 0.000000e+00 : f32
    %209 = vector.broadcast %cst_20 : f32 to vector<2x4x16x8xf32>
    %210 = vector.extract_strided_slice %206 {offsets = [0, 0, 0, 0], sizes = [2, 4, 16, 1], strides = [1, 1, 1, 1]} : vector<2x4x16x4xf32> to vector<2x4x16x1xf32>
    %211 = vector.extract_strided_slice %207 {offsets = [0, 0], sizes = [1, 8], strides = [1, 1]} : vector<4x8xf32> to vector<1x8xf32>
    %212 = vector.shape_cast %211 : vector<1x8xf32> to vector<1x1x1x8xf32>
    %213 = vector.broadcast %210 : vector<2x4x16x1xf32> to vector<2x4x16x8xf32>
    %214 = vector.broadcast %212 : vector<1x1x1x8xf32> to vector<2x4x16x8xf32>
    %215 = arith.mulf %213, %214 : vector<2x4x16x8xf32>
    %216 = arith.addf %209, %215 : vector<2x4x16x8xf32>
    %217 = vector.extract_strided_slice %206 {offsets = [0, 0, 0, 1], sizes = [2, 4, 16, 1], strides = [1, 1, 1, 1]} : vector<2x4x16x4xf32> to vector<2x4x16x1xf32>
    %218 = vector.extract_strided_slice %207 {offsets = [1, 0], sizes = [1, 8], strides = [1, 1]} : vector<4x8xf32> to vector<1x8xf32>
    %219 = vector.shape_cast %218 : vector<1x8xf32> to vector<1x1x1x8xf32>
    %220 = vector.broadcast %217 : vector<2x4x16x1xf32> to vector<2x4x16x8xf32>
    %221 = vector.broadcast %219 : vector<1x1x1x8xf32> to vector<2x4x16x8xf32>
    %222 = arith.mulf %220, %221 : vector<2x4x16x8xf32>
    %223 = arith.addf %216, %222 : vector<2x4x16x8xf32>
    %224 = vector.extract_strided_slice %206 {offsets = [0, 0, 0, 2], sizes = [2, 4, 16, 1], strides = [1, 1, 1, 1]} : vector<2x4x16x4xf32> to vector<2x4x16x1xf32>
    %225 = vector.extract_strided_slice %207 {offsets = [2, 0], sizes = [1, 8], strides = [1, 1]} : vector<4x8xf32> to vector<1x8xf32>
    %226 = vector.shape_cast %225 : vector<1x8xf32> to vector<1x1x1x8xf32>
    %227 = vector.broadcast %224 : vector<2x4x16x1xf32> to vector<2x4x16x8xf32>
    %228 = vector.broadcast %226 : vector<1x1x1x8xf32> to vector<2x4x16x8xf32>
    %229 = arith.mulf %227, %228 : vector<2x4x16x8xf32>
    %230 = arith.addf %223, %229 : vector<2x4x16x8xf32>
    %231 = vector.extract_strided_slice %206 {offsets = [0, 0, 0, 3], sizes = [2, 4, 16, 1], strides = [1, 1, 1, 1]} : vector<2x4x16x4xf32> to vector<2x4x16x1xf32>
    %232 = vector.extract_strided_slice %207 {offsets = [3, 0], sizes = [1, 8], strides = [1, 1]} : vector<4x8xf32> to vector<1x8xf32>
    %233 = vector.shape_cast %232 : vector<1x8xf32> to vector<1x1x1x8xf32>
    %234 = vector.broadcast %231 : vector<2x4x16x1xf32> to vector<2x4x16x8xf32>
    %235 = vector.broadcast %233 : vector<1x1x1x8xf32> to vector<2x4x16x8xf32>
    %236 = arith.mulf %234, %235 : vector<2x4x16x8xf32>
    %237 = arith.addf %230, %236 : vector<2x4x16x8xf32>
    %238 = vector.shape_cast %208 : vector<1x8xf32> to vector<1x1x1x8xf32>
    %239 = vector.broadcast %238 : vector<1x1x1x8xf32> to vector<2x4x16x8xf32>
    %240 = arith.addf %237, %239 : vector<2x4x16x8xf32>
    %c0_21 = arith.constant 0 : index
    %c0_22 = arith.constant 0 : index
    %241 = vector.load %arg8[%c0_21, %c0_22] : memref<4x8xf32, #tpu.memory_space<vmem>>, vector<4x8xf32>
    %c0_23 = arith.constant 0 : index
    %c0_24 = arith.constant 0 : index
    %242 = vector.load %arg9[%c0_23, %c0_24] : memref<1x8xf32, #tpu.memory_space<vmem>>, vector<1x8xf32>
    %cst_25 = arith.constant 0.000000e+00 : f32
    %243 = vector.broadcast %cst_25 : f32 to vector<2x4x16x8xf32>
    %244 = vector.extract_strided_slice %206 {offsets = [0, 0, 0, 0], sizes = [2, 4, 16, 1], strides = [1, 1, 1, 1]} : vector<2x4x16x4xf32> to vector<2x4x16x1xf32>
    %245 = vector.extract_strided_slice %241 {offsets = [0, 0], sizes = [1, 8], strides = [1, 1]} : vector<4x8xf32> to vector<1x8xf32>
    %246 = vector.shape_cast %245 : vector<1x8xf32> to vector<1x1x1x8xf32>
    %247 = vector.broadcast %244 : vector<2x4x16x1xf32> to vector<2x4x16x8xf32>
    %248 = vector.broadcast %246 : vector<1x1x1x8xf32> to vector<2x4x16x8xf32>
    %249 = arith.mulf %247, %248 : vector<2x4x16x8xf32>
    %250 = arith.addf %243, %249 : vector<2x4x16x8xf32>
    %251 = vector.extract_strided_slice %206 {offsets = [0, 0, 0, 1], sizes = [2, 4, 16, 1], strides = [1, 1, 1, 1]} : vector<2x4x16x4xf32> to vector<2x4x16x1xf32>
    %252 = vector.extract_strided_slice %241 {offsets = [1, 0], sizes = [1, 8], strides = [1, 1]} : vector<4x8xf32> to vector<1x8xf32>
    %253 = vector.shape_cast %252 : vector<1x8xf32> to vector<1x1x1x8xf32>
    %254 = vector.broadcast %251 : vector<2x4x16x1xf32> to vector<2x4x16x8xf32>
    %255 = vector.broadcast %253 : vector<1x1x1x8xf32> to vector<2x4x16x8xf32>
    %256 = arith.mulf %254, %255 : vector<2x4x16x8xf32>
    %257 = arith.addf %250, %256 : vector<2x4x16x8xf32>
    %258 = vector.extract_strided_slice %206 {offsets = [0, 0, 0, 2], sizes = [2, 4, 16, 1], strides = [1, 1, 1, 1]} : vector<2x4x16x4xf32> to vector<2x4x16x1xf32>
    %259 = vector.extract_strided_slice %241 {offsets = [2, 0], sizes = [1, 8], strides = [1, 1]} : vector<4x8xf32> to vector<1x8xf32>
    %260 = vector.shape_cast %259 : vector<1x8xf32> to vector<1x1x1x8xf32>
    %261 = vector.broadcast %258 : vector<2x4x16x1xf32> to vector<2x4x16x8xf32>
    %262 = vector.broadcast %260 : vector<1x1x1x8xf32> to vector<2x4x16x8xf32>
    %263 = arith.mulf %261, %262 : vector<2x4x16x8xf32>
    %264 = arith.addf %257, %263 : vector<2x4x16x8xf32>
    %265 = vector.extract_strided_slice %206 {offsets = [0, 0, 0, 3], sizes = [2, 4, 16, 1], strides = [1, 1, 1, 1]} : vector<2x4x16x4xf32> to vector<2x4x16x1xf32>
    %266 = vector.extract_strided_slice %241 {offsets = [3, 0], sizes = [1, 8], strides = [1, 1]} : vector<4x8xf32> to vector<1x8xf32>
    %267 = vector.shape_cast %266 : vector<1x8xf32> to vector<1x1x1x8xf32>
    %268 = vector.broadcast %265 : vector<2x4x16x1xf32> to vector<2x4x16x8xf32>
    %269 = vector.broadcast %267 : vector<1x1x1x8xf32> to vector<2x4x16x8xf32>
    %270 = arith.mulf %268, %269 : vector<2x4x16x8xf32>
    %271 = arith.addf %264, %270 : vector<2x4x16x8xf32>
    %272 = vector.shape_cast %242 : vector<1x8xf32> to vector<1x1x1x8xf32>
    %273 = vector.broadcast %272 : vector<1x1x1x8xf32> to vector<2x4x16x8xf32>
    %274 = arith.addf %271, %273 : vector<2x4x16x8xf32>
    %c0_26 = arith.constant 0 : index
    %c0_27 = arith.constant 0 : index
    %275 = vector.load %arg10[%c0_26, %c0_27] : memref<4x8xf32, #tpu.memory_space<vmem>>, vector<4x8xf32>
    %c0_28 = arith.constant 0 : index
    %c0_29 = arith.constant 0 : index
    %276 = vector.load %arg11[%c0_28, %c0_29] : memref<1x8xf32, #tpu.memory_space<vmem>>, vector<1x8xf32>
    %cst_30 = arith.constant 0.000000e+00 : f32
    %277 = vector.broadcast %cst_30 : f32 to vector<2x4x16x8xf32>
    %278 = vector.extract_strided_slice %206 {offsets = [0, 0, 0, 0], sizes = [2, 4, 16, 1], strides = [1, 1, 1, 1]} : vector<2x4x16x4xf32> to vector<2x4x16x1xf32>
    %279 = vector.extract_strided_slice %275 {offsets = [0, 0], sizes = [1, 8], strides = [1, 1]} : vector<4x8xf32> to vector<1x8xf32>
    %280 = vector.shape_cast %279 : vector<1x8xf32> to vector<1x1x1x8xf32>
    %281 = vector.broadcast %278 : vector<2x4x16x1xf32> to vector<2x4x16x8xf32>
    %282 = vector.broadcast %280 : vector<1x1x1x8xf32> to vector<2x4x16x8xf32>
    %283 = arith.mulf %281, %282 : vector<2x4x16x8xf32>
    %284 = arith.addf %277, %283 : vector<2x4x16x8xf32>
    %285 = vector.extract_strided_slice %206 {offsets = [0, 0, 0, 1], sizes = [2, 4, 16, 1], strides = [1, 1, 1, 1]} : vector<2x4x16x4xf32> to vector<2x4x16x1xf32>
    %286 = vector.extract_strided_slice %275 {offsets = [1, 0], sizes = [1, 8], strides = [1, 1]} : vector<4x8xf32> to vector<1x8xf32>
    %287 = vector.shape_cast %286 : vector<1x8xf32> to vector<1x1x1x8xf32>
    %288 = vector.broadcast %285 : vector<2x4x16x1xf32> to vector<2x4x16x8xf32>
    %289 = vector.broadcast %287 : vector<1x1x1x8xf32> to vector<2x4x16x8xf32>
    %290 = arith.mulf %288, %289 : vector<2x4x16x8xf32>
    %291 = arith.addf %284, %290 : vector<2x4x16x8xf32>
    %292 = vector.extract_strided_slice %206 {offsets = [0, 0, 0, 2], sizes = [2, 4, 16, 1], strides = [1, 1, 1, 1]} : vector<2x4x16x4xf32> to vector<2x4x16x1xf32>
    %293 = vector.extract_strided_slice %275 {offsets = [2, 0], sizes = [1, 8], strides = [1, 1]} : vector<4x8xf32> to vector<1x8xf32>
    %294 = vector.shape_cast %293 : vector<1x8xf32> to vector<1x1x1x8xf32>
    %295 = vector.broadcast %292 : vector<2x4x16x1xf32> to vector<2x4x16x8xf32>
    %296 = vector.broadcast %294 : vector<1x1x1x8xf32> to vector<2x4x16x8xf32>
    %297 = arith.mulf %295, %296 : vector<2x4x16x8xf32>
    %298 = arith.addf %291, %297 : vector<2x4x16x8xf32>
    %299 = vector.extract_strided_slice %206 {offsets = [0, 0, 0, 3], sizes = [2, 4, 16, 1], strides = [1, 1, 1, 1]} : vector<2x4x16x4xf32> to vector<2x4x16x1xf32>
    %300 = vector.extract_strided_slice %275 {offsets = [3, 0], sizes = [1, 8], strides = [1, 1]} : vector<4x8xf32> to vector<1x8xf32>
    %301 = vector.shape_cast %300 : vector<1x8xf32> to vector<1x1x1x8xf32>
    %302 = vector.broadcast %299 : vector<2x4x16x1xf32> to vector<2x4x16x8xf32>
    %303 = vector.broadcast %301 : vector<1x1x1x8xf32> to vector<2x4x16x8xf32>
    %304 = arith.mulf %302, %303 : vector<2x4x16x8xf32>
    %305 = arith.addf %298, %304 : vector<2x4x16x8xf32>
    %306 = vector.shape_cast %276 : vector<1x8xf32> to vector<1x1x1x8xf32>
    %307 = vector.broadcast %306 : vector<1x1x1x8xf32> to vector<2x4x16x8xf32>
    %308 = arith.addf %305, %307 : vector<2x4x16x8xf32>
    %cst_31 = arith.constant 0.000000e+00 : f32
    %309 = vector.broadcast %cst_31 : f32 to vector<2x4x16x8xf32>
    %310 = vector.extract_strided_slice %240 {offsets = [0, 0, 0, 0], sizes = [2, 4, 1, 8], strides = [1, 1, 1, 1]} : vector<2x4x16x8xf32> to vector<2x4x1x8xf32>
    %311 = vector.broadcast %310 : vector<2x4x1x8xf32> to vector<2x4x16x8xf32>
    %312 = arith.mulf %311, %274 : vector<2x4x16x8xf32>
    %cst_32 = arith.constant dense<0.000000e+00> : vector<2x16x8xf32>
    %313 = vector.multi_reduction <add>, %312, %cst_32 [1] : vector<2x4x16x8xf32> to vector<2x16x8xf32>
    %cst_33 = arith.constant dense<0xFF800000> : vector<2x8xf32>
    %314 = vector.multi_reduction <maximumf>, %313, %cst_33 [1] : vector<2x16x8xf32> to vector<2x8xf32>
    %315 = vector.shape_cast %314 : vector<2x8xf32> to vector<2x1x8xf32>
    %316 = vector.broadcast %315 : vector<2x1x8xf32> to vector<2x16x8xf32>
    %317 = arith.subf %313, %316 : vector<2x16x8xf32>
    %318 = math.exp %317 : vector<2x16x8xf32>
    %cst_34 = arith.constant dense<0.000000e+00> : vector<2x8xf32>
    %319 = vector.multi_reduction <add>, %318, %cst_34 [1] : vector<2x16x8xf32> to vector<2x8xf32>
    %320 = vector.shape_cast %319 : vector<2x8xf32> to vector<2x1x8xf32>
    %321 = vector.broadcast %320 : vector<2x1x8xf32> to vector<2x16x8xf32>
    %322 = arith.divf %318, %321 : vector<2x16x8xf32>
    %323 = vector.extract_strided_slice %308 {offsets = [0, 0, 0, 0], sizes = [2, 4, 1, 8], strides = [1, 1, 1, 1]} : vector<2x4x16x8xf32> to vector<2x4x1x8xf32>
    %324 = vector.shape_cast %322 : vector<2x16x8xf32> to vector<2x1x16x8xf32>
    %325 = vector.broadcast %323 : vector<2x4x1x8xf32> to vector<2x4x16x8xf32>
    %326 = vector.broadcast %324 : vector<2x1x16x8xf32> to vector<2x4x16x8xf32>
    %327 = arith.mulf %325, %326 : vector<2x4x16x8xf32>
    %328 = arith.addf %309, %327 : vector<2x4x16x8xf32>
    %329 = vector.extract_strided_slice %240 {offsets = [0, 0, 1, 0], sizes = [2, 4, 1, 8], strides = [1, 1, 1, 1]} : vector<2x4x16x8xf32> to vector<2x4x1x8xf32>
    %330 = vector.broadcast %329 : vector<2x4x1x8xf32> to vector<2x4x16x8xf32>
    %331 = arith.mulf %330, %274 : vector<2x4x16x8xf32>
    %cst_35 = arith.constant dense<0.000000e+00> : vector<2x16x8xf32>
    %332 = vector.multi_reduction <add>, %331, %cst_35 [1] : vector<2x4x16x8xf32> to vector<2x16x8xf32>
    %cst_36 = arith.constant dense<0xFF800000> : vector<2x8xf32>
    %333 = vector.multi_reduction <maximumf>, %332, %cst_36 [1] : vector<2x16x8xf32> to vector<2x8xf32>
    %334 = vector.shape_cast %333 : vector<2x8xf32> to vector<2x1x8xf32>
    %335 = vector.broadcast %334 : vector<2x1x8xf32> to vector<2x16x8xf32>
    %336 = arith.subf %332, %335 : vector<2x16x8xf32>
    %337 = math.exp %336 : vector<2x16x8xf32>
    %cst_37 = arith.constant dense<0.000000e+00> : vector<2x8xf32>
    %338 = vector.multi_reduction <add>, %337, %cst_37 [1] : vector<2x16x8xf32> to vector<2x8xf32>
    %339 = vector.shape_cast %338 : vector<2x8xf32> to vector<2x1x8xf32>
    %340 = vector.broadcast %339 : vector<2x1x8xf32> to vector<2x16x8xf32>
    %341 = arith.divf %337, %340 : vector<2x16x8xf32>
    %342 = vector.extract_strided_slice %308 {offsets = [0, 0, 1, 0], sizes = [2, 4, 1, 8], strides = [1, 1, 1, 1]} : vector<2x4x16x8xf32> to vector<2x4x1x8xf32>
    %343 = vector.shape_cast %341 : vector<2x16x8xf32> to vector<2x1x16x8xf32>
    %344 = vector.broadcast %342 : vector<2x4x1x8xf32> to vector<2x4x16x8xf32>
    %345 = vector.broadcast %343 : vector<2x1x16x8xf32> to vector<2x4x16x8xf32>
    %346 = arith.mulf %344, %345 : vector<2x4x16x8xf32>
    %347 = arith.addf %328, %346 : vector<2x4x16x8xf32>
    %348 = vector.extract_strided_slice %240 {offsets = [0, 0, 2, 0], sizes = [2, 4, 1, 8], strides = [1, 1, 1, 1]} : vector<2x4x16x8xf32> to vector<2x4x1x8xf32>
    %349 = vector.broadcast %348 : vector<2x4x1x8xf32> to vector<2x4x16x8xf32>
    %350 = arith.mulf %349, %274 : vector<2x4x16x8xf32>
    %cst_38 = arith.constant dense<0.000000e+00> : vector<2x16x8xf32>
    %351 = vector.multi_reduction <add>, %350, %cst_38 [1] : vector<2x4x16x8xf32> to vector<2x16x8xf32>
    %cst_39 = arith.constant dense<0xFF800000> : vector<2x8xf32>
    %352 = vector.multi_reduction <maximumf>, %351, %cst_39 [1] : vector<2x16x8xf32> to vector<2x8xf32>
    %353 = vector.shape_cast %352 : vector<2x8xf32> to vector<2x1x8xf32>
    %354 = vector.broadcast %353 : vector<2x1x8xf32> to vector<2x16x8xf32>
    %355 = arith.subf %351, %354 : vector<2x16x8xf32>
    %356 = math.exp %355 : vector<2x16x8xf32>
    %cst_40 = arith.constant dense<0.000000e+00> : vector<2x8xf32>
    %357 = vector.multi_reduction <add>, %356, %cst_40 [1] : vector<2x16x8xf32> to vector<2x8xf32>
    %358 = vector.shape_cast %357 : vector<2x8xf32> to vector<2x1x8xf32>
    %359 = vector.broadcast %358 : vector<2x1x8xf32> to vector<2x16x8xf32>
    %360 = arith.divf %356, %359 : vector<2x16x8xf32>
    %361 = vector.extract_strided_slice %308 {offsets = [0, 0, 2, 0], sizes = [2, 4, 1, 8], strides = [1, 1, 1, 1]} : vector<2x4x16x8xf32> to vector<2x4x1x8xf32>
    %362 = vector.shape_cast %360 : vector<2x16x8xf32> to vector<2x1x16x8xf32>
    %363 = vector.broadcast %361 : vector<2x4x1x8xf32> to vector<2x4x16x8xf32>
    %364 = vector.broadcast %362 : vector<2x1x16x8xf32> to vector<2x4x16x8xf32>
    %365 = arith.mulf %363, %364 : vector<2x4x16x8xf32>
    %366 = arith.addf %347, %365 : vector<2x4x16x8xf32>
    %367 = vector.extract_strided_slice %240 {offsets = [0, 0, 3, 0], sizes = [2, 4, 1, 8], strides = [1, 1, 1, 1]} : vector<2x4x16x8xf32> to vector<2x4x1x8xf32>
    %368 = vector.broadcast %367 : vector<2x4x1x8xf32> to vector<2x4x16x8xf32>
    %369 = arith.mulf %368, %274 : vector<2x4x16x8xf32>
    %cst_41 = arith.constant dense<0.000000e+00> : vector<2x16x8xf32>
    %370 = vector.multi_reduction <add>, %369, %cst_41 [1] : vector<2x4x16x8xf32> to vector<2x16x8xf32>
    %cst_42 = arith.constant dense<0xFF800000> : vector<2x8xf32>
    %371 = vector.multi_reduction <maximumf>, %370, %cst_42 [1] : vector<2x16x8xf32> to vector<2x8xf32>
    %372 = vector.shape_cast %371 : vector<2x8xf32> to vector<2x1x8xf32>
    %373 = vector.broadcast %372 : vector<2x1x8xf32> to vector<2x16x8xf32>
    %374 = arith.subf %370, %373 : vector<2x16x8xf32>
    %375 = math.exp %374 : vector<2x16x8xf32>
    %cst_43 = arith.constant dense<0.000000e+00> : vector<2x8xf32>
    %376 = vector.multi_reduction <add>, %375, %cst_43 [1] : vector<2x16x8xf32> to vector<2x8xf32>
    %377 = vector.shape_cast %376 : vector<2x8xf32> to vector<2x1x8xf32>
    %378 = vector.broadcast %377 : vector<2x1x8xf32> to vector<2x16x8xf32>
    %379 = arith.divf %375, %378 : vector<2x16x8xf32>
    %380 = vector.extract_strided_slice %308 {offsets = [0, 0, 3, 0], sizes = [2, 4, 1, 8], strides = [1, 1, 1, 1]} : vector<2x4x16x8xf32> to vector<2x4x1x8xf32>
    %381 = vector.shape_cast %379 : vector<2x16x8xf32> to vector<2x1x16x8xf32>
    %382 = vector.broadcast %380 : vector<2x4x1x8xf32> to vector<2x4x16x8xf32>
    %383 = vector.broadcast %381 : vector<2x1x16x8xf32> to vector<2x4x16x8xf32>
    %384 = arith.mulf %382, %383 : vector<2x4x16x8xf32>
    %385 = arith.addf %366, %384 : vector<2x4x16x8xf32>
    %386 = vector.extract_strided_slice %240 {offsets = [0, 0, 4, 0], sizes = [2, 4, 1, 8], strides = [1, 1, 1, 1]} : vector<2x4x16x8xf32> to vector<2x4x1x8xf32>
    %387 = vector.broadcast %386 : vector<2x4x1x8xf32> to vector<2x4x16x8xf32>
    %388 = arith.mulf %387, %274 : vector<2x4x16x8xf32>
    %cst_44 = arith.constant dense<0.000000e+00> : vector<2x16x8xf32>
    %389 = vector.multi_reduction <add>, %388, %cst_44 [1] : vector<2x4x16x8xf32> to vector<2x16x8xf32>
    %cst_45 = arith.constant dense<0xFF800000> : vector<2x8xf32>
    %390 = vector.multi_reduction <maximumf>, %389, %cst_45 [1] : vector<2x16x8xf32> to vector<2x8xf32>
    %391 = vector.shape_cast %390 : vector<2x8xf32> to vector<2x1x8xf32>
    %392 = vector.broadcast %391 : vector<2x1x8xf32> to vector<2x16x8xf32>
    %393 = arith.subf %389, %392 : vector<2x16x8xf32>
    %394 = math.exp %393 : vector<2x16x8xf32>
    %cst_46 = arith.constant dense<0.000000e+00> : vector<2x8xf32>
    %395 = vector.multi_reduction <add>, %394, %cst_46 [1] : vector<2x16x8xf32> to vector<2x8xf32>
    %396 = vector.shape_cast %395 : vector<2x8xf32> to vector<2x1x8xf32>
    %397 = vector.broadcast %396 : vector<2x1x8xf32> to vector<2x16x8xf32>
    %398 = arith.divf %394, %397 : vector<2x16x8xf32>
    %399 = vector.extract_strided_slice %308 {offsets = [0, 0, 4, 0], sizes = [2, 4, 1, 8], strides = [1, 1, 1, 1]} : vector<2x4x16x8xf32> to vector<2x4x1x8xf32>
    %400 = vector.shape_cast %398 : vector<2x16x8xf32> to vector<2x1x16x8xf32>
    %401 = vector.broadcast %399 : vector<2x4x1x8xf32> to vector<2x4x16x8xf32>
    %402 = vector.broadcast %400 : vector<2x1x16x8xf32> to vector<2x4x16x8xf32>
    %403 = arith.mulf %401, %402 : vector<2x4x16x8xf32>
    %404 = arith.addf %385, %403 : vector<2x4x16x8xf32>
    %405 = vector.extract_strided_slice %240 {offsets = [0, 0, 5, 0], sizes = [2, 4, 1, 8], strides = [1, 1, 1, 1]} : vector<2x4x16x8xf32> to vector<2x4x1x8xf32>
    %406 = vector.broadcast %405 : vector<2x4x1x8xf32> to vector<2x4x16x8xf32>
    %407 = arith.mulf %406, %274 : vector<2x4x16x8xf32>
    %cst_47 = arith.constant dense<0.000000e+00> : vector<2x16x8xf32>
    %408 = vector.multi_reduction <add>, %407, %cst_47 [1] : vector<2x4x16x8xf32> to vector<2x16x8xf32>
    %cst_48 = arith.constant dense<0xFF800000> : vector<2x8xf32>
    %409 = vector.multi_reduction <maximumf>, %408, %cst_48 [1] : vector<2x16x8xf32> to vector<2x8xf32>
    %410 = vector.shape_cast %409 : vector<2x8xf32> to vector<2x1x8xf32>
    %411 = vector.broadcast %410 : vector<2x1x8xf32> to vector<2x16x8xf32>
    %412 = arith.subf %408, %411 : vector<2x16x8xf32>
    %413 = math.exp %412 : vector<2x16x8xf32>
    %cst_49 = arith.constant dense<0.000000e+00> : vector<2x8xf32>
    %414 = vector.multi_reduction <add>, %413, %cst_49 [1] : vector<2x16x8xf32> to vector<2x8xf32>
    %415 = vector.shape_cast %414 : vector<2x8xf32> to vector<2x1x8xf32>
    %416 = vector.broadcast %415 : vector<2x1x8xf32> to vector<2x16x8xf32>
    %417 = arith.divf %413, %416 : vector<2x16x8xf32>
    %418 = vector.extract_strided_slice %308 {offsets = [0, 0, 5, 0], sizes = [2, 4, 1, 8], strides = [1, 1, 1, 1]} : vector<2x4x16x8xf32> to vector<2x4x1x8xf32>
    %419 = vector.shape_cast %417 : vector<2x16x8xf32> to vector<2x1x16x8xf32>
    %420 = vector.broadcast %418 : vector<2x4x1x8xf32> to vector<2x4x16x8xf32>
    %421 = vector.broadcast %419 : vector<2x1x16x8xf32> to vector<2x4x16x8xf32>
    %422 = arith.mulf %420, %421 : vector<2x4x16x8xf32>
    %423 = arith.addf %404, %422 : vector<2x4x16x8xf32>
    %424 = vector.extract_strided_slice %240 {offsets = [0, 0, 6, 0], sizes = [2, 4, 1, 8], strides = [1, 1, 1, 1]} : vector<2x4x16x8xf32> to vector<2x4x1x8xf32>
    %425 = vector.broadcast %424 : vector<2x4x1x8xf32> to vector<2x4x16x8xf32>
    %426 = arith.mulf %425, %274 : vector<2x4x16x8xf32>
    %cst_50 = arith.constant dense<0.000000e+00> : vector<2x16x8xf32>
    %427 = vector.multi_reduction <add>, %426, %cst_50 [1] : vector<2x4x16x8xf32> to vector<2x16x8xf32>
    %cst_51 = arith.constant dense<0xFF800000> : vector<2x8xf32>
    %428 = vector.multi_reduction <maximumf>, %427, %cst_51 [1] : vector<2x16x8xf32> to vector<2x8xf32>
    %429 = vector.shape_cast %428 : vector<2x8xf32> to vector<2x1x8xf32>
    %430 = vector.broadcast %429 : vector<2x1x8xf32> to vector<2x16x8xf32>
    %431 = arith.subf %427, %430 : vector<2x16x8xf32>
    %432 = math.exp %431 : vector<2x16x8xf32>
    %cst_52 = arith.constant dense<0.000000e+00> : vector<2x8xf32>
    %433 = vector.multi_reduction <add>, %432, %cst_52 [1] : vector<2x16x8xf32> to vector<2x8xf32>
    %434 = vector.shape_cast %433 : vector<2x8xf32> to vector<2x1x8xf32>
    %435 = vector.broadcast %434 : vector<2x1x8xf32> to vector<2x16x8xf32>
    %436 = arith.divf %432, %435 : vector<2x16x8xf32>
    %437 = vector.extract_strided_slice %308 {offsets = [0, 0, 6, 0], sizes = [2, 4, 1, 8], strides = [1, 1, 1, 1]} : vector<2x4x16x8xf32> to vector<2x4x1x8xf32>
    %438 = vector.shape_cast %436 : vector<2x16x8xf32> to vector<2x1x16x8xf32>
    %439 = vector.broadcast %437 : vector<2x4x1x8xf32> to vector<2x4x16x8xf32>
    %440 = vector.broadcast %438 : vector<2x1x16x8xf32> to vector<2x4x16x8xf32>
    %441 = arith.mulf %439, %440 : vector<2x4x16x8xf32>
    %442 = arith.addf %423, %441 : vector<2x4x16x8xf32>
    %443 = vector.extract_strided_slice %240 {offsets = [0, 0, 7, 0], sizes = [2, 4, 1, 8], strides = [1, 1, 1, 1]} : vector<2x4x16x8xf32> to vector<2x4x1x8xf32>
    %444 = vector.broadcast %443 : vector<2x4x1x8xf32> to vector<2x4x16x8xf32>
    %445 = arith.mulf %444, %274 : vector<2x4x16x8xf32>
    %cst_53 = arith.constant dense<0.000000e+00> : vector<2x16x8xf32>
    %446 = vector.multi_reduction <add>, %445, %cst_53 [1] : vector<2x4x16x8xf32> to vector<2x16x8xf32>
    %cst_54 = arith.constant dense<0xFF800000> : vector<2x8xf32>
    %447 = vector.multi_reduction <maximumf>, %446, %cst_54 [1] : vector<2x16x8xf32> to vector<2x8xf32>
    %448 = vector.shape_cast %447 : vector<2x8xf32> to vector<2x1x8xf32>
    %449 = vector.broadcast %448 : vector<2x1x8xf32> to vector<2x16x8xf32>
    %450 = arith.subf %446, %449 : vector<2x16x8xf32>
    %451 = math.exp %450 : vector<2x16x8xf32>
    %cst_55 = arith.constant dense<0.000000e+00> : vector<2x8xf32>
    %452 = vector.multi_reduction <add>, %451, %cst_55 [1] : vector<2x16x8xf32> to vector<2x8xf32>
    %453 = vector.shape_cast %452 : vector<2x8xf32> to vector<2x1x8xf32>
    %454 = vector.broadcast %453 : vector<2x1x8xf32> to vector<2x16x8xf32>
    %455 = arith.divf %451, %454 : vector<2x16x8xf32>
    %456 = vector.extract_strided_slice %308 {offsets = [0, 0, 7, 0], sizes = [2, 4, 1, 8], strides = [1, 1, 1, 1]} : vector<2x4x16x8xf32> to vector<2x4x1x8xf32>
    %457 = vector.shape_cast %455 : vector<2x16x8xf32> to vector<2x1x16x8xf32>
    %458 = vector.broadcast %456 : vector<2x4x1x8xf32> to vector<2x4x16x8xf32>
    %459 = vector.broadcast %457 : vector<2x1x16x8xf32> to vector<2x4x16x8xf32>
    %460 = arith.mulf %458, %459 : vector<2x4x16x8xf32>
    %461 = arith.addf %442, %460 : vector<2x4x16x8xf32>
    %462 = vector.extract_strided_slice %240 {offsets = [0, 0, 8, 0], sizes = [2, 4, 1, 8], strides = [1, 1, 1, 1]} : vector<2x4x16x8xf32> to vector<2x4x1x8xf32>
    %463 = vector.broadcast %462 : vector<2x4x1x8xf32> to vector<2x4x16x8xf32>
    %464 = arith.mulf %463, %274 : vector<2x4x16x8xf32>
    %cst_56 = arith.constant dense<0.000000e+00> : vector<2x16x8xf32>
    %465 = vector.multi_reduction <add>, %464, %cst_56 [1] : vector<2x4x16x8xf32> to vector<2x16x8xf32>
    %cst_57 = arith.constant dense<0xFF800000> : vector<2x8xf32>
    %466 = vector.multi_reduction <maximumf>, %465, %cst_57 [1] : vector<2x16x8xf32> to vector<2x8xf32>
    %467 = vector.shape_cast %466 : vector<2x8xf32> to vector<2x1x8xf32>
    %468 = vector.broadcast %467 : vector<2x1x8xf32> to vector<2x16x8xf32>
    %469 = arith.subf %465, %468 : vector<2x16x8xf32>
    %470 = math.exp %469 : vector<2x16x8xf32>
    %cst_58 = arith.constant dense<0.000000e+00> : vector<2x8xf32>
    %471 = vector.multi_reduction <add>, %470, %cst_58 [1] : vector<2x16x8xf32> to vector<2x8xf32>
    %472 = vector.shape_cast %471 : vector<2x8xf32> to vector<2x1x8xf32>
    %473 = vector.broadcast %472 : vector<2x1x8xf32> to vector<2x16x8xf32>
    %474 = arith.divf %470, %473 : vector<2x16x8xf32>
    %475 = vector.extract_strided_slice %308 {offsets = [0, 0, 8, 0], sizes = [2, 4, 1, 8], strides = [1, 1, 1, 1]} : vector<2x4x16x8xf32> to vector<2x4x1x8xf32>
    %476 = vector.shape_cast %474 : vector<2x16x8xf32> to vector<2x1x16x8xf32>
    %477 = vector.broadcast %475 : vector<2x4x1x8xf32> to vector<2x4x16x8xf32>
    %478 = vector.broadcast %476 : vector<2x1x16x8xf32> to vector<2x4x16x8xf32>
    %479 = arith.mulf %477, %478 : vector<2x4x16x8xf32>
    %480 = arith.addf %461, %479 : vector<2x4x16x8xf32>
    %481 = vector.extract_strided_slice %240 {offsets = [0, 0, 9, 0], sizes = [2, 4, 1, 8], strides = [1, 1, 1, 1]} : vector<2x4x16x8xf32> to vector<2x4x1x8xf32>
    %482 = vector.broadcast %481 : vector<2x4x1x8xf32> to vector<2x4x16x8xf32>
    %483 = arith.mulf %482, %274 : vector<2x4x16x8xf32>
    %cst_59 = arith.constant dense<0.000000e+00> : vector<2x16x8xf32>
    %484 = vector.multi_reduction <add>, %483, %cst_59 [1] : vector<2x4x16x8xf32> to vector<2x16x8xf32>
    %cst_60 = arith.constant dense<0xFF800000> : vector<2x8xf32>
    %485 = vector.multi_reduction <maximumf>, %484, %cst_60 [1] : vector<2x16x8xf32> to vector<2x8xf32>
    %486 = vector.shape_cast %485 : vector<2x8xf32> to vector<2x1x8xf32>
    %487 = vector.broadcast %486 : vector<2x1x8xf32> to vector<2x16x8xf32>
    %488 = arith.subf %484, %487 : vector<2x16x8xf32>
    %489 = math.exp %488 : vector<2x16x8xf32>
    %cst_61 = arith.constant dense<0.000000e+00> : vector<2x8xf32>
    %490 = vector.multi_reduction <add>, %489, %cst_61 [1] : vector<2x16x8xf32> to vector<2x8xf32>
    %491 = vector.shape_cast %490 : vector<2x8xf32> to vector<2x1x8xf32>
    %492 = vector.broadcast %491 : vector<2x1x8xf32> to vector<2x16x8xf32>
    %493 = arith.divf %489, %492 : vector<2x16x8xf32>
    %494 = vector.extract_strided_slice %308 {offsets = [0, 0, 9, 0], sizes = [2, 4, 1, 8], strides = [1, 1, 1, 1]} : vector<2x4x16x8xf32> to vector<2x4x1x8xf32>
    %495 = vector.shape_cast %493 : vector<2x16x8xf32> to vector<2x1x16x8xf32>
    %496 = vector.broadcast %494 : vector<2x4x1x8xf32> to vector<2x4x16x8xf32>
    %497 = vector.broadcast %495 : vector<2x1x16x8xf32> to vector<2x4x16x8xf32>
    %498 = arith.mulf %496, %497 : vector<2x4x16x8xf32>
    %499 = arith.addf %480, %498 : vector<2x4x16x8xf32>
    %500 = vector.extract_strided_slice %240 {offsets = [0, 0, 10, 0], sizes = [2, 4, 1, 8], strides = [1, 1, 1, 1]} : vector<2x4x16x8xf32> to vector<2x4x1x8xf32>
    %501 = vector.broadcast %500 : vector<2x4x1x8xf32> to vector<2x4x16x8xf32>
    %502 = arith.mulf %501, %274 : vector<2x4x16x8xf32>
    %cst_62 = arith.constant dense<0.000000e+00> : vector<2x16x8xf32>
    %503 = vector.multi_reduction <add>, %502, %cst_62 [1] : vector<2x4x16x8xf32> to vector<2x16x8xf32>
    %cst_63 = arith.constant dense<0xFF800000> : vector<2x8xf32>
    %504 = vector.multi_reduction <maximumf>, %503, %cst_63 [1] : vector<2x16x8xf32> to vector<2x8xf32>
    %505 = vector.shape_cast %504 : vector<2x8xf32> to vector<2x1x8xf32>
    %506 = vector.broadcast %505 : vector<2x1x8xf32> to vector<2x16x8xf32>
    %507 = arith.subf %503, %506 : vector<2x16x8xf32>
    %508 = math.exp %507 : vector<2x16x8xf32>
    %cst_64 = arith.constant dense<0.000000e+00> : vector<2x8xf32>
    %509 = vector.multi_reduction <add>, %508, %cst_64 [1] : vector<2x16x8xf32> to vector<2x8xf32>
    %510 = vector.shape_cast %509 : vector<2x8xf32> to vector<2x1x8xf32>
    %511 = vector.broadcast %510 : vector<2x1x8xf32> to vector<2x16x8xf32>
    %512 = arith.divf %508, %511 : vector<2x16x8xf32>
    %513 = vector.extract_strided_slice %308 {offsets = [0, 0, 10, 0], sizes = [2, 4, 1, 8], strides = [1, 1, 1, 1]} : vector<2x4x16x8xf32> to vector<2x4x1x8xf32>
    %514 = vector.shape_cast %512 : vector<2x16x8xf32> to vector<2x1x16x8xf32>
    %515 = vector.broadcast %513 : vector<2x4x1x8xf32> to vector<2x4x16x8xf32>
    %516 = vector.broadcast %514 : vector<2x1x16x8xf32> to vector<2x4x16x8xf32>
    %517 = arith.mulf %515, %516 : vector<2x4x16x8xf32>
    %518 = arith.addf %499, %517 : vector<2x4x16x8xf32>
    %519 = vector.extract_strided_slice %240 {offsets = [0, 0, 11, 0], sizes = [2, 4, 1, 8], strides = [1, 1, 1, 1]} : vector<2x4x16x8xf32> to vector<2x4x1x8xf32>
    %520 = vector.broadcast %519 : vector<2x4x1x8xf32> to vector<2x4x16x8xf32>
    %521 = arith.mulf %520, %274 : vector<2x4x16x8xf32>
    %cst_65 = arith.constant dense<0.000000e+00> : vector<2x16x8xf32>
    %522 = vector.multi_reduction <add>, %521, %cst_65 [1] : vector<2x4x16x8xf32> to vector<2x16x8xf32>
    %cst_66 = arith.constant dense<0xFF800000> : vector<2x8xf32>
    %523 = vector.multi_reduction <maximumf>, %522, %cst_66 [1] : vector<2x16x8xf32> to vector<2x8xf32>
    %524 = vector.shape_cast %523 : vector<2x8xf32> to vector<2x1x8xf32>
    %525 = vector.broadcast %524 : vector<2x1x8xf32> to vector<2x16x8xf32>
    %526 = arith.subf %522, %525 : vector<2x16x8xf32>
    %527 = math.exp %526 : vector<2x16x8xf32>
    %cst_67 = arith.constant dense<0.000000e+00> : vector<2x8xf32>
    %528 = vector.multi_reduction <add>, %527, %cst_67 [1] : vector<2x16x8xf32> to vector<2x8xf32>
    %529 = vector.shape_cast %528 : vector<2x8xf32> to vector<2x1x8xf32>
    %530 = vector.broadcast %529 : vector<2x1x8xf32> to vector<2x16x8xf32>
    %531 = arith.divf %527, %530 : vector<2x16x8xf32>
    %532 = vector.extract_strided_slice %308 {offsets = [0, 0, 11, 0], sizes = [2, 4, 1, 8], strides = [1, 1, 1, 1]} : vector<2x4x16x8xf32> to vector<2x4x1x8xf32>
    %533 = vector.shape_cast %531 : vector<2x16x8xf32> to vector<2x1x16x8xf32>
    %534 = vector.broadcast %532 : vector<2x4x1x8xf32> to vector<2x4x16x8xf32>
    %535 = vector.broadcast %533 : vector<2x1x16x8xf32> to vector<2x4x16x8xf32>
    %536 = arith.mulf %534, %535 : vector<2x4x16x8xf32>
    %537 = arith.addf %518, %536 : vector<2x4x16x8xf32>
    %538 = vector.extract_strided_slice %240 {offsets = [0, 0, 12, 0], sizes = [2, 4, 1, 8], strides = [1, 1, 1, 1]} : vector<2x4x16x8xf32> to vector<2x4x1x8xf32>
    %539 = vector.broadcast %538 : vector<2x4x1x8xf32> to vector<2x4x16x8xf32>
    %540 = arith.mulf %539, %274 : vector<2x4x16x8xf32>
    %cst_68 = arith.constant dense<0.000000e+00> : vector<2x16x8xf32>
    %541 = vector.multi_reduction <add>, %540, %cst_68 [1] : vector<2x4x16x8xf32> to vector<2x16x8xf32>
    %cst_69 = arith.constant dense<0xFF800000> : vector<2x8xf32>
    %542 = vector.multi_reduction <maximumf>, %541, %cst_69 [1] : vector<2x16x8xf32> to vector<2x8xf32>
    %543 = vector.shape_cast %542 : vector<2x8xf32> to vector<2x1x8xf32>
    %544 = vector.broadcast %543 : vector<2x1x8xf32> to vector<2x16x8xf32>
    %545 = arith.subf %541, %544 : vector<2x16x8xf32>
    %546 = math.exp %545 : vector<2x16x8xf32>
    %cst_70 = arith.constant dense<0.000000e+00> : vector<2x8xf32>
    %547 = vector.multi_reduction <add>, %546, %cst_70 [1] : vector<2x16x8xf32> to vector<2x8xf32>
    %548 = vector.shape_cast %547 : vector<2x8xf32> to vector<2x1x8xf32>
    %549 = vector.broadcast %548 : vector<2x1x8xf32> to vector<2x16x8xf32>
    %550 = arith.divf %546, %549 : vector<2x16x8xf32>
    %551 = vector.extract_strided_slice %308 {offsets = [0, 0, 12, 0], sizes = [2, 4, 1, 8], strides = [1, 1, 1, 1]} : vector<2x4x16x8xf32> to vector<2x4x1x8xf32>
    %552 = vector.shape_cast %550 : vector<2x16x8xf32> to vector<2x1x16x8xf32>
    %553 = vector.broadcast %551 : vector<2x4x1x8xf32> to vector<2x4x16x8xf32>
    %554 = vector.broadcast %552 : vector<2x1x16x8xf32> to vector<2x4x16x8xf32>
    %555 = arith.mulf %553, %554 : vector<2x4x16x8xf32>
    %556 = arith.addf %537, %555 : vector<2x4x16x8xf32>
    %557 = vector.extract_strided_slice %240 {offsets = [0, 0, 13, 0], sizes = [2, 4, 1, 8], strides = [1, 1, 1, 1]} : vector<2x4x16x8xf32> to vector<2x4x1x8xf32>
    %558 = vector.broadcast %557 : vector<2x4x1x8xf32> to vector<2x4x16x8xf32>
    %559 = arith.mulf %558, %274 : vector<2x4x16x8xf32>
    %cst_71 = arith.constant dense<0.000000e+00> : vector<2x16x8xf32>
    %560 = vector.multi_reduction <add>, %559, %cst_71 [1] : vector<2x4x16x8xf32> to vector<2x16x8xf32>
    %cst_72 = arith.constant dense<0xFF800000> : vector<2x8xf32>
    %561 = vector.multi_reduction <maximumf>, %560, %cst_72 [1] : vector<2x16x8xf32> to vector<2x8xf32>
    %562 = vector.shape_cast %561 : vector<2x8xf32> to vector<2x1x8xf32>
    %563 = vector.broadcast %562 : vector<2x1x8xf32> to vector<2x16x8xf32>
    %564 = arith.subf %560, %563 : vector<2x16x8xf32>
    %565 = math.exp %564 : vector<2x16x8xf32>
    %cst_73 = arith.constant dense<0.000000e+00> : vector<2x8xf32>
    %566 = vector.multi_reduction <add>, %565, %cst_73 [1] : vector<2x16x8xf32> to vector<2x8xf32>
    %567 = vector.shape_cast %566 : vector<2x8xf32> to vector<2x1x8xf32>
    %568 = vector.broadcast %567 : vector<2x1x8xf32> to vector<2x16x8xf32>
    %569 = arith.divf %565, %568 : vector<2x16x8xf32>
    %570 = vector.extract_strided_slice %308 {offsets = [0, 0, 13, 0], sizes = [2, 4, 1, 8], strides = [1, 1, 1, 1]} : vector<2x4x16x8xf32> to vector<2x4x1x8xf32>
    %571 = vector.shape_cast %569 : vector<2x16x8xf32> to vector<2x1x16x8xf32>
    %572 = vector.broadcast %570 : vector<2x4x1x8xf32> to vector<2x4x16x8xf32>
    %573 = vector.broadcast %571 : vector<2x1x16x8xf32> to vector<2x4x16x8xf32>
    %574 = arith.mulf %572, %573 : vector<2x4x16x8xf32>
    %575 = arith.addf %556, %574 : vector<2x4x16x8xf32>
    %576 = vector.extract_strided_slice %240 {offsets = [0, 0, 14, 0], sizes = [2, 4, 1, 8], strides = [1, 1, 1, 1]} : vector<2x4x16x8xf32> to vector<2x4x1x8xf32>
    %577 = vector.broadcast %576 : vector<2x4x1x8xf32> to vector<2x4x16x8xf32>
    %578 = arith.mulf %577, %274 : vector<2x4x16x8xf32>
    %cst_74 = arith.constant dense<0.000000e+00> : vector<2x16x8xf32>
    %579 = vector.multi_reduction <add>, %578, %cst_74 [1] : vector<2x4x16x8xf32> to vector<2x16x8xf32>
    %cst_75 = arith.constant dense<0xFF800000> : vector<2x8xf32>
    %580 = vector.multi_reduction <maximumf>, %579, %cst_75 [1] : vector<2x16x8xf32> to vector<2x8xf32>
    %581 = vector.shape_cast %580 : vector<2x8xf32> to vector<2x1x8xf32>
    %582 = vector.broadcast %581 : vector<2x1x8xf32> to vector<2x16x8xf32>
    %583 = arith.subf %579, %582 : vector<2x16x8xf32>
    %584 = math.exp %583 : vector<2x16x8xf32>
    %cst_76 = arith.constant dense<0.000000e+00> : vector<2x8xf32>
    %585 = vector.multi_reduction <add>, %584, %cst_76 [1] : vector<2x16x8xf32> to vector<2x8xf32>
    %586 = vector.shape_cast %585 : vector<2x8xf32> to vector<2x1x8xf32>
    %587 = vector.broadcast %586 : vector<2x1x8xf32> to vector<2x16x8xf32>
    %588 = arith.divf %584, %587 : vector<2x16x8xf32>
    %589 = vector.extract_strided_slice %308 {offsets = [0, 0, 14, 0], sizes = [2, 4, 1, 8], strides = [1, 1, 1, 1]} : vector<2x4x16x8xf32> to vector<2x4x1x8xf32>
    %590 = vector.shape_cast %588 : vector<2x16x8xf32> to vector<2x1x16x8xf32>
    %591 = vector.broadcast %589 : vector<2x4x1x8xf32> to vector<2x4x16x8xf32>
    %592 = vector.broadcast %590 : vector<2x1x16x8xf32> to vector<2x4x16x8xf32>
    %593 = arith.mulf %591, %592 : vector<2x4x16x8xf32>
    %594 = arith.addf %575, %593 : vector<2x4x16x8xf32>
    %595 = vector.extract_strided_slice %240 {offsets = [0, 0, 15, 0], sizes = [2, 4, 1, 8], strides = [1, 1, 1, 1]} : vector<2x4x16x8xf32> to vector<2x4x1x8xf32>
    %596 = vector.broadcast %595 : vector<2x4x1x8xf32> to vector<2x4x16x8xf32>
    %597 = arith.mulf %596, %274 : vector<2x4x16x8xf32>
    %cst_77 = arith.constant dense<0.000000e+00> : vector<2x16x8xf32>
    %598 = vector.multi_reduction <add>, %597, %cst_77 [1] : vector<2x4x16x8xf32> to vector<2x16x8xf32>
    %cst_78 = arith.constant dense<0xFF800000> : vector<2x8xf32>
    %599 = vector.multi_reduction <maximumf>, %598, %cst_78 [1] : vector<2x16x8xf32> to vector<2x8xf32>
    %600 = vector.shape_cast %599 : vector<2x8xf32> to vector<2x1x8xf32>
    %601 = vector.broadcast %600 : vector<2x1x8xf32> to vector<2x16x8xf32>
    %602 = arith.subf %598, %601 : vector<2x16x8xf32>
    %603 = math.exp %602 : vector<2x16x8xf32>
    %cst_79 = arith.constant dense<0.000000e+00> : vector<2x8xf32>
    %604 = vector.multi_reduction <add>, %603, %cst_79 [1] : vector<2x16x8xf32> to vector<2x8xf32>
    %605 = vector.shape_cast %604 : vector<2x8xf32> to vector<2x1x8xf32>
    %606 = vector.broadcast %605 : vector<2x1x8xf32> to vector<2x16x8xf32>
    %607 = arith.divf %603, %606 : vector<2x16x8xf32>
    %608 = vector.extract_strided_slice %308 {offsets = [0, 0, 15, 0], sizes = [2, 4, 1, 8], strides = [1, 1, 1, 1]} : vector<2x4x16x8xf32> to vector<2x4x1x8xf32>
    %609 = vector.shape_cast %607 : vector<2x16x8xf32> to vector<2x1x16x8xf32>
    %610 = vector.broadcast %608 : vector<2x4x1x8xf32> to vector<2x4x16x8xf32>
    %611 = vector.broadcast %609 : vector<2x1x16x8xf32> to vector<2x4x16x8xf32>
    %612 = arith.mulf %610, %611 : vector<2x4x16x8xf32>
    %613 = arith.addf %594, %612 : vector<2x4x16x8xf32>
    %c0_80 = arith.constant 0 : index
    %c0_81 = arith.constant 0 : index
    %614 = vector.load %arg12[%c0_80, %c0_81] : memref<8x8xf32, #tpu.memory_space<vmem>>, vector<8x8xf32>
    %c0_82 = arith.constant 0 : index
    %c0_83 = arith.constant 0 : index
    %615 = vector.load %arg13[%c0_82, %c0_83] : memref<8x8xf32, #tpu.memory_space<vmem>>, vector<8x8xf32>
    %c0_84 = arith.constant 0 : index
    %c0_85 = arith.constant 0 : index
    %616 = vector.load %arg14[%c0_84, %c0_85] : memref<1x8xf32, #tpu.memory_space<vmem>>, vector<1x8xf32>
    %c0_86 = arith.constant 0 : index
    %c0_87 = arith.constant 0 : index
    %617 = vector.load %arg15[%c0_86, %c0_87] : memref<1x8xf32, #tpu.memory_space<vmem>>, vector<1x8xf32>
    %cst_88 = arith.constant 0.000000e+00 : f32
    %618 = vector.broadcast %cst_88 : f32 to vector<2x4x16x8xf32>
    %619 = vector.extract_strided_slice %613 {offsets = [0, 0, 0, 0], sizes = [2, 4, 16, 1], strides = [1, 1, 1, 1]} : vector<2x4x16x8xf32> to vector<2x4x16x1xf32>
    %620 = vector.extract_strided_slice %614 {offsets = [0, 0], sizes = [1, 8], strides = [1, 1]} : vector<8x8xf32> to vector<1x8xf32>
    %621 = vector.shape_cast %620 : vector<1x8xf32> to vector<1x1x1x8xf32>
    %622 = vector.broadcast %619 : vector<2x4x16x1xf32> to vector<2x4x16x8xf32>
    %623 = vector.broadcast %621 : vector<1x1x1x8xf32> to vector<2x4x16x8xf32>
    %624 = arith.mulf %622, %623 : vector<2x4x16x8xf32>
    %625 = arith.addf %618, %624 : vector<2x4x16x8xf32>
    %626 = vector.extract_strided_slice %613 {offsets = [0, 0, 0, 1], sizes = [2, 4, 16, 1], strides = [1, 1, 1, 1]} : vector<2x4x16x8xf32> to vector<2x4x16x1xf32>
    %627 = vector.extract_strided_slice %614 {offsets = [1, 0], sizes = [1, 8], strides = [1, 1]} : vector<8x8xf32> to vector<1x8xf32>
    %628 = vector.shape_cast %627 : vector<1x8xf32> to vector<1x1x1x8xf32>
    %629 = vector.broadcast %626 : vector<2x4x16x1xf32> to vector<2x4x16x8xf32>
    %630 = vector.broadcast %628 : vector<1x1x1x8xf32> to vector<2x4x16x8xf32>
    %631 = arith.mulf %629, %630 : vector<2x4x16x8xf32>
    %632 = arith.addf %625, %631 : vector<2x4x16x8xf32>
    %633 = vector.extract_strided_slice %613 {offsets = [0, 0, 0, 2], sizes = [2, 4, 16, 1], strides = [1, 1, 1, 1]} : vector<2x4x16x8xf32> to vector<2x4x16x1xf32>
    %634 = vector.extract_strided_slice %614 {offsets = [2, 0], sizes = [1, 8], strides = [1, 1]} : vector<8x8xf32> to vector<1x8xf32>
    %635 = vector.shape_cast %634 : vector<1x8xf32> to vector<1x1x1x8xf32>
    %636 = vector.broadcast %633 : vector<2x4x16x1xf32> to vector<2x4x16x8xf32>
    %637 = vector.broadcast %635 : vector<1x1x1x8xf32> to vector<2x4x16x8xf32>
    %638 = arith.mulf %636, %637 : vector<2x4x16x8xf32>
    %639 = arith.addf %632, %638 : vector<2x4x16x8xf32>
    %640 = vector.extract_strided_slice %613 {offsets = [0, 0, 0, 3], sizes = [2, 4, 16, 1], strides = [1, 1, 1, 1]} : vector<2x4x16x8xf32> to vector<2x4x16x1xf32>
    %641 = vector.extract_strided_slice %614 {offsets = [3, 0], sizes = [1, 8], strides = [1, 1]} : vector<8x8xf32> to vector<1x8xf32>
    %642 = vector.shape_cast %641 : vector<1x8xf32> to vector<1x1x1x8xf32>
    %643 = vector.broadcast %640 : vector<2x4x16x1xf32> to vector<2x4x16x8xf32>
    %644 = vector.broadcast %642 : vector<1x1x1x8xf32> to vector<2x4x16x8xf32>
    %645 = arith.mulf %643, %644 : vector<2x4x16x8xf32>
    %646 = arith.addf %639, %645 : vector<2x4x16x8xf32>
    %647 = vector.extract_strided_slice %613 {offsets = [0, 0, 0, 4], sizes = [2, 4, 16, 1], strides = [1, 1, 1, 1]} : vector<2x4x16x8xf32> to vector<2x4x16x1xf32>
    %648 = vector.extract_strided_slice %614 {offsets = [4, 0], sizes = [1, 8], strides = [1, 1]} : vector<8x8xf32> to vector<1x8xf32>
    %649 = vector.shape_cast %648 : vector<1x8xf32> to vector<1x1x1x8xf32>
    %650 = vector.broadcast %647 : vector<2x4x16x1xf32> to vector<2x4x16x8xf32>
    %651 = vector.broadcast %649 : vector<1x1x1x8xf32> to vector<2x4x16x8xf32>
    %652 = arith.mulf %650, %651 : vector<2x4x16x8xf32>
    %653 = arith.addf %646, %652 : vector<2x4x16x8xf32>
    %654 = vector.extract_strided_slice %613 {offsets = [0, 0, 0, 5], sizes = [2, 4, 16, 1], strides = [1, 1, 1, 1]} : vector<2x4x16x8xf32> to vector<2x4x16x1xf32>
    %655 = vector.extract_strided_slice %614 {offsets = [5, 0], sizes = [1, 8], strides = [1, 1]} : vector<8x8xf32> to vector<1x8xf32>
    %656 = vector.shape_cast %655 : vector<1x8xf32> to vector<1x1x1x8xf32>
    %657 = vector.broadcast %654 : vector<2x4x16x1xf32> to vector<2x4x16x8xf32>
    %658 = vector.broadcast %656 : vector<1x1x1x8xf32> to vector<2x4x16x8xf32>
    %659 = arith.mulf %657, %658 : vector<2x4x16x8xf32>
    %660 = arith.addf %653, %659 : vector<2x4x16x8xf32>
    %661 = vector.extract_strided_slice %613 {offsets = [0, 0, 0, 6], sizes = [2, 4, 16, 1], strides = [1, 1, 1, 1]} : vector<2x4x16x8xf32> to vector<2x4x16x1xf32>
    %662 = vector.extract_strided_slice %614 {offsets = [6, 0], sizes = [1, 8], strides = [1, 1]} : vector<8x8xf32> to vector<1x8xf32>
    %663 = vector.shape_cast %662 : vector<1x8xf32> to vector<1x1x1x8xf32>
    %664 = vector.broadcast %661 : vector<2x4x16x1xf32> to vector<2x4x16x8xf32>
    %665 = vector.broadcast %663 : vector<1x1x1x8xf32> to vector<2x4x16x8xf32>
    %666 = arith.mulf %664, %665 : vector<2x4x16x8xf32>
    %667 = arith.addf %660, %666 : vector<2x4x16x8xf32>
    %668 = vector.extract_strided_slice %613 {offsets = [0, 0, 0, 7], sizes = [2, 4, 16, 1], strides = [1, 1, 1, 1]} : vector<2x4x16x8xf32> to vector<2x4x16x1xf32>
    %669 = vector.extract_strided_slice %614 {offsets = [7, 0], sizes = [1, 8], strides = [1, 1]} : vector<8x8xf32> to vector<1x8xf32>
    %670 = vector.shape_cast %669 : vector<1x8xf32> to vector<1x1x1x8xf32>
    %671 = vector.broadcast %668 : vector<2x4x16x1xf32> to vector<2x4x16x8xf32>
    %672 = vector.broadcast %670 : vector<1x1x1x8xf32> to vector<2x4x16x8xf32>
    %673 = arith.mulf %671, %672 : vector<2x4x16x8xf32>
    %674 = arith.addf %667, %673 : vector<2x4x16x8xf32>
    %675 = vector.shape_cast %616 : vector<1x8xf32> to vector<1x1x1x8xf32>
    %676 = vector.broadcast %675 : vector<1x1x1x8xf32> to vector<2x4x16x8xf32>
    %677 = arith.addf %674, %676 : vector<2x4x16x8xf32>
    %cst_89 = arith.constant 0.000000e+00 : f32
    %678 = vector.broadcast %cst_89 : f32 to vector<2x4x16x8xf32>
    %679 = arith.cmpf oge, %677, %678 : vector<2x4x16x8xf32>
    %680 = vector.shape_cast %617 : vector<1x8xf32> to vector<1x1x1x8xf32>
    %681 = vector.broadcast %680 : vector<1x1x1x8xf32> to vector<2x4x16x8xf32>
    %682 = arith.mulf %681, %677 : vector<2x4x16x8xf32>
    %683 = arith.select %679, %677, %682 : vector<2x4x16x8xi1>, vector<2x4x16x8xf32>
    %cst_90 = arith.constant 0.000000e+00 : f32
    %684 = vector.broadcast %cst_90 : f32 to vector<2x4x16x8xf32>
    %685 = vector.extract_strided_slice %613 {offsets = [0, 0, 0, 0], sizes = [2, 4, 16, 1], strides = [1, 1, 1, 1]} : vector<2x4x16x8xf32> to vector<2x4x16x1xf32>
    %686 = vector.extract_strided_slice %615 {offsets = [0, 0], sizes = [1, 8], strides = [1, 1]} : vector<8x8xf32> to vector<1x8xf32>
    %687 = vector.shape_cast %686 : vector<1x8xf32> to vector<1x1x1x8xf32>
    %688 = vector.broadcast %685 : vector<2x4x16x1xf32> to vector<2x4x16x8xf32>
    %689 = vector.broadcast %687 : vector<1x1x1x8xf32> to vector<2x4x16x8xf32>
    %690 = arith.mulf %688, %689 : vector<2x4x16x8xf32>
    %691 = arith.addf %684, %690 : vector<2x4x16x8xf32>
    %692 = vector.extract_strided_slice %613 {offsets = [0, 0, 0, 1], sizes = [2, 4, 16, 1], strides = [1, 1, 1, 1]} : vector<2x4x16x8xf32> to vector<2x4x16x1xf32>
    %693 = vector.extract_strided_slice %615 {offsets = [1, 0], sizes = [1, 8], strides = [1, 1]} : vector<8x8xf32> to vector<1x8xf32>
    %694 = vector.shape_cast %693 : vector<1x8xf32> to vector<1x1x1x8xf32>
    %695 = vector.broadcast %692 : vector<2x4x16x1xf32> to vector<2x4x16x8xf32>
    %696 = vector.broadcast %694 : vector<1x1x1x8xf32> to vector<2x4x16x8xf32>
    %697 = arith.mulf %695, %696 : vector<2x4x16x8xf32>
    %698 = arith.addf %691, %697 : vector<2x4x16x8xf32>
    %699 = vector.extract_strided_slice %613 {offsets = [0, 0, 0, 2], sizes = [2, 4, 16, 1], strides = [1, 1, 1, 1]} : vector<2x4x16x8xf32> to vector<2x4x16x1xf32>
    %700 = vector.extract_strided_slice %615 {offsets = [2, 0], sizes = [1, 8], strides = [1, 1]} : vector<8x8xf32> to vector<1x8xf32>
    %701 = vector.shape_cast %700 : vector<1x8xf32> to vector<1x1x1x8xf32>
    %702 = vector.broadcast %699 : vector<2x4x16x1xf32> to vector<2x4x16x8xf32>
    %703 = vector.broadcast %701 : vector<1x1x1x8xf32> to vector<2x4x16x8xf32>
    %704 = arith.mulf %702, %703 : vector<2x4x16x8xf32>
    %705 = arith.addf %698, %704 : vector<2x4x16x8xf32>
    %706 = vector.extract_strided_slice %613 {offsets = [0, 0, 0, 3], sizes = [2, 4, 16, 1], strides = [1, 1, 1, 1]} : vector<2x4x16x8xf32> to vector<2x4x16x1xf32>
    %707 = vector.extract_strided_slice %615 {offsets = [3, 0], sizes = [1, 8], strides = [1, 1]} : vector<8x8xf32> to vector<1x8xf32>
    %708 = vector.shape_cast %707 : vector<1x8xf32> to vector<1x1x1x8xf32>
    %709 = vector.broadcast %706 : vector<2x4x16x1xf32> to vector<2x4x16x8xf32>
    %710 = vector.broadcast %708 : vector<1x1x1x8xf32> to vector<2x4x16x8xf32>
    %711 = arith.mulf %709, %710 : vector<2x4x16x8xf32>
    %712 = arith.addf %705, %711 : vector<2x4x16x8xf32>
    %713 = vector.extract_strided_slice %613 {offsets = [0, 0, 0, 4], sizes = [2, 4, 16, 1], strides = [1, 1, 1, 1]} : vector<2x4x16x8xf32> to vector<2x4x16x1xf32>
    %714 = vector.extract_strided_slice %615 {offsets = [4, 0], sizes = [1, 8], strides = [1, 1]} : vector<8x8xf32> to vector<1x8xf32>
    %715 = vector.shape_cast %714 : vector<1x8xf32> to vector<1x1x1x8xf32>
    %716 = vector.broadcast %713 : vector<2x4x16x1xf32> to vector<2x4x16x8xf32>
    %717 = vector.broadcast %715 : vector<1x1x1x8xf32> to vector<2x4x16x8xf32>
    %718 = arith.mulf %716, %717 : vector<2x4x16x8xf32>
    %719 = arith.addf %712, %718 : vector<2x4x16x8xf32>
    %720 = vector.extract_strided_slice %613 {offsets = [0, 0, 0, 5], sizes = [2, 4, 16, 1], strides = [1, 1, 1, 1]} : vector<2x4x16x8xf32> to vector<2x4x16x1xf32>
    %721 = vector.extract_strided_slice %615 {offsets = [5, 0], sizes = [1, 8], strides = [1, 1]} : vector<8x8xf32> to vector<1x8xf32>
    %722 = vector.shape_cast %721 : vector<1x8xf32> to vector<1x1x1x8xf32>
    %723 = vector.broadcast %720 : vector<2x4x16x1xf32> to vector<2x4x16x8xf32>
    %724 = vector.broadcast %722 : vector<1x1x1x8xf32> to vector<2x4x16x8xf32>
    %725 = arith.mulf %723, %724 : vector<2x4x16x8xf32>
    %726 = arith.addf %719, %725 : vector<2x4x16x8xf32>
    %727 = vector.extract_strided_slice %613 {offsets = [0, 0, 0, 6], sizes = [2, 4, 16, 1], strides = [1, 1, 1, 1]} : vector<2x4x16x8xf32> to vector<2x4x16x1xf32>
    %728 = vector.extract_strided_slice %615 {offsets = [6, 0], sizes = [1, 8], strides = [1, 1]} : vector<8x8xf32> to vector<1x8xf32>
    %729 = vector.shape_cast %728 : vector<1x8xf32> to vector<1x1x1x8xf32>
    %730 = vector.broadcast %727 : vector<2x4x16x1xf32> to vector<2x4x16x8xf32>
    %731 = vector.broadcast %729 : vector<1x1x1x8xf32> to vector<2x4x16x8xf32>
    %732 = arith.mulf %730, %731 : vector<2x4x16x8xf32>
    %733 = arith.addf %726, %732 : vector<2x4x16x8xf32>
    %734 = vector.extract_strided_slice %613 {offsets = [0, 0, 0, 7], sizes = [2, 4, 16, 1], strides = [1, 1, 1, 1]} : vector<2x4x16x8xf32> to vector<2x4x16x1xf32>
    %735 = vector.extract_strided_slice %615 {offsets = [7, 0], sizes = [1, 8], strides = [1, 1]} : vector<8x8xf32> to vector<1x8xf32>
    %736 = vector.shape_cast %735 : vector<1x8xf32> to vector<1x1x1x8xf32>
    %737 = vector.broadcast %734 : vector<2x4x16x1xf32> to vector<2x4x16x8xf32>
    %738 = vector.broadcast %736 : vector<1x1x1x8xf32> to vector<2x4x16x8xf32>
    %739 = arith.mulf %737, %738 : vector<2x4x16x8xf32>
    %740 = arith.addf %733, %739 : vector<2x4x16x8xf32>
    %741 = vector.shape_cast %616 : vector<1x8xf32> to vector<1x1x1x8xf32>
    %742 = vector.broadcast %741 : vector<1x1x1x8xf32> to vector<2x4x16x8xf32>
    %743 = arith.addf %740, %742 : vector<2x4x16x8xf32>
    %cst_91 = arith.constant 0.000000e+00 : f32
    %744 = vector.broadcast %cst_91 : f32 to vector<2x4x16x8xf32>
    %745 = arith.cmpf oge, %743, %744 : vector<2x4x16x8xf32>
    %746 = vector.shape_cast %617 : vector<1x8xf32> to vector<1x1x1x8xf32>
    %747 = vector.broadcast %746 : vector<1x1x1x8xf32> to vector<2x4x16x8xf32>
    %748 = arith.mulf %747, %743 : vector<2x4x16x8xf32>
    %749 = arith.select %745, %743, %748 : vector<2x4x16x8xi1>, vector<2x4x16x8xf32>
    %750 = vector.shape_cast %683 : vector<2x4x16x8xf32> to vector<2x4x1x16x8xf32>
    %751 = vector.shape_cast %749 : vector<2x4x16x8xf32> to vector<2x4x1x16x8xf32>
    %752 = tpu.concatenate %750, %751 in 2 : vector<2x4x1x16x8xf32>, vector<2x4x1x16x8xf32> -> vector<2x4x2x16x8xf32>
    %753 = vector.shape_cast %752 : vector<2x4x2x16x8xf32> to vector<2x8x16x8xf32>
    %cst_92 = arith.constant 0.000000e+00 : f32
    %754 = vector.broadcast %cst_92 : f32 to vector<2x8x16x8xf32>
    %755 = vector.extract_strided_slice %753 {offsets = [0, 0, 0, 0], sizes = [2, 8, 16, 1], strides = [1, 1, 1, 1]} : vector<2x8x16x8xf32> to vector<2x8x16x1xf32>
    %756 = vector.extract_strided_slice %614 {offsets = [0, 0], sizes = [1, 8], strides = [1, 1]} : vector<8x8xf32> to vector<1x8xf32>
    %757 = vector.shape_cast %756 : vector<1x8xf32> to vector<1x1x1x8xf32>
    %758 = vector.broadcast %755 : vector<2x8x16x1xf32> to vector<2x8x16x8xf32>
    %759 = vector.broadcast %757 : vector<1x1x1x8xf32> to vector<2x8x16x8xf32>
    %760 = arith.mulf %758, %759 : vector<2x8x16x8xf32>
    %761 = arith.addf %754, %760 : vector<2x8x16x8xf32>
    %762 = vector.extract_strided_slice %753 {offsets = [0, 0, 0, 1], sizes = [2, 8, 16, 1], strides = [1, 1, 1, 1]} : vector<2x8x16x8xf32> to vector<2x8x16x1xf32>
    %763 = vector.extract_strided_slice %614 {offsets = [1, 0], sizes = [1, 8], strides = [1, 1]} : vector<8x8xf32> to vector<1x8xf32>
    %764 = vector.shape_cast %763 : vector<1x8xf32> to vector<1x1x1x8xf32>
    %765 = vector.broadcast %762 : vector<2x8x16x1xf32> to vector<2x8x16x8xf32>
    %766 = vector.broadcast %764 : vector<1x1x1x8xf32> to vector<2x8x16x8xf32>
    %767 = arith.mulf %765, %766 : vector<2x8x16x8xf32>
    %768 = arith.addf %761, %767 : vector<2x8x16x8xf32>
    %769 = vector.extract_strided_slice %753 {offsets = [0, 0, 0, 2], sizes = [2, 8, 16, 1], strides = [1, 1, 1, 1]} : vector<2x8x16x8xf32> to vector<2x8x16x1xf32>
    %770 = vector.extract_strided_slice %614 {offsets = [2, 0], sizes = [1, 8], strides = [1, 1]} : vector<8x8xf32> to vector<1x8xf32>
    %771 = vector.shape_cast %770 : vector<1x8xf32> to vector<1x1x1x8xf32>
    %772 = vector.broadcast %769 : vector<2x8x16x1xf32> to vector<2x8x16x8xf32>
    %773 = vector.broadcast %771 : vector<1x1x1x8xf32> to vector<2x8x16x8xf32>
    %774 = arith.mulf %772, %773 : vector<2x8x16x8xf32>
    %775 = arith.addf %768, %774 : vector<2x8x16x8xf32>
    %776 = vector.extract_strided_slice %753 {offsets = [0, 0, 0, 3], sizes = [2, 8, 16, 1], strides = [1, 1, 1, 1]} : vector<2x8x16x8xf32> to vector<2x8x16x1xf32>
    %777 = vector.extract_strided_slice %614 {offsets = [3, 0], sizes = [1, 8], strides = [1, 1]} : vector<8x8xf32> to vector<1x8xf32>
    %778 = vector.shape_cast %777 : vector<1x8xf32> to vector<1x1x1x8xf32>
    %779 = vector.broadcast %776 : vector<2x8x16x1xf32> to vector<2x8x16x8xf32>
    %780 = vector.broadcast %778 : vector<1x1x1x8xf32> to vector<2x8x16x8xf32>
    %781 = arith.mulf %779, %780 : vector<2x8x16x8xf32>
    %782 = arith.addf %775, %781 : vector<2x8x16x8xf32>
    %783 = vector.extract_strided_slice %753 {offsets = [0, 0, 0, 4], sizes = [2, 8, 16, 1], strides = [1, 1, 1, 1]} : vector<2x8x16x8xf32> to vector<2x8x16x1xf32>
    %784 = vector.extract_strided_slice %614 {offsets = [4, 0], sizes = [1, 8], strides = [1, 1]} : vector<8x8xf32> to vector<1x8xf32>
    %785 = vector.shape_cast %784 : vector<1x8xf32> to vector<1x1x1x8xf32>
    %786 = vector.broadcast %783 : vector<2x8x16x1xf32> to vector<2x8x16x8xf32>
    %787 = vector.broadcast %785 : vector<1x1x1x8xf32> to vector<2x8x16x8xf32>
    %788 = arith.mulf %786, %787 : vector<2x8x16x8xf32>
    %789 = arith.addf %782, %788 : vector<2x8x16x8xf32>
    %790 = vector.extract_strided_slice %753 {offsets = [0, 0, 0, 5], sizes = [2, 8, 16, 1], strides = [1, 1, 1, 1]} : vector<2x8x16x8xf32> to vector<2x8x16x1xf32>
    %791 = vector.extract_strided_slice %614 {offsets = [5, 0], sizes = [1, 8], strides = [1, 1]} : vector<8x8xf32> to vector<1x8xf32>
    %792 = vector.shape_cast %791 : vector<1x8xf32> to vector<1x1x1x8xf32>
    %793 = vector.broadcast %790 : vector<2x8x16x1xf32> to vector<2x8x16x8xf32>
    %794 = vector.broadcast %792 : vector<1x1x1x8xf32> to vector<2x8x16x8xf32>
    %795 = arith.mulf %793, %794 : vector<2x8x16x8xf32>
    %796 = arith.addf %789, %795 : vector<2x8x16x8xf32>
    %797 = vector.extract_strided_slice %753 {offsets = [0, 0, 0, 6], sizes = [2, 8, 16, 1], strides = [1, 1, 1, 1]} : vector<2x8x16x8xf32> to vector<2x8x16x1xf32>
    %798 = vector.extract_strided_slice %614 {offsets = [6, 0], sizes = [1, 8], strides = [1, 1]} : vector<8x8xf32> to vector<1x8xf32>
    %799 = vector.shape_cast %798 : vector<1x8xf32> to vector<1x1x1x8xf32>
    %800 = vector.broadcast %797 : vector<2x8x16x1xf32> to vector<2x8x16x8xf32>
    %801 = vector.broadcast %799 : vector<1x1x1x8xf32> to vector<2x8x16x8xf32>
    %802 = arith.mulf %800, %801 : vector<2x8x16x8xf32>
    %803 = arith.addf %796, %802 : vector<2x8x16x8xf32>
    %804 = vector.extract_strided_slice %753 {offsets = [0, 0, 0, 7], sizes = [2, 8, 16, 1], strides = [1, 1, 1, 1]} : vector<2x8x16x8xf32> to vector<2x8x16x1xf32>
    %805 = vector.extract_strided_slice %614 {offsets = [7, 0], sizes = [1, 8], strides = [1, 1]} : vector<8x8xf32> to vector<1x8xf32>
    %806 = vector.shape_cast %805 : vector<1x8xf32> to vector<1x1x1x8xf32>
    %807 = vector.broadcast %804 : vector<2x8x16x1xf32> to vector<2x8x16x8xf32>
    %808 = vector.broadcast %806 : vector<1x1x1x8xf32> to vector<2x8x16x8xf32>
    %809 = arith.mulf %807, %808 : vector<2x8x16x8xf32>
    %810 = arith.addf %803, %809 : vector<2x8x16x8xf32>
    %811 = vector.shape_cast %616 : vector<1x8xf32> to vector<1x1x1x8xf32>
    %812 = vector.broadcast %811 : vector<1x1x1x8xf32> to vector<2x8x16x8xf32>
    %813 = arith.addf %810, %812 : vector<2x8x16x8xf32>
    %cst_93 = arith.constant 0.000000e+00 : f32
    %814 = vector.broadcast %cst_93 : f32 to vector<2x8x16x8xf32>
    %815 = arith.cmpf oge, %813, %814 : vector<2x8x16x8xf32>
    %816 = vector.shape_cast %617 : vector<1x8xf32> to vector<1x1x1x8xf32>
    %817 = vector.broadcast %816 : vector<1x1x1x8xf32> to vector<2x8x16x8xf32>
    %818 = arith.mulf %817, %813 : vector<2x8x16x8xf32>
    %819 = arith.select %815, %813, %818 : vector<2x8x16x8xi1>, vector<2x8x16x8xf32>
    %cst_94 = arith.constant 0.000000e+00 : f32
    %820 = vector.broadcast %cst_94 : f32 to vector<2x8x16x8xf32>
    %821 = vector.extract_strided_slice %753 {offsets = [0, 0, 0, 0], sizes = [2, 8, 16, 1], strides = [1, 1, 1, 1]} : vector<2x8x16x8xf32> to vector<2x8x16x1xf32>
    %822 = vector.extract_strided_slice %615 {offsets = [0, 0], sizes = [1, 8], strides = [1, 1]} : vector<8x8xf32> to vector<1x8xf32>
    %823 = vector.shape_cast %822 : vector<1x8xf32> to vector<1x1x1x8xf32>
    %824 = vector.broadcast %821 : vector<2x8x16x1xf32> to vector<2x8x16x8xf32>
    %825 = vector.broadcast %823 : vector<1x1x1x8xf32> to vector<2x8x16x8xf32>
    %826 = arith.mulf %824, %825 : vector<2x8x16x8xf32>
    %827 = arith.addf %820, %826 : vector<2x8x16x8xf32>
    %828 = vector.extract_strided_slice %753 {offsets = [0, 0, 0, 1], sizes = [2, 8, 16, 1], strides = [1, 1, 1, 1]} : vector<2x8x16x8xf32> to vector<2x8x16x1xf32>
    %829 = vector.extract_strided_slice %615 {offsets = [1, 0], sizes = [1, 8], strides = [1, 1]} : vector<8x8xf32> to vector<1x8xf32>
    %830 = vector.shape_cast %829 : vector<1x8xf32> to vector<1x1x1x8xf32>
    %831 = vector.broadcast %828 : vector<2x8x16x1xf32> to vector<2x8x16x8xf32>
    %832 = vector.broadcast %830 : vector<1x1x1x8xf32> to vector<2x8x16x8xf32>
    %833 = arith.mulf %831, %832 : vector<2x8x16x8xf32>
    %834 = arith.addf %827, %833 : vector<2x8x16x8xf32>
    %835 = vector.extract_strided_slice %753 {offsets = [0, 0, 0, 2], sizes = [2, 8, 16, 1], strides = [1, 1, 1, 1]} : vector<2x8x16x8xf32> to vector<2x8x16x1xf32>
    %836 = vector.extract_strided_slice %615 {offsets = [2, 0], sizes = [1, 8], strides = [1, 1]} : vector<8x8xf32> to vector<1x8xf32>
    %837 = vector.shape_cast %836 : vector<1x8xf32> to vector<1x1x1x8xf32>
    %838 = vector.broadcast %835 : vector<2x8x16x1xf32> to vector<2x8x16x8xf32>
    %839 = vector.broadcast %837 : vector<1x1x1x8xf32> to vector<2x8x16x8xf32>
    %840 = arith.mulf %838, %839 : vector<2x8x16x8xf32>
    %841 = arith.addf %834, %840 : vector<2x8x16x8xf32>
    %842 = vector.extract_strided_slice %753 {offsets = [0, 0, 0, 3], sizes = [2, 8, 16, 1], strides = [1, 1, 1, 1]} : vector<2x8x16x8xf32> to vector<2x8x16x1xf32>
    %843 = vector.extract_strided_slice %615 {offsets = [3, 0], sizes = [1, 8], strides = [1, 1]} : vector<8x8xf32> to vector<1x8xf32>
    %844 = vector.shape_cast %843 : vector<1x8xf32> to vector<1x1x1x8xf32>
    %845 = vector.broadcast %842 : vector<2x8x16x1xf32> to vector<2x8x16x8xf32>
    %846 = vector.broadcast %844 : vector<1x1x1x8xf32> to vector<2x8x16x8xf32>
    %847 = arith.mulf %845, %846 : vector<2x8x16x8xf32>
    %848 = arith.addf %841, %847 : vector<2x8x16x8xf32>
    %849 = vector.extract_strided_slice %753 {offsets = [0, 0, 0, 4], sizes = [2, 8, 16, 1], strides = [1, 1, 1, 1]} : vector<2x8x16x8xf32> to vector<2x8x16x1xf32>
    %850 = vector.extract_strided_slice %615 {offsets = [4, 0], sizes = [1, 8], strides = [1, 1]} : vector<8x8xf32> to vector<1x8xf32>
    %851 = vector.shape_cast %850 : vector<1x8xf32> to vector<1x1x1x8xf32>
    %852 = vector.broadcast %849 : vector<2x8x16x1xf32> to vector<2x8x16x8xf32>
    %853 = vector.broadcast %851 : vector<1x1x1x8xf32> to vector<2x8x16x8xf32>
    %854 = arith.mulf %852, %853 : vector<2x8x16x8xf32>
    %855 = arith.addf %848, %854 : vector<2x8x16x8xf32>
    %856 = vector.extract_strided_slice %753 {offsets = [0, 0, 0, 5], sizes = [2, 8, 16, 1], strides = [1, 1, 1, 1]} : vector<2x8x16x8xf32> to vector<2x8x16x1xf32>
    %857 = vector.extract_strided_slice %615 {offsets = [5, 0], sizes = [1, 8], strides = [1, 1]} : vector<8x8xf32> to vector<1x8xf32>
    %858 = vector.shape_cast %857 : vector<1x8xf32> to vector<1x1x1x8xf32>
    %859 = vector.broadcast %856 : vector<2x8x16x1xf32> to vector<2x8x16x8xf32>
    %860 = vector.broadcast %858 : vector<1x1x1x8xf32> to vector<2x8x16x8xf32>
    %861 = arith.mulf %859, %860 : vector<2x8x16x8xf32>
    %862 = arith.addf %855, %861 : vector<2x8x16x8xf32>
    %863 = vector.extract_strided_slice %753 {offsets = [0, 0, 0, 6], sizes = [2, 8, 16, 1], strides = [1, 1, 1, 1]} : vector<2x8x16x8xf32> to vector<2x8x16x1xf32>
    %864 = vector.extract_strided_slice %615 {offsets = [6, 0], sizes = [1, 8], strides = [1, 1]} : vector<8x8xf32> to vector<1x8xf32>
    %865 = vector.shape_cast %864 : vector<1x8xf32> to vector<1x1x1x8xf32>
    %866 = vector.broadcast %863 : vector<2x8x16x1xf32> to vector<2x8x16x8xf32>
    %867 = vector.broadcast %865 : vector<1x1x1x8xf32> to vector<2x8x16x8xf32>
    %868 = arith.mulf %866, %867 : vector<2x8x16x8xf32>
    %869 = arith.addf %862, %868 : vector<2x8x16x8xf32>
    %870 = vector.extract_strided_slice %753 {offsets = [0, 0, 0, 7], sizes = [2, 8, 16, 1], strides = [1, 1, 1, 1]} : vector<2x8x16x8xf32> to vector<2x8x16x1xf32>
    %871 = vector.extract_strided_slice %615 {offsets = [7, 0], sizes = [1, 8], strides = [1, 1]} : vector<8x8xf32> to vector<1x8xf32>
    %872 = vector.shape_cast %871 : vector<1x8xf32> to vector<1x1x1x8xf32>
    %873 = vector.broadcast %870 : vector<2x8x16x1xf32> to vector<2x8x16x8xf32>
    %874 = vector.broadcast %872 : vector<1x1x1x8xf32> to vector<2x8x16x8xf32>
    %875 = arith.mulf %873, %874 : vector<2x8x16x8xf32>
    %876 = arith.addf %869, %875 : vector<2x8x16x8xf32>
    %877 = vector.shape_cast %616 : vector<1x8xf32> to vector<1x1x1x8xf32>
    %878 = vector.broadcast %877 : vector<1x1x1x8xf32> to vector<2x8x16x8xf32>
    %879 = arith.addf %876, %878 : vector<2x8x16x8xf32>
    %cst_95 = arith.constant 0.000000e+00 : f32
    %880 = vector.broadcast %cst_95 : f32 to vector<2x8x16x8xf32>
    %881 = arith.cmpf oge, %879, %880 : vector<2x8x16x8xf32>
    %882 = vector.shape_cast %617 : vector<1x8xf32> to vector<1x1x1x8xf32>
    %883 = vector.broadcast %882 : vector<1x1x1x8xf32> to vector<2x8x16x8xf32>
    %884 = arith.mulf %883, %879 : vector<2x8x16x8xf32>
    %885 = arith.select %881, %879, %884 : vector<2x8x16x8xi1>, vector<2x8x16x8xf32>
    %886 = vector.shape_cast %819 : vector<2x8x16x8xf32> to vector<2x8x1x16x8xf32>
    %887 = vector.shape_cast %885 : vector<2x8x16x8xf32> to vector<2x8x1x16x8xf32>
    %888 = tpu.concatenate %886, %887 in 2 : vector<2x8x1x16x8xf32>, vector<2x8x1x16x8xf32> -> vector<2x8x2x16x8xf32>
    %889 = vector.shape_cast %888 : vector<2x8x2x16x8xf32> to vector<2x16x16x8xf32>
    %c0_96 = arith.constant 0 : index
    %c0_97 = arith.constant 0 : index
    %c0_98 = arith.constant 0 : index
    %c0_99 = arith.constant 0 : index
    %890 = vector.load %arg16[%c0_96, %c0_97, %c0_98, %c0_99] : memref<2x16x16x8xf32, #tpu.memory_space<vmem>>, vector<2x16x16x8xf32>
    tpu.vector_store %arg16[%c0_96, %c0_97, %c0_98, %c0_99], %889 {strides = array<i32>} : memref<2x16x16x8xf32, #tpu.memory_space<vmem>>, vector<2x16x16x8xf32>,
    return
  }
  func.func @transform_0(%arg0: i32) -> (i32, i32, i32, i32) {
    %c0_i32 = arith.constant 0 : i32
    %c0_i32_0 = arith.constant 0 : i32
    %c0_i32_1 = arith.constant 0 : i32
    %c0_i32_2 = arith.constant 0 : i32
    return %arg0, %c0_i32, %c0_i32_0, %c0_i32_1 : i32, i32, i32, i32
  }
  func.func @transform_1(%arg0: i32) -> (i32, i32) {
    %c0_i32 = arith.constant 0 : i32
    %c0_i32_0 = arith.constant 0 : i32
    %c0_i32_1 = arith.constant 0 : i32
    return %c0_i32, %c0_i32_0 : i32, i32
  }
  func.func @transform_2(%arg0: i32) -> (i32, i32) {
    %c0_i32 = arith.constant 0 : i32
    %c0_i32_0 = arith.constant 0 : i32
    %c0_i32_1 = arith.constant 0 : i32
    return %c0_i32, %c0_i32_0 : i32, i32
  }
  func.func @transform_3(%arg0: i32) -> (i32, i32) {
    %c0_i32 = arith.constant 0 : i32
    %c0_i32_0 = arith.constant 0 : i32
    %c0_i32_1 = arith.constant 0 : i32
    return %c0_i32, %c0_i32_0 : i32, i32
  }
  func.func @transform_4(%arg0: i32) -> (i32, i32) {
    %c0_i32 = arith.constant 0 : i32
    %c0_i32_0 = arith.constant 0 : i32
    %c0_i32_1 = arith.constant 0 : i32
    return %c0_i32, %c0_i32_0 : i32, i32
  }
  func.func @transform_5(%arg0: i32) -> (i32, i32) {
    %c0_i32 = arith.constant 0 : i32
    %c0_i32_0 = arith.constant 0 : i32
    %c0_i32_1 = arith.constant 0 : i32
    return %c0_i32, %c0_i32_0 : i32, i32
  }
  func.func @transform_6(%arg0: i32) -> (i32, i32) {
    %c0_i32 = arith.constant 0 : i32
    %c0_i32_0 = arith.constant 0 : i32
    %c0_i32_1 = arith.constant 0 : i32
    return %c0_i32, %c0_i32_0 : i32, i32
  }
  func.func @transform_7(%arg0: i32) -> (i32, i32) {
    %c0_i32 = arith.constant 0 : i32
    %c0_i32_0 = arith.constant 0 : i32
    %c0_i32_1 = arith.constant 0 : i32
    return %c0_i32, %c0_i32_0 : i32, i32
  }
  func.func @transform_8(%arg0: i32) -> (i32, i32) {
    %c0_i32 = arith.constant 0 : i32
    %c0_i32_0 = arith.constant 0 : i32
    %c0_i32_1 = arith.constant 0 : i32
    return %c0_i32, %c0_i32_0 : i32, i32
  }
  func.func @transform_9(%arg0: i32) -> (i32, i32) {
    %c0_i32 = arith.constant 0 : i32
    %c0_i32_0 = arith.constant 0 : i32
    %c0_i32_1 = arith.constant 0 : i32
    return %c0_i32, %c0_i32_0 : i32, i32
  }
  func.func @transform_10(%arg0: i32) -> (i32, i32) {
    %c0_i32 = arith.constant 0 : i32
    %c0_i32_0 = arith.constant 0 : i32
    %c0_i32_1 = arith.constant 0 : i32
    return %c0_i32, %c0_i32_0 : i32, i32
  }
  func.func @transform_11(%arg0: i32) -> (i32, i32) {
    %c0_i32 = arith.constant 0 : i32
    %c0_i32_0 = arith.constant 0 : i32
    %c0_i32_1 = arith.constant 0 : i32
    return %c0_i32, %c0_i32_0 : i32, i32
  }
  func.func @transform_12(%arg0: i32) -> (i32, i32) {
    %c0_i32 = arith.constant 0 : i32
    %c0_i32_0 = arith.constant 0 : i32
    %c0_i32_1 = arith.constant 0 : i32
    return %c0_i32, %c0_i32_0 : i32, i32
  }
  func.func @transform_13(%arg0: i32) -> (i32, i32) {
    %c0_i32 = arith.constant 0 : i32
    %c0_i32_0 = arith.constant 0 : i32
    %c0_i32_1 = arith.constant 0 : i32
    return %c0_i32, %c0_i32_0 : i32, i32
  }
  func.func @transform_14(%arg0: i32) -> (i32, i32) {
    %c0_i32 = arith.constant 0 : i32
    %c0_i32_0 = arith.constant 0 : i32
    %c0_i32_1 = arith.constant 0 : i32
    return %c0_i32, %c0_i32_0 : i32, i32
  }
  func.func @transform_15(%arg0: i32) -> (i32, i32, i32, i32) {
    %c0_i32 = arith.constant 0 : i32
    %c0_i32_0 = arith.constant 0 : i32
    %c0_i32_1 = arith.constant 0 : i32
    %c0_i32_2 = arith.constant 0 : i32
    return %arg0, %c0_i32, %c0_i32_0, %c0_i32_1 : i32, i32, i32, i32
  }
}

</mosaic_0001>

<llo_original>
// kernel: att_mechanism_forward_pallas.1
$region0: #{att_mechanism_forward_pallas.1}
  #allocation0 [shape = 'u32[]', space=smem, size = 0x4, offset = 0x4, fixed_abs, tag = 'smem constant byte address 0x4 - core index']
  #allocation1 [shape = 'u32[144,128]{1,0:T(1,128)}', space=vmem, size = 0x12000, scoped, tag = 'internal scratch']
  %s0 = inlined_call_operand.vmem [shape: f32[2,16,16,4], index: 0, kind: input, shape index: {}]
  %s1 = inlined_call_operand.vmem [shape: f32[12,4], index: 1, kind: input, shape index: {}]
  %s2 = inlined_call_operand.vmem [shape: f32[1,4], index: 2, kind: input, shape index: {}]
  %s3 = inlined_call_operand.vmem [shape: f32[12,4], index: 3, kind: input, shape index: {}]
  %s4 = inlined_call_operand.vmem [shape: f32[1,4], index: 4, kind: input, shape index: {}]
  %s5 = inlined_call_operand.vmem [shape: f32[4,8], index: 5, kind: input, shape index: {}]
  %s6 = inlined_call_operand.vmem [shape: f32[1,8], index: 6, kind: input, shape index: {}]
  %s7 = inlined_call_operand.vmem [shape: f32[4,8], index: 7, kind: input, shape index: {}]
  %s8 = inlined_call_operand.vmem [shape: f32[1,8], index: 8, kind: input, shape index: {}]
  %s9 = inlined_call_operand.vmem [shape: f32[4,8], index: 9, kind: input, shape index: {}]
  %s10 = inlined_call_operand.vmem [shape: f32[1,8], index: 10, kind: input, shape index: {}]
  %s11 = inlined_call_operand.vmem [shape: f32[8,8], index: 11, kind: input, shape index: {}]
  %s12 = inlined_call_operand.vmem [shape: f32[8,8], index: 12, kind: input, shape index: {}]
  %s13 = inlined_call_operand.vmem [shape: f32[1,8], index: 13, kind: input, shape index: {}]
  %s14 = inlined_call_operand.vmem [shape: f32[1,8], index: 14, kind: input, shape index: {}]
  %s15 = inlined_call_operand.vmem [shape: f32[2,16,16,8], index: 15, kind: output, shape index: {}]
  %s16 = sld [smem:[#allocation0]]
  $region70: #{att_mechanism_forward_pallas.1} parent=0
    _
  %s18 = ssub.s32 1, %s16
  %s19 = scalar_select 0, %s18, %s16
  // Predicated region
  $region2: #{att_mechanism_forward_pallas.1} parent=0 // pred_check
    _
  $region3: #{att_mechanism_forward_pallas.1} parent=0 // pred_check_branch
    %21 = sbr.rel (0) target = $region5
  $region4: #{att_mechanism_forward_pallas.1} parent=0 // pred_region
    _
  $region5: #{att_mechanism_forward_pallas.1} parent=0 // pred_fallthru
    _
  // Predicated region
  $region6: #{att_mechanism_forward_pallas.1} parent=0 // pred_check
    _
  $region7: #{att_mechanism_forward_pallas.1} parent=0 // pred_check_branch
    %23 = sbr.rel (0) target = $region9
  $region8: #{att_mechanism_forward_pallas.1} parent=0 // pred_region
    _
  $region9: #{att_mechanism_forward_pallas.1} parent=0 // pred_fallthru
    _
  // Predicated region
  $region10: #{att_mechanism_forward_pallas.1} parent=0 // pred_check
    _
  $region11: #{att_mechanism_forward_pallas.1} parent=0 // pred_check_branch
    %25 = sbr.rel (0) target = $region13
  $region12: #{att_mechanism_forward_pallas.1} parent=0 // pred_region
    _
  $region13: #{att_mechanism_forward_pallas.1} parent=0 // pred_fallthru
    _
  // Predicated region
  $region14: #{att_mechanism_forward_pallas.1} parent=0 // pred_check
    _
  $region15: #{att_mechanism_forward_pallas.1} parent=0 // pred_check_branch
    %27 = sbr.rel (0) target = $region17
  $region16: #{att_mechanism_forward_pallas.1} parent=0 // pred_region
    _
  $region17: #{att_mechanism_forward_pallas.1} parent=0 // pred_fallthru
    _
  // Predicated region
  $region18: #{att_mechanism_forward_pallas.1} parent=0 // pred_check
    _
  $region19: #{att_mechanism_forward_pallas.1} parent=0 // pred_check_branch
    %29 = sbr.rel (0) target = $region21
  $region20: #{att_mechanism_forward_pallas.1} parent=0 // pred_region
    _
  $region21: #{att_mechanism_forward_pallas.1} parent=0 // pred_fallthru
    _
  // Predicated region
  $region22: #{att_mechanism_forward_pallas.1} parent=0 // pred_check
    _
  $region23: #{att_mechanism_forward_pallas.1} parent=0 // pred_check_branch
    %31 = sbr.rel (0) target = $region25
  $region24: #{att_mechanism_forward_pallas.1} parent=0 // pred_region
    _
  $region25: #{att_mechanism_forward_pallas.1} parent=0 // pred_fallthru
    _
  // Predicated region
  $region26: #{att_mechanism_forward_pallas.1} parent=0 // pred_check
    _
  $region27: #{att_mechanism_forward_pallas.1} parent=0 // pred_check_branch
    %33 = sbr.rel (0) target = $region29
  $region28: #{att_mechanism_forward_pallas.1} parent=0 // pred_region
    _
  $region29: #{att_mechanism_forward_pallas.1} parent=0 // pred_fallthru
    _
  // Predicated region
  $region30: #{att_mechanism_forward_pallas.1} parent=0 // pred_check
    _
  $region31: #{att_mechanism_forward_pallas.1} parent=0 // pred_check_branch
    %35 = sbr.rel (0) target = $region33
  $region32: #{att_mechanism_forward_pallas.1} parent=0 // pred_region
    _
  $region33: #{att_mechanism_forward_pallas.1} parent=0 // pred_fallthru
    _
  // Predicated region
  $region34: #{att_mechanism_forward_pallas.1} parent=0 // pred_check
    _
  $region35: #{att_mechanism_forward_pallas.1} parent=0 // pred_check_branch
    %37 = sbr.rel (0) target = $region37
  $region36: #{att_mechanism_forward_pallas.1} parent=0 // pred_region
    _
  $region37: #{att_mechanism_forward_pallas.1} parent=0 // pred_fallthru
    _
  // Predicated region
  $region38: #{att_mechanism_forward_pallas.1} parent=0 // pred_check
    _
  $region39: #{att_mechanism_forward_pallas.1} parent=0 // pred_check_branch
    %39 = sbr.rel (0) target = $region41
  $region40: #{att_mechanism_forward_pallas.1} parent=0 // pred_region
    _
  $region41: #{att_mechanism_forward_pallas.1} parent=0 // pred_fallthru
    _
  // Predicated region
  $region42: #{att_mechanism_forward_pallas.1} parent=0 // pred_check
    _
  $region43: #{att_mechanism_forward_pallas.1} parent=0 // pred_check_branch
    %41 = sbr.rel (0) target = $region45
  $region44: #{att_mechanism_forward_pallas.1} parent=0 // pred_region
    _
  $region45: #{att_mechanism_forward_pallas.1} parent=0 // pred_fallthru
    _
  // Predicated region
  $region46: #{att_mechanism_forward_pallas.1} parent=0 // pred_check
    _
  $region47: #{att_mechanism_forward_pallas.1} parent=0 // pred_check_branch
    %43 = sbr.rel (0) target = $region49
  $region48: #{att_mechanism_forward_pallas.1} parent=0 // pred_region
    _
  $region49: #{att_mechanism_forward_pallas.1} parent=0 // pred_fallthru
    _
  // Predicated region
  $region50: #{att_mechanism_forward_pallas.1} parent=0 // pred_check
    _
  $region51: #{att_mechanism_forward_pallas.1} parent=0 // pred_check_branch
    %45 = sbr.rel (0) target = $region53
  $region52: #{att_mechanism_forward_pallas.1} parent=0 // pred_region
    _
  $region53: #{att_mechanism_forward_pallas.1} parent=0 // pred_fallthru
    _
  // Predicated region
  $region54: #{att_mechanism_forward_pallas.1} parent=0 // pred_check
    _
  $region55: #{att_mechanism_forward_pallas.1} parent=0 // pred_check_branch
    %47 = sbr.rel (0) target = $region57
  $region56: #{att_mechanism_forward_pallas.1} parent=0 // pred_region
    _
  $region57: #{att_mechanism_forward_pallas.1} parent=0 // pred_fallthru
    _
  // Predicated region
  $region58: #{att_mechanism_forward_pallas.1} parent=0 // pred_check
    _
  $region59: #{att_mechanism_forward_pallas.1} parent=0 // pred_check_branch
    %49 = sbr.rel (0) target = $region61
  $region60: #{att_mechanism_forward_pallas.1} parent=0 // pred_region
    _
  $region61: #{att_mechanism_forward_pallas.1} parent=0 // pred_fallthru
    _
  %v50 = vld [vmem:[%s0] sm:$0xff]
  %v51 = vld [vmem:[%s0 + $0x8] sm:$0xff]
  %v52 = vld [vmem:[%s0 + $0x10] sm:$0xff]
  %v53 = vld [vmem:[%s0 + $0x18] sm:$0xff]
  %v54 = vld [vmem:[%s0 + $0x20] sm:$0xff]
  %v55 = vld [vmem:[%s0 + $0x28] sm:$0xff]
  %v56 = vld [vmem:[%s0 + $0x30] sm:$0xff]
  %v57 = vld [vmem:[%s0 + $0x38] sm:$0xff]
  %v58 = vld [vmem:[%s0 + $0x40] sm:$0xff]
  %v59 = vld [vmem:[%s0 + $0x48] sm:$0xff]
  %v60 = vld [vmem:[%s0 + $0x50] sm:$0xff]
  %v61 = vld [vmem:[%s0 + $0x58] sm:$0xff]
  %v62 = vld [vmem:[%s0 + $0x60] sm:$0xff]
  %v63 = vld [vmem:[%s0 + $0x68] sm:$0xff]
  %v64 = vld [vmem:[%s0 + $0x70] sm:$0xff]
  %v65 = vld [vmem:[%s0 + $0x78] sm:$0xff]
  %v66 = vld [vmem:[%s0 + $0x80] sm:$0xff]
  %v67 = vld [vmem:[%s0 + $0x88] sm:$0xff]
  %v68 = vld [vmem:[%s0 + $0x90] sm:$0xff]
  %v69 = vld [vmem:[%s0 + $0x98] sm:$0xff]
  %v70 = vld [vmem:[%s0 + $0xa0] sm:$0xff]
  %v71 = vld [vmem:[%s0 + $0xa8] sm:$0xff]
  %v72 = vld [vmem:[%s0 + $0xb0] sm:$0xff]
  %v73 = vld [vmem:[%s0 + $0xb8] sm:$0xff]
  %v74 = vld [vmem:[%s0 + $0xc0] sm:$0xff]
  %v75 = vld [vmem:[%s0 + $0xc8] sm:$0xff]
  %v76 = vld [vmem:[%s0 + $0xd0] sm:$0xff]
  %v77 = vld [vmem:[%s0 + $0xd8] sm:$0xff]
  %v78 = vld [vmem:[%s0 + $0xe0] sm:$0xff]
  %v79 = vld [vmem:[%s0 + $0xe8] sm:$0xff]
  %v80 = vld [vmem:[%s0 + $0xf0] sm:$0xff]
  %v81 = vld [vmem:[%s0 + $0xf8] sm:$0xff]
  %v82 = vld [vmem:[%s0 + $0x100] sm:$0xff]
  %v83 = vld [vmem:[%s0 + $0x108] sm:$0xff]
  %v84 = vld [vmem:[%s0 + $0x110] sm:$0xff]
  %v85 = vld [vmem:[%s0 + $0x118] sm:$0xff]
  %v86 = vld [vmem:[%s0 + $0x120] sm:$0xff]
  %v87 = vld [vmem:[%s0 + $0x128] sm:$0xff]
  %v88 = vld [vmem:[%s0 + $0x130] sm:$0xff]
  %v89 = vld [vmem:[%s0 + $0x138] sm:$0xff]
  %v90 = vld [vmem:[%s0 + $0x140] sm:$0xff]
  %v91 = vld [vmem:[%s0 + $0x148] sm:$0xff]
  %v92 = vld [vmem:[%s0 + $0x150] sm:$0xff]
  %v93 = vld [vmem:[%s0 + $0x158] sm:$0xff]
  %v94 = vld [vmem:[%s0 + $0x160] sm:$0xff]
  %v95 = vld [vmem:[%s0 + $0x168] sm:$0xff]
  %v96 = vld [vmem:[%s0 + $0x170] sm:$0xff]
  %v97 = vld [vmem:[%s0 + $0x178] sm:$0xff]
  %v98 = vld [vmem:[%s0 + $0x180] sm:$0xff]
  %v99 = vld [vmem:[%s0 + $0x188] sm:$0xff]
  %v100 = vld [vmem:[%s0 + $0x190] sm:$0xff]
  %v101 = vld [vmem:[%s0 + $0x198] sm:$0xff]
  %v102 = vld [vmem:[%s0 + $0x1a0] sm:$0xff]
  %v103 = vld [vmem:[%s0 + $0x1a8] sm:$0xff]
  %v104 = vld [vmem:[%s0 + $0x1b0] sm:$0xff]
  %v105 = vld [vmem:[%s0 + $0x1b8] sm:$0xff]
  %v106 = vld [vmem:[%s0 + $0x1c0] sm:$0xff]
  %v107 = vld [vmem:[%s0 + $0x1c8] sm:$0xff]
  %v108 = vld [vmem:[%s0 + $0x1d0] sm:$0xff]
  %v109 = vld [vmem:[%s0 + $0x1d8] sm:$0xff]
  %v110 = vld [vmem:[%s0 + $0x1e0] sm:$0xff]
  %v111 = vld [vmem:[%s0 + $0x1e8] sm:$0xff]
  %v112 = vld [vmem:[%s0 + $0x1f0] sm:$0xff]
  %v113 = vld [vmem:[%s0 + $0x1f8] sm:$0xff]
  %v114 = vld [vmem:[%s1] sm:$0xff]
  %v115 = vld [vmem:[%s1 + $0x8] sm:$0xf]
  %v116 = vld [vmem:[%s2] sm:$0x1]
  %118 = vset.pattern.permute.xlu0 0
  %119 = vperm.xlu0 %118, 0.0
  %v120 = vpop.permute.xlu0 %119
  %123 = vset.pattern.permute.xlu0 0
  %124 = vperm.xlu0 %123, %v52
  %v125 = vpop.permute.xlu0 %124
  %128 = vset.pattern.permute.xlu0 0
  %129 = vperm.xlu0 %128, %v53
  %v130 = vpop.permute.xlu0 %129
  %133 = vset.pattern.permute.xlu0 0
  %134 = vperm.xlu0 %133, %v56
  %v135 = vpop.permute.xlu0 %134
  %138 = vset.pattern.permute.xlu0 0
  %139 = vperm.xlu0 %138, %v57
  %v140 = vpop.permute.xlu0 %139
  %143 = vset.pattern.permute.xlu0 0
  %144 = vperm.xlu0 %143, %v60
  %v145 = vpop.permute.xlu0 %144
  %148 = vset.pattern.permute.xlu0 0
  %149 = vperm.xlu0 %148, %v61
  %v150 = vpop.permute.xlu0 %149
  %153 = vset.pattern.permute.xlu0 0
  %154 = vperm.xlu0 %153, %v64
  %v155 = vpop.permute.xlu0 %154
  %158 = vset.pattern.permute.xlu0 0
  %159 = vperm.xlu0 %158, %v65
  %v160 = vpop.permute.xlu0 %159
  %163 = vset.pattern.permute.xlu0 0
  %164 = vperm.xlu0 %163, %v68
  %v165 = vpop.permute.xlu0 %164
  %168 = vset.pattern.permute.xlu0 0
  %169 = vperm.xlu0 %168, %v69
  %v170 = vpop.permute.xlu0 %169
  %173 = vset.pattern.permute.xlu0 0
  %174 = vperm.xlu0 %173, %v72
  %v175 = vpop.permute.xlu0 %174
  %178 = vset.pattern.permute.xlu0 0
  %179 = vperm.xlu0 %178, %v73
  %v180 = vpop.permute.xlu0 %179
  %183 = vset.pattern.permute.xlu0 0
  %184 = vperm.xlu0 %183, %v76
  %v185 = vpop.permute.xlu0 %184
  %188 = vset.pattern.permute.xlu0 0
  %189 = vperm.xlu0 %188, %v77
  %v190 = vpop.permute.xlu0 %189
  %193 = vset.pattern.permute.xlu0 0
  %194 = vperm.xlu0 %193, %v84
  %v195 = vpop.permute.xlu0 %194
  %198 = vset.pattern.permute.xlu0 0
  %199 = vperm.xlu0 %198, %v85
  %v200 = vpop.permute.xlu0 %199
  %203 = vset.pattern.permute.xlu0 0
  %204 = vperm.xlu0 %203, %v88
  %v205 = vpop.permute.xlu0 %204
  %208 = vset.pattern.permute.xlu0 0
  %209 = vperm.xlu0 %208, %v89
  %v210 = vpop.permute.xlu0 %209
  %213 = vset.pattern.permute.xlu0 0
  %214 = vperm.xlu0 %213, %v92
  %v215 = vpop.permute.xlu0 %214
  %218 = vset.pattern.permute.xlu0 0
  %219 = vperm.xlu0 %218, %v93
  %v220 = vpop.permute.xlu0 %219
  %223 = vset.pattern.permute.xlu0 0
  %224 = vperm.xlu0 %223, %v96
  %v225 = vpop.permute.xlu0 %224
  %228 = vset.pattern.permute.xlu0 0
  %229 = vperm.xlu0 %228, %v97
  %v230 = vpop.permute.xlu0 %229
  %233 = vset.pattern.permute.xlu0 0
  %234 = vperm.xlu0 %233, %v100
  %v235 = vpop.permute.xlu0 %234
  %238 = vset.pattern.permute.xlu0 0
  %239 = vperm.xlu0 %238, %v101
  %v240 = vpop.permute.xlu0 %239
  %243 = vset.pattern.permute.xlu0 0
  %244 = vperm.xlu0 %243, %v104
  %v245 = vpop.permute.xlu0 %244
  %248 = vset.pattern.permute.xlu0 0
  %249 = vperm.xlu0 %248, %v105
  %v250 = vpop.permute.xlu0 %249
  %253 = vset.pattern.permute.xlu0 0
  %254 = vperm.xlu0 %253, %v108
  %v255 = vpop.permute.xlu0 %254
  %258 = vset.pattern.permute.xlu0 0
  %259 = vperm.xlu0 %258, %v109
  %v260 = vpop.permute.xlu0 %259
  %v262 = vlaneseq
  %v263 = vshrl.u32 %v262, 7
  %v264 = vsub.s32 0, %v263
  %v265 = vrot.slane %v114, %v264
  %v266 = vmul.f32 %v120, %v265
  %v267 = vmul.f32 %v125, %v265
  %v268 = vmul.f32 %v130, %v265
  %v269 = vmul.f32 %v135, %v265
  %v270 = vmul.f32 %v140, %v265
  %v271 = vmul.f32 %v145, %v265
  %v272 = vmul.f32 %v150, %v265
  %v273 = vmul.f32 %v155, %v265
  %v274 = vmul.f32 %v160, %v265
  %v275 = vmul.f32 %v165, %v265
  %v276 = vmul.f32 %v170, %v265
  %v277 = vmul.f32 %v175, %v265
  %v278 = vmul.f32 %v180, %v265
  %v279 = vmul.f32 %v185, %v265
  %v280 = vmul.f32 %v190, %v265
  %v281 = vmul.f32 %v195, %v265
  %v282 = vmul.f32 %v200, %v265
  %v283 = vmul.f32 %v205, %v265
  %v284 = vmul.f32 %v210, %v265
  %v285 = vmul.f32 %v215, %v265
  %v286 = vmul.f32 %v220, %v265
  %v287 = vmul.f32 %v225, %v265
  %v288 = vmul.f32 %v230, %v265
  %v289 = vmul.f32 %v235, %v265
  %v290 = vmul.f32 %v240, %v265
  %v291 = vmul.f32 %v245, %v265
  %v292 = vmul.f32 %v250, %v265
  %v293 = vmul.f32 %v255, %v265
  %v294 = vmul.f32 %v260, %v265
  %v295 = vadd.f32 %v266, 0.0
  %v296 = vadd.f32 %v267, 0.0
  %v297 = vadd.f32 %v268, 0.0
  %v298 = vadd.f32 %v269, 0.0
  %v299 = vadd.f32 %v270, 0.0
  %v300 = vadd.f32 %v271, 0.0
  %v301 = vadd.f32 %v272, 0.0
  %v302 = vadd.f32 %v273, 0.0
  %v303 = vadd.f32 %v274, 0.0
  %v304 = vadd.f32 %v275, 0.0
  %v305 = vadd.f32 %v276, 0.0
  %v306 = vadd.f32 %v277, 0.0
  %v307 = vadd.f32 %v278, 0.0
  %v308 = vadd.f32 %v279, 0.0
  %v309 = vadd.f32 %v280, 0.0
  %v310 = vadd.f32 %v281, 0.0
  %v311 = vadd.f32 %v282, 0.0
  %v312 = vadd.f32 %v283, 0.0
  %v313 = vadd.f32 %v284, 0.0
  %v314 = vadd.f32 %v285, 0.0
  %v315 = vadd.f32 %v286, 0.0
  %v316 = vadd.f32 %v287, 0.0
  %v317 = vadd.f32 %v288, 0.0
  %v318 = vadd.f32 %v289, 0.0
  %v319 = vadd.f32 %v290, 0.0
  %v320 = vadd.f32 %v291, 0.0
  %v321 = vadd.f32 %v292, 0.0
  %v322 = vadd.f32 %v293, 0.0
  %v323 = vadd.f32 %v294, 0.0
  %324 = vset.pattern.permute.xlu0 1
  %325 = vperm.xlu0 %324, 0.0
  %v326 = vpop.permute.xlu0 %325
  %328 = vset.pattern.permute.xlu0 1
  %329 = vperm.xlu0 %328, %v52
  %v330 = vpop.permute.xlu0 %329
  %332 = vset.pattern.permute.xlu0 1
  %333 = vperm.xlu0 %332, %v53
  %v334 = vpop.permute.xlu0 %333
  %336 = vset.pattern.permute.xlu0 1
  %337 = vperm.xlu0 %336, %v56
  %v338 = vpop.permute.xlu0 %337
  %340 = vset.pattern.permute.xlu0 1
  %341 = vperm.xlu0 %340, %v57
  %v342 = vpop.permute.xlu0 %341
  %344 = vset.pattern.permute.xlu0 1
  %345 = vperm.xlu0 %344, %v60
  %v346 = vpop.permute.xlu0 %345
  %348 = vset.pattern.permute.xlu0 1
  %349 = vperm.xlu0 %348, %v61
  %v350 = vpop.permute.xlu0 %349
  %352 = vset.pattern.permute.xlu0 1
  %353 = vperm.xlu0 %352, %v64
  %v354 = vpop.permute.xlu0 %353
  %356 = vset.pattern.permute.xlu0 1
  %357 = vperm.xlu0 %356, %v65
  %v358 = vpop.permute.xlu0 %357
  %360 = vset.pattern.permute.xlu0 1
  %361 = vperm.xlu0 %360, %v68
  %v362 = vpop.permute.xlu0 %361
  %364 = vset.pattern.permute.xlu0 1
  %365 = vperm.xlu0 %364, %v69
  %v366 = vpop.permute.xlu0 %365
  %368 = vset.pattern.permute.xlu0 1
  %369 = vperm.xlu0 %368, %v72
  %v370 = vpop.permute.xlu0 %369
  %372 = vset.pattern.permute.xlu0 1
  %373 = vperm.xlu0 %372, %v73
  %v374 = vpop.permute.xlu0 %373
  %376 = vset.pattern.permute.xlu0 1
  %377 = vperm.xlu0 %376, %v76
  %v378 = vpop.permute.xlu0 %377
  %380 = vset.pattern.permute.xlu0 1
  %381 = vperm.xlu0 %380, %v77
  %v382 = vpop.permute.xlu0 %381
  %384 = vset.pattern.permute.xlu0 1
  %385 = vperm.xlu0 %384, %v84
  %v386 = vpop.permute.xlu0 %385
  %388 = vset.pattern.permute.xlu0 1
  %389 = vperm.xlu0 %388, %v85
  %v390 = vpop.permute.xlu0 %389
  %392 = vset.pattern.permute.xlu0 1
  %393 = vperm.xlu0 %392, %v88
  %v394 = vpop.permute.xlu0 %393
  %396 = vset.pattern.permute.xlu0 1
  %397 = vperm.xlu0 %396, %v89
  %v398 = vpop.permute.xlu0 %397
  %400 = vset.pattern.permute.xlu0 1
  %401 = vperm.xlu0 %400, %v92
  %v402 = vpop.permute.xlu0 %401
  %404 = vset.pattern.permute.xlu0 1
  %405 = vperm.xlu0 %404, %v93
  %v406 = vpop.permute.xlu0 %405
  %408 = vset.pattern.permute.xlu0 1
  %409 = vperm.xlu0 %408, %v96
  %v410 = vpop.permute.xlu0 %409
  %412 = vset.pattern.permute.xlu0 1
  %413 = vperm.xlu0 %412, %v97
  %v414 = vpop.permute.xlu0 %413
  %416 = vset.pattern.permute.xlu0 1
  %417 = vperm.xlu0 %416, %v100
  %v418 = vpop.permute.xlu0 %417
  %420 = vset.pattern.permute.xlu0 1
  %421 = vperm.xlu0 %420, %v101
  %v422 = vpop.permute.xlu0 %421
  %424 = vset.pattern.permute.xlu0 1
  %425 = vperm.xlu0 %424, %v104
  %v426 = vpop.permute.xlu0 %425
  %428 = vset.pattern.permute.xlu0 1
  %429 = vperm.xlu0 %428, %v105
  %v430 = vpop.permute.xlu0 %429
  %432 = vset.pattern.permute.xlu0 1
  %433 = vperm.xlu0 %432, %v108
  %v434 = vpop.permute.xlu0 %433
  %436 = vset.pattern.permute.xlu0 1
  %437 = vperm.xlu0 %436, %v109
  %v438 = vpop.permute.xlu0 %437
  %v440 = vlaneseq
  %v441 = vshrl.u32 %v440, 7
  %v442 = vsub.s32 1, %v441
  %v443 = vrot.slane %v114, %v442
  %v444 = vmul.f32 %v326, %v443
  %v445 = vmul.f32 %v330, %v443
  %v446 = vmul.f32 %v334, %v443
  %v447 = vmul.f32 %v338, %v443
  %v448 = vmul.f32 %v342, %v443
  %v449 = vmul.f32 %v346, %v443
  %v450 = vmul.f32 %v350, %v443
  %v451 = vmul.f32 %v354, %v443
  %v452 = vmul.f32 %v358, %v443
  %v453 = vmul.f32 %v362, %v443
  %v454 = vmul.f32 %v366, %v443
  %v455 = vmul.f32 %v370, %v443
  %v456 = vmul.f32 %v374, %v443
  %v457 = vmul.f32 %v378, %v443
  %v458 = vmul.f32 %v382, %v443
  %v459 = vmul.f32 %v386, %v443
  %v460 = vmul.f32 %v390, %v443
  %v461 = vmul.f32 %v394, %v443
  %v462 = vmul.f32 %v398, %v443
  %v463 = vmul.f32 %v402, %v443
  %v464 = vmul.f32 %v406, %v443
  %v465 = vmul.f32 %v410, %v443
  %v466 = vmul.f32 %v414, %v443
  %v467 = vmul.f32 %v418, %v443
  %v468 = vmul.f32 %v422, %v443
  %v469 = vmul.f32 %v426, %v443
  %v470 = vmul.f32 %v430, %v443
  %v471 = vmul.f32 %v434, %v443
  %v472 = vmul.f32 %v438, %v443
  %v473 = vadd.f32 %v295, %v444
  %v474 = vadd.f32 %v296, %v445
  %v475 = vadd.f32 %v297, %v446
  %v476 = vadd.f32 %v298, %v447
  %v477 = vadd.f32 %v299, %v448
  %v478 = vadd.f32 %v300, %v449
  %v479 = vadd.f32 %v301, %v450
  %v480 = vadd.f32 %v302, %v451
  %v481 = vadd.f32 %v303, %v452
  %v482 = vadd.f32 %v304, %v453
  %v483 = vadd.f32 %v305, %v454
  %v484 = vadd.f32 %v306, %v455
  %v485 = vadd.f32 %v307, %v456
  %v486 = vadd.f32 %v308, %v457
  %v487 = vadd.f32 %v309, %v458
  %v488 = vadd.f32 %v310, %v459
  %v489 = vadd.f32 %v311, %v460
  %v490 = vadd.f32 %v312, %v461
  %v491 = vadd.f32 %v313, %v462
  %v492 = vadd.f32 %v314, %v463
  %v493 = vadd.f32 %v315, %v464
  %v494 = vadd.f32 %v316, %v465
  %v495 = vadd.f32 %v317, %v466
  %v496 = vadd.f32 %v318, %v467
  %v497 = vadd.f32 %v319, %v468
  %v498 = vadd.f32 %v320, %v469
  %v499 = vadd.f32 %v321, %v470
  %v500 = vadd.f32 %v322, %v471
  %v501 = vadd.f32 %v323, %v472
  %502 = vset.pattern.permute.xlu0 2
  %503 = vperm.xlu0 %502, 0.0
  %v504 = vpop.permute.xlu0 %503
  %506 = vset.pattern.permute.xlu0 2
  %507 = vperm.xlu0 %506, %v52
  %v508 = vpop.permute.xlu0 %507
  %510 = vset.pattern.permute.xlu0 2
  %511 = vperm.xlu0 %510, %v53
  %v512 = vpop.permute.xlu0 %511
  %514 = vset.pattern.permute.xlu0 2
  %515 = vperm.xlu0 %514, %v56
  %v516 = vpop.permute.xlu0 %515
  %518 = vset.pattern.permute.xlu0 2
  %519 = vperm.xlu0 %518, %v57
  %v520 = vpop.permute.xlu0 %519
  %522 = vset.pattern.permute.xlu0 2
  %523 = vperm.xlu0 %522, %v60
  %v524 = vpop.permute.xlu0 %523
  %526 = vset.pattern.permute.xlu0 2
  %527 = vperm.xlu0 %526, %v61
  %v528 = vpop.permute.xlu0 %527
  %530 = vset.pattern.permute.xlu0 2
  %531 = vperm.xlu0 %530, %v64
  %v532 = vpop.permute.xlu0 %531
  %534 = vset.pattern.permute.xlu0 2
  %535 = vperm.xlu0 %534, %v65
  %v536 = vpop.permute.xlu0 %535
  %538 = vset.pattern.permute.xlu0 2
  %539 = vperm.xlu0 %538, %v68
  %v540 = vpop.permute.xlu0 %539
  %542 = vset.pattern.permute.xlu0 2
  %543 = vperm.xlu0 %542, %v69
  %v544 = vpop.permute.xlu0 %543
  %546 = vset.pattern.permute.xlu0 2
  %547 = vperm.xlu0 %546, %v72
  %v548 = vpop.permute.xlu0 %547
  %550 = vset.pattern.permute.xlu0 2
  %551 = vperm.xlu0 %550, %v73
  %v552 = vpop.permute.xlu0 %551
  %554 = vset.pattern.permute.xlu0 2
  %555 = vperm.xlu0 %554, %v76
  %v556 = vpop.permute.xlu0 %555
  %558 = vset.pattern.permute.xlu0 2
  %559 = vperm.xlu0 %558, %v77
  %v560 = vpop.permute.xlu0 %559
  %562 = vset.pattern.permute.xlu0 2
  %563 = vperm.xlu0 %562, %v84
  %v564 = vpop.permute.xlu0 %563
  %566 = vset.pattern.permute.xlu0 2
  %567 = vperm.xlu0 %566, %v85
  %v568 = vpop.permute.xlu0 %567
  %570 = vset.pattern.permute.xlu0 2
  %571 = vperm.xlu0 %570, %v88
  %v572 = vpop.permute.xlu0 %571
  %574 = vset.pattern.permute.xlu0 2
  %575 = vperm.xlu0 %574, %v89
  %v576 = vpop.permute.xlu0 %575
  %578 = vset.pattern.permute.xlu0 2
  %579 = vperm.xlu0 %578, %v92
  %v580 = vpop.permute.xlu0 %579
  %582 = vset.pattern.permute.xlu0 2
  %583 = vperm.xlu0 %582, %v93
  %v584 = vpop.permute.xlu0 %583
  %586 = vset.pattern.permute.xlu0 2
  %587 = vperm.xlu0 %586, %v96
  %v588 = vpop.permute.xlu0 %587
  %590 = vset.pattern.permute.xlu0 2
  %591 = vperm.xlu0 %590, %v97
  %v592 = vpop.permute.xlu0 %591
  %594 = vset.pattern.permute.xlu0 2
  %595 = vperm.xlu0 %594, %v100
  %v596 = vpop.permute.xlu0 %595
  %598 = vset.pattern.permute.xlu0 2
  %599 = vperm.xlu0 %598, %v101
  %v600 = vpop.permute.xlu0 %599
  %602 = vset.pattern.permute.xlu0 2
  %603 = vperm.xlu0 %602, %v104
  %v604 = vpop.permute.xlu0 %603
  %606 = vset.pattern.permute.xlu0 2
  %607 = vperm.xlu0 %606, %v105
  %v608 = vpop.permute.xlu0 %607
  %610 = vset.pattern.permute.xlu0 2
  %611 = vperm.xlu0 %610, %v108
  %v612 = vpop.permute.xlu0 %611
  %614 = vset.pattern.permute.xlu0 2
  %615 = vperm.xlu0 %614, %v109
  %v616 = vpop.permute.xlu0 %615
  %v618 = vlaneseq
  %v619 = vshrl.u32 %v618, 7
  %v620 = vsub.s32 2, %v619
  %v621 = vrot.slane %v114, %v620
  %v622 = vmul.f32 %v504, %v621
  %v623 = vmul.f32 %v508, %v621
  %v624 = vmul.f32 %v512, %v621
  %v625 = vmul.f32 %v516, %v621
  %v626 = vmul.f32 %v520, %v621
  %v627 = vmul.f32 %v524, %v621
  %v628 = vmul.f32 %v528, %v621
  %v629 = vmul.f32 %v532, %v621
  %v630 = vmul.f32 %v536, %v621
  %v631 = vmul.f32 %v540, %v621
  %v632 = vmul.f32 %v544, %v621
  %v633 = vmul.f32 %v548, %v621
  %v634 = vmul.f32 %v552, %v621
  %v635 = vmul.f32 %v556, %v621
  %v636 = vmul.f32 %v560, %v621
  %v637 = vmul.f32 %v564, %v621
  %v638 = vmul.f32 %v568, %v621
  %v639 = vmul.f32 %v572, %v621
  %v640 = vmul.f32 %v576, %v621
  %v641 = vmul.f32 %v580, %v621
  %v642 = vmul.f32 %v584, %v621
  %v643 = vmul.f32 %v588, %v621
  %v644 = vmul.f32 %v592, %v621
  %v645 = vmul.f32 %v596, %v621
  %v646 = vmul.f32 %v600, %v621
  %v647 = vmul.f32 %v604, %v621
  %v648 = vmul.f32 %v608, %v621
  %v649 = vmul.f32 %v612, %v621
  %v650 = vmul.f32 %v616, %v621
  %v651 = vadd.f32 %v473, %v622
  %v652 = vadd.f32 %v474, %v623
  %v653 = vadd.f32 %v475, %v624
  %v654 = vadd.f32 %v476, %v625
  %v655 = vadd.f32 %v477, %v626
  %v656 = vadd.f32 %v478, %v627
  %v657 = vadd.f32 %v479, %v628
  %v658 = vadd.f32 %v480, %v629
  %v659 = vadd.f32 %v481, %v630
  %v660 = vadd.f32 %v482, %v631
  %v661 = vadd.f32 %v483, %v632
  %v662 = vadd.f32 %v484, %v633
  %v663 = vadd.f32 %v485, %v634
  %v664 = vadd.f32 %v486, %v635
  %v665 = vadd.f32 %v487, %v636
  %v666 = vadd.f32 %v488, %v637
  %v667 = vadd.f32 %v489, %v638
  %v668 = vadd.f32 %v490, %v639
  %v669 = vadd.f32 %v491, %v640
  %v670 = vadd.f32 %v492, %v641
  %v671 = vadd.f32 %v493, %v642
  %v672 = vadd.f32 %v494, %v643
  %v673 = vadd.f32 %v495, %v644
  %v674 = vadd.f32 %v496, %v645
  %v675 = vadd.f32 %v497, %v646
  %v676 = vadd.f32 %v498, %v647
  %v677 = vadd.f32 %v499, %v648
  %v678 = vadd.f32 %v500, %v649
  %v679 = vadd.f32 %v501, %v650
  %680 = vset.pattern.permute.xlu0 3
  %681 = vperm.xlu0 %680, 0.0
  %v682 = vpop.permute.xlu0 %681
  %684 = vset.pattern.permute.xlu0 3
  %685 = vperm.xlu0 %684, %v52
  %v686 = vpop.permute.xlu0 %685
  %688 = vset.pattern.permute.xlu0 3
  %689 = vperm.xlu0 %688, %v53
  %v690 = vpop.permute.xlu0 %689
  %692 = vset.pattern.permute.xlu0 3
  %693 = vperm.xlu0 %692, %v56
  %v694 = vpop.permute.xlu0 %693
  %696 = vset.pattern.permute.xlu0 3
  %697 = vperm.xlu0 %696, %v57
  %v698 = vpop.permute.xlu0 %697
  %700 = vset.pattern.permute.xlu0 3
  %701 = vperm.xlu0 %700, %v60
  %v702 = vpop.permute.xlu0 %701
  %704 = vset.pattern.permute.xlu0 3
  %705 = vperm.xlu0 %704, %v61
  %v706 = vpop.permute.xlu0 %705
  %708 = vset.pattern.permute.xlu0 3
  %709 = vperm.xlu0 %708, %v64
  %v710 = vpop.permute.xlu0 %709
  %712 = vset.pattern.permute.xlu0 3
  %713 = vperm.xlu0 %712, %v65
  %v714 = vpop.permute.xlu0 %713
  %716 = vset.pattern.permute.xlu0 3
  %717 = vperm.xlu0 %716, %v68
  %v718 = vpop.permute.xlu0 %717
  %720 = vset.pattern.permute.xlu0 3
  %721 = vperm.xlu0 %720, %v69
  %v722 = vpop.permute.xlu0 %721
  %724 = vset.pattern.permute.xlu0 3
  %725 = vperm.xlu0 %724, %v72
  %v726 = vpop.permute.xlu0 %725
  %728 = vset.pattern.permute.xlu0 3
  %729 = vperm.xlu0 %728, %v73
  %v730 = vpop.permute.xlu0 %729
  %732 = vset.pattern.permute.xlu0 3
  %733 = vperm.xlu0 %732, %v76
  %v734 = vpop.permute.xlu0 %733
  %736 = vset.pattern.permute.xlu0 3
  %737 = vperm.xlu0 %736, %v77
  %v738 = vpop.permute.xlu0 %737
  %740 = vset.pattern.permute.xlu0 3
  %741 = vperm.xlu0 %740, %v84
  %v742 = vpop.permute.xlu0 %741
  %744 = vset.pattern.permute.xlu0 3
  %745 = vperm.xlu0 %744, %v85
  %v746 = vpop.permute.xlu0 %745
  %748 = vset.pattern.permute.xlu0 3
  %749 = vperm.xlu0 %748, %v88
  %v750 = vpop.permute.xlu0 %749
  %752 = vset.pattern.permute.xlu0 3
  %753 = vperm.xlu0 %752, %v89
  %v754 = vpop.permute.xlu0 %753
  %756 = vset.pattern.permute.xlu0 3
  %757 = vperm.xlu0 %756, %v92
  %v758 = vpop.permute.xlu0 %757
  %760 = vset.pattern.permute.xlu0 3
  %761 = vperm.xlu0 %760, %v93
  %v762 = vpop.permute.xlu0 %761
  %764 = vset.pattern.permute.xlu0 3
  %765 = vperm.xlu0 %764, %v96
  %v766 = vpop.permute.xlu0 %765
  %768 = vset.pattern.permute.xlu0 3
  %769 = vperm.xlu0 %768, %v97
  %v770 = vpop.permute.xlu0 %769
  %772 = vset.pattern.permute.xlu0 3
  %773 = vperm.xlu0 %772, %v100
  %v774 = vpop.permute.xlu0 %773
  %776 = vset.pattern.permute.xlu0 3
  %777 = vperm.xlu0 %776, %v101
  %v778 = vpop.permute.xlu0 %777
  %780 = vset.pattern.permute.xlu0 3
  %781 = vperm.xlu0 %780, %v104
  %v782 = vpop.permute.xlu0 %781
  %784 = vset.pattern.permute.xlu0 3
  %785 = vperm.xlu0 %784, %v105
  %v786 = vpop.permute.xlu0 %785
  %788 = vset.pattern.permute.xlu0 3
  %789 = vperm.xlu0 %788, %v108
  %v790 = vpop.permute.xlu0 %789
  %792 = vset.pattern.permute.xlu0 3
  %793 = vperm.xlu0 %792, %v109
  %v794 = vpop.permute.xlu0 %793
  %v796 = vlaneseq
  %v797 = vshrl.u32 %v796, 7
  %v798 = vsub.s32 3, %v797
  %v799 = vrot.slane %v114, %v798
  %v800 = vmul.f32 %v682, %v799
  %v801 = vmul.f32 %v686, %v799
  %v802 = vmul.f32 %v690, %v799
  %v803 = vmul.f32 %v694, %v799
  %v804 = vmul.f32 %v698, %v799
  %v805 = vmul.f32 %v702, %v799
  %v806 = vmul.f32 %v706, %v799
  %v807 = vmul.f32 %v710, %v799
  %v808 = vmul.f32 %v714, %v799
  %v809 = vmul.f32 %v718, %v799
  %v810 = vmul.f32 %v722, %v799
  %v811 = vmul.f32 %v726, %v799
  %v812 = vmul.f32 %v730, %v799
  %v813 = vmul.f32 %v734, %v799
  %v814 = vmul.f32 %v738, %v799
  %v815 = vmul.f32 %v742, %v799
  %v816 = vmul.f32 %v746, %v799
  %v817 = vmul.f32 %v750, %v799
  %v818 = vmul.f32 %v754, %v799
  %v819 = vmul.f32 %v758, %v799
  %v820 = vmul.f32 %v762, %v799
  %v821 = vmul.f32 %v766, %v799
  %v822 = vmul.f32 %v770, %v799
  %v823 = vmul.f32 %v774, %v799
  %v824 = vmul.f32 %v778, %v799
  %v825 = vmul.f32 %v782, %v799
  %v826 = vmul.f32 %v786, %v799
  %v827 = vmul.f32 %v790, %v799
  %v828 = vmul.f32 %v794, %v799
  %v829 = vadd.f32 %v651, %v800
  %v830 = vadd.f32 %v652, %v801
  %v831 = vadd.f32 %v653, %v802
  %v832 = vadd.f32 %v654, %v803
  %v833 = vadd.f32 %v655, %v804
  %v834 = vadd.f32 %v656, %v805
  %v835 = vadd.f32 %v657, %v806
  %v836 = vadd.f32 %v658, %v807
  %v837 = vadd.f32 %v659, %v808
  %v838 = vadd.f32 %v660, %v809
  %v839 = vadd.f32 %v661, %v810
  %v840 = vadd.f32 %v662, %v811
  %v841 = vadd.f32 %v663, %v812
  %v842 = vadd.f32 %v664, %v813
  %v843 = vadd.f32 %v665, %v814
  %v844 = vadd.f32 %v666, %v815
  %v845 = vadd.f32 %v667, %v816
  %v846 = vadd.f32 %v668, %v817
  %v847 = vadd.f32 %v669, %v818
  %v848 = vadd.f32 %v670, %v819
  %v849 = vadd.f32 %v671, %v820
  %v850 = vadd.f32 %v672, %v821
  %v851 = vadd.f32 %v673, %v822
  %v852 = vadd.f32 %v674, %v823
  %v853 = vadd.f32 %v675, %v824
  %v854 = vadd.f32 %v676, %v825
  %v855 = vadd.f32 %v677, %v826
  %v856 = vadd.f32 %v678, %v827
  %v857 = vadd.f32 %v679, %v828
  %859 = vset.pattern.permute.xlu0 0
  %860 = vperm.xlu0 %859, %v50
  %v861 = vpop.permute.xlu0 %860
  %864 = vset.pattern.permute.xlu0 0
  %865 = vperm.xlu0 %864, %v51
  %v866 = vpop.permute.xlu0 %865
  %869 = vset.pattern.permute.xlu0 0
  %870 = vperm.xlu0 %869, %v54
  %v871 = vpop.permute.xlu0 %870
  %874 = vset.pattern.permute.xlu0 0
  %875 = vperm.xlu0 %874, %v55
  %v876 = vpop.permute.xlu0 %875
  %879 = vset.pattern.permute.xlu0 0
  %880 = vperm.xlu0 %879, %v58
  %v881 = vpop.permute.xlu0 %880
  %884 = vset.pattern.permute.xlu0 0
  %885 = vperm.xlu0 %884, %v59
  %v886 = vpop.permute.xlu0 %885
  %889 = vset.pattern.permute.xlu0 0
  %890 = vperm.xlu0 %889, %v62
  %v891 = vpop.permute.xlu0 %890
  %894 = vset.pattern.permute.xlu0 0
  %895 = vperm.xlu0 %894, %v63
  %v896 = vpop.permute.xlu0 %895
  %899 = vset.pattern.permute.xlu0 0
  %900 = vperm.xlu0 %899, %v66
  %v901 = vpop.permute.xlu0 %900
  %904 = vset.pattern.permute.xlu0 0
  %905 = vperm.xlu0 %904, %v67
  %v906 = vpop.permute.xlu0 %905
  %909 = vset.pattern.permute.xlu0 0
  %910 = vperm.xlu0 %909, %v70
  %v911 = vpop.permute.xlu0 %910
  %914 = vset.pattern.permute.xlu0 0
  %915 = vperm.xlu0 %914, %v71
  %v916 = vpop.permute.xlu0 %915
  %919 = vset.pattern.permute.xlu0 0
  %920 = vperm.xlu0 %919, %v74
  %v921 = vpop.permute.xlu0 %920
  %924 = vset.pattern.permute.xlu0 0
  %925 = vperm.xlu0 %924, %v75
  %v926 = vpop.permute.xlu0 %925
  %929 = vset.pattern.permute.xlu0 0
  %930 = vperm.xlu0 %929, %v78
  %v931 = vpop.permute.xlu0 %930
  %934 = vset.pattern.permute.xlu0 0
  %935 = vperm.xlu0 %934, %v79
  %v936 = vpop.permute.xlu0 %935
  %939 = vset.pattern.permute.xlu0 0
  %940 = vperm.xlu0 %939, %v82
  %v941 = vpop.permute.xlu0 %940
  %944 = vset.pattern.permute.xlu0 0
  %945 = vperm.xlu0 %944, %v83
  %v946 = vpop.permute.xlu0 %945
  %949 = vset.pattern.permute.xlu0 0
  %950 = vperm.xlu0 %949, %v86
  %v951 = vpop.permute.xlu0 %950
  %954 = vset.pattern.permute.xlu0 0
  %955 = vperm.xlu0 %954, %v87
  %v956 = vpop.permute.xlu0 %955
  %959 = vset.pattern.permute.xlu0 0
  %960 = vperm.xlu0 %959, %v90
  %v961 = vpop.permute.xlu0 %960
  %964 = vset.pattern.permute.xlu0 0
  %965 = vperm.xlu0 %964, %v91
  %v966 = vpop.permute.xlu0 %965
  %969 = vset.pattern.permute.xlu0 0
  %970 = vperm.xlu0 %969, %v94
  %v971 = vpop.permute.xlu0 %970
  %974 = vset.pattern.permute.xlu0 0
  %975 = vperm.xlu0 %974, %v95
  %v976 = vpop.permute.xlu0 %975
  %979 = vset.pattern.permute.xlu0 0
  %980 = vperm.xlu0 %979, %v98
  %v981 = vpop.permute.xlu0 %980
  %984 = vset.pattern.permute.xlu0 0
  %985 = vperm.xlu0 %984, %v99
  %v986 = vpop.permute.xlu0 %985
  %989 = vset.pattern.permute.xlu0 0
  %990 = vperm.xlu0 %989, %v102
  %v991 = vpop.permute.xlu0 %990
  %994 = vset.pattern.permute.xlu0 0
  %995 = vperm.xlu0 %994, %v103
  %v996 = vpop.permute.xlu0 %995
  %999 = vset.pattern.permute.xlu0 0
  %1000 = vperm.xlu0 %999, %v106
  %v1001 = vpop.permute.xlu0 %1000
  %1004 = vset.pattern.permute.xlu0 0
  %1005 = vperm.xlu0 %1004, %v107
  %v1006 = vpop.permute.xlu0 %1005
  %1009 = vset.pattern.permute.xlu0 0
  %1010 = vperm.xlu0 %1009, %v110
  %v1011 = vpop.permute.xlu0 %1010
  %1014 = vset.pattern.permute.xlu0 0
  %1015 = vperm.xlu0 %1014, %v111
  %v1016 = vpop.permute.xlu0 %1015
  %v1018 = vlaneseq
  %v1019 = vshrl.u32 %v1018, 7
  %v1020 = vsub.s32 4, %v1019
  %v1021 = vrot.slane %v114, %v1020
  %v1022 = vmul.f32 %v861, %v1021
  %v1023 = vmul.f32 %v866, %v1021
  %v1024 = vmul.f32 %v871, %v1021
  %v1025 = vmul.f32 %v876, %v1021
  %v1026 = vmul.f32 %v881, %v1021
  %v1027 = vmul.f32 %v886, %v1021
  %v1028 = vmul.f32 %v891, %v1021
  %v1029 = vmul.f32 %v896, %v1021
  %v1030 = vmul.f32 %v901, %v1021
  %v1031 = vmul.f32 %v906, %v1021
  %v1032 = vmul.f32 %v911, %v1021
  %v1033 = vmul.f32 %v916, %v1021
  %v1034 = vmul.f32 %v921, %v1021
  %v1035 = vmul.f32 %v926, %v1021
  %v1036 = vmul.f32 %v931, %v1021
  %v1037 = vmul.f32 %v936, %v1021
  %v1038 = vmul.f32 %v941, %v1021
  %v1039 = vmul.f32 %v946, %v1021
  %v1040 = vmul.f32 %v951, %v1021
  %v1041 = vmul.f32 %v956, %v1021
  %v1042 = vmul.f32 %v961, %v1021
  %v1043 = vmul.f32 %v966, %v1021
  %v1044 = vmul.f32 %v971, %v1021
  %v1045 = vmul.f32 %v976, %v1021
  %v1046 = vmul.f32 %v981, %v1021
  %v1047 = vmul.f32 %v986, %v1021
  %v1048 = vmul.f32 %v991, %v1021
  %v1049 = vmul.f32 %v996, %v1021
  %v1050 = vmul.f32 %v1001, %v1021
  %v1051 = vmul.f32 %v1006, %v1021
  %v1052 = vmul.f32 %v1011, %v1021
  %v1053 = vmul.f32 %v1016, %v1021
  %v1054 = vadd.f32 %v829, %v1022
  %v1055 = vadd.f32 %v829, %v1023
  %v1056 = vadd.f32 %v830, %v1024
  %v1057 = vadd.f32 %v831, %v1025
  %v1058 = vadd.f32 %v832, %v1026
  %v1059 = vadd.f32 %v833, %v1027
  %v1060 = vadd.f32 %v834, %v1028
  %v1061 = vadd.f32 %v835, %v1029
  %v1062 = vadd.f32 %v836, %v1030
  %v1063 = vadd.f32 %v837, %v1031
  %v1064 = vadd.f32 %v838, %v1032
  %v1065 = vadd.f32 %v839, %v1033
  %v1066 = vadd.f32 %v840, %v1034
  %v1067 = vadd.f32 %v841, %v1035
  %v1068 = vadd.f32 %v842, %v1036
  %v1069 = vadd.f32 %v843, %v1037
  %v1070 = vadd.f32 %v829, %v1038
  %v1071 = vadd.f32 %v829, %v1039
  %v1072 = vadd.f32 %v844, %v1040
  %v1073 = vadd.f32 %v845, %v1041
  %v1074 = vadd.f32 %v846, %v1042
  %v1075 = vadd.f32 %v847, %v1043
  %v1076 = vadd.f32 %v848, %v1044
  %v1077 = vadd.f32 %v849, %v1045
  %v1078 = vadd.f32 %v850, %v1046
  %v1079 = vadd.f32 %v851, %v1047
  %v1080 = vadd.f32 %v852, %v1048
  %v1081 = vadd.f32 %v853, %v1049
  %v1082 = vadd.f32 %v854, %v1050
  %v1083 = vadd.f32 %v855, %v1051
  %v1084 = vadd.f32 %v856, %v1052
  %v1085 = vadd.f32 %v857, %v1053
  %1086 = vset.pattern.permute.xlu0 1
  %1087 = vperm.xlu0 %1086, %v50
  %v1088 = vpop.permute.xlu0 %1087
  %1090 = vset.pattern.permute.xlu0 1
  %1091 = vperm.xlu0 %1090, %v51
  %v1092 = vpop.permute.xlu0 %1091
  %1094 = vset.pattern.permute.xlu0 1
  %1095 = vperm.xlu0 %1094, %v54
  %v1096 = vpop.permute.xlu0 %1095
  %1098 = vset.pattern.permute.xlu0 1
  %1099 = vperm.xlu0 %1098, %v55
  %v1100 = vpop.permute.xlu0 %1099
  %1102 = vset.pattern.permute.xlu0 1
  %1103 = vperm.xlu0 %1102, %v58
  %v1104 = vpop.permute.xlu0 %1103
  %1106 = vset.pattern.permute.xlu0 1
  %1107 = vperm.xlu0 %1106, %v59
  %v1108 = vpop.permute.xlu0 %1107
  %1110 = vset.pattern.permute.xlu0 1
  %1111 = vperm.xlu0 %1110, %v62
  %v1112 = vpop.permute.xlu0 %1111
  %1114 = vset.pattern.permute.xlu0 1
  %1115 = vperm.xlu0 %1114, %v63
  %v1116 = vpop.permute.xlu0 %1115
  %1118 = vset.pattern.permute.xlu0 1
  %1119 = vperm.xlu0 %1118, %v66
  %v1120 = vpop.permute.xlu0 %1119
  %1122 = vset.pattern.permute.xlu0 1
  %1123 = vperm.xlu0 %1122, %v67
  %v1124 = vpop.permute.xlu0 %1123
  %1126 = vset.pattern.permute.xlu0 1
  %1127 = vperm.xlu0 %1126, %v70
  %v1128 = vpop.permute.xlu0 %1127
  %1130 = vset.pattern.permute.xlu0 1
  %1131 = vperm.xlu0 %1130, %v71
  %v1132 = vpop.permute.xlu0 %1131
  %1134 = vset.pattern.permute.xlu0 1
  %1135 = vperm.xlu0 %1134, %v74
  %v1136 = vpop.permute.xlu0 %1135
  %1138 = vset.pattern.permute.xlu0 1
  %1139 = vperm.xlu0 %1138, %v75
  %v1140 = vpop.permute.xlu0 %1139
  %1142 = vset.pattern.permute.xlu0 1
  %1143 = vperm.xlu0 %1142, %v78
  %v1144 = vpop.permute.xlu0 %1143
  %1146 = vset.pattern.permute.xlu0 1
  %1147 = vperm.xlu0 %1146, %v79
  %v1148 = vpop.permute.xlu0 %1147
  %1150 = vset.pattern.permute.xlu0 1
  %1151 = vperm.xlu0 %1150, %v82
  %v1152 = vpop.permute.xlu0 %1151
  %1154 = vset.pattern.permute.xlu0 1
  %1155 = vperm.xlu0 %1154, %v83
  %v1156 = vpop.permute.xlu0 %1155
  %1158 = vset.pattern.permute.xlu0 1
  %1159 = vperm.xlu0 %1158, %v86
  %v1160 = vpop.permute.xlu0 %1159
  %1162 = vset.pattern.permute.xlu0 1
  %1163 = vperm.xlu0 %1162, %v87
  %v1164 = vpop.permute.xlu0 %1163
  %1166 = vset.pattern.permute.xlu0 1
  %1167 = vperm.xlu0 %1166, %v90
  %v1168 = vpop.permute.xlu0 %1167
  %1170 = vset.pattern.permute.xlu0 1
  %1171 = vperm.xlu0 %1170, %v91
  %v1172 = vpop.permute.xlu0 %1171
  %1174 = vset.pattern.permute.xlu0 1
  %1175 = vperm.xlu0 %1174, %v94
  %v1176 = vpop.permute.xlu0 %1175
  %1178 = vset.pattern.permute.xlu0 1
  %1179 = vperm.xlu0 %1178, %v95
  %v1180 = vpop.permute.xlu0 %1179
  %1182 = vset.pattern.permute.xlu0 1
  %1183 = vperm.xlu0 %1182, %v98
  %v1184 = vpop.permute.xlu0 %1183
  %1186 = vset.pattern.permute.xlu0 1
  %1187 = vperm.xlu0 %1186, %v99
  %v1188 = vpop.permute.xlu0 %1187
  %1190 = vset.pattern.permute.xlu0 1
  %1191 = vperm.xlu0 %1190, %v102
  %v1192 = vpop.permute.xlu0 %1191
  %1194 = vset.pattern.permute.xlu0 1
  %1195 = vperm.xlu0 %1194, %v103
  %v1196 = vpop.permute.xlu0 %1195
  %1198 = vset.pattern.permute.xlu0 1
  %1199 = vperm.xlu0 %1198, %v106
  %v1200 = vpop.permute.xlu0 %1199
  %1202 = vset.pattern.permute.xlu0 1
  %1203 = vperm.xlu0 %1202, %v107
  %v1204 = vpop.permute.xlu0 %1203
  %1206 = vset.pattern.permute.xlu0 1
  %1207 = vperm.xlu0 %1206, %v110
  %v1208 = vpop.permute.xlu0 %1207
  %1210 = vset.pattern.permute.xlu0 1
  %1211 = vperm.xlu0 %1210, %v111
  %v1212 = vpop.permute.xlu0 %1211
  %v1214 = vlaneseq
  %v1215 = vshrl.u32 %v1214, 7
  %v1216 = vsub.s32 5, %v1215
  %v1217 = vrot.slane %v114, %v1216
  %v1218 = vmul.f32 %v1088, %v1217
  %v1219 = vmul.f32 %v1092, %v1217
  %v1220 = vmul.f32 %v1096, %v1217
  %v1221 = vmul.f32 %v1100, %v1217
  %v1222 = vmul.f32 %v1104, %v1217
  %v1223 = vmul.f32 %v1108, %v1217
  %v1224 = vmul.f32 %v1112, %v1217
  %v1225 = vmul.f32 %v1116, %v1217
  %v1226 = vmul.f32 %v1120, %v1217
  %v1227 = vmul.f32 %v1124, %v1217
  %v1228 = vmul.f32 %v1128, %v1217
  %v1229 = vmul.f32 %v1132, %v1217
  %v1230 = vmul.f32 %v1136, %v1217
  %v1231 = vmul.f32 %v1140, %v1217
  %v1232 = vmul.f32 %v1144, %v1217
  %v1233 = vmul.f32 %v1148, %v1217
  %v1234 = vmul.f32 %v1152, %v1217
  %v1235 = vmul.f32 %v1156, %v1217
  %v1236 = vmul.f32 %v1160, %v1217
  %v1237 = vmul.f32 %v1164, %v1217
  %v1238 = vmul.f32 %v1168, %v1217
  %v1239 = vmul.f32 %v1172, %v1217
  %v1240 = vmul.f32 %v1176, %v1217
  %v1241 = vmul.f32 %v1180, %v1217
  %v1242 = vmul.f32 %v1184, %v1217
  %v1243 = vmul.f32 %v1188, %v1217
  %v1244 = vmul.f32 %v1192, %v1217
  %v1245 = vmul.f32 %v1196, %v1217
  %v1246 = vmul.f32 %v1200, %v1217
  %v1247 = vmul.f32 %v1204, %v1217
  %v1248 = vmul.f32 %v1208, %v1217
  %v1249 = vmul.f32 %v1212, %v1217
  %v1250 = vadd.f32 %v1054, %v1218
  %v1251 = vadd.f32 %v1055, %v1219
  %v1252 = vadd.f32 %v1056, %v1220
  %v1253 = vadd.f32 %v1057, %v1221
  %v1254 = vadd.f32 %v1058, %v1222
  %v1255 = vadd.f32 %v1059, %v1223
  %v1256 = vadd.f32 %v1060, %v1224
  %v1257 = vadd.f32 %v1061, %v1225
  %v1258 = vadd.f32 %v1062, %v1226
  %v1259 = vadd.f32 %v1063, %v1227
  %v1260 = vadd.f32 %v1064, %v1228
  %v1261 = vadd.f32 %v1065, %v1229
  %v1262 = vadd.f32 %v1066, %v1230
  %v1263 = vadd.f32 %v1067, %v1231
  %v1264 = vadd.f32 %v1068, %v1232
  %v1265 = vadd.f32 %v1069, %v1233
  %v1266 = vadd.f32 %v1070, %v1234
  %v1267 = vadd.f32 %v1071, %v1235
  %v1268 = vadd.f32 %v1072, %v1236
  %v1269 = vadd.f32 %v1073, %v1237
  %v1270 = vadd.f32 %v1074, %v1238
  %v1271 = vadd.f32 %v1075, %v1239
  %v1272 = vadd.f32 %v1076, %v1240
  %v1273 = vadd.f32 %v1077, %v1241
  %v1274 = vadd.f32 %v1078, %v1242
  %v1275 = vadd.f32 %v1079, %v1243
  %v1276 = vadd.f32 %v1080, %v1244
  %v1277 = vadd.f32 %v1081, %v1245
  %v1278 = vadd.f32 %v1082, %v1246
  %v1279 = vadd.f32 %v1083, %v1247
  %v1280 = vadd.f32 %v1084, %v1248
  %v1281 = vadd.f32 %v1085, %v1249
  %1282 = vset.pattern.permute.xlu0 2
  %1283 = vperm.xlu0 %1282, %v50
  %v1284 = vpop.permute.xlu0 %1283
  %1286 = vset.pattern.permute.xlu0 2
  %1287 = vperm.xlu0 %1286, %v51
  %v1288 = vpop.permute.xlu0 %1287
  %1290 = vset.pattern.permute.xlu0 2
  %1291 = vperm.xlu0 %1290, %v54
  %v1292 = vpop.permute.xlu0 %1291
  %1294 = vset.pattern.permute.xlu0 2
  %1295 = vperm.xlu0 %1294, %v55
  %v1296 = vpop.permute.xlu0 %1295
  %1298 = vset.pattern.permute.xlu0 2
  %1299 = vperm.xlu0 %1298, %v58
  %v1300 = vpop.permute.xlu0 %1299
  %1302 = vset.pattern.permute.xlu0 2
  %1303 = vperm.xlu0 %1302, %v59
  %v1304 = vpop.permute.xlu0 %1303
  %1306 = vset.pattern.permute.xlu0 2
  %1307 = vperm.xlu0 %1306, %v62
  %v1308 = vpop.permute.xlu0 %1307
  %1310 = vset.pattern.permute.xlu0 2
  %1311 = vperm.xlu0 %1310, %v63
  %v1312 = vpop.permute.xlu0 %1311
  %1314 = vset.pattern.permute.xlu0 2
  %1315 = vperm.xlu0 %1314, %v66
  %v1316 = vpop.permute.xlu0 %1315
  %1318 = vset.pattern.permute.xlu0 2
  %1319 = vperm.xlu0 %1318, %v67
  %v1320 = vpop.permute.xlu0 %1319
  %1322 = vset.pattern.permute.xlu0 2
  %1323 = vperm.xlu0 %1322, %v70
  %v1324 = vpop.permute.xlu0 %1323
  %1326 = vset.pattern.permute.xlu0 2
  %1327 = vperm.xlu0 %1326, %v71
  %v1328 = vpop.permute.xlu0 %1327
  %1330 = vset.pattern.permute.xlu0 2
  %1331 = vperm.xlu0 %1330, %v74
  %v1332 = vpop.permute.xlu0 %1331
  %1334 = vset.pattern.permute.xlu0 2
  %1335 = vperm.xlu0 %1334, %v75
  %v1336 = vpop.permute.xlu0 %1335
  %1338 = vset.pattern.permute.xlu0 2
  %1339 = vperm.xlu0 %1338, %v78
  %v1340 = vpop.permute.xlu0 %1339
  %1342 = vset.pattern.permute.xlu0 2
  %1343 = vperm.xlu0 %1342, %v79
  %v1344 = vpop.permute.xlu0 %1343
  %1346 = vset.pattern.permute.xlu0 2
  %1347 = vperm.xlu0 %1346, %v82
  %v1348 = vpop.permute.xlu0 %1347
  %1350 = vset.pattern.permute.xlu0 2
  %1351 = vperm.xlu0 %1350, %v83
  %v1352 = vpop.permute.xlu0 %1351
  %1354 = vset.pattern.permute.xlu0 2
  %1355 = vperm.xlu0 %1354, %v86
  %v1356 = vpop.permute.xlu0 %1355
  %1358 = vset.pattern.permute.xlu0 2
  %1359 = vperm.xlu0 %1358, %v87
  %v1360 = vpop.permute.xlu0 %1359
  %1362 = vset.pattern.permute.xlu0 2
  %1363 = vperm.xlu0 %1362, %v90
  %v1364 = vpop.permute.xlu0 %1363
  %1366 = vset.pattern.permute.xlu0 2
  %1367 = vperm.xlu0 %1366, %v91
  %v1368 = vpop.permute.xlu0 %1367
  %1370 = vset.pattern.permute.xlu0 2
  %1371 = vperm.xlu0 %1370, %v94
  %v1372 = vpop.permute.xlu0 %1371
  %1374 = vset.pattern.permute.xlu0 2
  %1375 = vperm.xlu0 %1374, %v95
  %v1376 = vpop.permute.xlu0 %1375
  %1378 = vset.pattern.permute.xlu0 2
  %1379 = vperm.xlu0 %1378, %v98
  %v1380 = vpop.permute.xlu0 %1379
  %1382 = vset.pattern.permute.xlu0 2
  %1383 = vperm.xlu0 %1382, %v99
  %v1384 = vpop.permute.xlu0 %1383
  %1386 = vset.pattern.permute.xlu0 2
  %1387 = vperm.xlu0 %1386, %v102
  %v1388 = vpop.permute.xlu0 %1387
  %1390 = vset.pattern.permute.xlu0 2
  %1391 = vperm.xlu0 %1390, %v103
  %v1392 = vpop.permute.xlu0 %1391
  %1394 = vset.pattern.permute.xlu0 2
  %1395 = vperm.xlu0 %1394, %v106
  %v1396 = vpop.permute.xlu0 %1395
  %1398 = vset.pattern.permute.xlu0 2
  %1399 = vperm.xlu0 %1398, %v107
  %v1400 = vpop.permute.xlu0 %1399
  %1402 = vset.pattern.permute.xlu0 2
  %1403 = vperm.xlu0 %1402, %v110
  %v1404 = vpop.permute.xlu0 %1403
  %1406 = vset.pattern.permute.xlu0 2
  %1407 = vperm.xlu0 %1406, %v111
  %v1408 = vpop.permute.xlu0 %1407
  %v1410 = vlaneseq
  %v1411 = vshrl.u32 %v1410, 7
  %v1412 = vsub.s32 6, %v1411
  %v1413 = vrot.slane %v114, %v1412
  %v1414 = vmul.f32 %v1284, %v1413
  %v1415 = vmul.f32 %v1288, %v1413
  %v1416 = vmul.f32 %v1292, %v1413
  %v1417 = vmul.f32 %v1296, %v1413
  %v1418 = vmul.f32 %v1300, %v1413
  %v1419 = vmul.f32 %v1304, %v1413
  %v1420 = vmul.f32 %v1308, %v1413
  %v1421 = vmul.f32 %v1312, %v1413
  %v1422 = vmul.f32 %v1316, %v1413
  %v1423 = vmul.f32 %v1320, %v1413
  %v1424 = vmul.f32 %v1324, %v1413
  %v1425 = vmul.f32 %v1328, %v1413
  %v1426 = vmul.f32 %v1332, %v1413
  %v1427 = vmul.f32 %v1336, %v1413
  %v1428 = vmul.f32 %v1340, %v1413
  %v1429 = vmul.f32 %v1344, %v1413
  %v1430 = vmul.f32 %v1348, %v1413
  %v1431 = vmul.f32 %v1352, %v1413
  %v1432 = vmul.f32 %v1356, %v1413
  %v1433 = vmul.f32 %v1360, %v1413
  %v1434 = vmul.f32 %v1364, %v1413
  %v1435 = vmul.f32 %v1368, %v1413
  %v1436 = vmul.f32 %v1372, %v1413
  %v1437 = vmul.f32 %v1376, %v1413
  %v1438 = vmul.f32 %v1380, %v1413
  %v1439 = vmul.f32 %v1384, %v1413
  %v1440 = vmul.f32 %v1388, %v1413
  %v1441 = vmul.f32 %v1392, %v1413
  %v1442 = vmul.f32 %v1396, %v1413
  %v1443 = vmul.f32 %v1400, %v1413
  %v1444 = vmul.f32 %v1404, %v1413
  %v1445 = vmul.f32 %v1408, %v1413
  %v1446 = vadd.f32 %v1250, %v1414
  %v1447 = vadd.f32 %v1251, %v1415
  %v1448 = vadd.f32 %v1252, %v1416
  %v1449 = vadd.f32 %v1253, %v1417
  %v1450 = vadd.f32 %v1254, %v1418
  %v1451 = vadd.f32 %v1255, %v1419
  %v1452 = vadd.f32 %v1256, %v1420
  %v1453 = vadd.f32 %v1257, %v1421
  %v1454 = vadd.f32 %v1258, %v1422
  %v1455 = vadd.f32 %v1259, %v1423
  %v1456 = vadd.f32 %v1260, %v1424
  %v1457 = vadd.f32 %v1261, %v1425
  %v1458 = vadd.f32 %v1262, %v1426
  %v1459 = vadd.f32 %v1263, %v1427
  %v1460 = vadd.f32 %v1264, %v1428
  %v1461 = vadd.f32 %v1265, %v1429
  %v1462 = vadd.f32 %v1266, %v1430
  %v1463 = vadd.f32 %v1267, %v1431
  %v1464 = vadd.f32 %v1268, %v1432
  %v1465 = vadd.f32 %v1269, %v1433
  %v1466 = vadd.f32 %v1270, %v1434
  %v1467 = vadd.f32 %v1271, %v1435
  %v1468 = vadd.f32 %v1272, %v1436
  %v1469 = vadd.f32 %v1273, %v1437
  %v1470 = vadd.f32 %v1274, %v1438
  %v1471 = vadd.f32 %v1275, %v1439
  %v1472 = vadd.f32 %v1276, %v1440
  %v1473 = vadd.f32 %v1277, %v1441
  %v1474 = vadd.f32 %v1278, %v1442
  %v1475 = vadd.f32 %v1279, %v1443
  %v1476 = vadd.f32 %v1280, %v1444
  %v1477 = vadd.f32 %v1281, %v1445
  %1478 = vset.pattern.permute.xlu0 3
  %1479 = vperm.xlu0 %1478, %v50
  %v1480 = vpop.permute.xlu0 %1479
  %1482 = vset.pattern.permute.xlu0 3
  %1483 = vperm.xlu0 %1482, %v51
  %v1484 = vpop.permute.xlu0 %1483
  %1486 = vset.pattern.permute.xlu0 3
  %1487 = vperm.xlu0 %1486, %v54
  %v1488 = vpop.permute.xlu0 %1487
  %1490 = vset.pattern.permute.xlu0 3
  %1491 = vperm.xlu0 %1490, %v55
  %v1492 = vpop.permute.xlu0 %1491
  %1494 = vset.pattern.permute.xlu0 3
  %1495 = vperm.xlu0 %1494, %v58
  %v1496 = vpop.permute.xlu0 %1495
  %1498 = vset.pattern.permute.xlu0 3
  %1499 = vperm.xlu0 %1498, %v59
  %v1500 = vpop.permute.xlu0 %1499
  %1502 = vset.pattern.permute.xlu0 3
  %1503 = vperm.xlu0 %1502, %v62
  %v1504 = vpop.permute.xlu0 %1503
  %1506 = vset.pattern.permute.xlu0 3
  %1507 = vperm.xlu0 %1506, %v63
  %v1508 = vpop.permute.xlu0 %1507
  %1510 = vset.pattern.permute.xlu0 3
  %1511 = vperm.xlu0 %1510, %v66
  %v1512 = vpop.permute.xlu0 %1511
  %1514 = vset.pattern.permute.xlu0 3
  %1515 = vperm.xlu0 %1514, %v67
  %v1516 = vpop.permute.xlu0 %1515
  %1518 = vset.pattern.permute.xlu0 3
  %1519 = vperm.xlu0 %1518, %v70
  %v1520 = vpop.permute.xlu0 %1519
  %1522 = vset.pattern.permute.xlu0 3
  %1523 = vperm.xlu0 %1522, %v71
  %v1524 = vpop.permute.xlu0 %1523
  %1526 = vset.pattern.permute.xlu0 3
  %1527 = vperm.xlu0 %1526, %v74
  %v1528 = vpop.permute.xlu0 %1527
  %1530 = vset.pattern.permute.xlu0 3
  %1531 = vperm.xlu0 %1530, %v75
  %v1532 = vpop.permute.xlu0 %1531
  %1534 = vset.pattern.permute.xlu0 3
  %1535 = vperm.xlu0 %1534, %v78
  %v1536 = vpop.permute.xlu0 %1535
  %1538 = vset.pattern.permute.xlu0 3
  %1539 = vperm.xlu0 %1538, %v79
  %v1540 = vpop.permute.xlu0 %1539
  %1542 = vset.pattern.permute.xlu0 3
  %1543 = vperm.xlu0 %1542, %v82
  %v1544 = vpop.permute.xlu0 %1543
  %1546 = vset.pattern.permute.xlu0 3
  %1547 = vperm.xlu0 %1546, %v83
  %v1548 = vpop.permute.xlu0 %1547
  %1550 = vset.pattern.permute.xlu0 3
  %1551 = vperm.xlu0 %1550, %v86
  %v1552 = vpop.permute.xlu0 %1551
  %1554 = vset.pattern.permute.xlu0 3
  %1555 = vperm.xlu0 %1554, %v87
  %v1556 = vpop.permute.xlu0 %1555
  %1558 = vset.pattern.permute.xlu0 3
  %1559 = vperm.xlu0 %1558, %v90
  %v1560 = vpop.permute.xlu0 %1559
  %1562 = vset.pattern.permute.xlu0 3
  %1563 = vperm.xlu0 %1562, %v91
  %v1564 = vpop.permute.xlu0 %1563
  %1566 = vset.pattern.permute.xlu0 3
  %1567 = vperm.xlu0 %1566, %v94
  %v1568 = vpop.permute.xlu0 %1567
  %1570 = vset.pattern.permute.xlu0 3
  %1571 = vperm.xlu0 %1570, %v95
  %v1572 = vpop.permute.xlu0 %1571
  %1574 = vset.pattern.permute.xlu0 3
  %1575 = vperm.xlu0 %1574, %v98
  %v1576 = vpop.permute.xlu0 %1575
  %1578 = vset.pattern.permute.xlu0 3
  %1579 = vperm.xlu0 %1578, %v99
  %v1580 = vpop.permute.xlu0 %1579
  %1582 = vset.pattern.permute.xlu0 3
  %1583 = vperm.xlu0 %1582, %v102
  %v1584 = vpop.permute.xlu0 %1583
  %1586 = vset.pattern.permute.xlu0 3
  %1587 = vperm.xlu0 %1586, %v103
  %v1588 = vpop.permute.xlu0 %1587
  %1590 = vset.pattern.permute.xlu0 3
  %1591 = vperm.xlu0 %1590, %v106
  %v1592 = vpop.permute.xlu0 %1591
  %1594 = vset.pattern.permute.xlu0 3
  %1595 = vperm.xlu0 %1594, %v107
  %v1596 = vpop.permute.xlu0 %1595
  %1598 = vset.pattern.permute.xlu0 3
  %1599 = vperm.xlu0 %1598, %v110
  %v1600 = vpop.permute.xlu0 %1599
  %1602 = vset.pattern.permute.xlu0 3
  %1603 = vperm.xlu0 %1602, %v111
  %v1604 = vpop.permute.xlu0 %1603
  %v1606 = vlaneseq
  %v1607 = vshrl.u32 %v1606, 7
  %v1608 = vsub.s32 7, %v1607
  %v1609 = vrot.slane %v114, %v1608
  %v1610 = vmul.f32 %v1480, %v1609
  %v1611 = vmul.f32 %v1484, %v1609
  %v1612 = vmul.f32 %v1488, %v1609
  %v1613 = vmul.f32 %v1492, %v1609
  %v1614 = vmul.f32 %v1496, %v1609
  %v1615 = vmul.f32 %v1500, %v1609
  %v1616 = vmul.f32 %v1504, %v1609
  %v1617 = vmul.f32 %v1508, %v1609
  %v1618 = vmul.f32 %v1512, %v1609
  %v1619 = vmul.f32 %v1516, %v1609
  %v1620 = vmul.f32 %v1520, %v1609
  %v1621 = vmul.f32 %v1524, %v1609
  %v1622 = vmul.f32 %v1528, %v1609
  %v1623 = vmul.f32 %v1532, %v1609
  %v1624 = vmul.f32 %v1536, %v1609
  %v1625 = vmul.f32 %v1540, %v1609
  %v1626 = vmul.f32 %v1544, %v1609
  %v1627 = vmul.f32 %v1548, %v1609
  %v1628 = vmul.f32 %v1552, %v1609
  %v1629 = vmul.f32 %v1556, %v1609
  %v1630 = vmul.f32 %v1560, %v1609
  %v1631 = vmul.f32 %v1564, %v1609
  %v1632 = vmul.f32 %v1568, %v1609
  %v1633 = vmul.f32 %v1572, %v1609
  %v1634 = vmul.f32 %v1576, %v1609
  %v1635 = vmul.f32 %v1580, %v1609
  %v1636 = vmul.f32 %v1584, %v1609
  %v1637 = vmul.f32 %v1588, %v1609
  %v1638 = vmul.f32 %v1592, %v1609
  %v1639 = vmul.f32 %v1596, %v1609
  %v1640 = vmul.f32 %v1600, %v1609
  %v1641 = vmul.f32 %v1604, %v1609
  %v1642 = vadd.f32 %v1446, %v1610
  %v1643 = vadd.f32 %v1447, %v1611
  %v1644 = vadd.f32 %v1448, %v1612
  %v1645 = vadd.f32 %v1449, %v1613
  %v1646 = vadd.f32 %v1450, %v1614
  %v1647 = vadd.f32 %v1451, %v1615
  %v1648 = vadd.f32 %v1452, %v1616
  %v1649 = vadd.f32 %v1453, %v1617
  %v1650 = vadd.f32 %v1454, %v1618
  %v1651 = vadd.f32 %v1455, %v1619
  %v1652 = vadd.f32 %v1456, %v1620
  %v1653 = vadd.f32 %v1457, %v1621
  %v1654 = vadd.f32 %v1458, %v1622
  %v1655 = vadd.f32 %v1459, %v1623
  %v1656 = vadd.f32 %v1460, %v1624
  %v1657 = vadd.f32 %v1461, %v1625
  %v1658 = vadd.f32 %v1462, %v1626
  %v1659 = vadd.f32 %v1463, %v1627
  %v1660 = vadd.f32 %v1464, %v1628
  %v1661 = vadd.f32 %v1465, %v1629
  %v1662 = vadd.f32 %v1466, %v1630
  %v1663 = vadd.f32 %v1467, %v1631
  %v1664 = vadd.f32 %v1468, %v1632
  %v1665 = vadd.f32 %v1469, %v1633
  %v1666 = vadd.f32 %v1470, %v1634
  %v1667 = vadd.f32 %v1471, %v1635
  %v1668 = vadd.f32 %v1472, %v1636
  %v1669 = vadd.f32 %v1473, %v1637
  %v1670 = vadd.f32 %v1474, %v1638
  %v1671 = vadd.f32 %v1475, %v1639
  %v1672 = vadd.f32 %v1476, %v1640
  %v1673 = vadd.f32 %v1477, %v1641
  %1675 = vset.pattern.permute.xlu0 0
  %1676 = vperm.xlu0 %1675, %v80
  %v1677 = vpop.permute.xlu0 %1676
  %1680 = vset.pattern.permute.xlu0 0
  %1681 = vperm.xlu0 %1680, %v81
  %v1682 = vpop.permute.xlu0 %1681
  %1685 = vset.pattern.permute.xlu0 0
  %1686 = vperm.xlu0 %1685, %v112
  %v1687 = vpop.permute.xlu0 %1686
  %1690 = vset.pattern.permute.xlu0 0
  %1691 = vperm.xlu0 %1690, %v113
  %v1692 = vpop.permute.xlu0 %1691
  %v1694 = vlaneseq
  %v1695 = vshrl.u32 %v1694, 7
  %v1696 = vsub.s32 0, %v1695
  %v1697 = vrot.slane %v115, %v1696
  %v1698 = vmul.f32 %v125, %v1697
  %v1699 = vmul.f32 %v130, %v1697
  %v1700 = vmul.f32 %v135, %v1697
  %v1701 = vmul.f32 %v140, %v1697
  %v1702 = vmul.f32 %v145, %v1697
  %v1703 = vmul.f32 %v150, %v1697
  %v1704 = vmul.f32 %v155, %v1697
  %v1705 = vmul.f32 %v160, %v1697
  %v1706 = vmul.f32 %v165, %v1697
  %v1707 = vmul.f32 %v170, %v1697
  %v1708 = vmul.f32 %v175, %v1697
  %v1709 = vmul.f32 %v180, %v1697
  %v1710 = vmul.f32 %v185, %v1697
  %v1711 = vmul.f32 %v190, %v1697
  %v1712 = vmul.f32 %v1677, %v1697
  %v1713 = vmul.f32 %v1682, %v1697
  %v1714 = vmul.f32 %v195, %v1697
  %v1715 = vmul.f32 %v200, %v1697
  %v1716 = vmul.f32 %v205, %v1697
  %v1717 = vmul.f32 %v210, %v1697
  %v1718 = vmul.f32 %v215, %v1697
  %v1719 = vmul.f32 %v220, %v1697
  %v1720 = vmul.f32 %v225, %v1697
  %v1721 = vmul.f32 %v230, %v1697
  %v1722 = vmul.f32 %v235, %v1697
  %v1723 = vmul.f32 %v240, %v1697
  %v1724 = vmul.f32 %v245, %v1697
  %v1725 = vmul.f32 %v250, %v1697
  %v1726 = vmul.f32 %v255, %v1697
  %v1727 = vmul.f32 %v260, %v1697
  %v1728 = vmul.f32 %v1687, %v1697
  %v1729 = vmul.f32 %v1692, %v1697
  %v1730 = vadd.f32 %v1642, %v1698
  %v1731 = vadd.f32 %v1643, %v1699
  %v1732 = vadd.f32 %v1644, %v1700
  %v1733 = vadd.f32 %v1645, %v1701
  %v1734 = vadd.f32 %v1646, %v1702
  %v1735 = vadd.f32 %v1647, %v1703
  %v1736 = vadd.f32 %v1648, %v1704
  %v1737 = vadd.f32 %v1649, %v1705
  %v1738 = vadd.f32 %v1650, %v1706
  %v1739 = vadd.f32 %v1651, %v1707
  %v1740 = vadd.f32 %v1652, %v1708
  %v1741 = vadd.f32 %v1653, %v1709
  %v1742 = vadd.f32 %v1654, %v1710
  %v1743 = vadd.f32 %v1655, %v1711
  %v1744 = vadd.f32 %v1656, %v1712
  %v1745 = vadd.f32 %v1657, %v1713
  %v1746 = vadd.f32 %v1658, %v1714
  %v1747 = vadd.f32 %v1659, %v1715
  %v1748 = vadd.f32 %v1660, %v1716
  %v1749 = vadd.f32 %v1661, %v1717
  %v1750 = vadd.f32 %v1662, %v1718
  %v1751 = vadd.f32 %v1663, %v1719
  %v1752 = vadd.f32 %v1664, %v1720
  %v1753 = vadd.f32 %v1665, %v1721
  %v1754 = vadd.f32 %v1666, %v1722
  %v1755 = vadd.f32 %v1667, %v1723
  %v1756 = vadd.f32 %v1668, %v1724
  %v1757 = vadd.f32 %v1669, %v1725
  %v1758 = vadd.f32 %v1670, %v1726
  %v1759 = vadd.f32 %v1671, %v1727
  %v1760 = vadd.f32 %v1672, %v1728
  %v1761 = vadd.f32 %v1673, %v1729
  %1762 = vset.pattern.permute.xlu0 1
  %1763 = vperm.xlu0 %1762, %v80
  %v1764 = vpop.permute.xlu0 %1763
  %1766 = vset.pattern.permute.xlu0 1
  %1767 = vperm.xlu0 %1766, %v81
  %v1768 = vpop.permute.xlu0 %1767
  %1770 = vset.pattern.permute.xlu0 1
  %1771 = vperm.xlu0 %1770, %v112
  %v1772 = vpop.permute.xlu0 %1771
  %1774 = vset.pattern.permute.xlu0 1
  %1775 = vperm.xlu0 %1774, %v113
  %v1776 = vpop.permute.xlu0 %1775
  %v1778 = vlaneseq
  %v1779 = vshrl.u32 %v1778, 7
  %v1780 = vsub.s32 1, %v1779
  %v1781 = vrot.slane %v115, %v1780
  %v1782 = vmul.f32 %v330, %v1781
  %v1783 = vmul.f32 %v334, %v1781
  %v1784 = vmul.f32 %v338, %v1781
  %v1785 = vmul.f32 %v342, %v1781
  %v1786 = vmul.f32 %v346, %v1781
  %v1787 = vmul.f32 %v350, %v1781
  %v1788 = vmul.f32 %v354, %v1781
  %v1789 = vmul.f32 %v358, %v1781
  %v1790 = vmul.f32 %v362, %v1781
  %v1791 = vmul.f32 %v366, %v1781
  %v1792 = vmul.f32 %v370, %v1781
  %v1793 = vmul.f32 %v374, %v1781
  %v1794 = vmul.f32 %v378, %v1781
  %v1795 = vmul.f32 %v382, %v1781
  %v1796 = vmul.f32 %v1764, %v1781
  %v1797 = vmul.f32 %v1768, %v1781
  %v1798 = vmul.f32 %v386, %v1781
  %v1799 = vmul.f32 %v390, %v1781
  %v1800 = vmul.f32 %v394, %v1781
  %v1801 = vmul.f32 %v398, %v1781
  %v1802 = vmul.f32 %v402, %v1781
  %v1803 = vmul.f32 %v406, %v1781
  %v1804 = vmul.f32 %v410, %v1781
  %v1805 = vmul.f32 %v414, %v1781
  %v1806 = vmul.f32 %v418, %v1781
  %v1807 = vmul.f32 %v422, %v1781
  %v1808 = vmul.f32 %v426, %v1781
  %v1809 = vmul.f32 %v430, %v1781
  %v1810 = vmul.f32 %v434, %v1781
  %v1811 = vmul.f32 %v438, %v1781
  %v1812 = vmul.f32 %v1772, %v1781
  %v1813 = vmul.f32 %v1776, %v1781
  %v1814 = vadd.f32 %v1730, %v1782
  %v1815 = vadd.f32 %v1731, %v1783
  %v1816 = vadd.f32 %v1732, %v1784
  %v1817 = vadd.f32 %v1733, %v1785
  %v1818 = vadd.f32 %v1734, %v1786
  %v1819 = vadd.f32 %v1735, %v1787
  %v1820 = vadd.f32 %v1736, %v1788
  %v1821 = vadd.f32 %v1737, %v1789
  %v1822 = vadd.f32 %v1738, %v1790
  %v1823 = vadd.f32 %v1739, %v1791
  %v1824 = vadd.f32 %v1740, %v1792
  %v1825 = vadd.f32 %v1741, %v1793
  %v1826 = vadd.f32 %v1742, %v1794
  %v1827 = vadd.f32 %v1743, %v1795
  %v1828 = vadd.f32 %v1744, %v1796
  %v1829 = vadd.f32 %v1745, %v1797
  %v1830 = vadd.f32 %v1746, %v1798
  %v1831 = vadd.f32 %v1747, %v1799
  %v1832 = vadd.f32 %v1748, %v1800
  %v1833 = vadd.f32 %v1749, %v1801
  %v1834 = vadd.f32 %v1750, %v1802
  %v1835 = vadd.f32 %v1751, %v1803
  %v1836 = vadd.f32 %v1752, %v1804
  %v1837 = vadd.f32 %v1753, %v1805
  %v1838 = vadd.f32 %v1754, %v1806
  %v1839 = vadd.f32 %v1755, %v1807
  %v1840 = vadd.f32 %v1756, %v1808
  %v1841 = vadd.f32 %v1757, %v1809
  %v1842 = vadd.f32 %v1758, %v1810
  %v1843 = vadd.f32 %v1759, %v1811
  %v1844 = vadd.f32 %v1760, %v1812
  %v1845 = vadd.f32 %v1761, %v1813
  %1846 = vset.pattern.permute.xlu0 2
  %1847 = vperm.xlu0 %1846, %v80
  %v1848 = vpop.permute.xlu0 %1847
  %1850 = vset.pattern.permute.xlu0 2
  %1851 = vperm.xlu0 %1850, %v81
  %v1852 = vpop.permute.xlu0 %1851
  %1854 = vset.pattern.permute.xlu0 2
  %1855 = vperm.xlu0 %1854, %v112
  %v1856 = vpop.permute.xlu0 %1855
  %1858 = vset.pattern.permute.xlu0 2
  %1859 = vperm.xlu0 %1858, %v113
  %v1860 = vpop.permute.xlu0 %1859
  %v1862 = vlaneseq
  %v1863 = vshrl.u32 %v1862, 7
  %v1864 = vsub.s32 2, %v1863
  %v1865 = vrot.slane %v115, %v1864
  %v1866 = vmul.f32 %v508, %v1865
  %v1867 = vmul.f32 %v512, %v1865
  %v1868 = vmul.f32 %v516, %v1865
  %v1869 = vmul.f32 %v520, %v1865
  %v1870 = vmul.f32 %v524, %v1865
  %v1871 = vmul.f32 %v528, %v1865
  %v1872 = vmul.f32 %v532, %v1865
  %v1873 = vmul.f32 %v536, %v1865
  %v1874 = vmul.f32 %v540, %v1865
  %v1875 = vmul.f32 %v544, %v1865
  %v1876 = vmul.f32 %v548, %v1865
  %v1877 = vmul.f32 %v552, %v1865
  %v1878 = vmul.f32 %v556, %v1865
  %v1879 = vmul.f32 %v560, %v1865
  %v1880 = vmul.f32 %v1848, %v1865
  %v1881 = vmul.f32 %v1852, %v1865
  %v1882 = vmul.f32 %v564, %v1865
  %v1883 = vmul.f32 %v568, %v1865
  %v1884 = vmul.f32 %v572, %v1865
  %v1885 = vmul.f32 %v576, %v1865
  %v1886 = vmul.f32 %v580, %v1865
  %v1887 = vmul.f32 %v584, %v1865
  %v1888 = vmul.f32 %v588, %v1865
  %v1889 = vmul.f32 %v592, %v1865
  %v1890 = vmul.f32 %v596, %v1865
  %v1891 = vmul.f32 %v600, %v1865
  %v1892 = vmul.f32 %v604, %v1865
  %v1893 = vmul.f32 %v608, %v1865
  %v1894 = vmul.f32 %v612, %v1865
  %v1895 = vmul.f32 %v616, %v1865
  %v1896 = vmul.f32 %v1856, %v1865
  %v1897 = vmul.f32 %v1860, %v1865
  %v1898 = vadd.f32 %v1814, %v1866
  %v1899 = vadd.f32 %v1815, %v1867
  %v1900 = vadd.f32 %v1816, %v1868
  %v1901 = vadd.f32 %v1817, %v1869
  %v1902 = vadd.f32 %v1818, %v1870
  %v1903 = vadd.f32 %v1819, %v1871
  %v1904 = vadd.f32 %v1820, %v1872
  %v1905 = vadd.f32 %v1821, %v1873
  %v1906 = vadd.f32 %v1822, %v1874
  %v1907 = vadd.f32 %v1823, %v1875
  %v1908 = vadd.f32 %v1824, %v1876
  %v1909 = vadd.f32 %v1825, %v1877
  %v1910 = vadd.f32 %v1826, %v1878
  %v1911 = vadd.f32 %v1827, %v1879
  %v1912 = vadd.f32 %v1828, %v1880
  %v1913 = vadd.f32 %v1829, %v1881
  %v1914 = vadd.f32 %v1830, %v1882
  %v1915 = vadd.f32 %v1831, %v1883
  %v1916 = vadd.f32 %v1832, %v1884
  %v1917 = vadd.f32 %v1833, %v1885
  %v1918 = vadd.f32 %v1834, %v1886
  %v1919 = vadd.f32 %v1835, %v1887
  %v1920 = vadd.f32 %v1836, %v1888
  %v1921 = vadd.f32 %v1837, %v1889
  %v1922 = vadd.f32 %v1838, %v1890
  %v1923 = vadd.f32 %v1839, %v1891
  %v1924 = vadd.f32 %v1840, %v1892
  %v1925 = vadd.f32 %v1841, %v1893
  %v1926 = vadd.f32 %v1842, %v1894
  %v1927 = vadd.f32 %v1843, %v1895
  %v1928 = vadd.f32 %v1844, %v1896
  %v1929 = vadd.f32 %v1845, %v1897
  %1930 = vset.pattern.permute.xlu0 3
  %1931 = vperm.xlu0 %1930, %v80
  %v1932 = vpop.permute.xlu0 %1931
  %1934 = vset.pattern.permute.xlu0 3
  %1935 = vperm.xlu0 %1934, %v81
  %v1936 = vpop.permute.xlu0 %1935
  %1938 = vset.pattern.permute.xlu0 3
  %1939 = vperm.xlu0 %1938, %v112
  %v1940 = vpop.permute.xlu0 %1939
  %1942 = vset.pattern.permute.xlu0 3
  %1943 = vperm.xlu0 %1942, %v113
  %v1944 = vpop.permute.xlu0 %1943
  %v1946 = vlaneseq
  %v1947 = vshrl.u32 %v1946, 7
  %v1948 = vsub.s32 3, %v1947
  %v1949 = vrot.slane %v115, %v1948
  %v1950 = vmul.f32 %v686, %v1949
  %v1951 = vmul.f32 %v690, %v1949
  %v1952 = vmul.f32 %v694, %v1949
  %v1953 = vmul.f32 %v698, %v1949
  %v1954 = vmul.f32 %v702, %v1949
  %v1955 = vmul.f32 %v706, %v1949
  %v1956 = vmul.f32 %v710, %v1949
  %v1957 = vmul.f32 %v714, %v1949
  %v1958 = vmul.f32 %v718, %v1949
  %v1959 = vmul.f32 %v722, %v1949
  %v1960 = vmul.f32 %v726, %v1949
  %v1961 = vmul.f32 %v730, %v1949
  %v1962 = vmul.f32 %v734, %v1949
  %v1963 = vmul.f32 %v738, %v1949
  %v1964 = vmul.f32 %v1932, %v1949
  %v1965 = vmul.f32 %v1936, %v1949
  %v1966 = vmul.f32 %v742, %v1949
  %v1967 = vmul.f32 %v746, %v1949
  %v1968 = vmul.f32 %v750, %v1949
  %v1969 = vmul.f32 %v754, %v1949
  %v1970 = vmul.f32 %v758, %v1949
  %v1971 = vmul.f32 %v762, %v1949
  %v1972 = vmul.f32 %v766, %v1949
  %v1973 = vmul.f32 %v770, %v1949
  %v1974 = vmul.f32 %v774, %v1949
  %v1975 = vmul.f32 %v778, %v1949
  %v1976 = vmul.f32 %v782, %v1949
  %v1977 = vmul.f32 %v786, %v1949
  %v1978 = vmul.f32 %v790, %v1949
  %v1979 = vmul.f32 %v794, %v1949
  %v1980 = vmul.f32 %v1940, %v1949
  %v1981 = vmul.f32 %v1944, %v1949
  %v1982 = vadd.f32 %v1898, %v1950
  %v1983 = vadd.f32 %v1899, %v1951
  %v1984 = vadd.f32 %v1900, %v1952
  %v1985 = vadd.f32 %v1901, %v1953
  %v1986 = vadd.f32 %v1902, %v1954
  %v1987 = vadd.f32 %v1903, %v1955
  %v1988 = vadd.f32 %v1904, %v1956
  %v1989 = vadd.f32 %v1905, %v1957
  %v1990 = vadd.f32 %v1906, %v1958
  %v1991 = vadd.f32 %v1907, %v1959
  %v1992 = vadd.f32 %v1908, %v1960
  %v1993 = vadd.f32 %v1909, %v1961
  %v1994 = vadd.f32 %v1910, %v1962
  %v1995 = vadd.f32 %v1911, %v1963
  %v1996 = vadd.f32 %v1912, %v1964
  %v1997 = vadd.f32 %v1913, %v1965
  %v1998 = vadd.f32 %v1914, %v1966
  %v1999 = vadd.f32 %v1915, %v1967
  %v2000 = vadd.f32 %v1916, %v1968
  %v2001 = vadd.f32 %v1917, %v1969
  %v2002 = vadd.f32 %v1918, %v1970
  %v2003 = vadd.f32 %v1919, %v1971
  %v2004 = vadd.f32 %v1920, %v1972
  %v2005 = vadd.f32 %v1921, %v1973
  %v2006 = vadd.f32 %v1922, %v1974
  %v2007 = vadd.f32 %v1923, %v1975
  %v2008 = vadd.f32 %v1924, %v1976
  %v2009 = vadd.f32 %v1925, %v1977
  %v2010 = vadd.f32 %v1926, %v1978
  %v2011 = vadd.f32 %v1927, %v1979
  %v2012 = vadd.f32 %v1928, %v1980
  %v2013 = vadd.f32 %v1929, %v1981
  %v2015 = vlaneseq
  %v2016 = vshrl.u32 %v2015, 7
  %v2017 = vsub.s32 0, %v2016
  %v2018 = vrot.slane %v116, %v2017
  %v2020 = vadd.f32 %v1982, %v2018
  %v2021 = vadd.f32 %v1983, %v2018
  %v2022 = vadd.f32 %v1984, %v2018
  %v2023 = vadd.f32 %v1985, %v2018
  %v2024 = vadd.f32 %v1986, %v2018
  %v2025 = vadd.f32 %v1987, %v2018
  %v2026 = vadd.f32 %v1988, %v2018
  %v2027 = vadd.f32 %v1989, %v2018
  %v2028 = vadd.f32 %v1990, %v2018
  %v2029 = vadd.f32 %v1991, %v2018
  %v2030 = vadd.f32 %v1992, %v2018
  %v2031 = vadd.f32 %v1993, %v2018
  %v2032 = vadd.f32 %v1994, %v2018
  %v2033 = vadd.f32 %v1995, %v2018
  %v2034 = vadd.f32 %v1996, %v2018
  %v2035 = vadd.f32 %v1997, %v2018
  %v2036 = vadd.f32 %v1998, %v2018
  %v2037 = vadd.f32 %v1999, %v2018
  %v2038 = vadd.f32 %v2000, %v2018
  %v2039 = vadd.f32 %v2001, %v2018
  %v2040 = vadd.f32 %v2002, %v2018
  %v2041 = vadd.f32 %v2003, %v2018
  %v2042 = vadd.f32 %v2004, %v2018
  %v2043 = vadd.f32 %v2005, %v2018
  %v2044 = vadd.f32 %v2006, %v2018
  %v2045 = vadd.f32 %v2007, %v2018
  %v2046 = vadd.f32 %v2008, %v2018
  %v2047 = vadd.f32 %v2009, %v2018
  %v2048 = vadd.f32 %v2010, %v2018
  %v2049 = vadd.f32 %v2011, %v2018
  %v2050 = vadd.f32 %v2012, %v2018
  %v2051 = vadd.f32 %v2013, %v2018
  %v2052 = vld [vmem:[%s3] sm:$0xff]
  %v2053 = vld [vmem:[%s3 + $0x8] sm:$0xf]
  %v2054 = vld [vmem:[%s4] sm:$0x1]
  %2056 = vset.pattern.permute.xlu0 0
  %2057 = vperm.xlu0 %2056, %v2022
  %v2058 = vpop.permute.xlu0 %2057
  %2061 = vset.pattern.permute.xlu0 0
  %2062 = vperm.xlu0 %2061, %v2023
  %v2063 = vpop.permute.xlu0 %2062
  %2066 = vset.pattern.permute.xlu0 0
  %2067 = vperm.xlu0 %2066, %v2026
  %v2068 = vpop.permute.xlu0 %2067
  %2071 = vset.pattern.permute.xlu0 0
  %2072 = vperm.xlu0 %2071, %v2027
  %v2073 = vpop.permute.xlu0 %2072
  %2076 = vset.pattern.permute.xlu0 0
  %2077 = vperm.xlu0 %2076, %v2030
  %v2078 = vpop.permute.xlu0 %2077
  %2081 = vset.pattern.permute.xlu0 0
  %2082 = vperm.xlu0 %2081, %v2031
  %v2083 = vpop.permute.xlu0 %2082
  %2086 = vset.pattern.permute.xlu0 0
  %2087 = vperm.xlu0 %2086, %v2038
  %v2088 = vpop.permute.xlu0 %2087
  %2091 = vset.pattern.permute.xlu0 0
  %2092 = vperm.xlu0 %2091, %v2039
  %v2093 = vpop.permute.xlu0 %2092
  %2096 = vset.pattern.permute.xlu0 0
  %2097 = vperm.xlu0 %2096, %v2042
  %v2098 = vpop.permute.xlu0 %2097
  %2101 = vset.pattern.permute.xlu0 0
  %2102 = vperm.xlu0 %2101, %v2043
  %v2103 = vpop.permute.xlu0 %2102
  %2106 = vset.pattern.permute.xlu0 0
  %2107 = vperm.xlu0 %2106, %v2046
  %v2108 = vpop.permute.xlu0 %2107
  %2111 = vset.pattern.permute.xlu0 0
  %2112 = vperm.xlu0 %2111, %v2047
  %v2113 = vpop.permute.xlu0 %2112
  %v2115 = vlaneseq
  %v2116 = vshrl.u32 %v2115, 7
  %v2117 = vsub.s32 0, %v2116
  %v2118 = vrot.slane %v2052, %v2117
  %v2119 = vmul.f32 %v120, %v2118
  %v2120 = vmul.f32 %v2058, %v2118
  %v2121 = vmul.f32 %v2063, %v2118
  %v2122 = vmul.f32 %v2068, %v2118
  %v2123 = vmul.f32 %v2073, %v2118
  %v2124 = vmul.f32 %v2078, %v2118
  %v2125 = vmul.f32 %v2083, %v2118
  %v2126 = vmul.f32 %v2088, %v2118
  %v2127 = vmul.f32 %v2093, %v2118
  %v2128 = vmul.f32 %v2098, %v2118
  %v2129 = vmul.f32 %v2103, %v2118
  %v2130 = vmul.f32 %v2108, %v2118
  %v2131 = vmul.f32 %v2113, %v2118
  %v2132 = vadd.f32 %v2119, 0.0
  %v2133 = vadd.f32 %v2120, 0.0
  %v2134 = vadd.f32 %v2121, 0.0
  %v2135 = vadd.f32 %v2122, 0.0
  %v2136 = vadd.f32 %v2123, 0.0
  %v2137 = vadd.f32 %v2124, 0.0
  %v2138 = vadd.f32 %v2125, 0.0
  %v2139 = vadd.f32 %v2126, 0.0
  %v2140 = vadd.f32 %v2127, 0.0
  %v2141 = vadd.f32 %v2128, 0.0
  %v2142 = vadd.f32 %v2129, 0.0
  %v2143 = vadd.f32 %v2130, 0.0
  %v2144 = vadd.f32 %v2131, 0.0
  %2145 = vset.pattern.permute.xlu0 1
  %2146 = vperm.xlu0 %2145, %v2022
  %v2147 = vpop.permute.xlu0 %2146
  %2149 = vset.pattern.permute.xlu0 1
  %2150 = vperm.xlu0 %2149, %v2023
  %v2151 = vpop.permute.xlu0 %2150
  %2153 = vset.pattern.permute.xlu0 1
  %2154 = vperm.xlu0 %2153, %v2026
  %v2155 = vpop.permute.xlu0 %2154
  %2157 = vset.pattern.permute.xlu0 1
  %2158 = vperm.xlu0 %2157, %v2027
  %v2159 = vpop.permute.xlu0 %2158
  %2161 = vset.pattern.permute.xlu0 1
  %2162 = vperm.xlu0 %2161, %v2030
  %v2163 = vpop.permute.xlu0 %2162
  %2165 = vset.pattern.permute.xlu0 1
  %2166 = vperm.xlu0 %2165, %v2031
  %v2167 = vpop.permute.xlu0 %2166
  %2169 = vset.pattern.permute.xlu0 1
  %2170 = vperm.xlu0 %2169, %v2038
  %v2171 = vpop.permute.xlu0 %2170
  %2173 = vset.pattern.permute.xlu0 1
  %2174 = vperm.xlu0 %2173, %v2039
  %v2175 = vpop.permute.xlu0 %2174
  %2177 = vset.pattern.permute.xlu0 1
  %2178 = vperm.xlu0 %2177, %v2042
  %v2179 = vpop.permute.xlu0 %2178
  %2181 = vset.pattern.permute.xlu0 1
  %2182 = vperm.xlu0 %2181, %v2043
  %v2183 = vpop.permute.xlu0 %2182
  %2185 = vset.pattern.permute.xlu0 1
  %2186 = vperm.xlu0 %2185, %v2046
  %v2187 = vpop.permute.xlu0 %2186
  %2189 = vset.pattern.permute.xlu0 1
  %2190 = vperm.xlu0 %2189, %v2047
  %v2191 = vpop.permute.xlu0 %2190
  %v2193 = vlaneseq
  %v2194 = vshrl.u32 %v2193, 7
  %v2195 = vsub.s32 1, %v2194
  %v2196 = vrot.slane %v2052, %v2195
  %v2197 = vmul.f32 %v326, %v2196
  %v2198 = vmul.f32 %v2147, %v2196
  %v2199 = vmul.f32 %v2151, %v2196
  %v2200 = vmul.f32 %v2155, %v2196
  %v2201 = vmul.f32 %v2159, %v2196
  %v2202 = vmul.f32 %v2163, %v2196
  %v2203 = vmul.f32 %v2167, %v2196
  %v2204 = vmul.f32 %v2171, %v2196
  %v2205 = vmul.f32 %v2175, %v2196
  %v2206 = vmul.f32 %v2179, %v2196
  %v2207 = vmul.f32 %v2183, %v2196
  %v2208 = vmul.f32 %v2187, %v2196
  %v2209 = vmul.f32 %v2191, %v2196
  %v2210 = vadd.f32 %v2132, %v2197
  %v2211 = vadd.f32 %v2133, %v2198
  %v2212 = vadd.f32 %v2134, %v2199
  %v2213 = vadd.f32 %v2135, %v2200
  %v2214 = vadd.f32 %v2136, %v2201
  %v2215 = vadd.f32 %v2137, %v2202
  %v2216 = vadd.f32 %v2138, %v2203
  %v2217 = vadd.f32 %v2139, %v2204
  %v2218 = vadd.f32 %v2140, %v2205
  %v2219 = vadd.f32 %v2141, %v2206
  %v2220 = vadd.f32 %v2142, %v2207
  %v2221 = vadd.f32 %v2143, %v2208
  %v2222 = vadd.f32 %v2144, %v2209
  %2223 = vset.pattern.permute.xlu0 2
  %2224 = vperm.xlu0 %2223, %v2022
  %v2225 = vpop.permute.xlu0 %2224
  %2227 = vset.pattern.permute.xlu0 2
  %2228 = vperm.xlu0 %2227, %v2023
  %v2229 = vpop.permute.xlu0 %2228
  %2231 = vset.pattern.permute.xlu0 2
  %2232 = vperm.xlu0 %2231, %v2026
  %v2233 = vpop.permute.xlu0 %2232
  %2235 = vset.pattern.permute.xlu0 2
  %2236 = vperm.xlu0 %2235, %v2027
  %v2237 = vpop.permute.xlu0 %2236
  %2239 = vset.pattern.permute.xlu0 2
  %2240 = vperm.xlu0 %2239, %v2030
  %v2241 = vpop.permute.xlu0 %2240
  %2243 = vset.pattern.permute.xlu0 2
  %2244 = vperm.xlu0 %2243, %v2031
  %v2245 = vpop.permute.xlu0 %2244
  %2247 = vset.pattern.permute.xlu0 2
  %2248 = vperm.xlu0 %2247, %v2038
  %v2249 = vpop.permute.xlu0 %2248
  %2251 = vset.pattern.permute.xlu0 2
  %2252 = vperm.xlu0 %2251, %v2039
  %v2253 = vpop.permute.xlu0 %2252
  %2255 = vset.pattern.permute.xlu0 2
  %2256 = vperm.xlu0 %2255, %v2042
  %v2257 = vpop.permute.xlu0 %2256
  %2259 = vset.pattern.permute.xlu0 2
  %2260 = vperm.xlu0 %2259, %v2043
  %v2261 = vpop.permute.xlu0 %2260
  %2263 = vset.pattern.permute.xlu0 2
  %2264 = vperm.xlu0 %2263, %v2046
  %v2265 = vpop.permute.xlu0 %2264
  %2267 = vset.pattern.permute.xlu0 2
  %2268 = vperm.xlu0 %2267, %v2047
  %v2269 = vpop.permute.xlu0 %2268
  %v2271 = vlaneseq
  %v2272 = vshrl.u32 %v2271, 7
  %v2273 = vsub.s32 2, %v2272
  %v2274 = vrot.slane %v2052, %v2273
  %v2275 = vmul.f32 %v504, %v2274
  %v2276 = vmul.f32 %v2225, %v2274
  %v2277 = vmul.f32 %v2229, %v2274
  %v2278 = vmul.f32 %v2233, %v2274
  %v2279 = vmul.f32 %v2237, %v2274
  %v2280 = vmul.f32 %v2241, %v2274
  %v2281 = vmul.f32 %v2245, %v2274
  %v2282 = vmul.f32 %v2249, %v2274
  %v2283 = vmul.f32 %v2253, %v2274
  %v2284 = vmul.f32 %v2257, %v2274
  %v2285 = vmul.f32 %v2261, %v2274
  %v2286 = vmul.f32 %v2265, %v2274
  %v2287 = vmul.f32 %v2269, %v2274
  %v2288 = vadd.f32 %v2210, %v2275
  %v2289 = vadd.f32 %v2211, %v2276
  %v2290 = vadd.f32 %v2212, %v2277
  %v2291 = vadd.f32 %v2213, %v2278
  %v2292 = vadd.f32 %v2214, %v2279
  %v2293 = vadd.f32 %v2215, %v2280
  %v2294 = vadd.f32 %v2216, %v2281
  %v2295 = vadd.f32 %v2217, %v2282
  %v2296 = vadd.f32 %v2218, %v2283
  %v2297 = vadd.f32 %v2219, %v2284
  %v2298 = vadd.f32 %v2220, %v2285
  %v2299 = vadd.f32 %v2221, %v2286
  %v2300 = vadd.f32 %v2222, %v2287
  %2301 = vset.pattern.permute.xlu0 3
  %2302 = vperm.xlu0 %2301, %v2022
  %v2303 = vpop.permute.xlu0 %2302
  %2305 = vset.pattern.permute.xlu0 3
  %2306 = vperm.xlu0 %2305, %v2023
  %v2307 = vpop.permute.xlu0 %2306
  %2309 = vset.pattern.permute.xlu0 3
  %2310 = vperm.xlu0 %2309, %v2026
  %v2311 = vpop.permute.xlu0 %2310
  %2313 = vset.pattern.permute.xlu0 3
  %2314 = vperm.xlu0 %2313, %v2027
  %v2315 = vpop.permute.xlu0 %2314
  %2317 = vset.pattern.permute.xlu0 3
  %2318 = vperm.xlu0 %2317, %v2030
  %v2319 = vpop.permute.xlu0 %2318
  %2321 = vset.pattern.permute.xlu0 3
  %2322 = vperm.xlu0 %2321, %v2031
  %v2323 = vpop.permute.xlu0 %2322
  %2325 = vset.pattern.permute.xlu0 3
  %2326 = vperm.xlu0 %2325, %v2038
  %v2327 = vpop.permute.xlu0 %2326
  %2329 = vset.pattern.permute.xlu0 3
  %2330 = vperm.xlu0 %2329, %v2039
  %v2331 = vpop.permute.xlu0 %2330
  %2333 = vset.pattern.permute.xlu0 3
  %2334 = vperm.xlu0 %2333, %v2042
  %v2335 = vpop.permute.xlu0 %2334
  %2337 = vset.pattern.permute.xlu0 3
  %2338 = vperm.xlu0 %2337, %v2043
  %v2339 = vpop.permute.xlu0 %2338
  %2341 = vset.pattern.permute.xlu0 3
  %2342 = vperm.xlu0 %2341, %v2046
  %v2343 = vpop.permute.xlu0 %2342
  %2345 = vset.pattern.permute.xlu0 3
  %2346 = vperm.xlu0 %2345, %v2047
  %v2347 = vpop.permute.xlu0 %2346
  %v2349 = vlaneseq
  %v2350 = vshrl.u32 %v2349, 7
  %v2351 = vsub.s32 3, %v2350
  %v2352 = vrot.slane %v2052, %v2351
  %v2353 = vmul.f32 %v682, %v2352
  %v2354 = vmul.f32 %v2303, %v2352
  %v2355 = vmul.f32 %v2307, %v2352
  %v2356 = vmul.f32 %v2311, %v2352
  %v2357 = vmul.f32 %v2315, %v2352
  %v2358 = vmul.f32 %v2319, %v2352
  %v2359 = vmul.f32 %v2323, %v2352
  %v2360 = vmul.f32 %v2327, %v2352
  %v2361 = vmul.f32 %v2331, %v2352
  %v2362 = vmul.f32 %v2335, %v2352
  %v2363 = vmul.f32 %v2339, %v2352
  %v2364 = vmul.f32 %v2343, %v2352
  %v2365 = vmul.f32 %v2347, %v2352
  %v2366 = vadd.f32 %v2288, %v2353
  %v2367 = vadd.f32 %v2289, %v2354
  %v2368 = vadd.f32 %v2290, %v2355
  %v2369 = vadd.f32 %v2291, %v2356
  %v2370 = vadd.f32 %v2292, %v2357
  %v2371 = vadd.f32 %v2293, %v2358
  %v2372 = vadd.f32 %v2294, %v2359
  %v2373 = vadd.f32 %v2295, %v2360
  %v2374 = vadd.f32 %v2296, %v2361
  %v2375 = vadd.f32 %v2297, %v2362
  %v2376 = vadd.f32 %v2298, %v2363
  %v2377 = vadd.f32 %v2299, %v2364
  %v2378 = vadd.f32 %v2300, %v2365
  %2380 = vset.pattern.permute.xlu0 0
  %2381 = vperm.xlu0 %2380, %v2020
  %v2382 = vpop.permute.xlu0 %2381
  %2385 = vset.pattern.permute.xlu0 0
  %2386 = vperm.xlu0 %2385, %v2021
  %v2387 = vpop.permute.xlu0 %2386
  %2390 = vset.pattern.permute.xlu0 0
  %2391 = vperm.xlu0 %2390, %v2024
  %v2392 = vpop.permute.xlu0 %2391
  %2395 = vset.pattern.permute.xlu0 0
  %2396 = vperm.xlu0 %2395, %v2025
  %v2397 = vpop.permute.xlu0 %2396
  %2400 = vset.pattern.permute.xlu0 0
  %2401 = vperm.xlu0 %2400, %v2028
  %v2402 = vpop.permute.xlu0 %2401
  %2405 = vset.pattern.permute.xlu0 0
  %2406 = vperm.xlu0 %2405, %v2029
  %v2407 = vpop.permute.xlu0 %2406
  %2410 = vset.pattern.permute.xlu0 0
  %2411 = vperm.xlu0 %2410, %v2032
  %v2412 = vpop.permute.xlu0 %2411
  %2415 = vset.pattern.permute.xlu0 0
  %2416 = vperm.xlu0 %2415, %v2033
  %v2417 = vpop.permute.xlu0 %2416
  %2420 = vset.pattern.permute.xlu0 0
  %2421 = vperm.xlu0 %2420, %v2036
  %v2422 = vpop.permute.xlu0 %2421
  %2425 = vset.pattern.permute.xlu0 0
  %2426 = vperm.xlu0 %2425, %v2037
  %v2427 = vpop.permute.xlu0 %2426
  %2430 = vset.pattern.permute.xlu0 0
  %2431 = vperm.xlu0 %2430, %v2040
  %v2432 = vpop.permute.xlu0 %2431
  %2435 = vset.pattern.permute.xlu0 0
  %2436 = vperm.xlu0 %2435, %v2041
  %v2437 = vpop.permute.xlu0 %2436
  %2440 = vset.pattern.permute.xlu0 0
  %2441 = vperm.xlu0 %2440, %v2044
  %v2442 = vpop.permute.xlu0 %2441
  %2445 = vset.pattern.permute.xlu0 0
  %2446 = vperm.xlu0 %2445, %v2045
  %v2447 = vpop.permute.xlu0 %2446
  %2450 = vset.pattern.permute.xlu0 0
  %2451 = vperm.xlu0 %2450, %v2048
  %v2452 = vpop.permute.xlu0 %2451
  %2455 = vset.pattern.permute.xlu0 0
  %2456 = vperm.xlu0 %2455, %v2049
  %v2457 = vpop.permute.xlu0 %2456
  %v2459 = vlaneseq
  %v2460 = vshrl.u32 %v2459, 7
  %v2461 = vsub.s32 4, %v2460
  %v2462 = vrot.slane %v2052, %v2461
  %v2463 = vmul.f32 %v2382, %v2462
  %v2464 = vmul.f32 %v2387, %v2462
  %v2465 = vmul.f32 %v2392, %v2462
  %v2466 = vmul.f32 %v2397, %v2462
  %v2467 = vmul.f32 %v2402, %v2462
  %v2468 = vmul.f32 %v2407, %v2462
  %v2469 = vmul.f32 %v2412, %v2462
  %v2470 = vmul.f32 %v2417, %v2462
  %v2471 = vmul.f32 %v2422, %v2462
  %v2472 = vmul.f32 %v2427, %v2462
  %v2473 = vmul.f32 %v2432, %v2462
  %v2474 = vmul.f32 %v2437, %v2462
  %v2475 = vmul.f32 %v2442, %v2462
  %v2476 = vmul.f32 %v2447, %v2462
  %v2477 = vmul.f32 %v2452, %v2462
  %v2478 = vmul.f32 %v2457, %v2462
  %v2479 = vadd.f32 %v2366, %v2463
  %v2480 = vadd.f32 %v2366, %v2464
  %v2481 = vadd.f32 %v2367, %v2465
  %v2482 = vadd.f32 %v2368, %v2466
  %v2483 = vadd.f32 %v2369, %v2467
  %v2484 = vadd.f32 %v2370, %v2468
  %v2485 = vadd.f32 %v2371, %v2469
  %v2486 = vadd.f32 %v2372, %v2470
  %v2487 = vadd.f32 %v2366, %v2471
  %v2488 = vadd.f32 %v2366, %v2472
  %v2489 = vadd.f32 %v2373, %v2473
  %v2490 = vadd.f32 %v2374, %v2474
  %v2491 = vadd.f32 %v2375, %v2475
  %v2492 = vadd.f32 %v2376, %v2476
  %v2493 = vadd.f32 %v2377, %v2477
  %v2494 = vadd.f32 %v2378, %v2478
  %2495 = vset.pattern.permute.xlu0 1
  %2496 = vperm.xlu0 %2495, %v2020
  %v2497 = vpop.permute.xlu0 %2496
  %2499 = vset.pattern.permute.xlu0 1
  %2500 = vperm.xlu0 %2499, %v2021
  %v2501 = vpop.permute.xlu0 %2500
  %2503 = vset.pattern.permute.xlu0 1
  %2504 = vperm.xlu0 %2503, %v2024
  %v2505 = vpop.permute.xlu0 %2504
  %2507 = vset.pattern.permute.xlu0 1
  %2508 = vperm.xlu0 %2507, %v2025
  %v2509 = vpop.permute.xlu0 %2508
  %2511 = vset.pattern.permute.xlu0 1
  %2512 = vperm.xlu0 %2511, %v2028
  %v2513 = vpop.permute.xlu0 %2512
  %2515 = vset.pattern.permute.xlu0 1
  %2516 = vperm.xlu0 %2515, %v2029
  %v2517 = vpop.permute.xlu0 %2516
  %2519 = vset.pattern.permute.xlu0 1
  %2520 = vperm.xlu0 %2519, %v2032
  %v2521 = vpop.permute.xlu0 %2520
  %2523 = vset.pattern.permute.xlu0 1
  %2524 = vperm.xlu0 %2523, %v2033
  %v2525 = vpop.permute.xlu0 %2524
  %2527 = vset.pattern.permute.xlu0 1
  %2528 = vperm.xlu0 %2527, %v2036
  %v2529 = vpop.permute.xlu0 %2528
  %2531 = vset.pattern.permute.xlu0 1
  %2532 = vperm.xlu0 %2531, %v2037
  %v2533 = vpop.permute.xlu0 %2532
  %2535 = vset.pattern.permute.xlu0 1
  %2536 = vperm.xlu0 %2535, %v2040
  %v2537 = vpop.permute.xlu0 %2536
  %2539 = vset.pattern.permute.xlu0 1
  %2540 = vperm.xlu0 %2539, %v2041
  %v2541 = vpop.permute.xlu0 %2540
  %2543 = vset.pattern.permute.xlu0 1
  %2544 = vperm.xlu0 %2543, %v2044
  %v2545 = vpop.permute.xlu0 %2544
  %2547 = vset.pattern.permute.xlu0 1
  %2548 = vperm.xlu0 %2547, %v2045
  %v2549 = vpop.permute.xlu0 %2548
  %2551 = vset.pattern.permute.xlu0 1
  %2552 = vperm.xlu0 %2551, %v2048
  %v2553 = vpop.permute.xlu0 %2552
  %2555 = vset.pattern.permute.xlu0 1
  %2556 = vperm.xlu0 %2555, %v2049
  %v2557 = vpop.permute.xlu0 %2556
  %v2559 = vlaneseq
  %v2560 = vshrl.u32 %v2559, 7
  %v2561 = vsub.s32 5, %v2560
  %v2562 = vrot.slane %v2052, %v2561
  %v2563 = vmul.f32 %v2497, %v2562
  %v2564 = vmul.f32 %v2501, %v2562
  %v2565 = vmul.f32 %v2505, %v2562
  %v2566 = vmul.f32 %v2509, %v2562
  %v2567 = vmul.f32 %v2513, %v2562
  %v2568 = vmul.f32 %v2517, %v2562
  %v2569 = vmul.f32 %v2521, %v2562
  %v2570 = vmul.f32 %v2525, %v2562
  %v2571 = vmul.f32 %v2529, %v2562
  %v2572 = vmul.f32 %v2533, %v2562
  %v2573 = vmul.f32 %v2537, %v2562
  %v2574 = vmul.f32 %v2541, %v2562
  %v2575 = vmul.f32 %v2545, %v2562
  %v2576 = vmul.f32 %v2549, %v2562
  %v2577 = vmul.f32 %v2553, %v2562
  %v2578 = vmul.f32 %v2557, %v2562
  %v2579 = vadd.f32 %v2479, %v2563
  %v2580 = vadd.f32 %v2480, %v2564
  %v2581 = vadd.f32 %v2481, %v2565
  %v2582 = vadd.f32 %v2482, %v2566
  %v2583 = vadd.f32 %v2483, %v2567
  %v2584 = vadd.f32 %v2484, %v2568
  %v2585 = vadd.f32 %v2485, %v2569
  %v2586 = vadd.f32 %v2486, %v2570
  %v2587 = vadd.f32 %v2487, %v2571
  %v2588 = vadd.f32 %v2488, %v2572
  %v2589 = vadd.f32 %v2489, %v2573
  %v2590 = vadd.f32 %v2490, %v2574
  %v2591 = vadd.f32 %v2491, %v2575
  %v2592 = vadd.f32 %v2492, %v2576
  %v2593 = vadd.f32 %v2493, %v2577
  %v2594 = vadd.f32 %v2494, %v2578
  %2595 = vset.pattern.permute.xlu0 2
  %2596 = vperm.xlu0 %2595, %v2020
  %v2597 = vpop.permute.xlu0 %2596
  %2599 = vset.pattern.permute.xlu0 2
  %2600 = vperm.xlu0 %2599, %v2021
  %v2601 = vpop.permute.xlu0 %2600
  %2603 = vset.pattern.permute.xlu0 2
  %2604 = vperm.xlu0 %2603, %v2024
  %v2605 = vpop.permute.xlu0 %2604
  %2607 = vset.pattern.permute.xlu0 2
  %2608 = vperm.xlu0 %2607, %v2025
  %v2609 = vpop.permute.xlu0 %2608
  %2611 = vset.pattern.permute.xlu0 2
  %2612 = vperm.xlu0 %2611, %v2028
  %v2613 = vpop.permute.xlu0 %2612
  %2615 = vset.pattern.permute.xlu0 2
  %2616 = vperm.xlu0 %2615, %v2029
  %v2617 = vpop.permute.xlu0 %2616
  %2619 = vset.pattern.permute.xlu0 2
  %2620 = vperm.xlu0 %2619, %v2032
  %v2621 = vpop.permute.xlu0 %2620
  %2623 = vset.pattern.permute.xlu0 2
  %2624 = vperm.xlu0 %2623, %v2033
  %v2625 = vpop.permute.xlu0 %2624
  %2627 = vset.pattern.permute.xlu0 2
  %2628 = vperm.xlu0 %2627, %v2036
  %v2629 = vpop.permute.xlu0 %2628
  %2631 = vset.pattern.permute.xlu0 2
  %2632 = vperm.xlu0 %2631, %v2037
  %v2633 = vpop.permute.xlu0 %2632
  %2635 = vset.pattern.permute.xlu0 2
  %2636 = vperm.xlu0 %2635, %v2040
  %v2637 = vpop.permute.xlu0 %2636
  %2639 = vset.pattern.permute.xlu0 2
  %2640 = vperm.xlu0 %2639, %v2041
  %v2641 = vpop.permute.xlu0 %2640
  %2643 = vset.pattern.permute.xlu0 2
  %2644 = vperm.xlu0 %2643, %v2044
  %v2645 = vpop.permute.xlu0 %2644
  %2647 = vset.pattern.permute.xlu0 2
  %2648 = vperm.xlu0 %2647, %v2045
  %v2649 = vpop.permute.xlu0 %2648
  %2651 = vset.pattern.permute.xlu0 2
  %2652 = vperm.xlu0 %2651, %v2048
  %v2653 = vpop.permute.xlu0 %2652
  %2655 = vset.pattern.permute.xlu0 2
  %2656 = vperm.xlu0 %2655, %v2049
  %v2657 = vpop.permute.xlu0 %2656
  %v2659 = vlaneseq
  %v2660 = vshrl.u32 %v2659, 7
  %v2661 = vsub.s32 6, %v2660
  %v2662 = vrot.slane %v2052, %v2661
  %v2663 = vmul.f32 %v2597, %v2662
  %v2664 = vmul.f32 %v2601, %v2662
  %v2665 = vmul.f32 %v2605, %v2662
  %v2666 = vmul.f32 %v2609, %v2662
  %v2667 = vmul.f32 %v2613, %v2662
  %v2668 = vmul.f32 %v2617, %v2662
  %v2669 = vmul.f32 %v2621, %v2662
  %v2670 = vmul.f32 %v2625, %v2662
  %v2671 = vmul.f32 %v2629, %v2662
  %v2672 = vmul.f32 %v2633, %v2662
  %v2673 = vmul.f32 %v2637, %v2662
  %v2674 = vmul.f32 %v2641, %v2662
  %v2675 = vmul.f32 %v2645, %v2662
  %v2676 = vmul.f32 %v2649, %v2662
  %v2677 = vmul.f32 %v2653, %v2662
  %v2678 = vmul.f32 %v2657, %v2662
  %v2679 = vadd.f32 %v2579, %v2663
  %v2680 = vadd.f32 %v2580, %v2664
  %v2681 = vadd.f32 %v2581, %v2665
  %v2682 = vadd.f32 %v2582, %v2666
  %v2683 = vadd.f32 %v2583, %v2667
  %v2684 = vadd.f32 %v2584, %v2668
  %v2685 = vadd.f32 %v2585, %v2669
  %v2686 = vadd.f32 %v2586, %v2670
  %v2687 = vadd.f32 %v2587, %v2671
  %v2688 = vadd.f32 %v2588, %v2672
  %v2689 = vadd.f32 %v2589, %v2673
  %v2690 = vadd.f32 %v2590, %v2674
  %v2691 = vadd.f32 %v2591, %v2675
  %v2692 = vadd.f32 %v2592, %v2676
  %v2693 = vadd.f32 %v2593, %v2677
  %v2694 = vadd.f32 %v2594, %v2678
  %2695 = vset.pattern.permute.xlu0 3
  %2696 = vperm.xlu0 %2695, %v2020
  %v2697 = vpop.permute.xlu0 %2696
  %2699 = vset.pattern.permute.xlu0 3
  %2700 = vperm.xlu0 %2699, %v2021
  %v2701 = vpop.permute.xlu0 %2700
  %2703 = vset.pattern.permute.xlu0 3
  %2704 = vperm.xlu0 %2703, %v2024
  %v2705 = vpop.permute.xlu0 %2704
  %2707 = vset.pattern.permute.xlu0 3
  %2708 = vperm.xlu0 %2707, %v2025
  %v2709 = vpop.permute.xlu0 %2708
  %2711 = vset.pattern.permute.xlu0 3
  %2712 = vperm.xlu0 %2711, %v2028
  %v2713 = vpop.permute.xlu0 %2712
  %2715 = vset.pattern.permute.xlu0 3
  %2716 = vperm.xlu0 %2715, %v2029
  %v2717 = vpop.permute.xlu0 %2716
  %2719 = vset.pattern.permute.xlu0 3
  %2720 = vperm.xlu0 %2719, %v2032
  %v2721 = vpop.permute.xlu0 %2720
  %2723 = vset.pattern.permute.xlu0 3
  %2724 = vperm.xlu0 %2723, %v2033
  %v2725 = vpop.permute.xlu0 %2724
  %2727 = vset.pattern.permute.xlu0 3
  %2728 = vperm.xlu0 %2727, %v2036
  %v2729 = vpop.permute.xlu0 %2728
  %2731 = vset.pattern.permute.xlu0 3
  %2732 = vperm.xlu0 %2731, %v2037
  %v2733 = vpop.permute.xlu0 %2732
  %2735 = vset.pattern.permute.xlu0 3
  %2736 = vperm.xlu0 %2735, %v2040
  %v2737 = vpop.permute.xlu0 %2736
  %2739 = vset.pattern.permute.xlu0 3
  %2740 = vperm.xlu0 %2739, %v2041
  %v2741 = vpop.permute.xlu0 %2740
  %2743 = vset.pattern.permute.xlu0 3
  %2744 = vperm.xlu0 %2743, %v2044
  %v2745 = vpop.permute.xlu0 %2744
  %2747 = vset.pattern.permute.xlu0 3
  %2748 = vperm.xlu0 %2747, %v2045
  %v2749 = vpop.permute.xlu0 %2748
  %2751 = vset.pattern.permute.xlu0 3
  %2752 = vperm.xlu0 %2751, %v2048
  %v2753 = vpop.permute.xlu0 %2752
  %2755 = vset.pattern.permute.xlu0 3
  %2756 = vperm.xlu0 %2755, %v2049
  %v2757 = vpop.permute.xlu0 %2756
  %v2759 = vlaneseq
  %v2760 = vshrl.u32 %v2759, 7
  %v2761 = vsub.s32 7, %v2760
  %v2762 = vrot.slane %v2052, %v2761
  %v2763 = vmul.f32 %v2697, %v2762
  %v2764 = vmul.f32 %v2701, %v2762
  %v2765 = vmul.f32 %v2705, %v2762
  %v2766 = vmul.f32 %v2709, %v2762
  %v2767 = vmul.f32 %v2713, %v2762
  %v2768 = vmul.f32 %v2717, %v2762
  %v2769 = vmul.f32 %v2721, %v2762
  %v2770 = vmul.f32 %v2725, %v2762
  %v2771 = vmul.f32 %v2729, %v2762
  %v2772 = vmul.f32 %v2733, %v2762
  %v2773 = vmul.f32 %v2737, %v2762
  %v2774 = vmul.f32 %v2741, %v2762
  %v2775 = vmul.f32 %v2745, %v2762
  %v2776 = vmul.f32 %v2749, %v2762
  %v2777 = vmul.f32 %v2753, %v2762
  %v2778 = vmul.f32 %v2757, %v2762
  %v2779 = vadd.f32 %v2679, %v2763
  %v2780 = vadd.f32 %v2680, %v2764
  %v2781 = vadd.f32 %v2681, %v2765
  %v2782 = vadd.f32 %v2682, %v2766
  %v2783 = vadd.f32 %v2683, %v2767
  %v2784 = vadd.f32 %v2684, %v2768
  %v2785 = vadd.f32 %v2685, %v2769
  %v2786 = vadd.f32 %v2686, %v2770
  %v2787 = vadd.f32 %v2687, %v2771
  %v2788 = vadd.f32 %v2688, %v2772
  %v2789 = vadd.f32 %v2689, %v2773
  %v2790 = vadd.f32 %v2690, %v2774
  %v2791 = vadd.f32 %v2691, %v2775
  %v2792 = vadd.f32 %v2692, %v2776
  %v2793 = vadd.f32 %v2693, %v2777
  %v2794 = vadd.f32 %v2694, %v2778
  %2796 = vset.pattern.permute.xlu0 0
  %2797 = vperm.xlu0 %2796, %v2034
  %v2798 = vpop.permute.xlu0 %2797
  %2801 = vset.pattern.permute.xlu0 0
  %2802 = vperm.xlu0 %2801, %v2035
  %v2803 = vpop.permute.xlu0 %2802
  %2806 = vset.pattern.permute.xlu0 0
  %2807 = vperm.xlu0 %2806, %v2050
  %v2808 = vpop.permute.xlu0 %2807
  %2811 = vset.pattern.permute.xlu0 0
  %2812 = vperm.xlu0 %2811, %v2051
  %v2813 = vpop.permute.xlu0 %2812
  %v2815 = vlaneseq
  %v2816 = vshrl.u32 %v2815, 7
  %v2817 = vsub.s32 0, %v2816
  %v2818 = vrot.slane %v2053, %v2817
  %v2819 = vmul.f32 %v2058, %v2818
  %v2820 = vmul.f32 %v2063, %v2818
  %v2821 = vmul.f32 %v2068, %v2818
  %v2822 = vmul.f32 %v2073, %v2818
  %v2823 = vmul.f32 %v2078, %v2818
  %v2824 = vmul.f32 %v2083, %v2818
  %v2825 = vmul.f32 %v2798, %v2818
  %v2826 = vmul.f32 %v2803, %v2818
  %v2827 = vmul.f32 %v2088, %v2818
  %v2828 = vmul.f32 %v2093, %v2818
  %v2829 = vmul.f32 %v2098, %v2818
  %v2830 = vmul.f32 %v2103, %v2818
  %v2831 = vmul.f32 %v2108, %v2818
  %v2832 = vmul.f32 %v2113, %v2818
  %v2833 = vmul.f32 %v2808, %v2818
  %v2834 = vmul.f32 %v2813, %v2818
  %v2835 = vadd.f32 %v2779, %v2819
  %v2836 = vadd.f32 %v2780, %v2820
  %v2837 = vadd.f32 %v2781, %v2821
  %v2838 = vadd.f32 %v2782, %v2822
  %v2839 = vadd.f32 %v2783, %v2823
  %v2840 = vadd.f32 %v2784, %v2824
  %v2841 = vadd.f32 %v2785, %v2825
  %v2842 = vadd.f32 %v2786, %v2826
  %v2843 = vadd.f32 %v2787, %v2827
  %v2844 = vadd.f32 %v2788, %v2828
  %v2845 = vadd.f32 %v2789, %v2829
  %v2846 = vadd.f32 %v2790, %v2830
  %v2847 = vadd.f32 %v2791, %v2831
  %v2848 = vadd.f32 %v2792, %v2832
  %v2849 = vadd.f32 %v2793, %v2833
  %v2850 = vadd.f32 %v2794, %v2834
  %2851 = vset.pattern.permute.xlu0 1
  %2852 = vperm.xlu0 %2851, %v2034
  %v2853 = vpop.permute.xlu0 %2852
  %2855 = vset.pattern.permute.xlu0 1
  %2856 = vperm.xlu0 %2855, %v2035
  %v2857 = vpop.permute.xlu0 %2856
  %2859 = vset.pattern.permute.xlu0 1
  %2860 = vperm.xlu0 %2859, %v2050
  %v2861 = vpop.permute.xlu0 %2860
  %2863 = vset.pattern.permute.xlu0 1
  %2864 = vperm.xlu0 %2863, %v2051
  %v2865 = vpop.permute.xlu0 %2864
  %v2867 = vlaneseq
  %v2868 = vshrl.u32 %v2867, 7
  %v2869 = vsub.s32 1, %v2868
  %v2870 = vrot.slane %v2053, %v2869
  %v2871 = vmul.f32 %v2147, %v2870
  %v2872 = vmul.f32 %v2151, %v2870
  %v2873 = vmul.f32 %v2155, %v2870
  %v2874 = vmul.f32 %v2159, %v2870
  %v2875 = vmul.f32 %v2163, %v2870
  %v2876 = vmul.f32 %v2167, %v2870
  %v2877 = vmul.f32 %v2853, %v2870
  %v2878 = vmul.f32 %v2857, %v2870
  %v2879 = vmul.f32 %v2171, %v2870
  %v2880 = vmul.f32 %v2175, %v2870
  %v2881 = vmul.f32 %v2179, %v2870
  %v2882 = vmul.f32 %v2183, %v2870
  %v2883 = vmul.f32 %v2187, %v2870
  %v2884 = vmul.f32 %v2191, %v2870
  %v2885 = vmul.f32 %v2861, %v2870
  %v2886 = vmul.f32 %v2865, %v2870
  %v2887 = vadd.f32 %v2835, %v2871
  %v2888 = vadd.f32 %v2836, %v2872
  %v2889 = vadd.f32 %v2837, %v2873
  %v2890 = vadd.f32 %v2838, %v2874
  %v2891 = vadd.f32 %v2839, %v2875
  %v2892 = vadd.f32 %v2840, %v2876
  %v2893 = vadd.f32 %v2841, %v2877
  %v2894 = vadd.f32 %v2842, %v2878
  %v2895 = vadd.f32 %v2843, %v2879
  %v2896 = vadd.f32 %v2844, %v2880
  %v2897 = vadd.f32 %v2845, %v2881
  %v2898 = vadd.f32 %v2846, %v2882
  %v2899 = vadd.f32 %v2847, %v2883
  %v2900 = vadd.f32 %v2848, %v2884
  %v2901 = vadd.f32 %v2849, %v2885
  %v2902 = vadd.f32 %v2850, %v2886
  %2903 = vset.pattern.permute.xlu0 2
  %2904 = vperm.xlu0 %2903, %v2034
  %v2905 = vpop.permute.xlu0 %2904
  %2907 = vset.pattern.permute.xlu0 2
  %2908 = vperm.xlu0 %2907, %v2035
  %v2909 = vpop.permute.xlu0 %2908
  %2911 = vset.pattern.permute.xlu0 2
  %2912 = vperm.xlu0 %2911, %v2050
  %v2913 = vpop.permute.xlu0 %2912
  %2915 = vset.pattern.permute.xlu0 2
  %2916 = vperm.xlu0 %2915, %v2051
  %v2917 = vpop.permute.xlu0 %2916
  %v2919 = vlaneseq
  %v2920 = vshrl.u32 %v2919, 7
  %v2921 = vsub.s32 2, %v2920
  %v2922 = vrot.slane %v2053, %v2921
  %v2923 = vmul.f32 %v2225, %v2922
  %v2924 = vmul.f32 %v2229, %v2922
  %v2925 = vmul.f32 %v2233, %v2922
  %v2926 = vmul.f32 %v2237, %v2922
  %v2927 = vmul.f32 %v2241, %v2922
  %v2928 = vmul.f32 %v2245, %v2922
  %v2929 = vmul.f32 %v2905, %v2922
  %v2930 = vmul.f32 %v2909, %v2922
  %v2931 = vmul.f32 %v2249, %v2922
  %v2932 = vmul.f32 %v2253, %v2922
  %v2933 = vmul.f32 %v2257, %v2922
  %v2934 = vmul.f32 %v2261, %v2922
  %v2935 = vmul.f32 %v2265, %v2922
  %v2936 = vmul.f32 %v2269, %v2922
  %v2937 = vmul.f32 %v2913, %v2922
  %v2938 = vmul.f32 %v2917, %v2922
  %v2939 = vadd.f32 %v2887, %v2923
  %v2940 = vadd.f32 %v2888, %v2924
  %v2941 = vadd.f32 %v2889, %v2925
  %v2942 = vadd.f32 %v2890, %v2926
  %v2943 = vadd.f32 %v2891, %v2927
  %v2944 = vadd.f32 %v2892, %v2928
  %v2945 = vadd.f32 %v2893, %v2929
  %v2946 = vadd.f32 %v2894, %v2930
  %v2947 = vadd.f32 %v2895, %v2931
  %v2948 = vadd.f32 %v2896, %v2932
  %v2949 = vadd.f32 %v2897, %v2933
  %v2950 = vadd.f32 %v2898, %v2934
  %v2951 = vadd.f32 %v2899, %v2935
  %v2952 = vadd.f32 %v2900, %v2936
  %v2953 = vadd.f32 %v2901, %v2937
  %v2954 = vadd.f32 %v2902, %v2938
  %2955 = vset.pattern.permute.xlu0 3
  %2956 = vperm.xlu0 %2955, %v2034
  %v2957 = vpop.permute.xlu0 %2956
  %2959 = vset.pattern.permute.xlu0 3
  %2960 = vperm.xlu0 %2959, %v2035
  %v2961 = vpop.permute.xlu0 %2960
  %2963 = vset.pattern.permute.xlu0 3
  %2964 = vperm.xlu0 %2963, %v2050
  %v2965 = vpop.permute.xlu0 %2964
  %2967 = vset.pattern.permute.xlu0 3
  %2968 = vperm.xlu0 %2967, %v2051
  %v2969 = vpop.permute.xlu0 %2968
  %v2971 = vlaneseq
  %v2972 = vshrl.u32 %v2971, 7
  %v2973 = vsub.s32 3, %v2972
  %v2974 = vrot.slane %v2053, %v2973
  %v2975 = vmul.f32 %v2303, %v2974
  %v2976 = vmul.f32 %v2307, %v2974
  %v2977 = vmul.f32 %v2311, %v2974
  %v2978 = vmul.f32 %v2315, %v2974
  %v2979 = vmul.f32 %v2319, %v2974
  %v2980 = vmul.f32 %v2323, %v2974
  %v2981 = vmul.f32 %v2957, %v2974
  %v2982 = vmul.f32 %v2961, %v2974
  %v2983 = vmul.f32 %v2327, %v2974
  %v2984 = vmul.f32 %v2331, %v2974
  %v2985 = vmul.f32 %v2335, %v2974
  %v2986 = vmul.f32 %v2339, %v2974
  %v2987 = vmul.f32 %v2343, %v2974
  %v2988 = vmul.f32 %v2347, %v2974
  %v2989 = vmul.f32 %v2965, %v2974
  %v2990 = vmul.f32 %v2969, %v2974
  %v2991 = vadd.f32 %v2939, %v2975
  %v2992 = vadd.f32 %v2940, %v2976
  %v2993 = vadd.f32 %v2941, %v2977
  %v2994 = vadd.f32 %v2942, %v2978
  %v2995 = vadd.f32 %v2943, %v2979
  %v2996 = vadd.f32 %v2944, %v2980
  %v2997 = vadd.f32 %v2945, %v2981
  %v2998 = vadd.f32 %v2946, %v2982
  %v2999 = vadd.f32 %v2947, %v2983
  %v3000 = vadd.f32 %v2948, %v2984
  %v3001 = vadd.f32 %v2949, %v2985
  %v3002 = vadd.f32 %v2950, %v2986
  %v3003 = vadd.f32 %v2951, %v2987
  %v3004 = vadd.f32 %v2952, %v2988
  %v3005 = vadd.f32 %v2953, %v2989
  %v3006 = vadd.f32 %v2954, %v2990
  %v3008 = vlaneseq
  %v3009 = vshrl.u32 %v3008, 7
  %v3010 = vsub.s32 0, %v3009
  %v3011 = vrot.slane %v2054, %v3010
  %v3013 = vadd.f32 %v2991, %v3011
  %v3014 = vadd.f32 %v2992, %v3011
  %v3015 = vadd.f32 %v2993, %v3011
  %v3016 = vadd.f32 %v2994, %v3011
  %v3017 = vadd.f32 %v2995, %v3011
  %v3018 = vadd.f32 %v2996, %v3011
  %v3019 = vadd.f32 %v2997, %v3011
  %v3020 = vadd.f32 %v2998, %v3011
  %v3021 = vadd.f32 %v2999, %v3011
  %v3022 = vadd.f32 %v3000, %v3011
  %v3023 = vadd.f32 %v3001, %v3011
  %v3024 = vadd.f32 %v3002, %v3011
  %v3025 = vadd.f32 %v3003, %v3011
  %v3026 = vadd.f32 %v3004, %v3011
  %v3027 = vadd.f32 %v3005, %v3011
  %v3028 = vadd.f32 %v3006, %v3011
  %v3029 = vld [vmem:[%s5] sm:$0xf]
  %v3030 = vld [vmem:[%s6] sm:$0x1]
  %3032 = vset.pattern.permute.xlu0 0
  %3033 = vperm.xlu0 %3032, %v3013
  %v3034 = vpop.permute.xlu0 %3033
  %3037 = vset.pattern.permute.xlu0 0
  %3038 = vperm.xlu0 %3037, %v3014
  %v3039 = vpop.permute.xlu0 %3038
  %3042 = vset.pattern.permute.xlu0 0
  %3043 = vperm.xlu0 %3042, %v3015
  %v3044 = vpop.permute.xlu0 %3043
  %3047 = vset.pattern.permute.xlu0 0
  %3048 = vperm.xlu0 %3047, %v3016
  %v3049 = vpop.permute.xlu0 %3048
  %3052 = vset.pattern.permute.xlu0 0
  %3053 = vperm.xlu0 %3052, %v3017
  %v3054 = vpop.permute.xlu0 %3053
  %3057 = vset.pattern.permute.xlu0 0
  %3058 = vperm.xlu0 %3057, %v3018
  %v3059 = vpop.permute.xlu0 %3058
  %3062 = vset.pattern.permute.xlu0 0
  %3063 = vperm.xlu0 %3062, %v3019
  %v3064 = vpop.permute.xlu0 %3063
  %3067 = vset.pattern.permute.xlu0 0
  %3068 = vperm.xlu0 %3067, %v3020
  %v3069 = vpop.permute.xlu0 %3068
  %3072 = vset.pattern.permute.xlu0 0
  %3073 = vperm.xlu0 %3072, %v3021
  %v3074 = vpop.permute.xlu0 %3073
  %3077 = vset.pattern.permute.xlu0 0
  %3078 = vperm.xlu0 %3077, %v3022
  %v3079 = vpop.permute.xlu0 %3078
  %3082 = vset.pattern.permute.xlu0 0
  %3083 = vperm.xlu0 %3082, %v3023
  %v3084 = vpop.permute.xlu0 %3083
  %3087 = vset.pattern.permute.xlu0 0
  %3088 = vperm.xlu0 %3087, %v3024
  %v3089 = vpop.permute.xlu0 %3088
  %3092 = vset.pattern.permute.xlu0 0
  %3093 = vperm.xlu0 %3092, %v3025
  %v3094 = vpop.permute.xlu0 %3093
  %3097 = vset.pattern.permute.xlu0 0
  %3098 = vperm.xlu0 %3097, %v3026
  %v3099 = vpop.permute.xlu0 %3098
  %3102 = vset.pattern.permute.xlu0 0
  %3103 = vperm.xlu0 %3102, %v3027
  %v3104 = vpop.permute.xlu0 %3103
  %3107 = vset.pattern.permute.xlu0 0
  %3108 = vperm.xlu0 %3107, %v3028
  %v3109 = vpop.permute.xlu0 %3108
  %v3111 = vlaneseq
  %v3112 = vshrl.u32 %v3111, 7
  %v3113 = vsub.s32 0, %v3112
  %v3114 = vrot.slane %v3029, %v3113
  %v3115 = vmul.f32 %v3034, %v3114
  %v3116 = vmul.f32 %v3039, %v3114
  %v3117 = vmul.f32 %v3044, %v3114
  %v3118 = vmul.f32 %v3049, %v3114
  %v3119 = vmul.f32 %v3054, %v3114
  %v3120 = vmul.f32 %v3059, %v3114
  %v3121 = vmul.f32 %v3064, %v3114
  %v3122 = vmul.f32 %v3069, %v3114
  %v3123 = vmul.f32 %v3074, %v3114
  %v3124 = vmul.f32 %v3079, %v3114
  %v3125 = vmul.f32 %v3084, %v3114
  %v3126 = vmul.f32 %v3089, %v3114
  %v3127 = vmul.f32 %v3094, %v3114
  %v3128 = vmul.f32 %v3099, %v3114
  %v3129 = vmul.f32 %v3104, %v3114
  %v3130 = vmul.f32 %v3109, %v3114
  %v3131 = vadd.f32 %v3115, 0.0
  %v3132 = vadd.f32 %v3116, 0.0
  %v3133 = vadd.f32 %v3117, 0.0
  %v3134 = vadd.f32 %v3118, 0.0
  %v3135 = vadd.f32 %v3119, 0.0
  %v3136 = vadd.f32 %v3120, 0.0
  %v3137 = vadd.f32 %v3121, 0.0
  %v3138 = vadd.f32 %v3122, 0.0
  %v3139 = vadd.f32 %v3123, 0.0
  %v3140 = vadd.f32 %v3124, 0.0
  %v3141 = vadd.f32 %v3125, 0.0
  %v3142 = vadd.f32 %v3126, 0.0
  %v3143 = vadd.f32 %v3127, 0.0
  %v3144 = vadd.f32 %v3128, 0.0
  %v3145 = vadd.f32 %v3129, 0.0
  %v3146 = vadd.f32 %v3130, 0.0
  %3147 = vset.pattern.permute.xlu0 1
  %3148 = vperm.xlu0 %3147, %v3013
  %v3149 = vpop.permute.xlu0 %3148
  %3151 = vset.pattern.permute.xlu0 1
  %3152 = vperm.xlu0 %3151, %v3014
  %v3153 = vpop.permute.xlu0 %3152
  %3155 = vset.pattern.permute.xlu0 1
  %3156 = vperm.xlu0 %3155, %v3015
  %v3157 = vpop.permute.xlu0 %3156
  %3159 = vset.pattern.permute.xlu0 1
  %3160 = vperm.xlu0 %3159, %v3016
  %v3161 = vpop.permute.xlu0 %3160
  %3163 = vset.pattern.permute.xlu0 1
  %3164 = vperm.xlu0 %3163, %v3017
  %v3165 = vpop.permute.xlu0 %3164
  %3167 = vset.pattern.permute.xlu0 1
  %3168 = vperm.xlu0 %3167, %v3018
  %v3169 = vpop.permute.xlu0 %3168
  %3171 = vset.pattern.permute.xlu0 1
  %3172 = vperm.xlu0 %3171, %v3019
  %v3173 = vpop.permute.xlu0 %3172
  %3175 = vset.pattern.permute.xlu0 1
  %3176 = vperm.xlu0 %3175, %v3020
  %v3177 = vpop.permute.xlu0 %3176
  %3179 = vset.pattern.permute.xlu0 1
  %3180 = vperm.xlu0 %3179, %v3021
  %v3181 = vpop.permute.xlu0 %3180
  %3183 = vset.pattern.permute.xlu0 1
  %3184 = vperm.xlu0 %3183, %v3022
  %v3185 = vpop.permute.xlu0 %3184
  %3187 = vset.pattern.permute.xlu0 1
  %3188 = vperm.xlu0 %3187, %v3023
  %v3189 = vpop.permute.xlu0 %3188
  %3191 = vset.pattern.permute.xlu0 1
  %3192 = vperm.xlu0 %3191, %v3024
  %v3193 = vpop.permute.xlu0 %3192
  %3195 = vset.pattern.permute.xlu0 1
  %3196 = vperm.xlu0 %3195, %v3025
  %v3197 = vpop.permute.xlu0 %3196
  %3199 = vset.pattern.permute.xlu0 1
  %3200 = vperm.xlu0 %3199, %v3026
  %v3201 = vpop.permute.xlu0 %3200
  %3203 = vset.pattern.permute.xlu0 1
  %3204 = vperm.xlu0 %3203, %v3027
  %v3205 = vpop.permute.xlu0 %3204
  %3207 = vset.pattern.permute.xlu0 1
  %3208 = vperm.xlu0 %3207, %v3028
  %v3209 = vpop.permute.xlu0 %3208
  %v3211 = vlaneseq
  %v3212 = vshrl.u32 %v3211, 7
  %v3213 = vsub.s32 1, %v3212
  %v3214 = vrot.slane %v3029, %v3213
  %v3215 = vmul.f32 %v3149, %v3214
  %v3216 = vmul.f32 %v3153, %v3214
  %v3217 = vmul.f32 %v3157, %v3214
  %v3218 = vmul.f32 %v3161, %v3214
  %v3219 = vmul.f32 %v3165, %v3214
  %v3220 = vmul.f32 %v3169, %v3214
  %v3221 = vmul.f32 %v3173, %v3214
  %v3222 = vmul.f32 %v3177, %v3214
  %v3223 = vmul.f32 %v3181, %v3214
  %v3224 = vmul.f32 %v3185, %v3214
  %v3225 = vmul.f32 %v3189, %v3214
  %v3226 = vmul.f32 %v3193, %v3214
  %v3227 = vmul.f32 %v3197, %v3214
  %v3228 = vmul.f32 %v3201, %v3214
  %v3229 = vmul.f32 %v3205, %v3214
  %v3230 = vmul.f32 %v3209, %v3214
  %v3231 = vadd.f32 %v3131, %v3215
  %v3232 = vadd.f32 %v3132, %v3216
  %v3233 = vadd.f32 %v3133, %v3217
  %v3234 = vadd.f32 %v3134, %v3218
  %v3235 = vadd.f32 %v3135, %v3219
  %v3236 = vadd.f32 %v3136, %v3220
  %v3237 = vadd.f32 %v3137, %v3221
  %v3238 = vadd.f32 %v3138, %v3222
  %v3239 = vadd.f32 %v3139, %v3223
  %v3240 = vadd.f32 %v3140, %v3224
  %v3241 = vadd.f32 %v3141, %v3225
  %v3242 = vadd.f32 %v3142, %v3226
  %v3243 = vadd.f32 %v3143, %v3227
  %v3244 = vadd.f32 %v3144, %v3228
  %v3245 = vadd.f32 %v3145, %v3229
  %v3246 = vadd.f32 %v3146, %v3230
  %3247 = vset.pattern.permute.xlu0 2
  %3248 = vperm.xlu0 %3247, %v3013
  %v3249 = vpop.permute.xlu0 %3248
  %3251 = vset.pattern.permute.xlu0 2
  %3252 = vperm.xlu0 %3251, %v3014
  %v3253 = vpop.permute.xlu0 %3252
  %3255 = vset.pattern.permute.xlu0 2
  %3256 = vperm.xlu0 %3255, %v3015
  %v3257 = vpop.permute.xlu0 %3256
  %3259 = vset.pattern.permute.xlu0 2
  %3260 = vperm.xlu0 %3259, %v3016
  %v3261 = vpop.permute.xlu0 %3260
  %3263 = vset.pattern.permute.xlu0 2
  %3264 = vperm.xlu0 %3263, %v3017
  %v3265 = vpop.permute.xlu0 %3264
  %3267 = vset.pattern.permute.xlu0 2
  %3268 = vperm.xlu0 %3267, %v3018
  %v3269 = vpop.permute.xlu0 %3268
  %3271 = vset.pattern.permute.xlu0 2
  %3272 = vperm.xlu0 %3271, %v3019
  %v3273 = vpop.permute.xlu0 %3272
  %3275 = vset.pattern.permute.xlu0 2
  %3276 = vperm.xlu0 %3275, %v3020
  %v3277 = vpop.permute.xlu0 %3276
  %3279 = vset.pattern.permute.xlu0 2
  %3280 = vperm.xlu0 %3279, %v3021
  %v3281 = vpop.permute.xlu0 %3280
  %3283 = vset.pattern.permute.xlu0 2
  %3284 = vperm.xlu0 %3283, %v3022
  %v3285 = vpop.permute.xlu0 %3284
  %3287 = vset.pattern.permute.xlu0 2
  %3288 = vperm.xlu0 %3287, %v3023
  %v3289 = vpop.permute.xlu0 %3288
  %3291 = vset.pattern.permute.xlu0 2
  %3292 = vperm.xlu0 %3291, %v3024
  %v3293 = vpop.permute.xlu0 %3292
  %3295 = vset.pattern.permute.xlu0 2
  %3296 = vperm.xlu0 %3295, %v3025
  %v3297 = vpop.permute.xlu0 %3296
  %3299 = vset.pattern.permute.xlu0 2
  %3300 = vperm.xlu0 %3299, %v3026
  %v3301 = vpop.permute.xlu0 %3300
  %3303 = vset.pattern.permute.xlu0 2
  %3304 = vperm.xlu0 %3303, %v3027
  %v3305 = vpop.permute.xlu0 %3304
  %3307 = vset.pattern.permute.xlu0 2
  %3308 = vperm.xlu0 %3307, %v3028
  %v3309 = vpop.permute.xlu0 %3308
  %v3311 = vlaneseq
  %v3312 = vshrl.u32 %v3311, 7
  %v3313 = vsub.s32 2, %v3312
  %v3314 = vrot.slane %v3029, %v3313
  %v3315 = vmul.f32 %v3249, %v3314
  %v3316 = vmul.f32 %v3253, %v3314
  %v3317 = vmul.f32 %v3257, %v3314
  %v3318 = vmul.f32 %v3261, %v3314
  %v3319 = vmul.f32 %v3265, %v3314
  %v3320 = vmul.f32 %v3269, %v3314
  %v3321 = vmul.f32 %v3273, %v3314
  %v3322 = vmul.f32 %v3277, %v3314
  %v3323 = vmul.f32 %v3281, %v3314
  %v3324 = vmul.f32 %v3285, %v3314
  %v3325 = vmul.f32 %v3289, %v3314
  %v3326 = vmul.f32 %v3293, %v3314
  %v3327 = vmul.f32 %v3297, %v3314
  %v3328 = vmul.f32 %v3301, %v3314
  %v3329 = vmul.f32 %v3305, %v3314
  %v3330 = vmul.f32 %v3309, %v3314
  %v3331 = vadd.f32 %v3231, %v3315
  %v3332 = vadd.f32 %v3232, %v3316
  %v3333 = vadd.f32 %v3233, %v3317
  %v3334 = vadd.f32 %v3234, %v3318
  %v3335 = vadd.f32 %v3235, %v3319
  %v3336 = vadd.f32 %v3236, %v3320
  %v3337 = vadd.f32 %v3237, %v3321
  %v3338 = vadd.f32 %v3238, %v3322
  %v3339 = vadd.f32 %v3239, %v3323
  %v3340 = vadd.f32 %v3240, %v3324
  %v3341 = vadd.f32 %v3241, %v3325
  %v3342 = vadd.f32 %v3242, %v3326
  %v3343 = vadd.f32 %v3243, %v3327
  %v3344 = vadd.f32 %v3244, %v3328
  %v3345 = vadd.f32 %v3245, %v3329
  %v3346 = vadd.f32 %v3246, %v3330
  %3347 = vset.pattern.permute.xlu0 3
  %3348 = vperm.xlu0 %3347, %v3013
  %v3349 = vpop.permute.xlu0 %3348
  %3351 = vset.pattern.permute.xlu0 3
  %3352 = vperm.xlu0 %3351, %v3014
  %v3353 = vpop.permute.xlu0 %3352
  %3355 = vset.pattern.permute.xlu0 3
  %3356 = vperm.xlu0 %3355, %v3015
  %v3357 = vpop.permute.xlu0 %3356
  %3359 = vset.pattern.permute.xlu0 3
  %3360 = vperm.xlu0 %3359, %v3016
  %v3361 = vpop.permute.xlu0 %3360
  %3363 = vset.pattern.permute.xlu0 3
  %3364 = vperm.xlu0 %3363, %v3017
  %v3365 = vpop.permute.xlu0 %3364
  %3367 = vset.pattern.permute.xlu0 3
  %3368 = vperm.xlu0 %3367, %v3018
  %v3369 = vpop.permute.xlu0 %3368
  %3371 = vset.pattern.permute.xlu0 3
  %3372 = vperm.xlu0 %3371, %v3019
  %v3373 = vpop.permute.xlu0 %3372
  %3375 = vset.pattern.permute.xlu0 3
  %3376 = vperm.xlu0 %3375, %v3020
  %v3377 = vpop.permute.xlu0 %3376
  %3379 = vset.pattern.permute.xlu0 3
  %3380 = vperm.xlu0 %3379, %v3021
  %v3381 = vpop.permute.xlu0 %3380
  %3383 = vset.pattern.permute.xlu0 3
  %3384 = vperm.xlu0 %3383, %v3022
  %v3385 = vpop.permute.xlu0 %3384
  %3387 = vset.pattern.permute.xlu0 3
  %3388 = vperm.xlu0 %3387, %v3023
  %v3389 = vpop.permute.xlu0 %3388
  %3391 = vset.pattern.permute.xlu0 3
  %3392 = vperm.xlu0 %3391, %v3024
  %v3393 = vpop.permute.xlu0 %3392
  %3395 = vset.pattern.permute.xlu0 3
  %3396 = vperm.xlu0 %3395, %v3025
  %v3397 = vpop.permute.xlu0 %3396
  %3399 = vset.pattern.permute.xlu0 3
  %3400 = vperm.xlu0 %3399, %v3026
  %v3401 = vpop.permute.xlu0 %3400
  %3403 = vset.pattern.permute.xlu0 3
  %3404 = vperm.xlu0 %3403, %v3027
  %v3405 = vpop.permute.xlu0 %3404
  %3407 = vset.pattern.permute.xlu0 3
  %3408 = vperm.xlu0 %3407, %v3028
  %v3409 = vpop.permute.xlu0 %3408
  %v3411 = vlaneseq
  %v3412 = vshrl.u32 %v3411, 7
  %v3413 = vsub.s32 3, %v3412
  %v3414 = vrot.slane %v3029, %v3413
  %v3415 = vmul.f32 %v3349, %v3414
  %v3416 = vmul.f32 %v3353, %v3414
  %v3417 = vmul.f32 %v3357, %v3414
  %v3418 = vmul.f32 %v3361, %v3414
  %v3419 = vmul.f32 %v3365, %v3414
  %v3420 = vmul.f32 %v3369, %v3414
  %v3421 = vmul.f32 %v3373, %v3414
  %v3422 = vmul.f32 %v3377, %v3414
  %v3423 = vmul.f32 %v3381, %v3414
  %v3424 = vmul.f32 %v3385, %v3414
  %v3425 = vmul.f32 %v3389, %v3414
  %v3426 = vmul.f32 %v3393, %v3414
  %v3427 = vmul.f32 %v3397, %v3414
  %v3428 = vmul.f32 %v3401, %v3414
  %v3429 = vmul.f32 %v3405, %v3414
  %v3430 = vmul.f32 %v3409, %v3414
  %v3431 = vadd.f32 %v3331, %v3415
  %v3432 = vadd.f32 %v3332, %v3416
  %v3433 = vadd.f32 %v3333, %v3417
  %v3434 = vadd.f32 %v3334, %v3418
  %v3435 = vadd.f32 %v3335, %v3419
  %v3436 = vadd.f32 %v3336, %v3420
  %v3437 = vadd.f32 %v3337, %v3421
  %v3438 = vadd.f32 %v3338, %v3422
  %v3439 = vadd.f32 %v3339, %v3423
  %v3440 = vadd.f32 %v3340, %v3424
  %v3441 = vadd.f32 %v3341, %v3425
  %v3442 = vadd.f32 %v3342, %v3426
  %v3443 = vadd.f32 %v3343, %v3427
  %v3444 = vadd.f32 %v3344, %v3428
  %v3445 = vadd.f32 %v3345, %v3429
  %v3446 = vadd.f32 %v3346, %v3430
  %v3448 = vlaneseq
  %v3449 = vshrl.u32 %v3448, 7
  %v3450 = vsub.s32 0, %v3449
  %v3451 = vrot.slane %v3030, %v3450
  %v3453 = vadd.f32 %v3431, %v3451
  %v3454 = vadd.f32 %v3432, %v3451
  %v3455 = vadd.f32 %v3433, %v3451
  %v3456 = vadd.f32 %v3434, %v3451
  %v3457 = vadd.f32 %v3435, %v3451
  %v3458 = vadd.f32 %v3436, %v3451
  %v3459 = vadd.f32 %v3437, %v3451
  %v3460 = vadd.f32 %v3438, %v3451
  %v3461 = vadd.f32 %v3439, %v3451
  %v3462 = vadd.f32 %v3440, %v3451
  %v3463 = vadd.f32 %v3441, %v3451
  %v3464 = vadd.f32 %v3442, %v3451
  %v3465 = vadd.f32 %v3443, %v3451
  %v3466 = vadd.f32 %v3444, %v3451
  %v3467 = vadd.f32 %v3445, %v3451
  %v3468 = vadd.f32 %v3446, %v3451
  %v3469 = vld [vmem:[%s7] sm:$0xf]
  %v3470 = vld [vmem:[%s8] sm:$0x1]
  %v3471 = vlaneseq
  %v3472 = vshrl.u32 %v3471, 7
  %v3473 = vsub.s32 0, %v3472
  %v3474 = vrot.slane %v3469, %v3473
  %v3475 = vmul.f32 %v3034, %v3474
  %v3476 = vmul.f32 %v3039, %v3474
  %v3477 = vmul.f32 %v3044, %v3474
  %v3478 = vmul.f32 %v3049, %v3474
  %v3479 = vmul.f32 %v3054, %v3474
  %v3480 = vmul.f32 %v3059, %v3474
  %v3481 = vmul.f32 %v3064, %v3474
  %v3482 = vmul.f32 %v3069, %v3474
  %v3483 = vmul.f32 %v3074, %v3474
  %v3484 = vmul.f32 %v3079, %v3474
  %v3485 = vmul.f32 %v3084, %v3474
  %v3486 = vmul.f32 %v3089, %v3474
  %v3487 = vmul.f32 %v3094, %v3474
  %v3488 = vmul.f32 %v3099, %v3474
  %v3489 = vmul.f32 %v3104, %v3474
  %v3490 = vmul.f32 %v3109, %v3474
  %v3491 = vadd.f32 %v3475, 0.0
  %v3492 = vadd.f32 %v3476, 0.0
  %v3493 = vadd.f32 %v3477, 0.0
  %v3494 = vadd.f32 %v3478, 0.0
  %v3495 = vadd.f32 %v3479, 0.0
  %v3496 = vadd.f32 %v3480, 0.0
  %v3497 = vadd.f32 %v3481, 0.0
  %v3498 = vadd.f32 %v3482, 0.0
  %v3499 = vadd.f32 %v3483, 0.0
  %v3500 = vadd.f32 %v3484, 0.0
  %v3501 = vadd.f32 %v3485, 0.0
  %v3502 = vadd.f32 %v3486, 0.0
  %v3503 = vadd.f32 %v3487, 0.0
  %v3504 = vadd.f32 %v3488, 0.0
  %v3505 = vadd.f32 %v3489, 0.0
  %v3506 = vadd.f32 %v3490, 0.0
  %v3507 = vlaneseq
  %v3508 = vshrl.u32 %v3507, 7
  %v3509 = vsub.s32 1, %v3508
  %v3510 = vrot.slane %v3469, %v3509
  %v3511 = vmul.f32 %v3149, %v3510
  %v3512 = vmul.f32 %v3153, %v3510
  %v3513 = vmul.f32 %v3157, %v3510
  %v3514 = vmul.f32 %v3161, %v3510
  %v3515 = vmul.f32 %v3165, %v3510
  %v3516 = vmul.f32 %v3169, %v3510
  %v3517 = vmul.f32 %v3173, %v3510
  %v3518 = vmul.f32 %v3177, %v3510
  %v3519 = vmul.f32 %v3181, %v3510
  %v3520 = vmul.f32 %v3185, %v3510
  %v3521 = vmul.f32 %v3189, %v3510
  %v3522 = vmul.f32 %v3193, %v3510
  %v3523 = vmul.f32 %v3197, %v3510
  %v3524 = vmul.f32 %v3201, %v3510
  %v3525 = vmul.f32 %v3205, %v3510
  %v3526 = vmul.f32 %v3209, %v3510
  %v3527 = vadd.f32 %v3491, %v3511
  %v3528 = vadd.f32 %v3492, %v3512
  %v3529 = vadd.f32 %v3493, %v3513
  %v3530 = vadd.f32 %v3494, %v3514
  %v3531 = vadd.f32 %v3495, %v3515
  %v3532 = vadd.f32 %v3496, %v3516
  %v3533 = vadd.f32 %v3497, %v3517
  %v3534 = vadd.f32 %v3498, %v3518
  %v3535 = vadd.f32 %v3499, %v3519
  %v3536 = vadd.f32 %v3500, %v3520
  %v3537 = vadd.f32 %v3501, %v3521
  %v3538 = vadd.f32 %v3502, %v3522
  %v3539 = vadd.f32 %v3503, %v3523
  %v3540 = vadd.f32 %v3504, %v3524
  %v3541 = vadd.f32 %v3505, %v3525
  %v3542 = vadd.f32 %v3506, %v3526
  %v3543 = vlaneseq
  %v3544 = vshrl.u32 %v3543, 7
  %v3545 = vsub.s32 2, %v3544
  %v3546 = vrot.slane %v3469, %v3545
  %v3547 = vmul.f32 %v3249, %v3546
  %v3548 = vmul.f32 %v3253, %v3546
  %v3549 = vmul.f32 %v3257, %v3546
  %v3550 = vmul.f32 %v3261, %v3546
  %v3551 = vmul.f32 %v3265, %v3546
  %v3552 = vmul.f32 %v3269, %v3546
  %v3553 = vmul.f32 %v3273, %v3546
  %v3554 = vmul.f32 %v3277, %v3546
  %v3555 = vmul.f32 %v3281, %v3546
  %v3556 = vmul.f32 %v3285, %v3546
  %v3557 = vmul.f32 %v3289, %v3546
  %v3558 = vmul.f32 %v3293, %v3546
  %v3559 = vmul.f32 %v3297, %v3546
  %v3560 = vmul.f32 %v3301, %v3546
  %v3561 = vmul.f32 %v3305, %v3546
  %v3562 = vmul.f32 %v3309, %v3546
  %v3563 = vadd.f32 %v3527, %v3547
  %v3564 = vadd.f32 %v3528, %v3548
  %v3565 = vadd.f32 %v3529, %v3549
  %v3566 = vadd.f32 %v3530, %v3550
  %v3567 = vadd.f32 %v3531, %v3551
  %v3568 = vadd.f32 %v3532, %v3552
  %v3569 = vadd.f32 %v3533, %v3553
  %v3570 = vadd.f32 %v3534, %v3554
  %v3571 = vadd.f32 %v3535, %v3555
  %v3572 = vadd.f32 %v3536, %v3556
  %v3573 = vadd.f32 %v3537, %v3557
  %v3574 = vadd.f32 %v3538, %v3558
  %v3575 = vadd.f32 %v3539, %v3559
  %v3576 = vadd.f32 %v3540, %v3560
  %v3577 = vadd.f32 %v3541, %v3561
  %v3578 = vadd.f32 %v3542, %v3562
  %v3579 = vlaneseq
  %v3580 = vshrl.u32 %v3579, 7
  %v3581 = vsub.s32 3, %v3580
  %v3582 = vrot.slane %v3469, %v3581
  %v3583 = vmul.f32 %v3349, %v3582
  %v3584 = vmul.f32 %v3353, %v3582
  %v3585 = vmul.f32 %v3357, %v3582
  %v3586 = vmul.f32 %v3361, %v3582
  %v3587 = vmul.f32 %v3365, %v3582
  %v3588 = vmul.f32 %v3369, %v3582
  %v3589 = vmul.f32 %v3373, %v3582
  %v3590 = vmul.f32 %v3377, %v3582
  %v3591 = vmul.f32 %v3381, %v3582
  %v3592 = vmul.f32 %v3385, %v3582
  %v3593 = vmul.f32 %v3389, %v3582
  %v3594 = vmul.f32 %v3393, %v3582
  %v3595 = vmul.f32 %v3397, %v3582
  %v3596 = vmul.f32 %v3401, %v3582
  %v3597 = vmul.f32 %v3405, %v3582
  %v3598 = vmul.f32 %v3409, %v3582
  %v3599 = vadd.f32 %v3563, %v3583
  %v3600 = vadd.f32 %v3564, %v3584
  %v3601 = vadd.f32 %v3565, %v3585
  %v3602 = vadd.f32 %v3566, %v3586
  %v3603 = vadd.f32 %v3567, %v3587
  %v3604 = vadd.f32 %v3568, %v3588
  %v3605 = vadd.f32 %v3569, %v3589
  %v3606 = vadd.f32 %v3570, %v3590
  %v3607 = vadd.f32 %v3571, %v3591
  %v3608 = vadd.f32 %v3572, %v3592
  %v3609 = vadd.f32 %v3573, %v3593
  %v3610 = vadd.f32 %v3574, %v3594
  %v3611 = vadd.f32 %v3575, %v3595
  %v3612 = vadd.f32 %v3576, %v3596
  %v3613 = vadd.f32 %v3577, %v3597
  %v3614 = vadd.f32 %v3578, %v3598
  %v3616 = vlaneseq
  %v3617 = vshrl.u32 %v3616, 7
  %v3618 = vsub.s32 0, %v3617
  %v3619 = vrot.slane %v3470, %v3618
  %v3621 = vadd.f32 %v3599, %v3619
  %v3622 = vadd.f32 %v3600, %v3619
  %v3623 = vadd.f32 %v3601, %v3619
  %v3624 = vadd.f32 %v3602, %v3619
  %v3625 = vadd.f32 %v3603, %v3619
  %v3626 = vadd.f32 %v3604, %v3619
  %v3627 = vadd.f32 %v3605, %v3619
  %v3628 = vadd.f32 %v3606, %v3619
  %v3629 = vadd.f32 %v3607, %v3619
  %v3630 = vadd.f32 %v3608, %v3619
  %v3631 = vadd.f32 %v3609, %v3619
  %v3632 = vadd.f32 %v3610, %v3619
  %v3633 = vadd.f32 %v3611, %v3619
  %v3634 = vadd.f32 %v3612, %v3619
  %v3635 = vadd.f32 %v3613, %v3619
  %v3636 = vadd.f32 %v3614, %v3619
  %v3637 = vld [vmem:[%s9] sm:$0xf]
  %v3638 = vld [vmem:[%s10] sm:$0x1]
  %v3639 = vlaneseq
  %v3640 = vshrl.u32 %v3639, 7
  %v3641 = vsub.s32 0, %v3640
  %v3642 = vrot.slane %v3637, %v3641
  %v3643 = vmul.f32 %v3034, %v3642
  %v3644 = vmul.f32 %v3039, %v3642
  %v3645 = vmul.f32 %v3044, %v3642
  %v3646 = vmul.f32 %v3049, %v3642
  %v3647 = vmul.f32 %v3054, %v3642
  %v3648 = vmul.f32 %v3059, %v3642
  %v3649 = vmul.f32 %v3064, %v3642
  %v3650 = vmul.f32 %v3069, %v3642
  %v3651 = vmul.f32 %v3074, %v3642
  %v3652 = vmul.f32 %v3079, %v3642
  %v3653 = vmul.f32 %v3084, %v3642
  %v3654 = vmul.f32 %v3089, %v3642
  %v3655 = vmul.f32 %v3094, %v3642
  %v3656 = vmul.f32 %v3099, %v3642
  %v3657 = vmul.f32 %v3104, %v3642
  %v3658 = vmul.f32 %v3109, %v3642
  %v3659 = vadd.f32 %v3643, 0.0
  %v3660 = vadd.f32 %v3644, 0.0
  %v3661 = vadd.f32 %v3645, 0.0
  %v3662 = vadd.f32 %v3646, 0.0
  %v3663 = vadd.f32 %v3647, 0.0
  %v3664 = vadd.f32 %v3648, 0.0
  %v3665 = vadd.f32 %v3649, 0.0
  %v3666 = vadd.f32 %v3650, 0.0
  %v3667 = vadd.f32 %v3651, 0.0
  %v3668 = vadd.f32 %v3652, 0.0
  %v3669 = vadd.f32 %v3653, 0.0
  %v3670 = vadd.f32 %v3654, 0.0
  %v3671 = vadd.f32 %v3655, 0.0
  %v3672 = vadd.f32 %v3656, 0.0
  %v3673 = vadd.f32 %v3657, 0.0
  %v3674 = vadd.f32 %v3658, 0.0
  %v3675 = vlaneseq
  %v3676 = vshrl.u32 %v3675, 7
  %v3677 = vsub.s32 1, %v3676
  %v3678 = vrot.slane %v3637, %v3677
  %v3679 = vmul.f32 %v3149, %v3678
  %v3680 = vmul.f32 %v3153, %v3678
  %v3681 = vmul.f32 %v3157, %v3678
  %v3682 = vmul.f32 %v3161, %v3678
  %v3683 = vmul.f32 %v3165, %v3678
  %v3684 = vmul.f32 %v3169, %v3678
  %v3685 = vmul.f32 %v3173, %v3678
  %v3686 = vmul.f32 %v3177, %v3678
  %v3687 = vmul.f32 %v3181, %v3678
  %v3688 = vmul.f32 %v3185, %v3678
  %v3689 = vmul.f32 %v3189, %v3678
  %v3690 = vmul.f32 %v3193, %v3678
  %v3691 = vmul.f32 %v3197, %v3678
  %v3692 = vmul.f32 %v3201, %v3678
  %v3693 = vmul.f32 %v3205, %v3678
  %v3694 = vmul.f32 %v3209, %v3678
  %v3695 = vadd.f32 %v3659, %v3679
  %v3696 = vadd.f32 %v3660, %v3680
  %v3697 = vadd.f32 %v3661, %v3681
  %v3698 = vadd.f32 %v3662, %v3682
  %v3699 = vadd.f32 %v3663, %v3683
  %v3700 = vadd.f32 %v3664, %v3684
  %v3701 = vadd.f32 %v3665, %v3685
  %v3702 = vadd.f32 %v3666, %v3686
  %v3703 = vadd.f32 %v3667, %v3687
  %v3704 = vadd.f32 %v3668, %v3688
  %v3705 = vadd.f32 %v3669, %v3689
  %v3706 = vadd.f32 %v3670, %v3690
  %v3707 = vadd.f32 %v3671, %v3691
  %v3708 = vadd.f32 %v3672, %v3692
  %v3709 = vadd.f32 %v3673, %v3693
  %v3710 = vadd.f32 %v3674, %v3694
  %v3711 = vlaneseq
  %v3712 = vshrl.u32 %v3711, 7
  %v3713 = vsub.s32 2, %v3712
  %v3714 = vrot.slane %v3637, %v3713
  %v3715 = vmul.f32 %v3249, %v3714
  %v3716 = vmul.f32 %v3253, %v3714
  %v3717 = vmul.f32 %v3257, %v3714
  %v3718 = vmul.f32 %v3261, %v3714
  %v3719 = vmul.f32 %v3265, %v3714
  %v3720 = vmul.f32 %v3269, %v3714
  %v3721 = vmul.f32 %v3273, %v3714
  %v3722 = vmul.f32 %v3277, %v3714
  %v3723 = vmul.f32 %v3281, %v3714
  %v3724 = vmul.f32 %v3285, %v3714
  %v3725 = vmul.f32 %v3289, %v3714
  %v3726 = vmul.f32 %v3293, %v3714
  %v3727 = vmul.f32 %v3297, %v3714
  %v3728 = vmul.f32 %v3301, %v3714
  %v3729 = vmul.f32 %v3305, %v3714
  %v3730 = vmul.f32 %v3309, %v3714
  %v3731 = vadd.f32 %v3695, %v3715
  %v3732 = vadd.f32 %v3696, %v3716
  %v3733 = vadd.f32 %v3697, %v3717
  %v3734 = vadd.f32 %v3698, %v3718
  %v3735 = vadd.f32 %v3699, %v3719
  %v3736 = vadd.f32 %v3700, %v3720
  %v3737 = vadd.f32 %v3701, %v3721
  %v3738 = vadd.f32 %v3702, %v3722
  %v3739 = vadd.f32 %v3703, %v3723
  %v3740 = vadd.f32 %v3704, %v3724
  %v3741 = vadd.f32 %v3705, %v3725
  %v3742 = vadd.f32 %v3706, %v3726
  %v3743 = vadd.f32 %v3707, %v3727
  %v3744 = vadd.f32 %v3708, %v3728
  %v3745 = vadd.f32 %v3709, %v3729
  %v3746 = vadd.f32 %v3710, %v3730
  %v3747 = vlaneseq
  %v3748 = vshrl.u32 %v3747, 7
  %v3749 = vsub.s32 3, %v3748
  %v3750 = vrot.slane %v3637, %v3749
  %v3751 = vmul.f32 %v3349, %v3750
  %v3752 = vmul.f32 %v3353, %v3750
  %v3753 = vmul.f32 %v3357, %v3750
  %v3754 = vmul.f32 %v3361, %v3750
  %v3755 = vmul.f32 %v3365, %v3750
  %v3756 = vmul.f32 %v3369, %v3750
  %v3757 = vmul.f32 %v3373, %v3750
  %v3758 = vmul.f32 %v3377, %v3750
  %v3759 = vmul.f32 %v3381, %v3750
  %v3760 = vmul.f32 %v3385, %v3750
  %v3761 = vmul.f32 %v3389, %v3750
  %v3762 = vmul.f32 %v3393, %v3750
  %v3763 = vmul.f32 %v3397, %v3750
  %v3764 = vmul.f32 %v3401, %v3750
  %v3765 = vmul.f32 %v3405, %v3750
  %v3766 = vmul.f32 %v3409, %v3750
  %v3767 = vadd.f32 %v3731, %v3751
  %v3768 = vadd.f32 %v3732, %v3752
  %v3769 = vadd.f32 %v3733, %v3753
  %v3770 = vadd.f32 %v3734, %v3754
  %v3771 = vadd.f32 %v3735, %v3755
  %v3772 = vadd.f32 %v3736, %v3756
  %v3773 = vadd.f32 %v3737, %v3757
  %v3774 = vadd.f32 %v3738, %v3758
  %v3775 = vadd.f32 %v3739, %v3759
  %v3776 = vadd.f32 %v3740, %v3760
  %v3777 = vadd.f32 %v3741, %v3761
  %v3778 = vadd.f32 %v3742, %v3762
  %v3779 = vadd.f32 %v3743, %v3763
  %v3780 = vadd.f32 %v3744, %v3764
  %v3781 = vadd.f32 %v3745, %v3765
  %v3782 = vadd.f32 %v3746, %v3766
  %v3784 = vlaneseq
  %v3785 = vshrl.u32 %v3784, 7
  %v3786 = vsub.s32 0, %v3785
  %v3787 = vrot.slane %v3638, %v3786
  %v3789 = vadd.f32 %v3767, %v3787
  %v3790 = vadd.f32 %v3768, %v3787
  %v3791 = vadd.f32 %v3769, %v3787
  %v3792 = vadd.f32 %v3770, %v3787
  %v3793 = vadd.f32 %v3771, %v3787
  %v3794 = vadd.f32 %v3772, %v3787
  %v3795 = vadd.f32 %v3773, %v3787
  %v3796 = vadd.f32 %v3774, %v3787
  %v3797 = vadd.f32 %v3775, %v3787
  %v3798 = vadd.f32 %v3776, %v3787
  %v3799 = vadd.f32 %v3777, %v3787
  %v3800 = vadd.f32 %v3778, %v3787
  %v3801 = vadd.f32 %v3779, %v3787
  %v3802 = vadd.f32 %v3780, %v3787
  %v3803 = vadd.f32 %v3781, %v3787
  %v3804 = vadd.f32 %v3782, %v3787
  %v3805 = vlaneseq
  %v3806 = vshrl.u32 %v3805, 7
  %v3807 = vsub.s32 0, %v3806
  %v3808 = vrot.slane %v3453, %v3807
  %v3809 = vlaneseq
  %v3810 = vshrl.u32 %v3809, 7
  %v3811 = vsub.s32 0, %v3810
  %v3812 = vrot.slane %v3455, %v3811
  %v3813 = vlaneseq
  %v3814 = vshrl.u32 %v3813, 7
  %v3815 = vsub.s32 0, %v3814
  %v3816 = vrot.slane %v3457, %v3815
  %v3817 = vlaneseq
  %v3818 = vshrl.u32 %v3817, 7
  %v3819 = vsub.s32 0, %v3818
  %v3820 = vrot.slane %v3459, %v3819
  %v3821 = vlaneseq
  %v3822 = vshrl.u32 %v3821, 7
  %v3823 = vsub.s32 0, %v3822
  %v3824 = vrot.slane %v3461, %v3823
  %v3825 = vlaneseq
  %v3826 = vshrl.u32 %v3825, 7
  %v3827 = vsub.s32 0, %v3826
  %v3828 = vrot.slane %v3463, %v3827
  %v3829 = vlaneseq
  %v3830 = vshrl.u32 %v3829, 7
  %v3831 = vsub.s32 0, %v3830
  %v3832 = vrot.slane %v3465, %v3831
  %v3833 = vlaneseq
  %v3834 = vshrl.u32 %v3833, 7
  %v3835 = vsub.s32 0, %v3834
  %v3836 = vrot.slane %v3467, %v3835
  %v3837 = vmul.f32 %v3808, %v3621
  %v3838 = vmul.f32 %v3808, %v3622
  %v3839 = vmul.f32 %v3812, %v3623
  %v3840 = vmul.f32 %v3812, %v3624
  %v3841 = vmul.f32 %v3816, %v3625
  %v3842 = vmul.f32 %v3816, %v3626
  %v3843 = vmul.f32 %v3820, %v3627
  %v3844 = vmul.f32 %v3820, %v3628
  %v3845 = vmul.f32 %v3824, %v3629
  %v3846 = vmul.f32 %v3824, %v3630
  %v3847 = vmul.f32 %v3828, %v3631
  %v3848 = vmul.f32 %v3828, %v3632
  %v3849 = vmul.f32 %v3832, %v3633
  %v3850 = vmul.f32 %v3832, %v3634
  %v3851 = vmul.f32 %v3836, %v3635
  %v3852 = vmul.f32 %v3836, %v3636
  %vm3853 = vcmask 64512
  %v3854 = vsel %vm3853, %v3837, 0.0
  %v3855 = vsel %vm3853, %v3839, 0.0
  %v3856 = vadd.f32 %v3854, %v3855
  %v3857 = vsel %vm3853, %v3841, 0.0
  %v3858 = vadd.f32 %v3856, %v3857
  %v3859 = vsel %vm3853, %v3843, 0.0
  %v3860 = vadd.f32 %v3858, %v3859
  %v3861 = vsel %vm3853, %v3838, 0.0
  %v3862 = vsel %vm3853, %v3840, 0.0
  %v3863 = vadd.f32 %v3861, %v3862
  %v3864 = vsel %vm3853, %v3842, 0.0
  %v3865 = vadd.f32 %v3863, %v3864
  %v3866 = vsel %vm3853, %v3844, 0.0
  %v3867 = vadd.f32 %v3865, %v3866
  %v3868 = vsel %vm3853, %v3845, 0.0
  %v3869 = vsel %vm3853, %v3847, 0.0
  %v3870 = vadd.f32 %v3868, %v3869
  %v3871 = vsel %vm3853, %v3849, 0.0
  %v3872 = vadd.f32 %v3870, %v3871
  %v3873 = vsel %vm3853, %v3851, 0.0
  %v3874 = vadd.f32 %v3872, %v3873
  %v3875 = vsel %vm3853, %v3846, 0.0
  %v3876 = vsel %vm3853, %v3848, 0.0
  %v3877 = vadd.f32 %v3875, %v3876
  %v3878 = vsel %vm3853, %v3850, 0.0
  %v3879 = vadd.f32 %v3877, %v3878
  %v3880 = vsel %vm3853, %v3852, 0.0
  %v3881 = vadd.f32 %v3879, %v3880
  %v3882 = vsel %vm3853, %v3860, -inf
  %v3883 = vsel %vm3853, %v3867, -inf
  %v3884 = vmax.f32 %v3882, %v3883
  %v3885 = vrot.slane %v3884, 4
  %v3886 = vmax.f32 %v3884, %v3885
  %v3887 = vrot.slane %v3886, 2
  %v3888 = vmax.f32 %v3886, %v3887
  %v3889 = vrot.slane %v3888, 1
  %v3890 = vmax.f32 %v3888, %v3889
  %v3891 = vsel %vm3853, %v3874, -inf
  %v3892 = vsel %vm3853, %v3881, -inf
  %v3893 = vmax.f32 %v3891, %v3892
  %v3894 = vrot.slane %v3893, 4
  %v3895 = vmax.f32 %v3893, %v3894
  %v3896 = vrot.slane %v3895, 2
  %v3897 = vmax.f32 %v3895, %v3896
  %v3898 = vrot.slane %v3897, 1
  %v3899 = vmax.f32 %v3897, %v3898
  %v3900 = vsub.f32 %v3860, %v3890
  %v3901 = vsub.f32 %v3867, %v3890
  %v3902 = vsub.f32 %v3874, %v3899
  %v3903 = vsub.f32 %v3881, %v3899
  %v3904 = vmul.f32 %v3900, 1.442695
  %v3905 = vpow.pop %v3904
  %v3906 = vmul.f32 %v3901, 1.442695
  %v3907 = vpow.pop %v3906
  %v3908 = vmul.f32 %v3902, 1.442695
  %v3909 = vpow.pop %v3908
  %v3910 = vmul.f32 %v3903, 1.442695
  %v3911 = vpow.pop %v3910
  %v3912 = vsel %vm3853, %v3905, 0.0
  %v3913 = vsel %vm3853, %v3907, 0.0
  %v3914 = vadd.f32 %v3912, %v3913
  %v3915 = vrot.slane %v3914, 4
  %v3916 = vadd.f32 %v3914, %v3915
  %v3917 = vrot.slane %v3916, 2
  %v3918 = vadd.f32 %v3916, %v3917
  %v3919 = vrot.slane %v3918, 1
  %v3920 = vadd.f32 %v3918, %v3919
  %v3921 = vsel %vm3853, %v3909, 0.0
  %v3922 = vsel %vm3853, %v3911, 0.0
  %v3923 = vadd.f32 %v3921, %v3922
  %v3924 = vrot.slane %v3923, 4
  %v3925 = vadd.f32 %v3923, %v3924
  %v3926 = vrot.slane %v3925, 2
  %v3927 = vadd.f32 %v3925, %v3926
  %v3928 = vrot.slane %v3927, 1
  %v3929 = vadd.f32 %v3927, %v3928
  %v3930 = vrcp.pop %v3920
  %v3931 = vmul.f32 %v3905, %v3930
  %v3932 = vmul.f32 %v3907, %v3930
  %v3933 = vrcp.pop %v3929
  %v3934 = vmul.f32 %v3909, %v3933
  %v3935 = vmul.f32 %v3911, %v3933
  %v3936 = vlaneseq
  %v3937 = vshrl.u32 %v3936, 7
  %v3938 = vsub.s32 0, %v3937
  %v3939 = vrot.slane %v3789, %v3938
  %v3940 = vlaneseq
  %v3941 = vshrl.u32 %v3940, 7
  %v3942 = vsub.s32 0, %v3941
  %v3943 = vrot.slane %v3791, %v3942
  %v3944 = vlaneseq
  %v3945 = vshrl.u32 %v3944, 7
  %v3946 = vsub.s32 0, %v3945
  %v3947 = vrot.slane %v3793, %v3946
  %v3948 = vlaneseq
  %v3949 = vshrl.u32 %v3948, 7
  %v3950 = vsub.s32 0, %v3949
  %v3951 = vrot.slane %v3795, %v3950
  %v3952 = vlaneseq
  %v3953 = vshrl.u32 %v3952, 7
  %v3954 = vsub.s32 0, %v3953
  %v3955 = vrot.slane %v3797, %v3954
  %v3956 = vlaneseq
  %v3957 = vshrl.u32 %v3956, 7
  %v3958 = vsub.s32 0, %v3957
  %v3959 = vrot.slane %v3799, %v3958
  %v3960 = vlaneseq
  %v3961 = vshrl.u32 %v3960, 7
  %v3962 = vsub.s32 0, %v3961
  %v3963 = vrot.slane %v3801, %v3962
  %v3964 = vlaneseq
  %v3965 = vshrl.u32 %v3964, 7
  %v3966 = vsub.s32 0, %v3965
  %v3967 = vrot.slane %v3803, %v3966
  %v3968 = vmul.f32 %v3939, %v3931
  %v3969 = vmul.f32 %v3939, %v3932
  %v3970 = vmul.f32 %v3943, %v3931
  %v3971 = vmul.f32 %v3943, %v3932
  %v3972 = vmul.f32 %v3947, %v3931
  %v3973 = vmul.f32 %v3947, %v3932
  %v3974 = vmul.f32 %v3951, %v3931
  %v3975 = vmul.f32 %v3951, %v3932
  %v3976 = vmul.f32 %v3955, %v3934
  %v3977 = vmul.f32 %v3955, %v3935
  %v3978 = vmul.f32 %v3959, %v3934
  %v3979 = vmul.f32 %v3959, %v3935
  %v3980 = vmul.f32 %v3963, %v3934
  %v3981 = vmul.f32 %v3963, %v3935
  %v3982 = vmul.f32 %v3967, %v3934
  %v3983 = vmul.f32 %v3967, %v3935
  %v3984 = vadd.f32 %v3968, 0.0
  %v3985 = vadd.f32 %v3969, 0.0
  %v3986 = vadd.f32 %v3970, 0.0
  %v3987 = vadd.f32 %v3971, 0.0
  %v3988 = vadd.f32 %v3972, 0.0
  %v3989 = vadd.f32 %v3973, 0.0
  %v3990 = vadd.f32 %v3974, 0.0
  %v3991 = vadd.f32 %v3975, 0.0
  %v3992 = vadd.f32 %v3976, 0.0
  %v3993 = vadd.f32 %v3977, 0.0
  %v3994 = vadd.f32 %v3978, 0.0
  %v3995 = vadd.f32 %v3979, 0.0
  %v3996 = vadd.f32 %v3980, 0.0
  %v3997 = vadd.f32 %v3981, 0.0
  %v3998 = vadd.f32 %v3982, 0.0
  %v3999 = vadd.f32 %v3983, 0.0
  %v4000 = vlaneseq
  %v4001 = vshrl.u32 %v4000, 7
  %v4002 = vsub.s32 1, %v4001
  %v4003 = vrot.slane %v3453, %v4002
  %v4004 = vlaneseq
  %v4005 = vshrl.u32 %v4004, 7
  %v4006 = vsub.s32 1, %v4005
  %v4007 = vrot.slane %v3455, %v4006
  %v4008 = vlaneseq
  %v4009 = vshrl.u32 %v4008, 7
  %v4010 = vsub.s32 1, %v4009
  %v4011 = vrot.slane %v3457, %v4010
  %v4012 = vlaneseq
  %v4013 = vshrl.u32 %v4012, 7
  %v4014 = vsub.s32 1, %v4013
  %v4015 = vrot.slane %v3459, %v4014
  %v4016 = vlaneseq
  %v4017 = vshrl.u32 %v4016, 7
  %v4018 = vsub.s32 1, %v4017
  %v4019 = vrot.slane %v3461, %v4018
  %v4020 = vlaneseq
  %v4021 = vshrl.u32 %v4020, 7
  %v4022 = vsub.s32 1, %v4021
  %v4023 = vrot.slane %v3463, %v4022
  %v4024 = vlaneseq
  %v4025 = vshrl.u32 %v4024, 7
  %v4026 = vsub.s32 1, %v4025
  %v4027 = vrot.slane %v3465, %v4026
  %v4028 = vlaneseq
  %v4029 = vshrl.u32 %v4028, 7
  %v4030 = vsub.s32 1, %v4029
  %v4031 = vrot.slane %v3467, %v4030
  %v4032 = vmul.f32 %v4003, %v3621
  %v4033 = vmul.f32 %v4003, %v3622
  %v4034 = vmul.f32 %v4007, %v3623
  %v4035 = vmul.f32 %v4007, %v3624
  %v4036 = vmul.f32 %v4011, %v3625
  %v4037 = vmul.f32 %v4011, %v3626
  %v4038 = vmul.f32 %v4015, %v3627
  %v4039 = vmul.f32 %v4015, %v3628
  %v4040 = vmul.f32 %v4019, %v3629
  %v4041 = vmul.f32 %v4019, %v3630
  %v4042 = vmul.f32 %v4023, %v3631
  %v4043 = vmul.f32 %v4023, %v3632
  %v4044 = vmul.f32 %v4027, %v3633
  %v4045 = vmul.f32 %v4027, %v3634
  %v4046 = vmul.f32 %v4031, %v3635
  %v4047 = vmul.f32 %v4031, %v3636
  %v4048 = vsel %vm3853, %v4032, 0.0
  %v4049 = vsel %vm3853, %v4034, 0.0
  %v4050 = vadd.f32 %v4048, %v4049
  %v4051 = vsel %vm3853, %v4036, 0.0
  %v4052 = vadd.f32 %v4050, %v4051
  %v4053 = vsel %vm3853, %v4038, 0.0
  %v4054 = vadd.f32 %v4052, %v4053
  %v4055 = vsel %vm3853, %v4033, 0.0
  %v4056 = vsel %vm3853, %v4035, 0.0
  %v4057 = vadd.f32 %v4055, %v4056
  %v4058 = vsel %vm3853, %v4037, 0.0
  %v4059 = vadd.f32 %v4057, %v4058
  %v4060 = vsel %vm3853, %v4039, 0.0
  %v4061 = vadd.f32 %v4059, %v4060
  %v4062 = vsel %vm3853, %v4040, 0.0
  %v4063 = vsel %vm3853, %v4042, 0.0
  %v4064 = vadd.f32 %v4062, %v4063
  %v4065 = vsel %vm3853, %v4044, 0.0
  %v4066 = vadd.f32 %v4064, %v4065
  %v4067 = vsel %vm3853, %v4046, 0.0
  %v4068 = vadd.f32 %v4066, %v4067
  %v4069 = vsel %vm3853, %v4041, 0.0
  %v4070 = vsel %vm3853, %v4043, 0.0
  %v4071 = vadd.f32 %v4069, %v4070
  %v4072 = vsel %vm3853, %v4045, 0.0
  %v4073 = vadd.f32 %v4071, %v4072
  %v4074 = vsel %vm3853, %v4047, 0.0
  %v4075 = vadd.f32 %v4073, %v4074
  %v4076 = vsel %vm3853, %v4054, -inf
  %v4077 = vsel %vm3853, %v4061, -inf
  %v4078 = vmax.f32 %v4076, %v4077
  %v4079 = vrot.slane %v4078, 4
  %v4080 = vmax.f32 %v4078, %v4079
  %v4081 = vrot.slane %v4080, 2
  %v4082 = vmax.f32 %v4080, %v4081
  %v4083 = vrot.slane %v4082, 1
  %v4084 = vmax.f32 %v4082, %v4083
  %v4085 = vsel %vm3853, %v4068, -inf
  %v4086 = vsel %vm3853, %v4075, -inf
  %v4087 = vmax.f32 %v4085, %v4086
  %v4088 = vrot.slane %v4087, 4
  %v4089 = vmax.f32 %v4087, %v4088
  %v4090 = vrot.slane %v4089, 2
  %v4091 = vmax.f32 %v4089, %v4090
  %v4092 = vrot.slane %v4091, 1
  %v4093 = vmax.f32 %v4091, %v4092
  %v4094 = vsub.f32 %v4054, %v4084
  %v4095 = vsub.f32 %v4061, %v4084
  %v4096 = vsub.f32 %v4068, %v4093
  %v4097 = vsub.f32 %v4075, %v4093
  %v4098 = vmul.f32 %v4094, 1.442695
  %v4099 = vpow.pop %v4098
  %v4100 = vmul.f32 %v4095, 1.442695
  %v4101 = vpow.pop %v4100
  %v4102 = vmul.f32 %v4096, 1.442695
  %v4103 = vpow.pop %v4102
  %v4104 = vmul.f32 %v4097, 1.442695
  %v4105 = vpow.pop %v4104
  %v4106 = vsel %vm3853, %v4099, 0.0
  %v4107 = vsel %vm3853, %v4101, 0.0
  %v4108 = vadd.f32 %v4106, %v4107
  %v4109 = vrot.slane %v4108, 4
  %v4110 = vadd.f32 %v4108, %v4109
  %v4111 = vrot.slane %v4110, 2
  %v4112 = vadd.f32 %v4110, %v4111
  %v4113 = vrot.slane %v4112, 1
  %v4114 = vadd.f32 %v4112, %v4113
  %v4115 = vsel %vm3853, %v4103, 0.0
  %v4116 = vsel %vm3853, %v4105, 0.0
  %v4117 = vadd.f32 %v4115, %v4116
  %v4118 = vrot.slane %v4117, 4
  %v4119 = vadd.f32 %v4117, %v4118
  %v4120 = vrot.slane %v4119, 2
  %v4121 = vadd.f32 %v4119, %v4120
  %v4122 = vrot.slane %v4121, 1
  %v4123 = vadd.f32 %v4121, %v4122
  %v4124 = vrcp.pop %v4114
  %v4125 = vmul.f32 %v4099, %v4124
  %v4126 = vmul.f32 %v4101, %v4124
  %v4127 = vrcp.pop %v4123
  %v4128 = vmul.f32 %v4103, %v4127
  %v4129 = vmul.f32 %v4105, %v4127
  %v4130 = vlaneseq
  %v4131 = vshrl.u32 %v4130, 7
  %v4132 = vsub.s32 1, %v4131
  %v4133 = vrot.slane %v3789, %v4132
  %v4134 = vlaneseq
  %v4135 = vshrl.u32 %v4134, 7
  %v4136 = vsub.s32 1, %v4135
  %v4137 = vrot.slane %v3791, %v4136
  %v4138 = vlaneseq
  %v4139 = vshrl.u32 %v4138, 7
  %v4140 = vsub.s32 1, %v4139
  %v4141 = vrot.slane %v3793, %v4140
  %v4142 = vlaneseq
  %v4143 = vshrl.u32 %v4142, 7
  %v4144 = vsub.s32 1, %v4143
  %v4145 = vrot.slane %v3795, %v4144
  %v4146 = vlaneseq
  %v4147 = vshrl.u32 %v4146, 7
  %v4148 = vsub.s32 1, %v4147
  %v4149 = vrot.slane %v3797, %v4148
  %v4150 = vlaneseq
  %v4151 = vshrl.u32 %v4150, 7
  %v4152 = vsub.s32 1, %v4151
  %v4153 = vrot.slane %v3799, %v4152
  %v4154 = vlaneseq
  %v4155 = vshrl.u32 %v4154, 7
  %v4156 = vsub.s32 1, %v4155
  %v4157 = vrot.slane %v3801, %v4156
  %v4158 = vlaneseq
  %v4159 = vshrl.u32 %v4158, 7
  %v4160 = vsub.s32 1, %v4159
  %v4161 = vrot.slane %v3803, %v4160
  %v4162 = vmul.f32 %v4133, %v4125
  %v4163 = vmul.f32 %v4133, %v4126
  %v4164 = vmul.f32 %v4137, %v4125
  %v4165 = vmul.f32 %v4137, %v4126
  %v4166 = vmul.f32 %v4141, %v4125
  %v4167 = vmul.f32 %v4141, %v4126
  %v4168 = vmul.f32 %v4145, %v4125
  %v4169 = vmul.f32 %v4145, %v4126
  %v4170 = vmul.f32 %v4149, %v4128
  %v4171 = vmul.f32 %v4149, %v4129
  %v4172 = vmul.f32 %v4153, %v4128
  %v4173 = vmul.f32 %v4153, %v4129
  %v4174 = vmul.f32 %v4157, %v4128
  %v4175 = vmul.f32 %v4157, %v4129
  %v4176 = vmul.f32 %v4161, %v4128
  %v4177 = vmul.f32 %v4161, %v4129
  %v4178 = vadd.f32 %v3984, %v4162
  %v4179 = vadd.f32 %v3985, %v4163
  %v4180 = vadd.f32 %v3986, %v4164
  %v4181 = vadd.f32 %v3987, %v4165
  %v4182 = vadd.f32 %v3988, %v4166
  %v4183 = vadd.f32 %v3989, %v4167
  %v4184 = vadd.f32 %v3990, %v4168
  %v4185 = vadd.f32 %v3991, %v4169
  %v4186 = vadd.f32 %v3992, %v4170
  %v4187 = vadd.f32 %v3993, %v4171
  %v4188 = vadd.f32 %v3994, %v4172
  %v4189 = vadd.f32 %v3995, %v4173
  %v4190 = vadd.f32 %v3996, %v4174
  %v4191 = vadd.f32 %v3997, %v4175
  %v4192 = vadd.f32 %v3998, %v4176
  %v4193 = vadd.f32 %v3999, %v4177
  %v4194 = vlaneseq
  %v4195 = vshrl.u32 %v4194, 7
  %v4196 = vsub.s32 2, %v4195
  %v4197 = vrot.slane %v3453, %v4196
  %v4198 = vlaneseq
  %v4199 = vshrl.u32 %v4198, 7
  %v4200 = vsub.s32 2, %v4199
  %v4201 = vrot.slane %v3455, %v4200
  %v4202 = vlaneseq
  %v4203 = vshrl.u32 %v4202, 7
  %v4204 = vsub.s32 2, %v4203
  %v4205 = vrot.slane %v3457, %v4204
  %v4206 = vlaneseq
  %v4207 = vshrl.u32 %v4206, 7
  %v4208 = vsub.s32 2, %v4207
  %v4209 = vrot.slane %v3459, %v4208
  %v4210 = vlaneseq
  %v4211 = vshrl.u32 %v4210, 7
  %v4212 = vsub.s32 2, %v4211
  %v4213 = vrot.slane %v3461, %v4212
  %v4214 = vlaneseq
  %v4215 = vshrl.u32 %v4214, 7
  %v4216 = vsub.s32 2, %v4215
  %v4217 = vrot.slane %v3463, %v4216
  %v4218 = vlaneseq
  %v4219 = vshrl.u32 %v4218, 7
  %v4220 = vsub.s32 2, %v4219
  %v4221 = vrot.slane %v3465, %v4220
  %v4222 = vlaneseq
  %v4223 = vshrl.u32 %v4222, 7
  %v4224 = vsub.s32 2, %v4223
  %v4225 = vrot.slane %v3467, %v4224
  %v4226 = vmul.f32 %v4197, %v3621
  %v4227 = vmul.f32 %v4197, %v3622
  %v4228 = vmul.f32 %v4201, %v3623
  %v4229 = vmul.f32 %v4201, %v3624
  %v4230 = vmul.f32 %v4205, %v3625
  %v4231 = vmul.f32 %v4205, %v3626
  %v4232 = vmul.f32 %v4209, %v3627
  %v4233 = vmul.f32 %v4209, %v3628
  %v4234 = vmul.f32 %v4213, %v3629
  %v4235 = vmul.f32 %v4213, %v3630
  %v4236 = vmul.f32 %v4217, %v3631
  %v4237 = vmul.f32 %v4217, %v3632
  %v4238 = vmul.f32 %v4221, %v3633
  %v4239 = vmul.f32 %v4221, %v3634
  %v4240 = vmul.f32 %v4225, %v3635
  %v4241 = vmul.f32 %v4225, %v3636
  %v4242 = vsel %vm3853, %v4226, 0.0
  %v4243 = vsel %vm3853, %v4228, 0.0
  %v4244 = vadd.f32 %v4242, %v4243
  %v4245 = vsel %vm3853, %v4230, 0.0
  %v4246 = vadd.f32 %v4244, %v4245
  %v4247 = vsel %vm3853, %v4232, 0.0
  %v4248 = vadd.f32 %v4246, %v4247
  %v4249 = vsel %vm3853, %v4227, 0.0
  %v4250 = vsel %vm3853, %v4229, 0.0
  %v4251 = vadd.f32 %v4249, %v4250
  %v4252 = vsel %vm3853, %v4231, 0.0
  %v4253 = vadd.f32 %v4251, %v4252
  %v4254 = vsel %vm3853, %v4233, 0.0
  %v4255 = vadd.f32 %v4253, %v4254
  %v4256 = vsel %vm3853, %v4234, 0.0
  %v4257 = vsel %vm3853, %v4236, 0.0
  %v4258 = vadd.f32 %v4256, %v4257
  %v4259 = vsel %vm3853, %v4238, 0.0
  %v4260 = vadd.f32 %v4258, %v4259
  %v4261 = vsel %vm3853, %v4240, 0.0
  %v4262 = vadd.f32 %v4260, %v4261
  %v4263 = vsel %vm3853, %v4235, 0.0
  %v4264 = vsel %vm3853, %v4237, 0.0
  %v4265 = vadd.f32 %v4263, %v4264
  %v4266 = vsel %vm3853, %v4239, 0.0
  %v4267 = vadd.f32 %v4265, %v4266
  %v4268 = vsel %vm3853, %v4241, 0.0
  %v4269 = vadd.f32 %v4267, %v4268
  %v4270 = vsel %vm3853, %v4248, -inf
  %v4271 = vsel %vm3853, %v4255, -inf
  %v4272 = vmax.f32 %v4270, %v4271
  %v4273 = vrot.slane %v4272, 4
  %v4274 = vmax.f32 %v4272, %v4273
  %v4275 = vrot.slane %v4274, 2
  %v4276 = vmax.f32 %v4274, %v4275
  %v4277 = vrot.slane %v4276, 1
  %v4278 = vmax.f32 %v4276, %v4277
  %v4279 = vsel %vm3853, %v4262, -inf
  %v4280 = vsel %vm3853, %v4269, -inf
  %v4281 = vmax.f32 %v4279, %v4280
  %v4282 = vrot.slane %v4281, 4
  %v4283 = vmax.f32 %v4281, %v4282
  %v4284 = vrot.slane %v4283, 2
  %v4285 = vmax.f32 %v4283, %v4284
  %v4286 = vrot.slane %v4285, 1
  %v4287 = vmax.f32 %v4285, %v4286
  %v4288 = vsub.f32 %v4248, %v4278
  %v4289 = vsub.f32 %v4255, %v4278
  %v4290 = vsub.f32 %v4262, %v4287
  %v4291 = vsub.f32 %v4269, %v4287
  %v4292 = vmul.f32 %v4288, 1.442695
  %v4293 = vpow.pop %v4292
  %v4294 = vmul.f32 %v4289, 1.442695
  %v4295 = vpow.pop %v4294
  %v4296 = vmul.f32 %v4290, 1.442695
  %v4297 = vpow.pop %v4296
  %v4298 = vmul.f32 %v4291, 1.442695
  %v4299 = vpow.pop %v4298
  %v4300 = vsel %vm3853, %v4293, 0.0
  %v4301 = vsel %vm3853, %v4295, 0.0
  %v4302 = vadd.f32 %v4300, %v4301
  %v4303 = vrot.slane %v4302, 4
  %v4304 = vadd.f32 %v4302, %v4303
  %v4305 = vrot.slane %v4304, 2
  %v4306 = vadd.f32 %v4304, %v4305
  %v4307 = vrot.slane %v4306, 1
  %v4308 = vadd.f32 %v4306, %v4307
  %v4309 = vsel %vm3853, %v4297, 0.0
  %v4310 = vsel %vm3853, %v4299, 0.0
  %v4311 = vadd.f32 %v4309, %v4310
  %v4312 = vrot.slane %v4311, 4
  %v4313 = vadd.f32 %v4311, %v4312
  %v4314 = vrot.slane %v4313, 2
  %v4315 = vadd.f32 %v4313, %v4314
  %v4316 = vrot.slane %v4315, 1
  %v4317 = vadd.f32 %v4315, %v4316
  %v4318 = vrcp.pop %v4308
  %v4319 = vmul.f32 %v4293, %v4318
  %v4320 = vmul.f32 %v4295, %v4318
  %v4321 = vrcp.pop %v4317
  %v4322 = vmul.f32 %v4297, %v4321
  %v4323 = vmul.f32 %v4299, %v4321
  %v4324 = vlaneseq
  %v4325 = vshrl.u32 %v4324, 7
  %v4326 = vsub.s32 2, %v4325
  %v4327 = vrot.slane %v3789, %v4326
  %v4328 = vlaneseq
  %v4329 = vshrl.u32 %v4328, 7
  %v4330 = vsub.s32 2, %v4329
  %v4331 = vrot.slane %v3791, %v4330
  %v4332 = vlaneseq
  %v4333 = vshrl.u32 %v4332, 7
  %v4334 = vsub.s32 2, %v4333
  %v4335 = vrot.slane %v3793, %v4334
  %v4336 = vlaneseq
  %v4337 = vshrl.u32 %v4336, 7
  %v4338 = vsub.s32 2, %v4337
  %v4339 = vrot.slane %v3795, %v4338
  %v4340 = vlaneseq
  %v4341 = vshrl.u32 %v4340, 7
  %v4342 = vsub.s32 2, %v4341
  %v4343 = vrot.slane %v3797, %v4342
  %v4344 = vlaneseq
  %v4345 = vshrl.u32 %v4344, 7
  %v4346 = vsub.s32 2, %v4345
  %v4347 = vrot.slane %v3799, %v4346
  %v4348 = vlaneseq
  %v4349 = vshrl.u32 %v4348, 7
  %v4350 = vsub.s32 2, %v4349
  %v4351 = vrot.slane %v3801, %v4350
  %v4352 = vlaneseq
  %v4353 = vshrl.u32 %v4352, 7
  %v4354 = vsub.s32 2, %v4353
  %v4355 = vrot.slane %v3803, %v4354
  %v4356 = vmul.f32 %v4327, %v4319
  %v4357 = vmul.f32 %v4327, %v4320
  %v4358 = vmul.f32 %v4331, %v4319
  %v4359 = vmul.f32 %v4331, %v4320
  %v4360 = vmul.f32 %v4335, %v4319
  %v4361 = vmul.f32 %v4335, %v4320
  %v4362 = vmul.f32 %v4339, %v4319
  %v4363 = vmul.f32 %v4339, %v4320
  %v4364 = vmul.f32 %v4343, %v4322
  %v4365 = vmul.f32 %v4343, %v4323
  %v4366 = vmul.f32 %v4347, %v4322
  %v4367 = vmul.f32 %v4347, %v4323
  %v4368 = vmul.f32 %v4351, %v4322
  %v4369 = vmul.f32 %v4351, %v4323
  %v4370 = vmul.f32 %v4355, %v4322
  %v4371 = vmul.f32 %v4355, %v4323
  %v4372 = vadd.f32 %v4178, %v4356
  %v4373 = vadd.f32 %v4179, %v4357
  %v4374 = vadd.f32 %v4180, %v4358
  %v4375 = vadd.f32 %v4181, %v4359
  %v4376 = vadd.f32 %v4182, %v4360
  %v4377 = vadd.f32 %v4183, %v4361
  %v4378 = vadd.f32 %v4184, %v4362
  %v4379 = vadd.f32 %v4185, %v4363
  %v4380 = vadd.f32 %v4186, %v4364
  %v4381 = vadd.f32 %v4187, %v4365
  %v4382 = vadd.f32 %v4188, %v4366
  %v4383 = vadd.f32 %v4189, %v4367
  %v4384 = vadd.f32 %v4190, %v4368
  %v4385 = vadd.f32 %v4191, %v4369
  %v4386 = vadd.f32 %v4192, %v4370
  %v4387 = vadd.f32 %v4193, %v4371
  %v4388 = vlaneseq
  %v4389 = vshrl.u32 %v4388, 7
  %v4390 = vsub.s32 3, %v4389
  %v4391 = vrot.slane %v3453, %v4390
  %v4392 = vlaneseq
  %v4393 = vshrl.u32 %v4392, 7
  %v4394 = vsub.s32 3, %v4393
  %v4395 = vrot.slane %v3455, %v4394
  %v4396 = vlaneseq
  %v4397 = vshrl.u32 %v4396, 7
  %v4398 = vsub.s32 3, %v4397
  %v4399 = vrot.slane %v3457, %v4398
  %v4400 = vlaneseq
  %v4401 = vshrl.u32 %v4400, 7
  %v4402 = vsub.s32 3, %v4401
  %v4403 = vrot.slane %v3459, %v4402
  %v4404 = vlaneseq
  %v4405 = vshrl.u32 %v4404, 7
  %v4406 = vsub.s32 3, %v4405
  %v4407 = vrot.slane %v3461, %v4406
  %v4408 = vlaneseq
  %v4409 = vshrl.u32 %v4408, 7
  %v4410 = vsub.s32 3, %v4409
  %v4411 = vrot.slane %v3463, %v4410
  %v4412 = vlaneseq
  %v4413 = vshrl.u32 %v4412, 7
  %v4414 = vsub.s32 3, %v4413
  %v4415 = vrot.slane %v3465, %v4414
  %v4416 = vlaneseq
  %v4417 = vshrl.u32 %v4416, 7
  %v4418 = vsub.s32 3, %v4417
  %v4419 = vrot.slane %v3467, %v4418
  %v4420 = vmul.f32 %v4391, %v3621
  %v4421 = vmul.f32 %v4391, %v3622
  %v4422 = vmul.f32 %v4395, %v3623
  %v4423 = vmul.f32 %v4395, %v3624
  %v4424 = vmul.f32 %v4399, %v3625
  %v4425 = vmul.f32 %v4399, %v3626
  %v4426 = vmul.f32 %v4403, %v3627
  %v4427 = vmul.f32 %v4403, %v3628
  %v4428 = vmul.f32 %v4407, %v3629
  %v4429 = vmul.f32 %v4407, %v3630
  %v4430 = vmul.f32 %v4411, %v3631
  %v4431 = vmul.f32 %v4411, %v3632
  %v4432 = vmul.f32 %v4415, %v3633
  %v4433 = vmul.f32 %v4415, %v3634
  %v4434 = vmul.f32 %v4419, %v3635
  %v4435 = vmul.f32 %v4419, %v3636
  %v4436 = vsel %vm3853, %v4420, 0.0
  %v4437 = vsel %vm3853, %v4422, 0.0
  %v4438 = vadd.f32 %v4436, %v4437
  %v4439 = vsel %vm3853, %v4424, 0.0
  %v4440 = vadd.f32 %v4438, %v4439
  %v4441 = vsel %vm3853, %v4426, 0.0
  %v4442 = vadd.f32 %v4440, %v4441
  %v4443 = vsel %vm3853, %v4421, 0.0
  %v4444 = vsel %vm3853, %v4423, 0.0
  %v4445 = vadd.f32 %v4443, %v4444
  %v4446 = vsel %vm3853, %v4425, 0.0
  %v4447 = vadd.f32 %v4445, %v4446
  %v4448 = vsel %vm3853, %v4427, 0.0
  %v4449 = vadd.f32 %v4447, %v4448
  %v4450 = vsel %vm3853, %v4428, 0.0
  %v4451 = vsel %vm3853, %v4430, 0.0
  %v4452 = vadd.f32 %v4450, %v4451
  %v4453 = vsel %vm3853, %v4432, 0.0
  %v4454 = vadd.f32 %v4452, %v4453
  %v4455 = vsel %vm3853, %v4434, 0.0
  %v4456 = vadd.f32 %v4454, %v4455
  %v4457 = vsel %vm3853, %v4429, 0.0
  %v4458 = vsel %vm3853, %v4431, 0.0
  %v4459 = vadd.f32 %v4457, %v4458
  %v4460 = vsel %vm3853, %v4433, 0.0
  %v4461 = vadd.f32 %v4459, %v4460
  %v4462 = vsel %vm3853, %v4435, 0.0
  %v4463 = vadd.f32 %v4461, %v4462
  %v4464 = vsel %vm3853, %v4442, -inf
  %v4465 = vsel %vm3853, %v4449, -inf
  %v4466 = vmax.f32 %v4464, %v4465
  %v4467 = vrot.slane %v4466, 4
  %v4468 = vmax.f32 %v4466, %v4467
  %v4469 = vrot.slane %v4468, 2
  %v4470 = vmax.f32 %v4468, %v4469
  %v4471 = vrot.slane %v4470, 1
  %v4472 = vmax.f32 %v4470, %v4471
  %v4473 = vsel %vm3853, %v4456, -inf
  %v4474 = vsel %vm3853, %v4463, -inf
  %v4475 = vmax.f32 %v4473, %v4474
  %v4476 = vrot.slane %v4475, 4
  %v4477 = vmax.f32 %v4475, %v4476
  %v4478 = vrot.slane %v4477, 2
  %v4479 = vmax.f32 %v4477, %v4478
  %v4480 = vrot.slane %v4479, 1
  %v4481 = vmax.f32 %v4479, %v4480
  %v4482 = vsub.f32 %v4442, %v4472
  %v4483 = vsub.f32 %v4449, %v4472
  %v4484 = vsub.f32 %v4456, %v4481
  %v4485 = vsub.f32 %v4463, %v4481
  %v4486 = vmul.f32 %v4482, 1.442695
  %v4487 = vpow.pop %v4486
  %v4488 = vmul.f32 %v4483, 1.442695
  %v4489 = vpow.pop %v4488
  %v4490 = vmul.f32 %v4484, 1.442695
  %v4491 = vpow.pop %v4490
  %v4492 = vmul.f32 %v4485, 1.442695
  %v4493 = vpow.pop %v4492
  %v4494 = vsel %vm3853, %v4487, 0.0
  %v4495 = vsel %vm3853, %v4489, 0.0
  %v4496 = vadd.f32 %v4494, %v4495
  %v4497 = vrot.slane %v4496, 4
  %v4498 = vadd.f32 %v4496, %v4497
  %v4499 = vrot.slane %v4498, 2
  %v4500 = vadd.f32 %v4498, %v4499
  %v4501 = vrot.slane %v4500, 1
  %v4502 = vadd.f32 %v4500, %v4501
  %v4503 = vsel %vm3853, %v4491, 0.0
  %v4504 = vsel %vm3853, %v4493, 0.0
  %v4505 = vadd.f32 %v4503, %v4504
  %v4506 = vrot.slane %v4505, 4
  %v4507 = vadd.f32 %v4505, %v4506
  %v4508 = vrot.slane %v4507, 2
  %v4509 = vadd.f32 %v4507, %v4508
  %v4510 = vrot.slane %v4509, 1
  %v4511 = vadd.f32 %v4509, %v4510
  %v4512 = vrcp.pop %v4502
  %v4513 = vmul.f32 %v4487, %v4512
  %v4514 = vmul.f32 %v4489, %v4512
  %v4515 = vrcp.pop %v4511
  %v4516 = vmul.f32 %v4491, %v4515
  %v4517 = vmul.f32 %v4493, %v4515
  %v4518 = vlaneseq
  %v4519 = vshrl.u32 %v4518, 7
  %v4520 = vsub.s32 3, %v4519
  %v4521 = vrot.slane %v3789, %v4520
  %v4522 = vlaneseq
  %v4523 = vshrl.u32 %v4522, 7
  %v4524 = vsub.s32 3, %v4523
  %v4525 = vrot.slane %v3791, %v4524
  %v4526 = vlaneseq
  %v4527 = vshrl.u32 %v4526, 7
  %v4528 = vsub.s32 3, %v4527
  %v4529 = vrot.slane %v3793, %v4528
  %v4530 = vlaneseq
  %v4531 = vshrl.u32 %v4530, 7
  %v4532 = vsub.s32 3, %v4531
  %v4533 = vrot.slane %v3795, %v4532
  %v4534 = vlaneseq
  %v4535 = vshrl.u32 %v4534, 7
  %v4536 = vsub.s32 3, %v4535
  %v4537 = vrot.slane %v3797, %v4536
  %v4538 = vlaneseq
  %v4539 = vshrl.u32 %v4538, 7
  %v4540 = vsub.s32 3, %v4539
  %v4541 = vrot.slane %v3799, %v4540
  %v4542 = vlaneseq
  %v4543 = vshrl.u32 %v4542, 7
  %v4544 = vsub.s32 3, %v4543
  %v4545 = vrot.slane %v3801, %v4544
  %v4546 = vlaneseq
  %v4547 = vshrl.u32 %v4546, 7
  %v4548 = vsub.s32 3, %v4547
  %v4549 = vrot.slane %v3803, %v4548
  %v4550 = vmul.f32 %v4521, %v4513
  %v4551 = vmul.f32 %v4521, %v4514
  %v4552 = vmul.f32 %v4525, %v4513
  %v4553 = vmul.f32 %v4525, %v4514
  %v4554 = vmul.f32 %v4529, %v4513
  %v4555 = vmul.f32 %v4529, %v4514
  %v4556 = vmul.f32 %v4533, %v4513
  %v4557 = vmul.f32 %v4533, %v4514
  %v4558 = vmul.f32 %v4537, %v4516
  %v4559 = vmul.f32 %v4537, %v4517
  %v4560 = vmul.f32 %v4541, %v4516
  %v4561 = vmul.f32 %v4541, %v4517
  %v4562 = vmul.f32 %v4545, %v4516
  %v4563 = vmul.f32 %v4545, %v4517
  %v4564 = vmul.f32 %v4549, %v4516
  %v4565 = vmul.f32 %v4549, %v4517
  %v4566 = vadd.f32 %v4372, %v4550
  %v4567 = vadd.f32 %v4373, %v4551
  %v4568 = vadd.f32 %v4374, %v4552
  %v4569 = vadd.f32 %v4375, %v4553
  %v4570 = vadd.f32 %v4376, %v4554
  %v4571 = vadd.f32 %v4377, %v4555
  %v4572 = vadd.f32 %v4378, %v4556
  %v4573 = vadd.f32 %v4379, %v4557
  %v4574 = vadd.f32 %v4380, %v4558
  %v4575 = vadd.f32 %v4381, %v4559
  %v4576 = vadd.f32 %v4382, %v4560
  %v4577 = vadd.f32 %v4383, %v4561
  %v4578 = vadd.f32 %v4384, %v4562
  %v4579 = vadd.f32 %v4385, %v4563
  %v4580 = vadd.f32 %v4386, %v4564
  %v4581 = vadd.f32 %v4387, %v4565
  %v4582 = vlaneseq
  %v4583 = vshrl.u32 %v4582, 7
  %v4584 = vsub.s32 4, %v4583
  %v4585 = vrot.slane %v3453, %v4584
  %v4586 = vlaneseq
  %v4587 = vshrl.u32 %v4586, 7
  %v4588 = vsub.s32 4, %v4587
  %v4589 = vrot.slane %v3455, %v4588
  %v4590 = vlaneseq
  %v4591 = vshrl.u32 %v4590, 7
  %v4592 = vsub.s32 4, %v4591
  %v4593 = vrot.slane %v3457, %v4592
  %v4594 = vlaneseq
  %v4595 = vshrl.u32 %v4594, 7
  %v4596 = vsub.s32 4, %v4595
  %v4597 = vrot.slane %v3459, %v4596
  %v4598 = vlaneseq
  %v4599 = vshrl.u32 %v4598, 7
  %v4600 = vsub.s32 4, %v4599
  %v4601 = vrot.slane %v3461, %v4600
  %v4602 = vlaneseq
  %v4603 = vshrl.u32 %v4602, 7
  %v4604 = vsub.s32 4, %v4603
  %v4605 = vrot.slane %v3463, %v4604
  %v4606 = vlaneseq
  %v4607 = vshrl.u32 %v4606, 7
  %v4608 = vsub.s32 4, %v4607
  %v4609 = vrot.slane %v3465, %v4608
  %v4610 = vlaneseq
  %v4611 = vshrl.u32 %v4610, 7
  %v4612 = vsub.s32 4, %v4611
  %v4613 = vrot.slane %v3467, %v4612
  %v4614 = vmul.f32 %v4585, %v3621
  %v4615 = vmul.f32 %v4585, %v3622
  %v4616 = vmul.f32 %v4589, %v3623
  %v4617 = vmul.f32 %v4589, %v3624
  %v4618 = vmul.f32 %v4593, %v3625
  %v4619 = vmul.f32 %v4593, %v3626
  %v4620 = vmul.f32 %v4597, %v3627
  %v4621 = vmul.f32 %v4597, %v3628
  %v4622 = vmul.f32 %v4601, %v3629
  %v4623 = vmul.f32 %v4601, %v3630
  %v4624 = vmul.f32 %v4605, %v3631
  %v4625 = vmul.f32 %v4605, %v3632
  %v4626 = vmul.f32 %v4609, %v3633
  %v4627 = vmul.f32 %v4609, %v3634
  %v4628 = vmul.f32 %v4613, %v3635
  %v4629 = vmul.f32 %v4613, %v3636
  %v4630 = vsel %vm3853, %v4614, 0.0
  %v4631 = vsel %vm3853, %v4616, 0.0
  %v4632 = vadd.f32 %v4630, %v4631
  %v4633 = vsel %vm3853, %v4618, 0.0
  %v4634 = vadd.f32 %v4632, %v4633
  %v4635 = vsel %vm3853, %v4620, 0.0
  %v4636 = vadd.f32 %v4634, %v4635
  %v4637 = vsel %vm3853, %v4615, 0.0
  %v4638 = vsel %vm3853, %v4617, 0.0
  %v4639 = vadd.f32 %v4637, %v4638
  %v4640 = vsel %vm3853, %v4619, 0.0
  %v4641 = vadd.f32 %v4639, %v4640
  %v4642 = vsel %vm3853, %v4621, 0.0
  %v4643 = vadd.f32 %v4641, %v4642
  %v4644 = vsel %vm3853, %v4622, 0.0
  %v4645 = vsel %vm3853, %v4624, 0.0
  %v4646 = vadd.f32 %v4644, %v4645
  %v4647 = vsel %vm3853, %v4626, 0.0
  %v4648 = vadd.f32 %v4646, %v4647
  %v4649 = vsel %vm3853, %v4628, 0.0
  %v4650 = vadd.f32 %v4648, %v4649
  %v4651 = vsel %vm3853, %v4623, 0.0
  %v4652 = vsel %vm3853, %v4625, 0.0
  %v4653 = vadd.f32 %v4651, %v4652
  %v4654 = vsel %vm3853, %v4627, 0.0
  %v4655 = vadd.f32 %v4653, %v4654
  %v4656 = vsel %vm3853, %v4629, 0.0
  %v4657 = vadd.f32 %v4655, %v4656
  %v4658 = vsel %vm3853, %v4636, -inf
  %v4659 = vsel %vm3853, %v4643, -inf
  %v4660 = vmax.f32 %v4658, %v4659
  %v4661 = vrot.slane %v4660, 4
  %v4662 = vmax.f32 %v4660, %v4661
  %v4663 = vrot.slane %v4662, 2
  %v4664 = vmax.f32 %v4662, %v4663
  %v4665 = vrot.slane %v4664, 1
  %v4666 = vmax.f32 %v4664, %v4665
  %v4667 = vsel %vm3853, %v4650, -inf
  %v4668 = vsel %vm3853, %v4657, -inf
  %v4669 = vmax.f32 %v4667, %v4668
  %v4670 = vrot.slane %v4669, 4
  %v4671 = vmax.f32 %v4669, %v4670
  %v4672 = vrot.slane %v4671, 2
  %v4673 = vmax.f32 %v4671, %v4672
  %v4674 = vrot.slane %v4673, 1
  %v4675 = vmax.f32 %v4673, %v4674
  %v4676 = vsub.f32 %v4636, %v4666
  %v4677 = vsub.f32 %v4643, %v4666
  %v4678 = vsub.f32 %v4650, %v4675
  %v4679 = vsub.f32 %v4657, %v4675
  %v4680 = vmul.f32 %v4676, 1.442695
  %v4681 = vpow.pop %v4680
  %v4682 = vmul.f32 %v4677, 1.442695
  %v4683 = vpow.pop %v4682
  %v4684 = vmul.f32 %v4678, 1.442695
  %v4685 = vpow.pop %v4684
  %v4686 = vmul.f32 %v4679, 1.442695
  %v4687 = vpow.pop %v4686
  %v4688 = vsel %vm3853, %v4681, 0.0
  %v4689 = vsel %vm3853, %v4683, 0.0
  %v4690 = vadd.f32 %v4688, %v4689
  %v4691 = vrot.slane %v4690, 4
  %v4692 = vadd.f32 %v4690, %v4691
  %v4693 = vrot.slane %v4692, 2
  %v4694 = vadd.f32 %v4692, %v4693
  %v4695 = vrot.slane %v4694, 1
  %v4696 = vadd.f32 %v4694, %v4695
  %v4697 = vsel %vm3853, %v4685, 0.0
  %v4698 = vsel %vm3853, %v4687, 0.0
  %v4699 = vadd.f32 %v4697, %v4698
  %v4700 = vrot.slane %v4699, 4
  %v4701 = vadd.f32 %v4699, %v4700
  %v4702 = vrot.slane %v4701, 2
  %v4703 = vadd.f32 %v4701, %v4702
  %v4704 = vrot.slane %v4703, 1
  %v4705 = vadd.f32 %v4703, %v4704
  %v4706 = vrcp.pop %v4696
  %v4707 = vmul.f32 %v4681, %v4706
  %v4708 = vmul.f32 %v4683, %v4706
  %v4709 = vrcp.pop %v4705
  %v4710 = vmul.f32 %v4685, %v4709
  %v4711 = vmul.f32 %v4687, %v4709
  %v4712 = vlaneseq
  %v4713 = vshrl.u32 %v4712, 7
  %v4714 = vsub.s32 4, %v4713
  %v4715 = vrot.slane %v3789, %v4714
  %v4716 = vlaneseq
  %v4717 = vshrl.u32 %v4716, 7
  %v4718 = vsub.s32 4, %v4717
  %v4719 = vrot.slane %v3791, %v4718
  %v4720 = vlaneseq
  %v4721 = vshrl.u32 %v4720, 7
  %v4722 = vsub.s32 4, %v4721
  %v4723 = vrot.slane %v3793, %v4722
  %v4724 = vlaneseq
  %v4725 = vshrl.u32 %v4724, 7
  %v4726 = vsub.s32 4, %v4725
  %v4727 = vrot.slane %v3795, %v4726
  %v4728 = vlaneseq
  %v4729 = vshrl.u32 %v4728, 7
  %v4730 = vsub.s32 4, %v4729
  %v4731 = vrot.slane %v3797, %v4730
  %v4732 = vlaneseq
  %v4733 = vshrl.u32 %v4732, 7
  %v4734 = vsub.s32 4, %v4733
  %v4735 = vrot.slane %v3799, %v4734
  %v4736 = vlaneseq
  %v4737 = vshrl.u32 %v4736, 7
  %v4738 = vsub.s32 4, %v4737
  %v4739 = vrot.slane %v3801, %v4738
  %v4740 = vlaneseq
  %v4741 = vshrl.u32 %v4740, 7
  %v4742 = vsub.s32 4, %v4741
  %v4743 = vrot.slane %v3803, %v4742
  %v4744 = vmul.f32 %v4715, %v4707
  %v4745 = vmul.f32 %v4715, %v4708
  %v4746 = vmul.f32 %v4719, %v4707
  %v4747 = vmul.f32 %v4719, %v4708
  %v4748 = vmul.f32 %v4723, %v4707
  %v4749 = vmul.f32 %v4723, %v4708
  %v4750 = vmul.f32 %v4727, %v4707
  %v4751 = vmul.f32 %v4727, %v4708
  %v4752 = vmul.f32 %v4731, %v4710
  %v4753 = vmul.f32 %v4731, %v4711
  %v4754 = vmul.f32 %v4735, %v4710
  %v4755 = vmul.f32 %v4735, %v4711
  %v4756 = vmul.f32 %v4739, %v4710
  %v4757 = vmul.f32 %v4739, %v4711
  %v4758 = vmul.f32 %v4743, %v4710
  %v4759 = vmul.f32 %v4743, %v4711
  %v4760 = vadd.f32 %v4566, %v4744
  %v4761 = vadd.f32 %v4567, %v4745
  %v4762 = vadd.f32 %v4568, %v4746
  %v4763 = vadd.f32 %v4569, %v4747
  %v4764 = vadd.f32 %v4570, %v4748
  %v4765 = vadd.f32 %v4571, %v4749
  %v4766 = vadd.f32 %v4572, %v4750
  %v4767 = vadd.f32 %v4573, %v4751
  %v4768 = vadd.f32 %v4574, %v4752
  %v4769 = vadd.f32 %v4575, %v4753
  %v4770 = vadd.f32 %v4576, %v4754
  %v4771 = vadd.f32 %v4577, %v4755
  %v4772 = vadd.f32 %v4578, %v4756
  %v4773 = vadd.f32 %v4579, %v4757
  %v4774 = vadd.f32 %v4580, %v4758
  %v4775 = vadd.f32 %v4581, %v4759
  %v4776 = vlaneseq
  %v4777 = vshrl.u32 %v4776, 7
  %v4778 = vsub.s32 5, %v4777
  %v4779 = vrot.slane %v3453, %v4778
  %v4780 = vlaneseq
  %v4781 = vshrl.u32 %v4780, 7
  %v4782 = vsub.s32 5, %v4781
  %v4783 = vrot.slane %v3455, %v4782
  %v4784 = vlaneseq
  %v4785 = vshrl.u32 %v4784, 7
  %v4786 = vsub.s32 5, %v4785
  %v4787 = vrot.slane %v3457, %v4786
  %v4788 = vlaneseq
  %v4789 = vshrl.u32 %v4788, 7
  %v4790 = vsub.s32 5, %v4789
  %v4791 = vrot.slane %v3459, %v4790
  %v4792 = vlaneseq
  %v4793 = vshrl.u32 %v4792, 7
  %v4794 = vsub.s32 5, %v4793
  %v4795 = vrot.slane %v3461, %v4794
  %v4796 = vlaneseq
  %v4797 = vshrl.u32 %v4796, 7
  %v4798 = vsub.s32 5, %v4797
  %v4799 = vrot.slane %v3463, %v4798
  %v4800 = vlaneseq
  %v4801 = vshrl.u32 %v4800, 7
  %v4802 = vsub.s32 5, %v4801
  %v4803 = vrot.slane %v3465, %v4802
  %v4804 = vlaneseq
  %v4805 = vshrl.u32 %v4804, 7
  %v4806 = vsub.s32 5, %v4805
  %v4807 = vrot.slane %v3467, %v4806
  %v4808 = vmul.f32 %v4779, %v3621
  %v4809 = vmul.f32 %v4779, %v3622
  %v4810 = vmul.f32 %v4783, %v3623
  %v4811 = vmul.f32 %v4783, %v3624
  %v4812 = vmul.f32 %v4787, %v3625
  %v4813 = vmul.f32 %v4787, %v3626
  %v4814 = vmul.f32 %v4791, %v3627
  %v4815 = vmul.f32 %v4791, %v3628
  %v4816 = vmul.f32 %v4795, %v3629
  %v4817 = vmul.f32 %v4795, %v3630
  %v4818 = vmul.f32 %v4799, %v3631
  %v4819 = vmul.f32 %v4799, %v3632
  %v4820 = vmul.f32 %v4803, %v3633
  %v4821 = vmul.f32 %v4803, %v3634
  %v4822 = vmul.f32 %v4807, %v3635
  %v4823 = vmul.f32 %v4807, %v3636
  %v4824 = vsel %vm3853, %v4808, 0.0
  %v4825 = vsel %vm3853, %v4810, 0.0
  %v4826 = vadd.f32 %v4824, %v4825
  %v4827 = vsel %vm3853, %v4812, 0.0
  %v4828 = vadd.f32 %v4826, %v4827
  %v4829 = vsel %vm3853, %v4814, 0.0
  %v4830 = vadd.f32 %v4828, %v4829
  %v4831 = vsel %vm3853, %v4809, 0.0
  %v4832 = vsel %vm3853, %v4811, 0.0
  %v4833 = vadd.f32 %v4831, %v4832
  %v4834 = vsel %vm3853, %v4813, 0.0
  %v4835 = vadd.f32 %v4833, %v4834
  %v4836 = vsel %vm3853, %v4815, 0.0
  %v4837 = vadd.f32 %v4835, %v4836
  %v4838 = vsel %vm3853, %v4816, 0.0
  %v4839 = vsel %vm3853, %v4818, 0.0
  %v4840 = vadd.f32 %v4838, %v4839
  %v4841 = vsel %vm3853, %v4820, 0.0
  %v4842 = vadd.f32 %v4840, %v4841
  %v4843 = vsel %vm3853, %v4822, 0.0
  %v4844 = vadd.f32 %v4842, %v4843
  %v4845 = vsel %vm3853, %v4817, 0.0
  %v4846 = vsel %vm3853, %v4819, 0.0
  %v4847 = vadd.f32 %v4845, %v4846
  %v4848 = vsel %vm3853, %v4821, 0.0
  %v4849 = vadd.f32 %v4847, %v4848
  %v4850 = vsel %vm3853, %v4823, 0.0
  %v4851 = vadd.f32 %v4849, %v4850
  %v4852 = vsel %vm3853, %v4830, -inf
  %v4853 = vsel %vm3853, %v4837, -inf
  %v4854 = vmax.f32 %v4852, %v4853
  %v4855 = vrot.slane %v4854, 4
  %v4856 = vmax.f32 %v4854, %v4855
  %v4857 = vrot.slane %v4856, 2
  %v4858 = vmax.f32 %v4856, %v4857
  %v4859 = vrot.slane %v4858, 1
  %v4860 = vmax.f32 %v4858, %v4859
  %v4861 = vsel %vm3853, %v4844, -inf
  %v4862 = vsel %vm3853, %v4851, -inf
  %v4863 = vmax.f32 %v4861, %v4862
  %v4864 = vrot.slane %v4863, 4
  %v4865 = vmax.f32 %v4863, %v4864
  %v4866 = vrot.slane %v4865, 2
  %v4867 = vmax.f32 %v4865, %v4866
  %v4868 = vrot.slane %v4867, 1
  %v4869 = vmax.f32 %v4867, %v4868
  %v4870 = vsub.f32 %v4830, %v4860
  %v4871 = vsub.f32 %v4837, %v4860
  %v4872 = vsub.f32 %v4844, %v4869
  %v4873 = vsub.f32 %v4851, %v4869
  %v4874 = vmul.f32 %v4870, 1.442695
  %v4875 = vpow.pop %v4874
  %v4876 = vmul.f32 %v4871, 1.442695
  %v4877 = vpow.pop %v4876
  %v4878 = vmul.f32 %v4872, 1.442695
  %v4879 = vpow.pop %v4878
  %v4880 = vmul.f32 %v4873, 1.442695
  %v4881 = vpow.pop %v4880
  %v4882 = vsel %vm3853, %v4875, 0.0
  %v4883 = vsel %vm3853, %v4877, 0.0
  %v4884 = vadd.f32 %v4882, %v4883
  %v4885 = vrot.slane %v4884, 4
  %v4886 = vadd.f32 %v4884, %v4885
  %v4887 = vrot.slane %v4886, 2
  %v4888 = vadd.f32 %v4886, %v4887
  %v4889 = vrot.slane %v4888, 1
  %v4890 = vadd.f32 %v4888, %v4889
  %v4891 = vsel %vm3853, %v4879, 0.0
  %v4892 = vsel %vm3853, %v4881, 0.0
  %v4893 = vadd.f32 %v4891, %v4892
  %v4894 = vrot.slane %v4893, 4
  %v4895 = vadd.f32 %v4893, %v4894
  %v4896 = vrot.slane %v4895, 2
  %v4897 = vadd.f32 %v4895, %v4896
  %v4898 = vrot.slane %v4897, 1
  %v4899 = vadd.f32 %v4897, %v4898
  %v4900 = vrcp.pop %v4890
  %v4901 = vmul.f32 %v4875, %v4900
  %v4902 = vmul.f32 %v4877, %v4900
  %v4903 = vrcp.pop %v4899
  %v4904 = vmul.f32 %v4879, %v4903
  %v4905 = vmul.f32 %v4881, %v4903
  %v4906 = vlaneseq
  %v4907 = vshrl.u32 %v4906, 7
  %v4908 = vsub.s32 5, %v4907
  %v4909 = vrot.slane %v3789, %v4908
  %v4910 = vlaneseq
  %v4911 = vshrl.u32 %v4910, 7
  %v4912 = vsub.s32 5, %v4911
  %v4913 = vrot.slane %v3791, %v4912
  %v4914 = vlaneseq
  %v4915 = vshrl.u32 %v4914, 7
  %v4916 = vsub.s32 5, %v4915
  %v4917 = vrot.slane %v3793, %v4916
  %v4918 = vlaneseq
  %v4919 = vshrl.u32 %v4918, 7
  %v4920 = vsub.s32 5, %v4919
  %v4921 = vrot.slane %v3795, %v4920
  %v4922 = vlaneseq
  %v4923 = vshrl.u32 %v4922, 7
  %v4924 = vsub.s32 5, %v4923
  %v4925 = vrot.slane %v3797, %v4924
  %v4926 = vlaneseq
  %v4927 = vshrl.u32 %v4926, 7
  %v4928 = vsub.s32 5, %v4927
  %v4929 = vrot.slane %v3799, %v4928
  %v4930 = vlaneseq
  %v4931 = vshrl.u32 %v4930, 7
  %v4932 = vsub.s32 5, %v4931
  %v4933 = vrot.slane %v3801, %v4932
  %v4934 = vlaneseq
  %v4935 = vshrl.u32 %v4934, 7
  %v4936 = vsub.s32 5, %v4935
  %v4937 = vrot.slane %v3803, %v4936
  %v4938 = vmul.f32 %v4909, %v4901
  %v4939 = vmul.f32 %v4909, %v4902
  %v4940 = vmul.f32 %v4913, %v4901
  %v4941 = vmul.f32 %v4913, %v4902
  %v4942 = vmul.f32 %v4917, %v4901
  %v4943 = vmul.f32 %v4917, %v4902
  %v4944 = vmul.f32 %v4921, %v4901
  %v4945 = vmul.f32 %v4921, %v4902
  %v4946 = vmul.f32 %v4925, %v4904
  %v4947 = vmul.f32 %v4925, %v4905
  %v4948 = vmul.f32 %v4929, %v4904
  %v4949 = vmul.f32 %v4929, %v4905
  %v4950 = vmul.f32 %v4933, %v4904
  %v4951 = vmul.f32 %v4933, %v4905
  %v4952 = vmul.f32 %v4937, %v4904
  %v4953 = vmul.f32 %v4937, %v4905
  %v4954 = vadd.f32 %v4760, %v4938
  %v4955 = vadd.f32 %v4761, %v4939
  %v4956 = vadd.f32 %v4762, %v4940
  %v4957 = vadd.f32 %v4763, %v4941
  %v4958 = vadd.f32 %v4764, %v4942
  %v4959 = vadd.f32 %v4765, %v4943
  %v4960 = vadd.f32 %v4766, %v4944
  %v4961 = vadd.f32 %v4767, %v4945
  %v4962 = vadd.f32 %v4768, %v4946
  %v4963 = vadd.f32 %v4769, %v4947
  %v4964 = vadd.f32 %v4770, %v4948
  %v4965 = vadd.f32 %v4771, %v4949
  %v4966 = vadd.f32 %v4772, %v4950
  %v4967 = vadd.f32 %v4773, %v4951
  %v4968 = vadd.f32 %v4774, %v4952
  %v4969 = vadd.f32 %v4775, %v4953
  %v4970 = vlaneseq
  %v4971 = vshrl.u32 %v4970, 7
  %v4972 = vsub.s32 6, %v4971
  %v4973 = vrot.slane %v3453, %v4972
  %v4974 = vlaneseq
  %v4975 = vshrl.u32 %v4974, 7
  %v4976 = vsub.s32 6, %v4975
  %v4977 = vrot.slane %v3455, %v4976
  %v4978 = vlaneseq
  %v4979 = vshrl.u32 %v4978, 7
  %v4980 = vsub.s32 6, %v4979
  %v4981 = vrot.slane %v3457, %v4980
  %v4982 = vlaneseq
  %v4983 = vshrl.u32 %v4982, 7
  %v4984 = vsub.s32 6, %v4983
  %v4985 = vrot.slane %v3459, %v4984
  %v4986 = vlaneseq
  %v4987 = vshrl.u32 %v4986, 7
  %v4988 = vsub.s32 6, %v4987
  %v4989 = vrot.slane %v3461, %v4988
  %v4990 = vlaneseq
  %v4991 = vshrl.u32 %v4990, 7
  %v4992 = vsub.s32 6, %v4991
  %v4993 = vrot.slane %v3463, %v4992
  %v4994 = vlaneseq
  %v4995 = vshrl.u32 %v4994, 7
  %v4996 = vsub.s32 6, %v4995
  %v4997 = vrot.slane %v3465, %v4996
  %v4998 = vlaneseq
  %v4999 = vshrl.u32 %v4998, 7
  %v5000 = vsub.s32 6, %v4999
  %v5001 = vrot.slane %v3467, %v5000
  %v5002 = vmul.f32 %v4973, %v3621
  %v5003 = vmul.f32 %v4973, %v3622
  %v5004 = vmul.f32 %v4977, %v3623
  %v5005 = vmul.f32 %v4977, %v3624
  %v5006 = vmul.f32 %v4981, %v3625
  %v5007 = vmul.f32 %v4981, %v3626
  %v5008 = vmul.f32 %v4985, %v3627
  %v5009 = vmul.f32 %v4985, %v3628
  %v5010 = vmul.f32 %v4989, %v3629
  %v5011 = vmul.f32 %v4989, %v3630
  %v5012 = vmul.f32 %v4993, %v3631
  %v5013 = vmul.f32 %v4993, %v3632
  %v5014 = vmul.f32 %v4997, %v3633
  %v5015 = vmul.f32 %v4997, %v3634
  %v5016 = vmul.f32 %v5001, %v3635
  %v5017 = vmul.f32 %v5001, %v3636
  %v5018 = vsel %vm3853, %v5002, 0.0
  %v5019 = vsel %vm3853, %v5004, 0.0
  %v5020 = vadd.f32 %v5018, %v5019
  %v5021 = vsel %vm3853, %v5006, 0.0
  %v5022 = vadd.f32 %v5020, %v5021
  %v5023 = vsel %vm3853, %v5008, 0.0
  %v5024 = vadd.f32 %v5022, %v5023
  %v5025 = vsel %vm3853, %v5003, 0.0
  %v5026 = vsel %vm3853, %v5005, 0.0
  %v5027 = vadd.f32 %v5025, %v5026
  %v5028 = vsel %vm3853, %v5007, 0.0
  %v5029 = vadd.f32 %v5027, %v5028
  %v5030 = vsel %vm3853, %v5009, 0.0
  %v5031 = vadd.f32 %v5029, %v5030
  %v5032 = vsel %vm3853, %v5010, 0.0
  %v5033 = vsel %vm3853, %v5012, 0.0
  %v5034 = vadd.f32 %v5032, %v5033
  %v5035 = vsel %vm3853, %v5014, 0.0
  %v5036 = vadd.f32 %v5034, %v5035
  %v5037 = vsel %vm3853, %v5016, 0.0
  %v5038 = vadd.f32 %v5036, %v5037
  %v5039 = vsel %vm3853, %v5011, 0.0
  %v5040 = vsel %vm3853, %v5013, 0.0
  %v5041 = vadd.f32 %v5039, %v5040
  %v5042 = vsel %vm3853, %v5015, 0.0
  %v5043 = vadd.f32 %v5041, %v5042
  %v5044 = vsel %vm3853, %v5017, 0.0
  %v5045 = vadd.f32 %v5043, %v5044
  %v5046 = vsel %vm3853, %v5024, -inf
  %v5047 = vsel %vm3853, %v5031, -inf
  %v5048 = vmax.f32 %v5046, %v5047
  %v5049 = vrot.slane %v5048, 4
  %v5050 = vmax.f32 %v5048, %v5049
  %v5051 = vrot.slane %v5050, 2
  %v5052 = vmax.f32 %v5050, %v5051
  %v5053 = vrot.slane %v5052, 1
  %v5054 = vmax.f32 %v5052, %v5053
  %v5055 = vsel %vm3853, %v5038, -inf
  %v5056 = vsel %vm3853, %v5045, -inf
  %v5057 = vmax.f32 %v5055, %v5056
  %v5058 = vrot.slane %v5057, 4
  %v5059 = vmax.f32 %v5057, %v5058
  %v5060 = vrot.slane %v5059, 2
  %v5061 = vmax.f32 %v5059, %v5060
  %v5062 = vrot.slane %v5061, 1
  %v5063 = vmax.f32 %v5061, %v5062
  %v5064 = vsub.f32 %v5024, %v5054
  %v5065 = vsub.f32 %v5031, %v5054
  %v5066 = vsub.f32 %v5038, %v5063
  %v5067 = vsub.f32 %v5045, %v5063
  %v5068 = vmul.f32 %v5064, 1.442695
  %v5069 = vpow.pop %v5068
  %v5070 = vmul.f32 %v5065, 1.442695
  %v5071 = vpow.pop %v5070
  %v5072 = vmul.f32 %v5066, 1.442695
  %v5073 = vpow.pop %v5072
  %v5074 = vmul.f32 %v5067, 1.442695
  %v5075 = vpow.pop %v5074
  %v5076 = vsel %vm3853, %v5069, 0.0
  %v5077 = vsel %vm3853, %v5071, 0.0
  %v5078 = vadd.f32 %v5076, %v5077
  %v5079 = vrot.slane %v5078, 4
  %v5080 = vadd.f32 %v5078, %v5079
  %v5081 = vrot.slane %v5080, 2
  %v5082 = vadd.f32 %v5080, %v5081
  %v5083 = vrot.slane %v5082, 1
  %v5084 = vadd.f32 %v5082, %v5083
  %v5085 = vsel %vm3853, %v5073, 0.0
  %v5086 = vsel %vm3853, %v5075, 0.0
  %v5087 = vadd.f32 %v5085, %v5086
  %v5088 = vrot.slane %v5087, 4
  %v5089 = vadd.f32 %v5087, %v5088
  %v5090 = vrot.slane %v5089, 2
  %v5091 = vadd.f32 %v5089, %v5090
  %v5092 = vrot.slane %v5091, 1
  %v5093 = vadd.f32 %v5091, %v5092
  %v5094 = vrcp.pop %v5084
  %v5095 = vmul.f32 %v5069, %v5094
  %v5096 = vmul.f32 %v5071, %v5094
  %v5097 = vrcp.pop %v5093
  %v5098 = vmul.f32 %v5073, %v5097
  %v5099 = vmul.f32 %v5075, %v5097
  %v5100 = vlaneseq
  %v5101 = vshrl.u32 %v5100, 7
  %v5102 = vsub.s32 6, %v5101
  %v5103 = vrot.slane %v3789, %v5102
  %v5104 = vlaneseq
  %v5105 = vshrl.u32 %v5104, 7
  %v5106 = vsub.s32 6, %v5105
  %v5107 = vrot.slane %v3791, %v5106
  %v5108 = vlaneseq
  %v5109 = vshrl.u32 %v5108, 7
  %v5110 = vsub.s32 6, %v5109
  %v5111 = vrot.slane %v3793, %v5110
  %v5112 = vlaneseq
  %v5113 = vshrl.u32 %v5112, 7
  %v5114 = vsub.s32 6, %v5113
  %v5115 = vrot.slane %v3795, %v5114
  %v5116 = vlaneseq
  %v5117 = vshrl.u32 %v5116, 7
  %v5118 = vsub.s32 6, %v5117
  %v5119 = vrot.slane %v3797, %v5118
  %v5120 = vlaneseq
  %v5121 = vshrl.u32 %v5120, 7
  %v5122 = vsub.s32 6, %v5121
  %v5123 = vrot.slane %v3799, %v5122
  %v5124 = vlaneseq
  %v5125 = vshrl.u32 %v5124, 7
  %v5126 = vsub.s32 6, %v5125
  %v5127 = vrot.slane %v3801, %v5126
  %v5128 = vlaneseq
  %v5129 = vshrl.u32 %v5128, 7
  %v5130 = vsub.s32 6, %v5129
  %v5131 = vrot.slane %v3803, %v5130
  %v5132 = vmul.f32 %v5103, %v5095
  %v5133 = vmul.f32 %v5103, %v5096
  %v5134 = vmul.f32 %v5107, %v5095
  %v5135 = vmul.f32 %v5107, %v5096
  %v5136 = vmul.f32 %v5111, %v5095
  %v5137 = vmul.f32 %v5111, %v5096
  %v5138 = vmul.f32 %v5115, %v5095
  %v5139 = vmul.f32 %v5115, %v5096
  %v5140 = vmul.f32 %v5119, %v5098
  %v5141 = vmul.f32 %v5119, %v5099
  %v5142 = vmul.f32 %v5123, %v5098
  %v5143 = vmul.f32 %v5123, %v5099
  %v5144 = vmul.f32 %v5127, %v5098
  %v5145 = vmul.f32 %v5127, %v5099
  %v5146 = vmul.f32 %v5131, %v5098
  %v5147 = vmul.f32 %v5131, %v5099
  %v5148 = vadd.f32 %v4954, %v5132
  %v5149 = vadd.f32 %v4955, %v5133
  %v5150 = vadd.f32 %v4956, %v5134
  %v5151 = vadd.f32 %v4957, %v5135
  %v5152 = vadd.f32 %v4958, %v5136
  %v5153 = vadd.f32 %v4959, %v5137
  %v5154 = vadd.f32 %v4960, %v5138
  %v5155 = vadd.f32 %v4961, %v5139
  %v5156 = vadd.f32 %v4962, %v5140
  %v5157 = vadd.f32 %v4963, %v5141
  %v5158 = vadd.f32 %v4964, %v5142
  %v5159 = vadd.f32 %v4965, %v5143
  %v5160 = vadd.f32 %v4966, %v5144
  %v5161 = vadd.f32 %v4967, %v5145
  %v5162 = vadd.f32 %v4968, %v5146
  %v5163 = vadd.f32 %v4969, %v5147
  %v5164 = vlaneseq
  %v5165 = vshrl.u32 %v5164, 7
  %v5166 = vsub.s32 7, %v5165
  %v5167 = vrot.slane %v3453, %v5166
  %v5168 = vlaneseq
  %v5169 = vshrl.u32 %v5168, 7
  %v5170 = vsub.s32 7, %v5169
  %v5171 = vrot.slane %v3455, %v5170
  %v5172 = vlaneseq
  %v5173 = vshrl.u32 %v5172, 7
  %v5174 = vsub.s32 7, %v5173
  %v5175 = vrot.slane %v3457, %v5174
  %v5176 = vlaneseq
  %v5177 = vshrl.u32 %v5176, 7
  %v5178 = vsub.s32 7, %v5177
  %v5179 = vrot.slane %v3459, %v5178
  %v5180 = vlaneseq
  %v5181 = vshrl.u32 %v5180, 7
  %v5182 = vsub.s32 7, %v5181
  %v5183 = vrot.slane %v3461, %v5182
  %v5184 = vlaneseq
  %v5185 = vshrl.u32 %v5184, 7
  %v5186 = vsub.s32 7, %v5185
  %v5187 = vrot.slane %v3463, %v5186
  %v5188 = vlaneseq
  %v5189 = vshrl.u32 %v5188, 7
  %v5190 = vsub.s32 7, %v5189
  %v5191 = vrot.slane %v3465, %v5190
  %v5192 = vlaneseq
  %v5193 = vshrl.u32 %v5192, 7
  %v5194 = vsub.s32 7, %v5193
  %v5195 = vrot.slane %v3467, %v5194
  %v5196 = vmul.f32 %v5167, %v3621
  %v5197 = vmul.f32 %v5167, %v3622
  %v5198 = vmul.f32 %v5171, %v3623
  %v5199 = vmul.f32 %v5171, %v3624
  %v5200 = vmul.f32 %v5175, %v3625
  %v5201 = vmul.f32 %v5175, %v3626
  %v5202 = vmul.f32 %v5179, %v3627
  %v5203 = vmul.f32 %v5179, %v3628
  %v5204 = vmul.f32 %v5183, %v3629
  %v5205 = vmul.f32 %v5183, %v3630
  %v5206 = vmul.f32 %v5187, %v3631
  %v5207 = vmul.f32 %v5187, %v3632
  %v5208 = vmul.f32 %v5191, %v3633
  %v5209 = vmul.f32 %v5191, %v3634
  %v5210 = vmul.f32 %v5195, %v3635
  %v5211 = vmul.f32 %v5195, %v3636
  %v5212 = vsel %vm3853, %v5196, 0.0
  %v5213 = vsel %vm3853, %v5198, 0.0
  %v5214 = vadd.f32 %v5212, %v5213
  %v5215 = vsel %vm3853, %v5200, 0.0
  %v5216 = vadd.f32 %v5214, %v5215
  %v5217 = vsel %vm3853, %v5202, 0.0
  %v5218 = vadd.f32 %v5216, %v5217
  %v5219 = vsel %vm3853, %v5197, 0.0
  %v5220 = vsel %vm3853, %v5199, 0.0
  %v5221 = vadd.f32 %v5219, %v5220
  %v5222 = vsel %vm3853, %v5201, 0.0
  %v5223 = vadd.f32 %v5221, %v5222
  %v5224 = vsel %vm3853, %v5203, 0.0
  %v5225 = vadd.f32 %v5223, %v5224
  %v5226 = vsel %vm3853, %v5204, 0.0
  %v5227 = vsel %vm3853, %v5206, 0.0
  %v5228 = vadd.f32 %v5226, %v5227
  %v5229 = vsel %vm3853, %v5208, 0.0
  %v5230 = vadd.f32 %v5228, %v5229
  %v5231 = vsel %vm3853, %v5210, 0.0
  %v5232 = vadd.f32 %v5230, %v5231
  %v5233 = vsel %vm3853, %v5205, 0.0
  %v5234 = vsel %vm3853, %v5207, 0.0
  %v5235 = vadd.f32 %v5233, %v5234
  %v5236 = vsel %vm3853, %v5209, 0.0
  %v5237 = vadd.f32 %v5235, %v5236
  %v5238 = vsel %vm3853, %v5211, 0.0
  %v5239 = vadd.f32 %v5237, %v5238
  %v5240 = vsel %vm3853, %v5218, -inf
  %v5241 = vsel %vm3853, %v5225, -inf
  %v5242 = vmax.f32 %v5240, %v5241
  %v5243 = vrot.slane %v5242, 4
  %v5244 = vmax.f32 %v5242, %v5243
  %v5245 = vrot.slane %v5244, 2
  %v5246 = vmax.f32 %v5244, %v5245
  %v5247 = vrot.slane %v5246, 1
  %v5248 = vmax.f32 %v5246, %v5247
  %v5249 = vsel %vm3853, %v5232, -inf
  %v5250 = vsel %vm3853, %v5239, -inf
  %v5251 = vmax.f32 %v5249, %v5250
  %v5252 = vrot.slane %v5251, 4
  %v5253 = vmax.f32 %v5251, %v5252
  %v5254 = vrot.slane %v5253, 2
  %v5255 = vmax.f32 %v5253, %v5254
  %v5256 = vrot.slane %v5255, 1
  %v5257 = vmax.f32 %v5255, %v5256
  %v5258 = vsub.f32 %v5218, %v5248
  %v5259 = vsub.f32 %v5225, %v5248
  %v5260 = vsub.f32 %v5232, %v5257
  %v5261 = vsub.f32 %v5239, %v5257
  %v5262 = vmul.f32 %v5258, 1.442695
  %v5263 = vpow.pop %v5262
  %v5264 = vmul.f32 %v5259, 1.442695
  %v5265 = vpow.pop %v5264
  %v5266 = vmul.f32 %v5260, 1.442695
  %v5267 = vpow.pop %v5266
  %v5268 = vmul.f32 %v5261, 1.442695
  %v5269 = vpow.pop %v5268
  %v5270 = vsel %vm3853, %v5263, 0.0
  %v5271 = vsel %vm3853, %v5265, 0.0
  %v5272 = vadd.f32 %v5270, %v5271
  %v5273 = vrot.slane %v5272, 4
  %v5274 = vadd.f32 %v5272, %v5273
  %v5275 = vrot.slane %v5274, 2
  %v5276 = vadd.f32 %v5274, %v5275
  %v5277 = vrot.slane %v5276, 1
  %v5278 = vadd.f32 %v5276, %v5277
  %v5279 = vsel %vm3853, %v5267, 0.0
  %v5280 = vsel %vm3853, %v5269, 0.0
  %v5281 = vadd.f32 %v5279, %v5280
  %v5282 = vrot.slane %v5281, 4
  %v5283 = vadd.f32 %v5281, %v5282
  %v5284 = vrot.slane %v5283, 2
  %v5285 = vadd.f32 %v5283, %v5284
  %v5286 = vrot.slane %v5285, 1
  %v5287 = vadd.f32 %v5285, %v5286
  %v5288 = vrcp.pop %v5278
  %v5289 = vmul.f32 %v5263, %v5288
  %v5290 = vmul.f32 %v5265, %v5288
  %v5291 = vrcp.pop %v5287
  %v5292 = vmul.f32 %v5267, %v5291
  %v5293 = vmul.f32 %v5269, %v5291
  %v5294 = vlaneseq
  %v5295 = vshrl.u32 %v5294, 7
  %v5296 = vsub.s32 7, %v5295
  %v5297 = vrot.slane %v3789, %v5296
  %v5298 = vlaneseq
  %v5299 = vshrl.u32 %v5298, 7
  %v5300 = vsub.s32 7, %v5299
  %v5301 = vrot.slane %v3791, %v5300
  %v5302 = vlaneseq
  %v5303 = vshrl.u32 %v5302, 7
  %v5304 = vsub.s32 7, %v5303
  %v5305 = vrot.slane %v3793, %v5304
  %v5306 = vlaneseq
  %v5307 = vshrl.u32 %v5306, 7
  %v5308 = vsub.s32 7, %v5307
  %v5309 = vrot.slane %v3795, %v5308
  %v5310 = vlaneseq
  %v5311 = vshrl.u32 %v5310, 7
  %v5312 = vsub.s32 7, %v5311
  %v5313 = vrot.slane %v3797, %v5312
  %v5314 = vlaneseq
  %v5315 = vshrl.u32 %v5314, 7
  %v5316 = vsub.s32 7, %v5315
  %v5317 = vrot.slane %v3799, %v5316
  %v5318 = vlaneseq
  %v5319 = vshrl.u32 %v5318, 7
  %v5320 = vsub.s32 7, %v5319
  %v5321 = vrot.slane %v3801, %v5320
  %v5322 = vlaneseq
  %v5323 = vshrl.u32 %v5322, 7
  %v5324 = vsub.s32 7, %v5323
  %v5325 = vrot.slane %v3803, %v5324
  %v5326 = vmul.f32 %v5297, %v5289
  %v5327 = vmul.f32 %v5297, %v5290
  %v5328 = vmul.f32 %v5301, %v5289
  %v5329 = vmul.f32 %v5301, %v5290
  %v5330 = vmul.f32 %v5305, %v5289
  %v5331 = vmul.f32 %v5305, %v5290
  %v5332 = vmul.f32 %v5309, %v5289
  %v5333 = vmul.f32 %v5309, %v5290
  %v5334 = vmul.f32 %v5313, %v5292
  %v5335 = vmul.f32 %v5313, %v5293
  %v5336 = vmul.f32 %v5317, %v5292
  %v5337 = vmul.f32 %v5317, %v5293
  %v5338 = vmul.f32 %v5321, %v5292
  %v5339 = vmul.f32 %v5321, %v5293
  %v5340 = vmul.f32 %v5325, %v5292
  %v5341 = vmul.f32 %v5325, %v5293
  %v5342 = vadd.f32 %v5148, %v5326
  %v5343 = vadd.f32 %v5149, %v5327
  %v5344 = vadd.f32 %v5150, %v5328
  %v5345 = vadd.f32 %v5151, %v5329
  %v5346 = vadd.f32 %v5152, %v5330
  %v5347 = vadd.f32 %v5153, %v5331
  %v5348 = vadd.f32 %v5154, %v5332
  %v5349 = vadd.f32 %v5155, %v5333
  %v5350 = vadd.f32 %v5156, %v5334
  %v5351 = vadd.f32 %v5157, %v5335
  %v5352 = vadd.f32 %v5158, %v5336
  %v5353 = vadd.f32 %v5159, %v5337
  %v5354 = vadd.f32 %v5160, %v5338
  %v5355 = vadd.f32 %v5161, %v5339
  %v5356 = vadd.f32 %v5162, %v5340
  %v5357 = vadd.f32 %v5163, %v5341
  %v5358 = vlaneseq
  %v5359 = vshrl.u32 %v5358, 7
  %v5360 = vsub.s32 0, %v5359
  %v5361 = vrot.slane %v3454, %v5360
  %v5362 = vlaneseq
  %v5363 = vshrl.u32 %v5362, 7
  %v5364 = vsub.s32 0, %v5363
  %v5365 = vrot.slane %v3456, %v5364
  %v5366 = vlaneseq
  %v5367 = vshrl.u32 %v5366, 7
  %v5368 = vsub.s32 0, %v5367
  %v5369 = vrot.slane %v3458, %v5368
  %v5370 = vlaneseq
  %v5371 = vshrl.u32 %v5370, 7
  %v5372 = vsub.s32 0, %v5371
  %v5373 = vrot.slane %v3460, %v5372
  %v5374 = vlaneseq
  %v5375 = vshrl.u32 %v5374, 7
  %v5376 = vsub.s32 0, %v5375
  %v5377 = vrot.slane %v3462, %v5376
  %v5378 = vlaneseq
  %v5379 = vshrl.u32 %v5378, 7
  %v5380 = vsub.s32 0, %v5379
  %v5381 = vrot.slane %v3464, %v5380
  %v5382 = vlaneseq
  %v5383 = vshrl.u32 %v5382, 7
  %v5384 = vsub.s32 0, %v5383
  %v5385 = vrot.slane %v3466, %v5384
  %v5386 = vlaneseq
  %v5387 = vshrl.u32 %v5386, 7
  %v5388 = vsub.s32 0, %v5387
  %v5389 = vrot.slane %v3468, %v5388
  %v5390 = vmul.f32 %v5361, %v3621
  %v5391 = vmul.f32 %v5361, %v3622
  %v5392 = vmul.f32 %v5365, %v3623
  %v5393 = vmul.f32 %v5365, %v3624
  %v5394 = vmul.f32 %v5369, %v3625
  %v5395 = vmul.f32 %v5369, %v3626
  %v5396 = vmul.f32 %v5373, %v3627
  %v5397 = vmul.f32 %v5373, %v3628
  %v5398 = vmul.f32 %v5377, %v3629
  %v5399 = vmul.f32 %v5377, %v3630
  %v5400 = vmul.f32 %v5381, %v3631
  %v5401 = vmul.f32 %v5381, %v3632
  %v5402 = vmul.f32 %v5385, %v3633
  %v5403 = vmul.f32 %v5385, %v3634
  %v5404 = vmul.f32 %v5389, %v3635
  %v5405 = vmul.f32 %v5389, %v3636
  %v5406 = vsel %vm3853, %v5390, 0.0
  %v5407 = vsel %vm3853, %v5392, 0.0
  %v5408 = vadd.f32 %v5406, %v5407
  %v5409 = vsel %vm3853, %v5394, 0.0
  %v5410 = vadd.f32 %v5408, %v5409
  %v5411 = vsel %vm3853, %v5396, 0.0
  %v5412 = vadd.f32 %v5410, %v5411
  %v5413 = vsel %vm3853, %v5391, 0.0
  %v5414 = vsel %vm3853, %v5393, 0.0
  %v5415 = vadd.f32 %v5413, %v5414
  %v5416 = vsel %vm3853, %v5395, 0.0
  %v5417 = vadd.f32 %v5415, %v5416
  %v5418 = vsel %vm3853, %v5397, 0.0
  %v5419 = vadd.f32 %v5417, %v5418
  %v5420 = vsel %vm3853, %v5398, 0.0
  %v5421 = vsel %vm3853, %v5400, 0.0
  %v5422 = vadd.f32 %v5420, %v5421
  %v5423 = vsel %vm3853, %v5402, 0.0
  %v5424 = vadd.f32 %v5422, %v5423
  %v5425 = vsel %vm3853, %v5404, 0.0
  %v5426 = vadd.f32 %v5424, %v5425
  %v5427 = vsel %vm3853, %v5399, 0.0
  %v5428 = vsel %vm3853, %v5401, 0.0
  %v5429 = vadd.f32 %v5427, %v5428
  %v5430 = vsel %vm3853, %v5403, 0.0
  %v5431 = vadd.f32 %v5429, %v5430
  %v5432 = vsel %vm3853, %v5405, 0.0
  %v5433 = vadd.f32 %v5431, %v5432
  %v5434 = vsel %vm3853, %v5412, -inf
  %v5435 = vsel %vm3853, %v5419, -inf
  %v5436 = vmax.f32 %v5434, %v5435
  %v5437 = vrot.slane %v5436, 4
  %v5438 = vmax.f32 %v5436, %v5437
  %v5439 = vrot.slane %v5438, 2
  %v5440 = vmax.f32 %v5438, %v5439
  %v5441 = vrot.slane %v5440, 1
  %v5442 = vmax.f32 %v5440, %v5441
  %v5443 = vsel %vm3853, %v5426, -inf
  %v5444 = vsel %vm3853, %v5433, -inf
  %v5445 = vmax.f32 %v5443, %v5444
  %v5446 = vrot.slane %v5445, 4
  %v5447 = vmax.f32 %v5445, %v5446
  %v5448 = vrot.slane %v5447, 2
  %v5449 = vmax.f32 %v5447, %v5448
  %v5450 = vrot.slane %v5449, 1
  %v5451 = vmax.f32 %v5449, %v5450
  %v5452 = vsub.f32 %v5412, %v5442
  %v5453 = vsub.f32 %v5419, %v5442
  %v5454 = vsub.f32 %v5426, %v5451
  %v5455 = vsub.f32 %v5433, %v5451
  %v5456 = vmul.f32 %v5452, 1.442695
  %v5457 = vpow.pop %v5456
  %v5458 = vmul.f32 %v5453, 1.442695
  %v5459 = vpow.pop %v5458
  %v5460 = vmul.f32 %v5454, 1.442695
  %v5461 = vpow.pop %v5460
  %v5462 = vmul.f32 %v5455, 1.442695
  %v5463 = vpow.pop %v5462
  %v5464 = vsel %vm3853, %v5457, 0.0
  %v5465 = vsel %vm3853, %v5459, 0.0
  %v5466 = vadd.f32 %v5464, %v5465
  %v5467 = vrot.slane %v5466, 4
  %v5468 = vadd.f32 %v5466, %v5467
  %v5469 = vrot.slane %v5468, 2
  %v5470 = vadd.f32 %v5468, %v5469
  %v5471 = vrot.slane %v5470, 1
  %v5472 = vadd.f32 %v5470, %v5471
  %v5473 = vsel %vm3853, %v5461, 0.0
  %v5474 = vsel %vm3853, %v5463, 0.0
  %v5475 = vadd.f32 %v5473, %v5474
  %v5476 = vrot.slane %v5475, 4
  %v5477 = vadd.f32 %v5475, %v5476
  %v5478 = vrot.slane %v5477, 2
  %v5479 = vadd.f32 %v5477, %v5478
  %v5480 = vrot.slane %v5479, 1
  %v5481 = vadd.f32 %v5479, %v5480
  %v5482 = vrcp.pop %v5472
  %v5483 = vmul.f32 %v5457, %v5482
  %v5484 = vmul.f32 %v5459, %v5482
  %v5485 = vrcp.pop %v5481
  %v5486 = vmul.f32 %v5461, %v5485
  %v5487 = vmul.f32 %v5463, %v5485
  %v5488 = vlaneseq
  %v5489 = vshrl.u32 %v5488, 7
  %v5490 = vsub.s32 0, %v5489
  %v5491 = vrot.slane %v3790, %v5490
  %v5492 = vlaneseq
  %v5493 = vshrl.u32 %v5492, 7
  %v5494 = vsub.s32 0, %v5493
  %v5495 = vrot.slane %v3792, %v5494
  %v5496 = vlaneseq
  %v5497 = vshrl.u32 %v5496, 7
  %v5498 = vsub.s32 0, %v5497
  %v5499 = vrot.slane %v3794, %v5498
  %v5500 = vlaneseq
  %v5501 = vshrl.u32 %v5500, 7
  %v5502 = vsub.s32 0, %v5501
  %v5503 = vrot.slane %v3796, %v5502
  %v5504 = vlaneseq
  %v5505 = vshrl.u32 %v5504, 7
  %v5506 = vsub.s32 0, %v5505
  %v5507 = vrot.slane %v3798, %v5506
  %v5508 = vlaneseq
  %v5509 = vshrl.u32 %v5508, 7
  %v5510 = vsub.s32 0, %v5509
  %v5511 = vrot.slane %v3800, %v5510
  %v5512 = vlaneseq
  %v5513 = vshrl.u32 %v5512, 7
  %v5514 = vsub.s32 0, %v5513
  %v5515 = vrot.slane %v3802, %v5514
  %v5516 = vlaneseq
  %v5517 = vshrl.u32 %v5516, 7
  %v5518 = vsub.s32 0, %v5517
  %v5519 = vrot.slane %v3804, %v5518
  %v5520 = vmul.f32 %v5491, %v5483
  %v5521 = vmul.f32 %v5491, %v5484
  %v5522 = vmul.f32 %v5495, %v5483
  %v5523 = vmul.f32 %v5495, %v5484
  %v5524 = vmul.f32 %v5499, %v5483
  %v5525 = vmul.f32 %v5499, %v5484
  %v5526 = vmul.f32 %v5503, %v5483
  %v5527 = vmul.f32 %v5503, %v5484
  %v5528 = vmul.f32 %v5507, %v5486
  %v5529 = vmul.f32 %v5507, %v5487
  %v5530 = vmul.f32 %v5511, %v5486
  %v5531 = vmul.f32 %v5511, %v5487
  %v5532 = vmul.f32 %v5515, %v5486
  %v5533 = vmul.f32 %v5515, %v5487
  %v5534 = vmul.f32 %v5519, %v5486
  %v5535 = vmul.f32 %v5519, %v5487
  %v5536 = vadd.f32 %v5342, %v5520
  %v5537 = vadd.f32 %v5343, %v5521
  %v5538 = vadd.f32 %v5344, %v5522
  %v5539 = vadd.f32 %v5345, %v5523
  %v5540 = vadd.f32 %v5346, %v5524
  %v5541 = vadd.f32 %v5347, %v5525
  %v5542 = vadd.f32 %v5348, %v5526
  %v5543 = vadd.f32 %v5349, %v5527
  %v5544 = vadd.f32 %v5350, %v5528
  %v5545 = vadd.f32 %v5351, %v5529
  %v5546 = vadd.f32 %v5352, %v5530
  %v5547 = vadd.f32 %v5353, %v5531
  %v5548 = vadd.f32 %v5354, %v5532
  %v5549 = vadd.f32 %v5355, %v5533
  %v5550 = vadd.f32 %v5356, %v5534
  %v5551 = vadd.f32 %v5357, %v5535
  %v5552 = vlaneseq
  %v5553 = vshrl.u32 %v5552, 7
  %v5554 = vsub.s32 1, %v5553
  %v5555 = vrot.slane %v3454, %v5554
  %v5556 = vlaneseq
  %v5557 = vshrl.u32 %v5556, 7
  %v5558 = vsub.s32 1, %v5557
  %v5559 = vrot.slane %v3456, %v5558
  %v5560 = vlaneseq
  %v5561 = vshrl.u32 %v5560, 7
  %v5562 = vsub.s32 1, %v5561
  %v5563 = vrot.slane %v3458, %v5562
  %v5564 = vlaneseq
  %v5565 = vshrl.u32 %v5564, 7
  %v5566 = vsub.s32 1, %v5565
  %v5567 = vrot.slane %v3460, %v5566
  %v5568 = vlaneseq
  %v5569 = vshrl.u32 %v5568, 7
  %v5570 = vsub.s32 1, %v5569
  %v5571 = vrot.slane %v3462, %v5570
  %v5572 = vlaneseq
  %v5573 = vshrl.u32 %v5572, 7
  %v5574 = vsub.s32 1, %v5573
  %v5575 = vrot.slane %v3464, %v5574
  %v5576 = vlaneseq
  %v5577 = vshrl.u32 %v5576, 7
  %v5578 = vsub.s32 1, %v5577
  %v5579 = vrot.slane %v3466, %v5578
  %v5580 = vlaneseq
  %v5581 = vshrl.u32 %v5580, 7
  %v5582 = vsub.s32 1, %v5581
  %v5583 = vrot.slane %v3468, %v5582
  %v5584 = vmul.f32 %v5555, %v3621
  %v5585 = vmul.f32 %v5555, %v3622
  %v5586 = vmul.f32 %v5559, %v3623
  %v5587 = vmul.f32 %v5559, %v3624
  %v5588 = vmul.f32 %v5563, %v3625
  %v5589 = vmul.f32 %v5563, %v3626
  %v5590 = vmul.f32 %v5567, %v3627
  %v5591 = vmul.f32 %v5567, %v3628
  %v5592 = vmul.f32 %v5571, %v3629
  %v5593 = vmul.f32 %v5571, %v3630
  %v5594 = vmul.f32 %v5575, %v3631
  %v5595 = vmul.f32 %v5575, %v3632
  %v5596 = vmul.f32 %v5579, %v3633
  %v5597 = vmul.f32 %v5579, %v3634
  %v5598 = vmul.f32 %v5583, %v3635
  %v5599 = vmul.f32 %v5583, %v3636
  %v5600 = vsel %vm3853, %v5584, 0.0
  %v5601 = vsel %vm3853, %v5586, 0.0
  %v5602 = vadd.f32 %v5600, %v5601
  %v5603 = vsel %vm3853, %v5588, 0.0
  %v5604 = vadd.f32 %v5602, %v5603
  %v5605 = vsel %vm3853, %v5590, 0.0
  %v5606 = vadd.f32 %v5604, %v5605
  %v5607 = vsel %vm3853, %v5585, 0.0
  %v5608 = vsel %vm3853, %v5587, 0.0
  %v5609 = vadd.f32 %v5607, %v5608
  %v5610 = vsel %vm3853, %v5589, 0.0
  %v5611 = vadd.f32 %v5609, %v5610
  %v5612 = vsel %vm3853, %v5591, 0.0
  %v5613 = vadd.f32 %v5611, %v5612
  %v5614 = vsel %vm3853, %v5592, 0.0
  %v5615 = vsel %vm3853, %v5594, 0.0
  %v5616 = vadd.f32 %v5614, %v5615
  %v5617 = vsel %vm3853, %v5596, 0.0
  %v5618 = vadd.f32 %v5616, %v5617
  %v5619 = vsel %vm3853, %v5598, 0.0
  %v5620 = vadd.f32 %v5618, %v5619
  %v5621 = vsel %vm3853, %v5593, 0.0
  %v5622 = vsel %vm3853, %v5595, 0.0
  %v5623 = vadd.f32 %v5621, %v5622
  %v5624 = vsel %vm3853, %v5597, 0.0
  %v5625 = vadd.f32 %v5623, %v5624
  %v5626 = vsel %vm3853, %v5599, 0.0
  %v5627 = vadd.f32 %v5625, %v5626
  %v5628 = vsel %vm3853, %v5606, -inf
  %v5629 = vsel %vm3853, %v5613, -inf
  %v5630 = vmax.f32 %v5628, %v5629
  %v5631 = vrot.slane %v5630, 4
  %v5632 = vmax.f32 %v5630, %v5631
  %v5633 = vrot.slane %v5632, 2
  %v5634 = vmax.f32 %v5632, %v5633
  %v5635 = vrot.slane %v5634, 1
  %v5636 = vmax.f32 %v5634, %v5635
  %v5637 = vsel %vm3853, %v5620, -inf
  %v5638 = vsel %vm3853, %v5627, -inf
  %v5639 = vmax.f32 %v5637, %v5638
  %v5640 = vrot.slane %v5639, 4
  %v5641 = vmax.f32 %v5639, %v5640
  %v5642 = vrot.slane %v5641, 2
  %v5643 = vmax.f32 %v5641, %v5642
  %v5644 = vrot.slane %v5643, 1
  %v5645 = vmax.f32 %v5643, %v5644
  %v5646 = vsub.f32 %v5606, %v5636
  %v5647 = vsub.f32 %v5613, %v5636
  %v5648 = vsub.f32 %v5620, %v5645
  %v5649 = vsub.f32 %v5627, %v5645
  %v5650 = vmul.f32 %v5646, 1.442695
  %v5651 = vpow.pop %v5650
  %v5652 = vmul.f32 %v5647, 1.442695
  %v5653 = vpow.pop %v5652
  %v5654 = vmul.f32 %v5648, 1.442695
  %v5655 = vpow.pop %v5654
  %v5656 = vmul.f32 %v5649, 1.442695
  %v5657 = vpow.pop %v5656
  %v5658 = vsel %vm3853, %v5651, 0.0
  %v5659 = vsel %vm3853, %v5653, 0.0
  %v5660 = vadd.f32 %v5658, %v5659
  %v5661 = vrot.slane %v5660, 4
  %v5662 = vadd.f32 %v5660, %v5661
  %v5663 = vrot.slane %v5662, 2
  %v5664 = vadd.f32 %v5662, %v5663
  %v5665 = vrot.slane %v5664, 1
  %v5666 = vadd.f32 %v5664, %v5665
  %v5667 = vsel %vm3853, %v5655, 0.0
  %v5668 = vsel %vm3853, %v5657, 0.0
  %v5669 = vadd.f32 %v5667, %v5668
  %v5670 = vrot.slane %v5669, 4
  %v5671 = vadd.f32 %v5669, %v5670
  %v5672 = vrot.slane %v5671, 2
  %v5673 = vadd.f32 %v5671, %v5672
  %v5674 = vrot.slane %v5673, 1
  %v5675 = vadd.f32 %v5673, %v5674
  %v5676 = vrcp.pop %v5666
  %v5677 = vmul.f32 %v5651, %v5676
  %v5678 = vmul.f32 %v5653, %v5676
  %v5679 = vrcp.pop %v5675
  %v5680 = vmul.f32 %v5655, %v5679
  %v5681 = vmul.f32 %v5657, %v5679
  %v5682 = vlaneseq
  %v5683 = vshrl.u32 %v5682, 7
  %v5684 = vsub.s32 1, %v5683
  %v5685 = vrot.slane %v3790, %v5684
  %v5686 = vlaneseq
  %v5687 = vshrl.u32 %v5686, 7
  %v5688 = vsub.s32 1, %v5687
  %v5689 = vrot.slane %v3792, %v5688
  %v5690 = vlaneseq
  %v5691 = vshrl.u32 %v5690, 7
  %v5692 = vsub.s32 1, %v5691
  %v5693 = vrot.slane %v3794, %v5692
  %v5694 = vlaneseq
  %v5695 = vshrl.u32 %v5694, 7
  %v5696 = vsub.s32 1, %v5695
  %v5697 = vrot.slane %v3796, %v5696
  %v5698 = vlaneseq
  %v5699 = vshrl.u32 %v5698, 7
  %v5700 = vsub.s32 1, %v5699
  %v5701 = vrot.slane %v3798, %v5700
  %v5702 = vlaneseq
  %v5703 = vshrl.u32 %v5702, 7
  %v5704 = vsub.s32 1, %v5703
  %v5705 = vrot.slane %v3800, %v5704
  %v5706 = vlaneseq
  %v5707 = vshrl.u32 %v5706, 7
  %v5708 = vsub.s32 1, %v5707
  %v5709 = vrot.slane %v3802, %v5708
  %v5710 = vlaneseq
  %v5711 = vshrl.u32 %v5710, 7
  %v5712 = vsub.s32 1, %v5711
  %v5713 = vrot.slane %v3804, %v5712
  %v5714 = vmul.f32 %v5685, %v5677
  %v5715 = vmul.f32 %v5685, %v5678
  %v5716 = vmul.f32 %v5689, %v5677
  %v5717 = vmul.f32 %v5689, %v5678
  %v5718 = vmul.f32 %v5693, %v5677
  %v5719 = vmul.f32 %v5693, %v5678
  %v5720 = vmul.f32 %v5697, %v5677
  %v5721 = vmul.f32 %v5697, %v5678
  %v5722 = vmul.f32 %v5701, %v5680
  %v5723 = vmul.f32 %v5701, %v5681
  %v5724 = vmul.f32 %v5705, %v5680
  %v5725 = vmul.f32 %v5705, %v5681
  %v5726 = vmul.f32 %v5709, %v5680
  %v5727 = vmul.f32 %v5709, %v5681
  %v5728 = vmul.f32 %v5713, %v5680
  %v5729 = vmul.f32 %v5713, %v5681
  %v5730 = vadd.f32 %v5536, %v5714
  %v5731 = vadd.f32 %v5537, %v5715
  %v5732 = vadd.f32 %v5538, %v5716
  %v5733 = vadd.f32 %v5539, %v5717
  %v5734 = vadd.f32 %v5540, %v5718
  %v5735 = vadd.f32 %v5541, %v5719
  %v5736 = vadd.f32 %v5542, %v5720
  %v5737 = vadd.f32 %v5543, %v5721
  %v5738 = vadd.f32 %v5544, %v5722
  %v5739 = vadd.f32 %v5545, %v5723
  %v5740 = vadd.f32 %v5546, %v5724
  %v5741 = vadd.f32 %v5547, %v5725
  %v5742 = vadd.f32 %v5548, %v5726
  %v5743 = vadd.f32 %v5549, %v5727
  %v5744 = vadd.f32 %v5550, %v5728
  %v5745 = vadd.f32 %v5551, %v5729
  %v5746 = vlaneseq
  %v5747 = vshrl.u32 %v5746, 7
  %v5748 = vsub.s32 2, %v5747
  %v5749 = vrot.slane %v3454, %v5748
  %v5750 = vlaneseq
  %v5751 = vshrl.u32 %v5750, 7
  %v5752 = vsub.s32 2, %v5751
  %v5753 = vrot.slane %v3456, %v5752
  %v5754 = vlaneseq
  %v5755 = vshrl.u32 %v5754, 7
  %v5756 = vsub.s32 2, %v5755
  %v5757 = vrot.slane %v3458, %v5756
  %v5758 = vlaneseq
  %v5759 = vshrl.u32 %v5758, 7
  %v5760 = vsub.s32 2, %v5759
  %v5761 = vrot.slane %v3460, %v5760
  %v5762 = vlaneseq
  %v5763 = vshrl.u32 %v5762, 7
  %v5764 = vsub.s32 2, %v5763
  %v5765 = vrot.slane %v3462, %v5764
  %v5766 = vlaneseq
  %v5767 = vshrl.u32 %v5766, 7
  %v5768 = vsub.s32 2, %v5767
  %v5769 = vrot.slane %v3464, %v5768
  %v5770 = vlaneseq
  %v5771 = vshrl.u32 %v5770, 7
  %v5772 = vsub.s32 2, %v5771
  %v5773 = vrot.slane %v3466, %v5772
  %v5774 = vlaneseq
  %v5775 = vshrl.u32 %v5774, 7
  %v5776 = vsub.s32 2, %v5775
  %v5777 = vrot.slane %v3468, %v5776
  %v5778 = vmul.f32 %v5749, %v3621
  %v5779 = vmul.f32 %v5749, %v3622
  %v5780 = vmul.f32 %v5753, %v3623
  %v5781 = vmul.f32 %v5753, %v3624
  %v5782 = vmul.f32 %v5757, %v3625
  %v5783 = vmul.f32 %v5757, %v3626
  %v5784 = vmul.f32 %v5761, %v3627
  %v5785 = vmul.f32 %v5761, %v3628
  %v5786 = vmul.f32 %v5765, %v3629
  %v5787 = vmul.f32 %v5765, %v3630
  %v5788 = vmul.f32 %v5769, %v3631
  %v5789 = vmul.f32 %v5769, %v3632
  %v5790 = vmul.f32 %v5773, %v3633
  %v5791 = vmul.f32 %v5773, %v3634
  %v5792 = vmul.f32 %v5777, %v3635
  %v5793 = vmul.f32 %v5777, %v3636
  %v5794 = vsel %vm3853, %v5778, 0.0
  %v5795 = vsel %vm3853, %v5780, 0.0
  %v5796 = vadd.f32 %v5794, %v5795
  %v5797 = vsel %vm3853, %v5782, 0.0
  %v5798 = vadd.f32 %v5796, %v5797
  %v5799 = vsel %vm3853, %v5784, 0.0
  %v5800 = vadd.f32 %v5798, %v5799
  %v5801 = vsel %vm3853, %v5779, 0.0
  %v5802 = vsel %vm3853, %v5781, 0.0
  %v5803 = vadd.f32 %v5801, %v5802
  %v5804 = vsel %vm3853, %v5783, 0.0
  %v5805 = vadd.f32 %v5803, %v5804
  %v5806 = vsel %vm3853, %v5785, 0.0
  %v5807 = vadd.f32 %v5805, %v5806
  %v5808 = vsel %vm3853, %v5786, 0.0
  %v5809 = vsel %vm3853, %v5788, 0.0
  %v5810 = vadd.f32 %v5808, %v5809
  %v5811 = vsel %vm3853, %v5790, 0.0
  %v5812 = vadd.f32 %v5810, %v5811
  %v5813 = vsel %vm3853, %v5792, 0.0
  %v5814 = vadd.f32 %v5812, %v5813
  %v5815 = vsel %vm3853, %v5787, 0.0
  %v5816 = vsel %vm3853, %v5789, 0.0
  %v5817 = vadd.f32 %v5815, %v5816
  %v5818 = vsel %vm3853, %v5791, 0.0
  %v5819 = vadd.f32 %v5817, %v5818
  %v5820 = vsel %vm3853, %v5793, 0.0
  %v5821 = vadd.f32 %v5819, %v5820
  %v5822 = vsel %vm3853, %v5800, -inf
  %v5823 = vsel %vm3853, %v5807, -inf
  %v5824 = vmax.f32 %v5822, %v5823
  %v5825 = vrot.slane %v5824, 4
  %v5826 = vmax.f32 %v5824, %v5825
  %v5827 = vrot.slane %v5826, 2
  %v5828 = vmax.f32 %v5826, %v5827
  %v5829 = vrot.slane %v5828, 1
  %v5830 = vmax.f32 %v5828, %v5829
  %v5831 = vsel %vm3853, %v5814, -inf
  %v5832 = vsel %vm3853, %v5821, -inf
  %v5833 = vmax.f32 %v5831, %v5832
  %v5834 = vrot.slane %v5833, 4
  %v5835 = vmax.f32 %v5833, %v5834
  %v5836 = vrot.slane %v5835, 2
  %v5837 = vmax.f32 %v5835, %v5836
  %v5838 = vrot.slane %v5837, 1
  %v5839 = vmax.f32 %v5837, %v5838
  %v5840 = vsub.f32 %v5800, %v5830
  %v5841 = vsub.f32 %v5807, %v5830
  %v5842 = vsub.f32 %v5814, %v5839
  %v5843 = vsub.f32 %v5821, %v5839
  %v5844 = vmul.f32 %v5840, 1.442695
  %v5845 = vpow.pop %v5844
  %v5846 = vmul.f32 %v5841, 1.442695
  %v5847 = vpow.pop %v5846
  %v5848 = vmul.f32 %v5842, 1.442695
  %v5849 = vpow.pop %v5848
  %v5850 = vmul.f32 %v5843, 1.442695
  %v5851 = vpow.pop %v5850
  %v5852 = vsel %vm3853, %v5845, 0.0
  %v5853 = vsel %vm3853, %v5847, 0.0
  %v5854 = vadd.f32 %v5852, %v5853
  %v5855 = vrot.slane %v5854, 4
  %v5856 = vadd.f32 %v5854, %v5855
  %v5857 = vrot.slane %v5856, 2
  %v5858 = vadd.f32 %v5856, %v5857
  %v5859 = vrot.slane %v5858, 1
  %v5860 = vadd.f32 %v5858, %v5859
  %v5861 = vsel %vm3853, %v5849, 0.0
  %v5862 = vsel %vm3853, %v5851, 0.0
  %v5863 = vadd.f32 %v5861, %v5862
  %v5864 = vrot.slane %v5863, 4
  %v5865 = vadd.f32 %v5863, %v5864
  %v5866 = vrot.slane %v5865, 2
  %v5867 = vadd.f32 %v5865, %v5866
  %v5868 = vrot.slane %v5867, 1
  %v5869 = vadd.f32 %v5867, %v5868
  %v5870 = vrcp.pop %v5860
  %v5871 = vmul.f32 %v5845, %v5870
  %v5872 = vmul.f32 %v5847, %v5870
  %v5873 = vrcp.pop %v5869
  %v5874 = vmul.f32 %v5849, %v5873
  %v5875 = vmul.f32 %v5851, %v5873
  %v5876 = vlaneseq
  %v5877 = vshrl.u32 %v5876, 7
  %v5878 = vsub.s32 2, %v5877
  %v5879 = vrot.slane %v3790, %v5878
  %v5880 = vlaneseq
  %v5881 = vshrl.u32 %v5880, 7
  %v5882 = vsub.s32 2, %v5881
  %v5883 = vrot.slane %v3792, %v5882
  %v5884 = vlaneseq
  %v5885 = vshrl.u32 %v5884, 7
  %v5886 = vsub.s32 2, %v5885
  %v5887 = vrot.slane %v3794, %v5886
  %v5888 = vlaneseq
  %v5889 = vshrl.u32 %v5888, 7
  %v5890 = vsub.s32 2, %v5889
  %v5891 = vrot.slane %v3796, %v5890
  %v5892 = vlaneseq
  %v5893 = vshrl.u32 %v5892, 7
  %v5894 = vsub.s32 2, %v5893
  %v5895 = vrot.slane %v3798, %v5894
  %v5896 = vlaneseq
  %v5897 = vshrl.u32 %v5896, 7
  %v5898 = vsub.s32 2, %v5897
  %v5899 = vrot.slane %v3800, %v5898
  %v5900 = vlaneseq
  %v5901 = vshrl.u32 %v5900, 7
  %v5902 = vsub.s32 2, %v5901
  %v5903 = vrot.slane %v3802, %v5902
  %v5904 = vlaneseq
  %v5905 = vshrl.u32 %v5904, 7
  %v5906 = vsub.s32 2, %v5905
  %v5907 = vrot.slane %v3804, %v5906
  %v5908 = vmul.f32 %v5879, %v5871
  %v5909 = vmul.f32 %v5879, %v5872
  %v5910 = vmul.f32 %v5883, %v5871
  %v5911 = vmul.f32 %v5883, %v5872
  %v5912 = vmul.f32 %v5887, %v5871
  %v5913 = vmul.f32 %v5887, %v5872
  %v5914 = vmul.f32 %v5891, %v5871
  %v5915 = vmul.f32 %v5891, %v5872
  %v5916 = vmul.f32 %v5895, %v5874
  %v5917 = vmul.f32 %v5895, %v5875
  %v5918 = vmul.f32 %v5899, %v5874
  %v5919 = vmul.f32 %v5899, %v5875
  %v5920 = vmul.f32 %v5903, %v5874
  %v5921 = vmul.f32 %v5903, %v5875
  %v5922 = vmul.f32 %v5907, %v5874
  %v5923 = vmul.f32 %v5907, %v5875
  %v5924 = vadd.f32 %v5730, %v5908
  %v5925 = vadd.f32 %v5731, %v5909
  %v5926 = vadd.f32 %v5732, %v5910
  %v5927 = vadd.f32 %v5733, %v5911
  %v5928 = vadd.f32 %v5734, %v5912
  %v5929 = vadd.f32 %v5735, %v5913
  %v5930 = vadd.f32 %v5736, %v5914
  %v5931 = vadd.f32 %v5737, %v5915
  %v5932 = vadd.f32 %v5738, %v5916
  %v5933 = vadd.f32 %v5739, %v5917
  %v5934 = vadd.f32 %v5740, %v5918
  %v5935 = vadd.f32 %v5741, %v5919
  %v5936 = vadd.f32 %v5742, %v5920
  %v5937 = vadd.f32 %v5743, %v5921
  %v5938 = vadd.f32 %v5744, %v5922
  %v5939 = vadd.f32 %v5745, %v5923
  %v5940 = vlaneseq
  %v5941 = vshrl.u32 %v5940, 7
  %v5942 = vsub.s32 3, %v5941
  %v5943 = vrot.slane %v3454, %v5942
  %v5944 = vlaneseq
  %v5945 = vshrl.u32 %v5944, 7
  %v5946 = vsub.s32 3, %v5945
  %v5947 = vrot.slane %v3456, %v5946
  %v5948 = vlaneseq
  %v5949 = vshrl.u32 %v5948, 7
  %v5950 = vsub.s32 3, %v5949
  %v5951 = vrot.slane %v3458, %v5950
  %v5952 = vlaneseq
  %v5953 = vshrl.u32 %v5952, 7
  %v5954 = vsub.s32 3, %v5953
  %v5955 = vrot.slane %v3460, %v5954
  %v5956 = vlaneseq
  %v5957 = vshrl.u32 %v5956, 7
  %v5958 = vsub.s32 3, %v5957
  %v5959 = vrot.slane %v3462, %v5958
  %v5960 = vlaneseq
  %v5961 = vshrl.u32 %v5960, 7
  %v5962 = vsub.s32 3, %v5961
  %v5963 = vrot.slane %v3464, %v5962
  %v5964 = vlaneseq
  %v5965 = vshrl.u32 %v5964, 7
  %v5966 = vsub.s32 3, %v5965
  %v5967 = vrot.slane %v3466, %v5966
  %v5968 = vlaneseq
  %v5969 = vshrl.u32 %v5968, 7
  %v5970 = vsub.s32 3, %v5969
  %v5971 = vrot.slane %v3468, %v5970
  %v5972 = vmul.f32 %v5943, %v3621
  %v5973 = vmul.f32 %v5943, %v3622
  %v5974 = vmul.f32 %v5947, %v3623
  %v5975 = vmul.f32 %v5947, %v3624
  %v5976 = vmul.f32 %v5951, %v3625
  %v5977 = vmul.f32 %v5951, %v3626
  %v5978 = vmul.f32 %v5955, %v3627
  %v5979 = vmul.f32 %v5955, %v3628
  %v5980 = vmul.f32 %v5959, %v3629
  %v5981 = vmul.f32 %v5959, %v3630
  %v5982 = vmul.f32 %v5963, %v3631
  %v5983 = vmul.f32 %v5963, %v3632
  %v5984 = vmul.f32 %v5967, %v3633
  %v5985 = vmul.f32 %v5967, %v3634
  %v5986 = vmul.f32 %v5971, %v3635
  %v5987 = vmul.f32 %v5971, %v3636
  %v5988 = vsel %vm3853, %v5972, 0.0
  %v5989 = vsel %vm3853, %v5974, 0.0
  %v5990 = vadd.f32 %v5988, %v5989
  %v5991 = vsel %vm3853, %v5976, 0.0
  %v5992 = vadd.f32 %v5990, %v5991
  %v5993 = vsel %vm3853, %v5978, 0.0
  %v5994 = vadd.f32 %v5992, %v5993
  %v5995 = vsel %vm3853, %v5973, 0.0
  %v5996 = vsel %vm3853, %v5975, 0.0
  %v5997 = vadd.f32 %v5995, %v5996
  %v5998 = vsel %vm3853, %v5977, 0.0
  %v5999 = vadd.f32 %v5997, %v5998
  %v6000 = vsel %vm3853, %v5979, 0.0
  %v6001 = vadd.f32 %v5999, %v6000
  %v6002 = vsel %vm3853, %v5980, 0.0
  %v6003 = vsel %vm3853, %v5982, 0.0
  %v6004 = vadd.f32 %v6002, %v6003
  %v6005 = vsel %vm3853, %v5984, 0.0
  %v6006 = vadd.f32 %v6004, %v6005
  %v6007 = vsel %vm3853, %v5986, 0.0
  %v6008 = vadd.f32 %v6006, %v6007
  %v6009 = vsel %vm3853, %v5981, 0.0
  %v6010 = vsel %vm3853, %v5983, 0.0
  %v6011 = vadd.f32 %v6009, %v6010
  %v6012 = vsel %vm3853, %v5985, 0.0
  %v6013 = vadd.f32 %v6011, %v6012
  %v6014 = vsel %vm3853, %v5987, 0.0
  %v6015 = vadd.f32 %v6013, %v6014
  %v6016 = vsel %vm3853, %v5994, -inf
  %v6017 = vsel %vm3853, %v6001, -inf
  %v6018 = vmax.f32 %v6016, %v6017
  %v6019 = vrot.slane %v6018, 4
  %v6020 = vmax.f32 %v6018, %v6019
  %v6021 = vrot.slane %v6020, 2
  %v6022 = vmax.f32 %v6020, %v6021
  %v6023 = vrot.slane %v6022, 1
  %v6024 = vmax.f32 %v6022, %v6023
  %v6025 = vsel %vm3853, %v6008, -inf
  %v6026 = vsel %vm3853, %v6015, -inf
  %v6027 = vmax.f32 %v6025, %v6026
  %v6028 = vrot.slane %v6027, 4
  %v6029 = vmax.f32 %v6027, %v6028
  %v6030 = vrot.slane %v6029, 2
  %v6031 = vmax.f32 %v6029, %v6030
  %v6032 = vrot.slane %v6031, 1
  %v6033 = vmax.f32 %v6031, %v6032
  %v6034 = vsub.f32 %v5994, %v6024
  %v6035 = vsub.f32 %v6001, %v6024
  %v6036 = vsub.f32 %v6008, %v6033
  %v6037 = vsub.f32 %v6015, %v6033
  %v6038 = vmul.f32 %v6034, 1.442695
  %v6039 = vpow.pop %v6038
  %v6040 = vmul.f32 %v6035, 1.442695
  %v6041 = vpow.pop %v6040
  %v6042 = vmul.f32 %v6036, 1.442695
  %v6043 = vpow.pop %v6042
  %v6044 = vmul.f32 %v6037, 1.442695
  %v6045 = vpow.pop %v6044
  %v6046 = vsel %vm3853, %v6039, 0.0
  %v6047 = vsel %vm3853, %v6041, 0.0
  %v6048 = vadd.f32 %v6046, %v6047
  %v6049 = vrot.slane %v6048, 4
  %v6050 = vadd.f32 %v6048, %v6049
  %v6051 = vrot.slane %v6050, 2
  %v6052 = vadd.f32 %v6050, %v6051
  %v6053 = vrot.slane %v6052, 1
  %v6054 = vadd.f32 %v6052, %v6053
  %v6055 = vsel %vm3853, %v6043, 0.0
  %v6056 = vsel %vm3853, %v6045, 0.0
  %v6057 = vadd.f32 %v6055, %v6056
  %v6058 = vrot.slane %v6057, 4
  %v6059 = vadd.f32 %v6057, %v6058
  %v6060 = vrot.slane %v6059, 2
  %v6061 = vadd.f32 %v6059, %v6060
  %v6062 = vrot.slane %v6061, 1
  %v6063 = vadd.f32 %v6061, %v6062
  %v6064 = vrcp.pop %v6054
  %v6065 = vmul.f32 %v6039, %v6064
  %v6066 = vmul.f32 %v6041, %v6064
  %v6067 = vrcp.pop %v6063
  %v6068 = vmul.f32 %v6043, %v6067
  %v6069 = vmul.f32 %v6045, %v6067
  %v6070 = vlaneseq
  %v6071 = vshrl.u32 %v6070, 7
  %v6072 = vsub.s32 3, %v6071
  %v6073 = vrot.slane %v3790, %v6072
  %v6074 = vlaneseq
  %v6075 = vshrl.u32 %v6074, 7
  %v6076 = vsub.s32 3, %v6075
  %v6077 = vrot.slane %v3792, %v6076
  %v6078 = vlaneseq
  %v6079 = vshrl.u32 %v6078, 7
  %v6080 = vsub.s32 3, %v6079
  %v6081 = vrot.slane %v3794, %v6080
  %v6082 = vlaneseq
  %v6083 = vshrl.u32 %v6082, 7
  %v6084 = vsub.s32 3, %v6083
  %v6085 = vrot.slane %v3796, %v6084
  %v6086 = vlaneseq
  %v6087 = vshrl.u32 %v6086, 7
  %v6088 = vsub.s32 3, %v6087
  %v6089 = vrot.slane %v3798, %v6088
  %v6090 = vlaneseq
  %v6091 = vshrl.u32 %v6090, 7
  %v6092 = vsub.s32 3, %v6091
  %v6093 = vrot.slane %v3800, %v6092
  %v6094 = vlaneseq
  %v6095 = vshrl.u32 %v6094, 7
  %v6096 = vsub.s32 3, %v6095
  %v6097 = vrot.slane %v3802, %v6096
  %v6098 = vlaneseq
  %v6099 = vshrl.u32 %v6098, 7
  %v6100 = vsub.s32 3, %v6099
  %v6101 = vrot.slane %v3804, %v6100
  %v6102 = vmul.f32 %v6073, %v6065
  %v6103 = vmul.f32 %v6073, %v6066
  %v6104 = vmul.f32 %v6077, %v6065
  %v6105 = vmul.f32 %v6077, %v6066
  %v6106 = vmul.f32 %v6081, %v6065
  %v6107 = vmul.f32 %v6081, %v6066
  %v6108 = vmul.f32 %v6085, %v6065
  %v6109 = vmul.f32 %v6085, %v6066
  %v6110 = vmul.f32 %v6089, %v6068
  %v6111 = vmul.f32 %v6089, %v6069
  %v6112 = vmul.f32 %v6093, %v6068
  %v6113 = vmul.f32 %v6093, %v6069
  %v6114 = vmul.f32 %v6097, %v6068
  %v6115 = vmul.f32 %v6097, %v6069
  %v6116 = vmul.f32 %v6101, %v6068
  %v6117 = vmul.f32 %v6101, %v6069
  %v6118 = vadd.f32 %v5924, %v6102
  %v6119 = vadd.f32 %v5925, %v6103
  %v6120 = vadd.f32 %v5926, %v6104
  %v6121 = vadd.f32 %v5927, %v6105
  %v6122 = vadd.f32 %v5928, %v6106
  %v6123 = vadd.f32 %v5929, %v6107
  %v6124 = vadd.f32 %v5930, %v6108
  %v6125 = vadd.f32 %v5931, %v6109
  %v6126 = vadd.f32 %v5932, %v6110
  %v6127 = vadd.f32 %v5933, %v6111
  %v6128 = vadd.f32 %v5934, %v6112
  %v6129 = vadd.f32 %v5935, %v6113
  %v6130 = vadd.f32 %v5936, %v6114
  %v6131 = vadd.f32 %v5937, %v6115
  %v6132 = vadd.f32 %v5938, %v6116
  %v6133 = vadd.f32 %v5939, %v6117
  %v6134 = vlaneseq
  %v6135 = vshrl.u32 %v6134, 7
  %v6136 = vsub.s32 4, %v6135
  %v6137 = vrot.slane %v3454, %v6136
  %v6138 = vlaneseq
  %v6139 = vshrl.u32 %v6138, 7
  %v6140 = vsub.s32 4, %v6139
  %v6141 = vrot.slane %v3456, %v6140
  %v6142 = vlaneseq
  %v6143 = vshrl.u32 %v6142, 7
  %v6144 = vsub.s32 4, %v6143
  %v6145 = vrot.slane %v3458, %v6144
  %v6146 = vlaneseq
  %v6147 = vshrl.u32 %v6146, 7
  %v6148 = vsub.s32 4, %v6147
  %v6149 = vrot.slane %v3460, %v6148
  %v6150 = vlaneseq
  %v6151 = vshrl.u32 %v6150, 7
  %v6152 = vsub.s32 4, %v6151
  %v6153 = vrot.slane %v3462, %v6152
  %v6154 = vlaneseq
  %v6155 = vshrl.u32 %v6154, 7
  %v6156 = vsub.s32 4, %v6155
  %v6157 = vrot.slane %v3464, %v6156
  %v6158 = vlaneseq
  %v6159 = vshrl.u32 %v6158, 7
  %v6160 = vsub.s32 4, %v6159
  %v6161 = vrot.slane %v3466, %v6160
  %v6162 = vlaneseq
  %v6163 = vshrl.u32 %v6162, 7
  %v6164 = vsub.s32 4, %v6163
  %v6165 = vrot.slane %v3468, %v6164
  %v6166 = vmul.f32 %v6137, %v3621
  %v6167 = vmul.f32 %v6137, %v3622
  %v6168 = vmul.f32 %v6141, %v3623
  %v6169 = vmul.f32 %v6141, %v3624
  %v6170 = vmul.f32 %v6145, %v3625
  %v6171 = vmul.f32 %v6145, %v3626
  %v6172 = vmul.f32 %v6149, %v3627
  %v6173 = vmul.f32 %v6149, %v3628
  %v6174 = vmul.f32 %v6153, %v3629
  %v6175 = vmul.f32 %v6153, %v3630
  %v6176 = vmul.f32 %v6157, %v3631
  %v6177 = vmul.f32 %v6157, %v3632
  %v6178 = vmul.f32 %v6161, %v3633
  %v6179 = vmul.f32 %v6161, %v3634
  %v6180 = vmul.f32 %v6165, %v3635
  %v6181 = vmul.f32 %v6165, %v3636
  %v6182 = vsel %vm3853, %v6166, 0.0
  %v6183 = vsel %vm3853, %v6168, 0.0
  %v6184 = vadd.f32 %v6182, %v6183
  %v6185 = vsel %vm3853, %v6170, 0.0
  %v6186 = vadd.f32 %v6184, %v6185
  %v6187 = vsel %vm3853, %v6172, 0.0
  %v6188 = vadd.f32 %v6186, %v6187
  %v6189 = vsel %vm3853, %v6167, 0.0
  %v6190 = vsel %vm3853, %v6169, 0.0
  %v6191 = vadd.f32 %v6189, %v6190
  %v6192 = vsel %vm3853, %v6171, 0.0
  %v6193 = vadd.f32 %v6191, %v6192
  %v6194 = vsel %vm3853, %v6173, 0.0
  %v6195 = vadd.f32 %v6193, %v6194
  %v6196 = vsel %vm3853, %v6174, 0.0
  %v6197 = vsel %vm3853, %v6176, 0.0
  %v6198 = vadd.f32 %v6196, %v6197
  %v6199 = vsel %vm3853, %v6178, 0.0
  %v6200 = vadd.f32 %v6198, %v6199
  %v6201 = vsel %vm3853, %v6180, 0.0
  %v6202 = vadd.f32 %v6200, %v6201
  %v6203 = vsel %vm3853, %v6175, 0.0
  %v6204 = vsel %vm3853, %v6177, 0.0
  %v6205 = vadd.f32 %v6203, %v6204
  %v6206 = vsel %vm3853, %v6179, 0.0
  %v6207 = vadd.f32 %v6205, %v6206
  %v6208 = vsel %vm3853, %v6181, 0.0
  %v6209 = vadd.f32 %v6207, %v6208
  %v6210 = vsel %vm3853, %v6188, -inf
  %v6211 = vsel %vm3853, %v6195, -inf
  %v6212 = vmax.f32 %v6210, %v6211
  %v6213 = vrot.slane %v6212, 4
  %v6214 = vmax.f32 %v6212, %v6213
  %v6215 = vrot.slane %v6214, 2
  %v6216 = vmax.f32 %v6214, %v6215
  %v6217 = vrot.slane %v6216, 1
  %v6218 = vmax.f32 %v6216, %v6217
  %v6219 = vsel %vm3853, %v6202, -inf
  %v6220 = vsel %vm3853, %v6209, -inf
  %v6221 = vmax.f32 %v6219, %v6220
  %v6222 = vrot.slane %v6221, 4
  %v6223 = vmax.f32 %v6221, %v6222
  %v6224 = vrot.slane %v6223, 2
  %v6225 = vmax.f32 %v6223, %v6224
  %v6226 = vrot.slane %v6225, 1
  %v6227 = vmax.f32 %v6225, %v6226
  %v6228 = vsub.f32 %v6188, %v6218
  %v6229 = vsub.f32 %v6195, %v6218
  %v6230 = vsub.f32 %v6202, %v6227
  %v6231 = vsub.f32 %v6209, %v6227
  %v6232 = vmul.f32 %v6228, 1.442695
  %v6233 = vpow.pop %v6232
  %v6234 = vmul.f32 %v6229, 1.442695
  %v6235 = vpow.pop %v6234
  %v6236 = vmul.f32 %v6230, 1.442695
  %v6237 = vpow.pop %v6236
  %v6238 = vmul.f32 %v6231, 1.442695
  %v6239 = vpow.pop %v6238
  %v6240 = vsel %vm3853, %v6233, 0.0
  %v6241 = vsel %vm3853, %v6235, 0.0
  %v6242 = vadd.f32 %v6240, %v6241
  %v6243 = vrot.slane %v6242, 4
  %v6244 = vadd.f32 %v6242, %v6243
  %v6245 = vrot.slane %v6244, 2
  %v6246 = vadd.f32 %v6244, %v6245
  %v6247 = vrot.slane %v6246, 1
  %v6248 = vadd.f32 %v6246, %v6247
  %v6249 = vsel %vm3853, %v6237, 0.0
  %v6250 = vsel %vm3853, %v6239, 0.0
  %v6251 = vadd.f32 %v6249, %v6250
  %v6252 = vrot.slane %v6251, 4
  %v6253 = vadd.f32 %v6251, %v6252
  %v6254 = vrot.slane %v6253, 2
  %v6255 = vadd.f32 %v6253, %v6254
  %v6256 = vrot.slane %v6255, 1
  %v6257 = vadd.f32 %v6255, %v6256
  %v6258 = vrcp.pop %v6248
  %v6259 = vmul.f32 %v6233, %v6258
  %v6260 = vmul.f32 %v6235, %v6258
  %v6261 = vrcp.pop %v6257
  %v6262 = vmul.f32 %v6237, %v6261
  %v6263 = vmul.f32 %v6239, %v6261
  %v6264 = vlaneseq
  %v6265 = vshrl.u32 %v6264, 7
  %v6266 = vsub.s32 4, %v6265
  %v6267 = vrot.slane %v3790, %v6266
  %v6268 = vlaneseq
  %v6269 = vshrl.u32 %v6268, 7
  %v6270 = vsub.s32 4, %v6269
  %v6271 = vrot.slane %v3792, %v6270
  %v6272 = vlaneseq
  %v6273 = vshrl.u32 %v6272, 7
  %v6274 = vsub.s32 4, %v6273
  %v6275 = vrot.slane %v3794, %v6274
  %v6276 = vlaneseq
  %v6277 = vshrl.u32 %v6276, 7
  %v6278 = vsub.s32 4, %v6277
  %v6279 = vrot.slane %v3796, %v6278
  %v6280 = vlaneseq
  %v6281 = vshrl.u32 %v6280, 7
  %v6282 = vsub.s32 4, %v6281
  %v6283 = vrot.slane %v3798, %v6282
  %v6284 = vlaneseq
  %v6285 = vshrl.u32 %v6284, 7
  %v6286 = vsub.s32 4, %v6285
  %v6287 = vrot.slane %v3800, %v6286
  %v6288 = vlaneseq
  %v6289 = vshrl.u32 %v6288, 7
  %v6290 = vsub.s32 4, %v6289
  %v6291 = vrot.slane %v3802, %v6290
  %v6292 = vlaneseq
  %v6293 = vshrl.u32 %v6292, 7
  %v6294 = vsub.s32 4, %v6293
  %v6295 = vrot.slane %v3804, %v6294
  %v6296 = vmul.f32 %v6267, %v6259
  %v6297 = vmul.f32 %v6267, %v6260
  %v6298 = vmul.f32 %v6271, %v6259
  %v6299 = vmul.f32 %v6271, %v6260
  %v6300 = vmul.f32 %v6275, %v6259
  %v6301 = vmul.f32 %v6275, %v6260
  %v6302 = vmul.f32 %v6279, %v6259
  %v6303 = vmul.f32 %v6279, %v6260
  %v6304 = vmul.f32 %v6283, %v6262
  %v6305 = vmul.f32 %v6283, %v6263
  %v6306 = vmul.f32 %v6287, %v6262
  %v6307 = vmul.f32 %v6287, %v6263
  %v6308 = vmul.f32 %v6291, %v6262
  %v6309 = vmul.f32 %v6291, %v6263
  %v6310 = vmul.f32 %v6295, %v6262
  %v6311 = vmul.f32 %v6295, %v6263
  %v6312 = vadd.f32 %v6118, %v6296
  %v6313 = vadd.f32 %v6119, %v6297
  %v6314 = vadd.f32 %v6120, %v6298
  %v6315 = vadd.f32 %v6121, %v6299
  %v6316 = vadd.f32 %v6122, %v6300
  %v6317 = vadd.f32 %v6123, %v6301
  %v6318 = vadd.f32 %v6124, %v6302
  %v6319 = vadd.f32 %v6125, %v6303
  %v6320 = vadd.f32 %v6126, %v6304
  %v6321 = vadd.f32 %v6127, %v6305
  %v6322 = vadd.f32 %v6128, %v6306
  %v6323 = vadd.f32 %v6129, %v6307
  %v6324 = vadd.f32 %v6130, %v6308
  %v6325 = vadd.f32 %v6131, %v6309
  %v6326 = vadd.f32 %v6132, %v6310
  %v6327 = vadd.f32 %v6133, %v6311
  %v6328 = vlaneseq
  %v6329 = vshrl.u32 %v6328, 7
  %v6330 = vsub.s32 5, %v6329
  %v6331 = vrot.slane %v3454, %v6330
  %v6332 = vlaneseq
  %v6333 = vshrl.u32 %v6332, 7
  %v6334 = vsub.s32 5, %v6333
  %v6335 = vrot.slane %v3456, %v6334
  %v6336 = vlaneseq
  %v6337 = vshrl.u32 %v6336, 7
  %v6338 = vsub.s32 5, %v6337
  %v6339 = vrot.slane %v3458, %v6338
  %v6340 = vlaneseq
  %v6341 = vshrl.u32 %v6340, 7
  %v6342 = vsub.s32 5, %v6341
  %v6343 = vrot.slane %v3460, %v6342
  %v6344 = vlaneseq
  %v6345 = vshrl.u32 %v6344, 7
  %v6346 = vsub.s32 5, %v6345
  %v6347 = vrot.slane %v3462, %v6346
  %v6348 = vlaneseq
  %v6349 = vshrl.u32 %v6348, 7
  %v6350 = vsub.s32 5, %v6349
  %v6351 = vrot.slane %v3464, %v6350
  %v6352 = vlaneseq
  %v6353 = vshrl.u32 %v6352, 7
  %v6354 = vsub.s32 5, %v6353
  %v6355 = vrot.slane %v3466, %v6354
  %v6356 = vlaneseq
  %v6357 = vshrl.u32 %v6356, 7
  %v6358 = vsub.s32 5, %v6357
  %v6359 = vrot.slane %v3468, %v6358
  %v6360 = vmul.f32 %v6331, %v3621
  %v6361 = vmul.f32 %v6331, %v3622
  %v6362 = vmul.f32 %v6335, %v3623
  %v6363 = vmul.f32 %v6335, %v3624
  %v6364 = vmul.f32 %v6339, %v3625
  %v6365 = vmul.f32 %v6339, %v3626
  %v6366 = vmul.f32 %v6343, %v3627
  %v6367 = vmul.f32 %v6343, %v3628
  %v6368 = vmul.f32 %v6347, %v3629
  %v6369 = vmul.f32 %v6347, %v3630
  %v6370 = vmul.f32 %v6351, %v3631
  %v6371 = vmul.f32 %v6351, %v3632
  %v6372 = vmul.f32 %v6355, %v3633
  %v6373 = vmul.f32 %v6355, %v3634
  %v6374 = vmul.f32 %v6359, %v3635
  %v6375 = vmul.f32 %v6359, %v3636
  %v6376 = vsel %vm3853, %v6360, 0.0
  %v6377 = vsel %vm3853, %v6362, 0.0
  %v6378 = vadd.f32 %v6376, %v6377
  %v6379 = vsel %vm3853, %v6364, 0.0
  %v6380 = vadd.f32 %v6378, %v6379
  %v6381 = vsel %vm3853, %v6366, 0.0
  %v6382 = vadd.f32 %v6380, %v6381
  %v6383 = vsel %vm3853, %v6361, 0.0
  %v6384 = vsel %vm3853, %v6363, 0.0
  %v6385 = vadd.f32 %v6383, %v6384
  %v6386 = vsel %vm3853, %v6365, 0.0
  %v6387 = vadd.f32 %v6385, %v6386
  %v6388 = vsel %vm3853, %v6367, 0.0
  %v6389 = vadd.f32 %v6387, %v6388
  %v6390 = vsel %vm3853, %v6368, 0.0
  %v6391 = vsel %vm3853, %v6370, 0.0
  %v6392 = vadd.f32 %v6390, %v6391
  %v6393 = vsel %vm3853, %v6372, 0.0
  %v6394 = vadd.f32 %v6392, %v6393
  %v6395 = vsel %vm3853, %v6374, 0.0
  %v6396 = vadd.f32 %v6394, %v6395
  %v6397 = vsel %vm3853, %v6369, 0.0
  %v6398 = vsel %vm3853, %v6371, 0.0
  %v6399 = vadd.f32 %v6397, %v6398
  %v6400 = vsel %vm3853, %v6373, 0.0
  %v6401 = vadd.f32 %v6399, %v6400
  %v6402 = vsel %vm3853, %v6375, 0.0
  %v6403 = vadd.f32 %v6401, %v6402
  %v6404 = vsel %vm3853, %v6382, -inf
  %v6405 = vsel %vm3853, %v6389, -inf
  %v6406 = vmax.f32 %v6404, %v6405
  %v6407 = vrot.slane %v6406, 4
  %v6408 = vmax.f32 %v6406, %v6407
  %v6409 = vrot.slane %v6408, 2
  %v6410 = vmax.f32 %v6408, %v6409
  %v6411 = vrot.slane %v6410, 1
  %v6412 = vmax.f32 %v6410, %v6411
  %v6413 = vsel %vm3853, %v6396, -inf
  %v6414 = vsel %vm3853, %v6403, -inf
  %v6415 = vmax.f32 %v6413, %v6414
  %v6416 = vrot.slane %v6415, 4
  %v6417 = vmax.f32 %v6415, %v6416
  %v6418 = vrot.slane %v6417, 2
  %v6419 = vmax.f32 %v6417, %v6418
  %v6420 = vrot.slane %v6419, 1
  %v6421 = vmax.f32 %v6419, %v6420
  %v6422 = vsub.f32 %v6382, %v6412
  %v6423 = vsub.f32 %v6389, %v6412
  %v6424 = vsub.f32 %v6396, %v6421
  %v6425 = vsub.f32 %v6403, %v6421
  %v6426 = vmul.f32 %v6422, 1.442695
  %v6427 = vpow.pop %v6426
  %v6428 = vmul.f32 %v6423, 1.442695
  %v6429 = vpow.pop %v6428
  %v6430 = vmul.f32 %v6424, 1.442695
  %v6431 = vpow.pop %v6430
  %v6432 = vmul.f32 %v6425, 1.442695
  %v6433 = vpow.pop %v6432
  %v6434 = vsel %vm3853, %v6427, 0.0
  %v6435 = vsel %vm3853, %v6429, 0.0
  %v6436 = vadd.f32 %v6434, %v6435
  %v6437 = vrot.slane %v6436, 4
  %v6438 = vadd.f32 %v6436, %v6437
  %v6439 = vrot.slane %v6438, 2
  %v6440 = vadd.f32 %v6438, %v6439
  %v6441 = vrot.slane %v6440, 1
  %v6442 = vadd.f32 %v6440, %v6441
  %v6443 = vsel %vm3853, %v6431, 0.0
  %v6444 = vsel %vm3853, %v6433, 0.0
  %v6445 = vadd.f32 %v6443, %v6444
  %v6446 = vrot.slane %v6445, 4
  %v6447 = vadd.f32 %v6445, %v6446
  %v6448 = vrot.slane %v6447, 2
  %v6449 = vadd.f32 %v6447, %v6448
  %v6450 = vrot.slane %v6449, 1
  %v6451 = vadd.f32 %v6449, %v6450
  %v6452 = vrcp.pop %v6442
  %v6453 = vmul.f32 %v6427, %v6452
  %v6454 = vmul.f32 %v6429, %v6452
  %v6455 = vrcp.pop %v6451
  %v6456 = vmul.f32 %v6431, %v6455
  %v6457 = vmul.f32 %v6433, %v6455
  %v6458 = vlaneseq
  %v6459 = vshrl.u32 %v6458, 7
  %v6460 = vsub.s32 5, %v6459
  %v6461 = vrot.slane %v3790, %v6460
  %v6462 = vlaneseq
  %v6463 = vshrl.u32 %v6462, 7
  %v6464 = vsub.s32 5, %v6463
  %v6465 = vrot.slane %v3792, %v6464
  %v6466 = vlaneseq
  %v6467 = vshrl.u32 %v6466, 7
  %v6468 = vsub.s32 5, %v6467
  %v6469 = vrot.slane %v3794, %v6468
  %v6470 = vlaneseq
  %v6471 = vshrl.u32 %v6470, 7
  %v6472 = vsub.s32 5, %v6471
  %v6473 = vrot.slane %v3796, %v6472
  %v6474 = vlaneseq
  %v6475 = vshrl.u32 %v6474, 7
  %v6476 = vsub.s32 5, %v6475
  %v6477 = vrot.slane %v3798, %v6476
  %v6478 = vlaneseq
  %v6479 = vshrl.u32 %v6478, 7
  %v6480 = vsub.s32 5, %v6479
  %v6481 = vrot.slane %v3800, %v6480
  %v6482 = vlaneseq
  %v6483 = vshrl.u32 %v6482, 7
  %v6484 = vsub.s32 5, %v6483
  %v6485 = vrot.slane %v3802, %v6484
  %v6486 = vlaneseq
  %v6487 = vshrl.u32 %v6486, 7
  %v6488 = vsub.s32 5, %v6487
  %v6489 = vrot.slane %v3804, %v6488
  %v6490 = vmul.f32 %v6461, %v6453
  %v6491 = vmul.f32 %v6461, %v6454
  %v6492 = vmul.f32 %v6465, %v6453
  %v6493 = vmul.f32 %v6465, %v6454
  %v6494 = vmul.f32 %v6469, %v6453
  %v6495 = vmul.f32 %v6469, %v6454
  %v6496 = vmul.f32 %v6473, %v6453
  %v6497 = vmul.f32 %v6473, %v6454
  %v6498 = vmul.f32 %v6477, %v6456
  %v6499 = vmul.f32 %v6477, %v6457
  %v6500 = vmul.f32 %v6481, %v6456
  %v6501 = vmul.f32 %v6481, %v6457
  %v6502 = vmul.f32 %v6485, %v6456
  %v6503 = vmul.f32 %v6485, %v6457
  %v6504 = vmul.f32 %v6489, %v6456
  %v6505 = vmul.f32 %v6489, %v6457
  %v6506 = vadd.f32 %v6312, %v6490
  %v6507 = vadd.f32 %v6313, %v6491
  %v6508 = vadd.f32 %v6314, %v6492
  %v6509 = vadd.f32 %v6315, %v6493
  %v6510 = vadd.f32 %v6316, %v6494
  %v6511 = vadd.f32 %v6317, %v6495
  %v6512 = vadd.f32 %v6318, %v6496
  %v6513 = vadd.f32 %v6319, %v6497
  %v6514 = vadd.f32 %v6320, %v6498
  %v6515 = vadd.f32 %v6321, %v6499
  %v6516 = vadd.f32 %v6322, %v6500
  %v6517 = vadd.f32 %v6323, %v6501
  %v6518 = vadd.f32 %v6324, %v6502
  %v6519 = vadd.f32 %v6325, %v6503
  %v6520 = vadd.f32 %v6326, %v6504
  %v6521 = vadd.f32 %v6327, %v6505
  %v6522 = vlaneseq
  %v6523 = vshrl.u32 %v6522, 7
  %v6524 = vsub.s32 6, %v6523
  %v6525 = vrot.slane %v3454, %v6524
  %v6526 = vlaneseq
  %v6527 = vshrl.u32 %v6526, 7
  %v6528 = vsub.s32 6, %v6527
  %v6529 = vrot.slane %v3456, %v6528
  %v6530 = vlaneseq
  %v6531 = vshrl.u32 %v6530, 7
  %v6532 = vsub.s32 6, %v6531
  %v6533 = vrot.slane %v3458, %v6532
  %v6534 = vlaneseq
  %v6535 = vshrl.u32 %v6534, 7
  %v6536 = vsub.s32 6, %v6535
  %v6537 = vrot.slane %v3460, %v6536
  %v6538 = vlaneseq
  %v6539 = vshrl.u32 %v6538, 7
  %v6540 = vsub.s32 6, %v6539
  %v6541 = vrot.slane %v3462, %v6540
  %v6542 = vlaneseq
  %v6543 = vshrl.u32 %v6542, 7
  %v6544 = vsub.s32 6, %v6543
  %v6545 = vrot.slane %v3464, %v6544
  %v6546 = vlaneseq
  %v6547 = vshrl.u32 %v6546, 7
  %v6548 = vsub.s32 6, %v6547
  %v6549 = vrot.slane %v3466, %v6548
  %v6550 = vlaneseq
  %v6551 = vshrl.u32 %v6550, 7
  %v6552 = vsub.s32 6, %v6551
  %v6553 = vrot.slane %v3468, %v6552
  %v6554 = vmul.f32 %v6525, %v3621
  %v6555 = vmul.f32 %v6525, %v3622
  %v6556 = vmul.f32 %v6529, %v3623
  %v6557 = vmul.f32 %v6529, %v3624
  %v6558 = vmul.f32 %v6533, %v3625
  %v6559 = vmul.f32 %v6533, %v3626
  %v6560 = vmul.f32 %v6537, %v3627
  %v6561 = vmul.f32 %v6537, %v3628
  %v6562 = vmul.f32 %v6541, %v3629
  %v6563 = vmul.f32 %v6541, %v3630
  %v6564 = vmul.f32 %v6545, %v3631
  %v6565 = vmul.f32 %v6545, %v3632
  %v6566 = vmul.f32 %v6549, %v3633
  %v6567 = vmul.f32 %v6549, %v3634
  %v6568 = vmul.f32 %v6553, %v3635
  %v6569 = vmul.f32 %v6553, %v3636
  %v6570 = vsel %vm3853, %v6554, 0.0
  %v6571 = vsel %vm3853, %v6556, 0.0
  %v6572 = vadd.f32 %v6570, %v6571
  %v6573 = vsel %vm3853, %v6558, 0.0
  %v6574 = vadd.f32 %v6572, %v6573
  %v6575 = vsel %vm3853, %v6560, 0.0
  %v6576 = vadd.f32 %v6574, %v6575
  %v6577 = vsel %vm3853, %v6555, 0.0
  %v6578 = vsel %vm3853, %v6557, 0.0
  %v6579 = vadd.f32 %v6577, %v6578
  %v6580 = vsel %vm3853, %v6559, 0.0
  %v6581 = vadd.f32 %v6579, %v6580
  %v6582 = vsel %vm3853, %v6561, 0.0
  %v6583 = vadd.f32 %v6581, %v6582
  %v6584 = vsel %vm3853, %v6562, 0.0
  %v6585 = vsel %vm3853, %v6564, 0.0
  %v6586 = vadd.f32 %v6584, %v6585
  %v6587 = vsel %vm3853, %v6566, 0.0
  %v6588 = vadd.f32 %v6586, %v6587
  %v6589 = vsel %vm3853, %v6568, 0.0
  %v6590 = vadd.f32 %v6588, %v6589
  %v6591 = vsel %vm3853, %v6563, 0.0
  %v6592 = vsel %vm3853, %v6565, 0.0
  %v6593 = vadd.f32 %v6591, %v6592
  %v6594 = vsel %vm3853, %v6567, 0.0
  %v6595 = vadd.f32 %v6593, %v6594
  %v6596 = vsel %vm3853, %v6569, 0.0
  %v6597 = vadd.f32 %v6595, %v6596
  %v6598 = vsel %vm3853, %v6576, -inf
  %v6599 = vsel %vm3853, %v6583, -inf
  %v6600 = vmax.f32 %v6598, %v6599
  %v6601 = vrot.slane %v6600, 4
  %v6602 = vmax.f32 %v6600, %v6601
  %v6603 = vrot.slane %v6602, 2
  %v6604 = vmax.f32 %v6602, %v6603
  %v6605 = vrot.slane %v6604, 1
  %v6606 = vmax.f32 %v6604, %v6605
  %v6607 = vsel %vm3853, %v6590, -inf
  %v6608 = vsel %vm3853, %v6597, -inf
  %v6609 = vmax.f32 %v6607, %v6608
  %v6610 = vrot.slane %v6609, 4
  %v6611 = vmax.f32 %v6609, %v6610
  %v6612 = vrot.slane %v6611, 2
  %v6613 = vmax.f32 %v6611, %v6612
  %v6614 = vrot.slane %v6613, 1
  %v6615 = vmax.f32 %v6613, %v6614
  %v6616 = vsub.f32 %v6576, %v6606
  %v6617 = vsub.f32 %v6583, %v6606
  %v6618 = vsub.f32 %v6590, %v6615
  %v6619 = vsub.f32 %v6597, %v6615
  %v6620 = vmul.f32 %v6616, 1.442695
  %v6621 = vpow.pop %v6620
  %v6622 = vmul.f32 %v6617, 1.442695
  %v6623 = vpow.pop %v6622
  %v6624 = vmul.f32 %v6618, 1.442695
  %v6625 = vpow.pop %v6624
  %v6626 = vmul.f32 %v6619, 1.442695
  %v6627 = vpow.pop %v6626
  %v6628 = vsel %vm3853, %v6621, 0.0
  %v6629 = vsel %vm3853, %v6623, 0.0
  %v6630 = vadd.f32 %v6628, %v6629
  %v6631 = vrot.slane %v6630, 4
  %v6632 = vadd.f32 %v6630, %v6631
  %v6633 = vrot.slane %v6632, 2
  %v6634 = vadd.f32 %v6632, %v6633
  %v6635 = vrot.slane %v6634, 1
  %v6636 = vadd.f32 %v6634, %v6635
  %v6637 = vsel %vm3853, %v6625, 0.0
  %v6638 = vsel %vm3853, %v6627, 0.0
  %v6639 = vadd.f32 %v6637, %v6638
  %v6640 = vrot.slane %v6639, 4
  %v6641 = vadd.f32 %v6639, %v6640
  %v6642 = vrot.slane %v6641, 2
  %v6643 = vadd.f32 %v6641, %v6642
  %v6644 = vrot.slane %v6643, 1
  %v6645 = vadd.f32 %v6643, %v6644
  %v6646 = vrcp.pop %v6636
  %v6647 = vmul.f32 %v6621, %v6646
  %v6648 = vmul.f32 %v6623, %v6646
  %v6649 = vrcp.pop %v6645
  %v6650 = vmul.f32 %v6625, %v6649
  %v6651 = vmul.f32 %v6627, %v6649
  %v6652 = vlaneseq
  %v6653 = vshrl.u32 %v6652, 7
  %v6654 = vsub.s32 6, %v6653
  %v6655 = vrot.slane %v3790, %v6654
  %v6656 = vlaneseq
  %v6657 = vshrl.u32 %v6656, 7
  %v6658 = vsub.s32 6, %v6657
  %v6659 = vrot.slane %v3792, %v6658
  %v6660 = vlaneseq
  %v6661 = vshrl.u32 %v6660, 7
  %v6662 = vsub.s32 6, %v6661
  %v6663 = vrot.slane %v3794, %v6662
  %v6664 = vlaneseq
  %v6665 = vshrl.u32 %v6664, 7
  %v6666 = vsub.s32 6, %v6665
  %v6667 = vrot.slane %v3796, %v6666
  %v6668 = vlaneseq
  %v6669 = vshrl.u32 %v6668, 7
  %v6670 = vsub.s32 6, %v6669
  %v6671 = vrot.slane %v3798, %v6670
  %v6672 = vlaneseq
  %v6673 = vshrl.u32 %v6672, 7
  %v6674 = vsub.s32 6, %v6673
  %v6675 = vrot.slane %v3800, %v6674
  %v6676 = vlaneseq
  %v6677 = vshrl.u32 %v6676, 7
  %v6678 = vsub.s32 6, %v6677
  %v6679 = vrot.slane %v3802, %v6678
  %v6680 = vlaneseq
  %v6681 = vshrl.u32 %v6680, 7
  %v6682 = vsub.s32 6, %v6681
  %v6683 = vrot.slane %v3804, %v6682
  %v6684 = vmul.f32 %v6655, %v6647
  %v6685 = vmul.f32 %v6655, %v6648
  %v6686 = vmul.f32 %v6659, %v6647
  %v6687 = vmul.f32 %v6659, %v6648
  %v6688 = vmul.f32 %v6663, %v6647
  %v6689 = vmul.f32 %v6663, %v6648
  %v6690 = vmul.f32 %v6667, %v6647
  %v6691 = vmul.f32 %v6667, %v6648
  %v6692 = vmul.f32 %v6671, %v6650
  %v6693 = vmul.f32 %v6671, %v6651
  %v6694 = vmul.f32 %v6675, %v6650
  %v6695 = vmul.f32 %v6675, %v6651
  %v6696 = vmul.f32 %v6679, %v6650
  %v6697 = vmul.f32 %v6679, %v6651
  %v6698 = vmul.f32 %v6683, %v6650
  %v6699 = vmul.f32 %v6683, %v6651
  %v6700 = vadd.f32 %v6506, %v6684
  %v6701 = vadd.f32 %v6507, %v6685
  %v6702 = vadd.f32 %v6508, %v6686
  %v6703 = vadd.f32 %v6509, %v6687
  %v6704 = vadd.f32 %v6510, %v6688
  %v6705 = vadd.f32 %v6511, %v6689
  %v6706 = vadd.f32 %v6512, %v6690
  %v6707 = vadd.f32 %v6513, %v6691
  %v6708 = vadd.f32 %v6514, %v6692
  %v6709 = vadd.f32 %v6515, %v6693
  %v6710 = vadd.f32 %v6516, %v6694
  %v6711 = vadd.f32 %v6517, %v6695
  %v6712 = vadd.f32 %v6518, %v6696
  %v6713 = vadd.f32 %v6519, %v6697
  %v6714 = vadd.f32 %v6520, %v6698
  %v6715 = vadd.f32 %v6521, %v6699
  %v6716 = vlaneseq
  %v6717 = vshrl.u32 %v6716, 7
  %v6718 = vsub.s32 7, %v6717
  %v6719 = vrot.slane %v3454, %v6718
  %v6720 = vlaneseq
  %v6721 = vshrl.u32 %v6720, 7
  %v6722 = vsub.s32 7, %v6721
  %v6723 = vrot.slane %v3456, %v6722
  %v6724 = vlaneseq
  %v6725 = vshrl.u32 %v6724, 7
  %v6726 = vsub.s32 7, %v6725
  %v6727 = vrot.slane %v3458, %v6726
  %v6728 = vlaneseq
  %v6729 = vshrl.u32 %v6728, 7
  %v6730 = vsub.s32 7, %v6729
  %v6731 = vrot.slane %v3460, %v6730
  %v6732 = vlaneseq
  %v6733 = vshrl.u32 %v6732, 7
  %v6734 = vsub.s32 7, %v6733
  %v6735 = vrot.slane %v3462, %v6734
  %v6736 = vlaneseq
  %v6737 = vshrl.u32 %v6736, 7
  %v6738 = vsub.s32 7, %v6737
  %v6739 = vrot.slane %v3464, %v6738
  %v6740 = vlaneseq
  %v6741 = vshrl.u32 %v6740, 7
  %v6742 = vsub.s32 7, %v6741
  %v6743 = vrot.slane %v3466, %v6742
  %v6744 = vlaneseq
  %v6745 = vshrl.u32 %v6744, 7
  %v6746 = vsub.s32 7, %v6745
  %v6747 = vrot.slane %v3468, %v6746
  %v6748 = vmul.f32 %v6719, %v3621
  %v6749 = vmul.f32 %v6719, %v3622
  %v6750 = vmul.f32 %v6723, %v3623
  %v6751 = vmul.f32 %v6723, %v3624
  %v6752 = vmul.f32 %v6727, %v3625
  %v6753 = vmul.f32 %v6727, %v3626
  %v6754 = vmul.f32 %v6731, %v3627
  %v6755 = vmul.f32 %v6731, %v3628
  %v6756 = vmul.f32 %v6735, %v3629
  %v6757 = vmul.f32 %v6735, %v3630
  %v6758 = vmul.f32 %v6739, %v3631
  %v6759 = vmul.f32 %v6739, %v3632
  %v6760 = vmul.f32 %v6743, %v3633
  %v6761 = vmul.f32 %v6743, %v3634
  %v6762 = vmul.f32 %v6747, %v3635
  %v6763 = vmul.f32 %v6747, %v3636
  %v6764 = vsel %vm3853, %v6748, 0.0
  %v6765 = vsel %vm3853, %v6750, 0.0
  %v6766 = vadd.f32 %v6764, %v6765
  %v6767 = vsel %vm3853, %v6752, 0.0
  %v6768 = vadd.f32 %v6766, %v6767
  %v6769 = vsel %vm3853, %v6754, 0.0
  %v6770 = vadd.f32 %v6768, %v6769
  %v6771 = vsel %vm3853, %v6749, 0.0
  %v6772 = vsel %vm3853, %v6751, 0.0
  %v6773 = vadd.f32 %v6771, %v6772
  %v6774 = vsel %vm3853, %v6753, 0.0
  %v6775 = vadd.f32 %v6773, %v6774
  %v6776 = vsel %vm3853, %v6755, 0.0
  %v6777 = vadd.f32 %v6775, %v6776
  %v6778 = vsel %vm3853, %v6756, 0.0
  %v6779 = vsel %vm3853, %v6758, 0.0
  %v6780 = vadd.f32 %v6778, %v6779
  %v6781 = vsel %vm3853, %v6760, 0.0
  %v6782 = vadd.f32 %v6780, %v6781
  %v6783 = vsel %vm3853, %v6762, 0.0
  %v6784 = vadd.f32 %v6782, %v6783
  %v6785 = vsel %vm3853, %v6757, 0.0
  %v6786 = vsel %vm3853, %v6759, 0.0
  %v6787 = vadd.f32 %v6785, %v6786
  %v6788 = vsel %vm3853, %v6761, 0.0
  %v6789 = vadd.f32 %v6787, %v6788
  %v6790 = vsel %vm3853, %v6763, 0.0
  %v6791 = vadd.f32 %v6789, %v6790
  %v6792 = vsel %vm3853, %v6770, -inf
  %v6793 = vsel %vm3853, %v6777, -inf
  %v6794 = vmax.f32 %v6792, %v6793
  %v6795 = vrot.slane %v6794, 4
  %v6796 = vmax.f32 %v6794, %v6795
  %v6797 = vrot.slane %v6796, 2
  %v6798 = vmax.f32 %v6796, %v6797
  %v6799 = vrot.slane %v6798, 1
  %v6800 = vmax.f32 %v6798, %v6799
  %v6801 = vsel %vm3853, %v6784, -inf
  %v6802 = vsel %vm3853, %v6791, -inf
  %v6803 = vmax.f32 %v6801, %v6802
  %v6804 = vrot.slane %v6803, 4
  %v6805 = vmax.f32 %v6803, %v6804
  %v6806 = vrot.slane %v6805, 2
  %v6807 = vmax.f32 %v6805, %v6806
  %v6808 = vrot.slane %v6807, 1
  %v6809 = vmax.f32 %v6807, %v6808
  %v6810 = vsub.f32 %v6770, %v6800
  %v6811 = vsub.f32 %v6777, %v6800
  %v6812 = vsub.f32 %v6784, %v6809
  %v6813 = vsub.f32 %v6791, %v6809
  %v6814 = vmul.f32 %v6810, 1.442695
  %v6815 = vpow.pop %v6814
  %v6816 = vmul.f32 %v6811, 1.442695
  %v6817 = vpow.pop %v6816
  %v6818 = vmul.f32 %v6812, 1.442695
  %v6819 = vpow.pop %v6818
  %v6820 = vmul.f32 %v6813, 1.442695
  %v6821 = vpow.pop %v6820
  %v6822 = vsel %vm3853, %v6815, 0.0
  %v6823 = vsel %vm3853, %v6817, 0.0
  %v6824 = vadd.f32 %v6822, %v6823
  %v6825 = vrot.slane %v6824, 4
  %v6826 = vadd.f32 %v6824, %v6825
  %v6827 = vrot.slane %v6826, 2
  %v6828 = vadd.f32 %v6826, %v6827
  %v6829 = vrot.slane %v6828, 1
  %v6830 = vadd.f32 %v6828, %v6829
  %v6831 = vsel %vm3853, %v6819, 0.0
  %v6832 = vsel %vm3853, %v6821, 0.0
  %v6833 = vadd.f32 %v6831, %v6832
  %v6834 = vrot.slane %v6833, 4
  %v6835 = vadd.f32 %v6833, %v6834
  %v6836 = vrot.slane %v6835, 2
  %v6837 = vadd.f32 %v6835, %v6836
  %v6838 = vrot.slane %v6837, 1
  %v6839 = vadd.f32 %v6837, %v6838
  %v6840 = vrcp.pop %v6830
  %v6841 = vmul.f32 %v6815, %v6840
  %v6842 = vmul.f32 %v6817, %v6840
  %v6843 = vrcp.pop %v6839
  %v6844 = vmul.f32 %v6819, %v6843
  %v6845 = vmul.f32 %v6821, %v6843
  %v6846 = vlaneseq
  %v6847 = vshrl.u32 %v6846, 7
  %v6848 = vsub.s32 7, %v6847
  %v6849 = vrot.slane %v3790, %v6848
  %v6850 = vlaneseq
  %v6851 = vshrl.u32 %v6850, 7
  %v6852 = vsub.s32 7, %v6851
  %v6853 = vrot.slane %v3792, %v6852
  %v6854 = vlaneseq
  %v6855 = vshrl.u32 %v6854, 7
  %v6856 = vsub.s32 7, %v6855
  %v6857 = vrot.slane %v3794, %v6856
  %v6858 = vlaneseq
  %v6859 = vshrl.u32 %v6858, 7
  %v6860 = vsub.s32 7, %v6859
  %v6861 = vrot.slane %v3796, %v6860
  %v6862 = vlaneseq
  %v6863 = vshrl.u32 %v6862, 7
  %v6864 = vsub.s32 7, %v6863
  %v6865 = vrot.slane %v3798, %v6864
  %v6866 = vlaneseq
  %v6867 = vshrl.u32 %v6866, 7
  %v6868 = vsub.s32 7, %v6867
  %v6869 = vrot.slane %v3800, %v6868
  %v6870 = vlaneseq
  %v6871 = vshrl.u32 %v6870, 7
  %v6872 = vsub.s32 7, %v6871
  %v6873 = vrot.slane %v3802, %v6872
  %v6874 = vlaneseq
  %v6875 = vshrl.u32 %v6874, 7
  %v6876 = vsub.s32 7, %v6875
  %v6877 = vrot.slane %v3804, %v6876
  %v6878 = vmul.f32 %v6849, %v6841
  %v6879 = vmul.f32 %v6849, %v6842
  %v6880 = vmul.f32 %v6853, %v6841
  %v6881 = vmul.f32 %v6853, %v6842
  %v6882 = vmul.f32 %v6857, %v6841
  %v6883 = vmul.f32 %v6857, %v6842
  %v6884 = vmul.f32 %v6861, %v6841
  %v6885 = vmul.f32 %v6861, %v6842
  %v6886 = vmul.f32 %v6865, %v6844
  %v6887 = vmul.f32 %v6865, %v6845
  %v6888 = vmul.f32 %v6869, %v6844
  %v6889 = vmul.f32 %v6869, %v6845
  %v6890 = vmul.f32 %v6873, %v6844
  %v6891 = vmul.f32 %v6873, %v6845
  %v6892 = vmul.f32 %v6877, %v6844
  %v6893 = vmul.f32 %v6877, %v6845
  %v6894 = vadd.f32 %v6700, %v6878
  %v6895 = vadd.f32 %v6701, %v6879
  %v6896 = vadd.f32 %v6702, %v6880
  %v6897 = vadd.f32 %v6703, %v6881
  %v6898 = vadd.f32 %v6704, %v6882
  %v6899 = vadd.f32 %v6705, %v6883
  %v6900 = vadd.f32 %v6706, %v6884
  %v6901 = vadd.f32 %v6707, %v6885
  %v6902 = vadd.f32 %v6708, %v6886
  %v6903 = vadd.f32 %v6709, %v6887
  %v6904 = vadd.f32 %v6710, %v6888
  %v6905 = vadd.f32 %v6711, %v6889
  %v6906 = vadd.f32 %v6712, %v6890
  %v6907 = vadd.f32 %v6713, %v6891
  %v6908 = vadd.f32 %v6714, %v6892
  %v6909 = vadd.f32 %v6715, %v6893
  %v6910 = vld [vmem:[%s11] sm:$0xff]
  %v6911 = vld [vmem:[%s12] sm:$0xff]
  %v6912 = vld [vmem:[%s13] sm:$0x1]
  %v6913 = vld [vmem:[%s14] sm:$0x1]
  %6915 = vset.pattern.permute.xlu0 0
  %6916 = vperm.xlu0 %6915, %v6894
  %v6917 = vpop.permute.xlu0 %6916
  %6920 = vset.pattern.permute.xlu0 0
  %6921 = vperm.xlu0 %6920, %v6895
  %v6922 = vpop.permute.xlu0 %6921
  %6925 = vset.pattern.permute.xlu0 0
  %6926 = vperm.xlu0 %6925, %v6896
  %v6927 = vpop.permute.xlu0 %6926
  %6930 = vset.pattern.permute.xlu0 0
  %6931 = vperm.xlu0 %6930, %v6897
  %v6932 = vpop.permute.xlu0 %6931
  %6935 = vset.pattern.permute.xlu0 0
  %6936 = vperm.xlu0 %6935, %v6898
  %v6937 = vpop.permute.xlu0 %6936
  %6940 = vset.pattern.permute.xlu0 0
  %6941 = vperm.xlu0 %6940, %v6899
  %v6942 = vpop.permute.xlu0 %6941
  %6945 = vset.pattern.permute.xlu0 0
  %6946 = vperm.xlu0 %6945, %v6900
  %v6947 = vpop.permute.xlu0 %6946
  %6950 = vset.pattern.permute.xlu0 0
  %6951 = vperm.xlu0 %6950, %v6901
  %v6952 = vpop.permute.xlu0 %6951
  %6955 = vset.pattern.permute.xlu0 0
  %6956 = vperm.xlu0 %6955, %v6902
  %v6957 = vpop.permute.xlu0 %6956
  %6960 = vset.pattern.permute.xlu0 0
  %6961 = vperm.xlu0 %6960, %v6903
  %v6962 = vpop.permute.xlu0 %6961
  %6965 = vset.pattern.permute.xlu0 0
  %6966 = vperm.xlu0 %6965, %v6904
  %v6967 = vpop.permute.xlu0 %6966
  %6970 = vset.pattern.permute.xlu0 0
  %6971 = vperm.xlu0 %6970, %v6905
  %v6972 = vpop.permute.xlu0 %6971
  %6975 = vset.pattern.permute.xlu0 0
  %6976 = vperm.xlu0 %6975, %v6906
  %v6977 = vpop.permute.xlu0 %6976
  %6980 = vset.pattern.permute.xlu0 0
  %6981 = vperm.xlu0 %6980, %v6907
  %v6982 = vpop.permute.xlu0 %6981
  %6985 = vset.pattern.permute.xlu0 0
  %6986 = vperm.xlu0 %6985, %v6908
  %v6987 = vpop.permute.xlu0 %6986
  %6990 = vset.pattern.permute.xlu0 0
  %6991 = vperm.xlu0 %6990, %v6909
  %v6992 = vpop.permute.xlu0 %6991
  %v6994 = vlaneseq
  %v6995 = vshrl.u32 %v6994, 7
  %v6996 = vsub.s32 0, %v6995
  %v6997 = vrot.slane %v6910, %v6996
  %v6998 = vmul.f32 %v6917, %v6997
  %v6999 = vmul.f32 %v6922, %v6997
  %v7000 = vmul.f32 %v6927, %v6997
  %v7001 = vmul.f32 %v6932, %v6997
  %v7002 = vmul.f32 %v6937, %v6997
  %v7003 = vmul.f32 %v6942, %v6997
  %v7004 = vmul.f32 %v6947, %v6997
  %v7005 = vmul.f32 %v6952, %v6997
  %v7006 = vmul.f32 %v6957, %v6997
  %v7007 = vmul.f32 %v6962, %v6997
  %v7008 = vmul.f32 %v6967, %v6997
  %v7009 = vmul.f32 %v6972, %v6997
  %v7010 = vmul.f32 %v6977, %v6997
  %v7011 = vmul.f32 %v6982, %v6997
  %v7012 = vmul.f32 %v6987, %v6997
  %v7013 = vmul.f32 %v6992, %v6997
  %v7014 = vadd.f32 %v6998, 0.0
  %v7015 = vadd.f32 %v6999, 0.0
  %v7016 = vadd.f32 %v7000, 0.0
  %v7017 = vadd.f32 %v7001, 0.0
  %v7018 = vadd.f32 %v7002, 0.0
  %v7019 = vadd.f32 %v7003, 0.0
  %v7020 = vadd.f32 %v7004, 0.0
  %v7021 = vadd.f32 %v7005, 0.0
  %v7022 = vadd.f32 %v7006, 0.0
  %v7023 = vadd.f32 %v7007, 0.0
  %v7024 = vadd.f32 %v7008, 0.0
  %v7025 = vadd.f32 %v7009, 0.0
  %v7026 = vadd.f32 %v7010, 0.0
  %v7027 = vadd.f32 %v7011, 0.0
  %v7028 = vadd.f32 %v7012, 0.0
  %v7029 = vadd.f32 %v7013, 0.0
  %7030 = vset.pattern.permute.xlu0 1
  %7031 = vperm.xlu0 %7030, %v6894
  %v7032 = vpop.permute.xlu0 %7031
  %7034 = vset.pattern.permute.xlu0 1
  %7035 = vperm.xlu0 %7034, %v6895
  %v7036 = vpop.permute.xlu0 %7035
  %7038 = vset.pattern.permute.xlu0 1
  %7039 = vperm.xlu0 %7038, %v6896
  %v7040 = vpop.permute.xlu0 %7039
  %7042 = vset.pattern.permute.xlu0 1
  %7043 = vperm.xlu0 %7042, %v6897
  %v7044 = vpop.permute.xlu0 %7043
  %7046 = vset.pattern.permute.xlu0 1
  %7047 = vperm.xlu0 %7046, %v6898
  %v7048 = vpop.permute.xlu0 %7047
  %7050 = vset.pattern.permute.xlu0 1
  %7051 = vperm.xlu0 %7050, %v6899
  %v7052 = vpop.permute.xlu0 %7051
  %7054 = vset.pattern.permute.xlu0 1
  %7055 = vperm.xlu0 %7054, %v6900
  %v7056 = vpop.permute.xlu0 %7055
  %7058 = vset.pattern.permute.xlu0 1
  %7059 = vperm.xlu0 %7058, %v6901
  %v7060 = vpop.permute.xlu0 %7059
  %7062 = vset.pattern.permute.xlu0 1
  %7063 = vperm.xlu0 %7062, %v6902
  %v7064 = vpop.permute.xlu0 %7063
  %7066 = vset.pattern.permute.xlu0 1
  %7067 = vperm.xlu0 %7066, %v6903
  %v7068 = vpop.permute.xlu0 %7067
  %7070 = vset.pattern.permute.xlu0 1
  %7071 = vperm.xlu0 %7070, %v6904
  %v7072 = vpop.permute.xlu0 %7071
  %7074 = vset.pattern.permute.xlu0 1
  %7075 = vperm.xlu0 %7074, %v6905
  %v7076 = vpop.permute.xlu0 %7075
  %7078 = vset.pattern.permute.xlu0 1
  %7079 = vperm.xlu0 %7078, %v6906
  %v7080 = vpop.permute.xlu0 %7079
  %7082 = vset.pattern.permute.xlu0 1
  %7083 = vperm.xlu0 %7082, %v6907
  %v7084 = vpop.permute.xlu0 %7083
  %7086 = vset.pattern.permute.xlu0 1
  %7087 = vperm.xlu0 %7086, %v6908
  %v7088 = vpop.permute.xlu0 %7087
  %7090 = vset.pattern.permute.xlu0 1
  %7091 = vperm.xlu0 %7090, %v6909
  %v7092 = vpop.permute.xlu0 %7091
  %v7094 = vlaneseq
  %v7095 = vshrl.u32 %v7094, 7
  %v7096 = vsub.s32 1, %v7095
  %v7097 = vrot.slane %v6910, %v7096
  %v7098 = vmul.f32 %v7032, %v7097
  %v7099 = vmul.f32 %v7036, %v7097
  %v7100 = vmul.f32 %v7040, %v7097
  %v7101 = vmul.f32 %v7044, %v7097
  %v7102 = vmul.f32 %v7048, %v7097
  %v7103 = vmul.f32 %v7052, %v7097
  %v7104 = vmul.f32 %v7056, %v7097
  %v7105 = vmul.f32 %v7060, %v7097
  %v7106 = vmul.f32 %v7064, %v7097
  %v7107 = vmul.f32 %v7068, %v7097
  %v7108 = vmul.f32 %v7072, %v7097
  %v7109 = vmul.f32 %v7076, %v7097
  %v7110 = vmul.f32 %v7080, %v7097
  %v7111 = vmul.f32 %v7084, %v7097
  %v7112 = vmul.f32 %v7088, %v7097
  %v7113 = vmul.f32 %v7092, %v7097
  %v7114 = vadd.f32 %v7014, %v7098
  %v7115 = vadd.f32 %v7015, %v7099
  %v7116 = vadd.f32 %v7016, %v7100
  %v7117 = vadd.f32 %v7017, %v7101
  %v7118 = vadd.f32 %v7018, %v7102
  %v7119 = vadd.f32 %v7019, %v7103
  %v7120 = vadd.f32 %v7020, %v7104
  %v7121 = vadd.f32 %v7021, %v7105
  %v7122 = vadd.f32 %v7022, %v7106
  %v7123 = vadd.f32 %v7023, %v7107
  %v7124 = vadd.f32 %v7024, %v7108
  %v7125 = vadd.f32 %v7025, %v7109
  %v7126 = vadd.f32 %v7026, %v7110
  %v7127 = vadd.f32 %v7027, %v7111
  %v7128 = vadd.f32 %v7028, %v7112
  %v7129 = vadd.f32 %v7029, %v7113
  %7130 = vset.pattern.permute.xlu0 2
  %7131 = vperm.xlu0 %7130, %v6894
  %v7132 = vpop.permute.xlu0 %7131
  %7134 = vset.pattern.permute.xlu0 2
  %7135 = vperm.xlu0 %7134, %v6895
  %v7136 = vpop.permute.xlu0 %7135
  %7138 = vset.pattern.permute.xlu0 2
  %7139 = vperm.xlu0 %7138, %v6896
  %v7140 = vpop.permute.xlu0 %7139
  %7142 = vset.pattern.permute.xlu0 2
  %7143 = vperm.xlu0 %7142, %v6897
  %v7144 = vpop.permute.xlu0 %7143
  %7146 = vset.pattern.permute.xlu0 2
  %7147 = vperm.xlu0 %7146, %v6898
  %v7148 = vpop.permute.xlu0 %7147
  %7150 = vset.pattern.permute.xlu0 2
  %7151 = vperm.xlu0 %7150, %v6899
  %v7152 = vpop.permute.xlu0 %7151
  %7154 = vset.pattern.permute.xlu0 2
  %7155 = vperm.xlu0 %7154, %v6900
  %v7156 = vpop.permute.xlu0 %7155
  %7158 = vset.pattern.permute.xlu0 2
  %7159 = vperm.xlu0 %7158, %v6901
  %v7160 = vpop.permute.xlu0 %7159
  %7162 = vset.pattern.permute.xlu0 2
  %7163 = vperm.xlu0 %7162, %v6902
  %v7164 = vpop.permute.xlu0 %7163
  %7166 = vset.pattern.permute.xlu0 2
  %7167 = vperm.xlu0 %7166, %v6903
  %v7168 = vpop.permute.xlu0 %7167
  %7170 = vset.pattern.permute.xlu0 2
  %7171 = vperm.xlu0 %7170, %v6904
  %v7172 = vpop.permute.xlu0 %7171
  %7174 = vset.pattern.permute.xlu0 2
  %7175 = vperm.xlu0 %7174, %v6905
  %v7176 = vpop.permute.xlu0 %7175
  %7178 = vset.pattern.permute.xlu0 2
  %7179 = vperm.xlu0 %7178, %v6906
  %v7180 = vpop.permute.xlu0 %7179
  %7182 = vset.pattern.permute.xlu0 2
  %7183 = vperm.xlu0 %7182, %v6907
  %v7184 = vpop.permute.xlu0 %7183
  %7186 = vset.pattern.permute.xlu0 2
  %7187 = vperm.xlu0 %7186, %v6908
  %v7188 = vpop.permute.xlu0 %7187
  %7190 = vset.pattern.permute.xlu0 2
  %7191 = vperm.xlu0 %7190, %v6909
  %v7192 = vpop.permute.xlu0 %7191
  %v7194 = vlaneseq
  %v7195 = vshrl.u32 %v7194, 7
  %v7196 = vsub.s32 2, %v7195
  %v7197 = vrot.slane %v6910, %v7196
  %v7198 = vmul.f32 %v7132, %v7197
  %v7199 = vmul.f32 %v7136, %v7197
  %v7200 = vmul.f32 %v7140, %v7197
  %v7201 = vmul.f32 %v7144, %v7197
  %v7202 = vmul.f32 %v7148, %v7197
  %v7203 = vmul.f32 %v7152, %v7197
  %v7204 = vmul.f32 %v7156, %v7197
  %v7205 = vmul.f32 %v7160, %v7197
  %v7206 = vmul.f32 %v7164, %v7197
  %v7207 = vmul.f32 %v7168, %v7197
  %v7208 = vmul.f32 %v7172, %v7197
  %v7209 = vmul.f32 %v7176, %v7197
  %v7210 = vmul.f32 %v7180, %v7197
  %v7211 = vmul.f32 %v7184, %v7197
  %v7212 = vmul.f32 %v7188, %v7197
  %v7213 = vmul.f32 %v7192, %v7197
  %v7214 = vadd.f32 %v7114, %v7198
  %v7215 = vadd.f32 %v7115, %v7199
  %v7216 = vadd.f32 %v7116, %v7200
  %v7217 = vadd.f32 %v7117, %v7201
  %v7218 = vadd.f32 %v7118, %v7202
  %v7219 = vadd.f32 %v7119, %v7203
  %v7220 = vadd.f32 %v7120, %v7204
  %v7221 = vadd.f32 %v7121, %v7205
  %v7222 = vadd.f32 %v7122, %v7206
  %v7223 = vadd.f32 %v7123, %v7207
  %v7224 = vadd.f32 %v7124, %v7208
  %v7225 = vadd.f32 %v7125, %v7209
  %v7226 = vadd.f32 %v7126, %v7210
  %v7227 = vadd.f32 %v7127, %v7211
  %v7228 = vadd.f32 %v7128, %v7212
  %v7229 = vadd.f32 %v7129, %v7213
  %7230 = vset.pattern.permute.xlu0 3
  %7231 = vperm.xlu0 %7230, %v6894
  %v7232 = vpop.permute.xlu0 %7231
  %7234 = vset.pattern.permute.xlu0 3
  %7235 = vperm.xlu0 %7234, %v6895
  %v7236 = vpop.permute.xlu0 %7235
  %7238 = vset.pattern.permute.xlu0 3
  %7239 = vperm.xlu0 %7238, %v6896
  %v7240 = vpop.permute.xlu0 %7239
  %7242 = vset.pattern.permute.xlu0 3
  %7243 = vperm.xlu0 %7242, %v6897
  %v7244 = vpop.permute.xlu0 %7243
  %7246 = vset.pattern.permute.xlu0 3
  %7247 = vperm.xlu0 %7246, %v6898
  %v7248 = vpop.permute.xlu0 %7247
  %7250 = vset.pattern.permute.xlu0 3
  %7251 = vperm.xlu0 %7250, %v6899
  %v7252 = vpop.permute.xlu0 %7251
  %7254 = vset.pattern.permute.xlu0 3
  %7255 = vperm.xlu0 %7254, %v6900
  %v7256 = vpop.permute.xlu0 %7255
  %7258 = vset.pattern.permute.xlu0 3
  %7259 = vperm.xlu0 %7258, %v6901
  %v7260 = vpop.permute.xlu0 %7259
  %7262 = vset.pattern.permute.xlu0 3
  %7263 = vperm.xlu0 %7262, %v6902
  %v7264 = vpop.permute.xlu0 %7263
  %7266 = vset.pattern.permute.xlu0 3
  %7267 = vperm.xlu0 %7266, %v6903
  %v7268 = vpop.permute.xlu0 %7267
  %7270 = vset.pattern.permute.xlu0 3
  %7271 = vperm.xlu0 %7270, %v6904
  %v7272 = vpop.permute.xlu0 %7271
  %7274 = vset.pattern.permute.xlu0 3
  %7275 = vperm.xlu0 %7274, %v6905
  %v7276 = vpop.permute.xlu0 %7275
  %7278 = vset.pattern.permute.xlu0 3
  %7279 = vperm.xlu0 %7278, %v6906
  %v7280 = vpop.permute.xlu0 %7279
  %7282 = vset.pattern.permute.xlu0 3
  %7283 = vperm.xlu0 %7282, %v6907
  %v7284 = vpop.permute.xlu0 %7283
  %7286 = vset.pattern.permute.xlu0 3
  %7287 = vperm.xlu0 %7286, %v6908
  %v7288 = vpop.permute.xlu0 %7287
  %7290 = vset.pattern.permute.xlu0 3
  %7291 = vperm.xlu0 %7290, %v6909
  %v7292 = vpop.permute.xlu0 %7291
  %v7294 = vlaneseq
  %v7295 = vshrl.u32 %v7294, 7
  %v7296 = vsub.s32 3, %v7295
  %v7297 = vrot.slane %v6910, %v7296
  %v7298 = vmul.f32 %v7232, %v7297
  %v7299 = vmul.f32 %v7236, %v7297
  %v7300 = vmul.f32 %v7240, %v7297
  %v7301 = vmul.f32 %v7244, %v7297
  %v7302 = vmul.f32 %v7248, %v7297
  %v7303 = vmul.f32 %v7252, %v7297
  %v7304 = vmul.f32 %v7256, %v7297
  %v7305 = vmul.f32 %v7260, %v7297
  %v7306 = vmul.f32 %v7264, %v7297
  %v7307 = vmul.f32 %v7268, %v7297
  %v7308 = vmul.f32 %v7272, %v7297
  %v7309 = vmul.f32 %v7276, %v7297
  %v7310 = vmul.f32 %v7280, %v7297
  %v7311 = vmul.f32 %v7284, %v7297
  %v7312 = vmul.f32 %v7288, %v7297
  %v7313 = vmul.f32 %v7292, %v7297
  %v7314 = vadd.f32 %v7214, %v7298
  %v7315 = vadd.f32 %v7215, %v7299
  %v7316 = vadd.f32 %v7216, %v7300
  %v7317 = vadd.f32 %v7217, %v7301
  %v7318 = vadd.f32 %v7218, %v7302
  %v7319 = vadd.f32 %v7219, %v7303
  %v7320 = vadd.f32 %v7220, %v7304
  %v7321 = vadd.f32 %v7221, %v7305
  %v7322 = vadd.f32 %v7222, %v7306
  %v7323 = vadd.f32 %v7223, %v7307
  %v7324 = vadd.f32 %v7224, %v7308
  %v7325 = vadd.f32 %v7225, %v7309
  %v7326 = vadd.f32 %v7226, %v7310
  %v7327 = vadd.f32 %v7227, %v7311
  %v7328 = vadd.f32 %v7228, %v7312
  %v7329 = vadd.f32 %v7229, %v7313
  %7330 = vset.pattern.permute.xlu0 4
  %7331 = vperm.xlu0 %7330, %v6894
  %v7332 = vpop.permute.xlu0 %7331
  %7334 = vset.pattern.permute.xlu0 4
  %7335 = vperm.xlu0 %7334, %v6895
  %v7336 = vpop.permute.xlu0 %7335
  %7338 = vset.pattern.permute.xlu0 4
  %7339 = vperm.xlu0 %7338, %v6896
  %v7340 = vpop.permute.xlu0 %7339
  %7342 = vset.pattern.permute.xlu0 4
  %7343 = vperm.xlu0 %7342, %v6897
  %v7344 = vpop.permute.xlu0 %7343
  %7346 = vset.pattern.permute.xlu0 4
  %7347 = vperm.xlu0 %7346, %v6898
  %v7348 = vpop.permute.xlu0 %7347
  %7350 = vset.pattern.permute.xlu0 4
  %7351 = vperm.xlu0 %7350, %v6899
  %v7352 = vpop.permute.xlu0 %7351
  %7354 = vset.pattern.permute.xlu0 4
  %7355 = vperm.xlu0 %7354, %v6900
  %v7356 = vpop.permute.xlu0 %7355
  %7358 = vset.pattern.permute.xlu0 4
  %7359 = vperm.xlu0 %7358, %v6901
  %v7360 = vpop.permute.xlu0 %7359
  %7362 = vset.pattern.permute.xlu0 4
  %7363 = vperm.xlu0 %7362, %v6902
  %v7364 = vpop.permute.xlu0 %7363
  %7366 = vset.pattern.permute.xlu0 4
  %7367 = vperm.xlu0 %7366, %v6903
  %v7368 = vpop.permute.xlu0 %7367
  %7370 = vset.pattern.permute.xlu0 4
  %7371 = vperm.xlu0 %7370, %v6904
  %v7372 = vpop.permute.xlu0 %7371
  %7374 = vset.pattern.permute.xlu0 4
  %7375 = vperm.xlu0 %7374, %v6905
  %v7376 = vpop.permute.xlu0 %7375
  %7378 = vset.pattern.permute.xlu0 4
  %7379 = vperm.xlu0 %7378, %v6906
  %v7380 = vpop.permute.xlu0 %7379
  %7382 = vset.pattern.permute.xlu0 4
  %7383 = vperm.xlu0 %7382, %v6907
  %v7384 = vpop.permute.xlu0 %7383
  %7386 = vset.pattern.permute.xlu0 4
  %7387 = vperm.xlu0 %7386, %v6908
  %v7388 = vpop.permute.xlu0 %7387
  %7390 = vset.pattern.permute.xlu0 4
  %7391 = vperm.xlu0 %7390, %v6909
  %v7392 = vpop.permute.xlu0 %7391
  %v7394 = vlaneseq
  %v7395 = vshrl.u32 %v7394, 7
  %v7396 = vsub.s32 4, %v7395
  %v7397 = vrot.slane %v6910, %v7396
  %v7398 = vmul.f32 %v7332, %v7397
  %v7399 = vmul.f32 %v7336, %v7397
  %v7400 = vmul.f32 %v7340, %v7397
  %v7401 = vmul.f32 %v7344, %v7397
  %v7402 = vmul.f32 %v7348, %v7397
  %v7403 = vmul.f32 %v7352, %v7397
  %v7404 = vmul.f32 %v7356, %v7397
  %v7405 = vmul.f32 %v7360, %v7397
  %v7406 = vmul.f32 %v7364, %v7397
  %v7407 = vmul.f32 %v7368, %v7397
  %v7408 = vmul.f32 %v7372, %v7397
  %v7409 = vmul.f32 %v7376, %v7397
  %v7410 = vmul.f32 %v7380, %v7397
  %v7411 = vmul.f32 %v7384, %v7397
  %v7412 = vmul.f32 %v7388, %v7397
  %v7413 = vmul.f32 %v7392, %v7397
  %v7414 = vadd.f32 %v7314, %v7398
  %v7415 = vadd.f32 %v7315, %v7399
  %v7416 = vadd.f32 %v7316, %v7400
  %v7417 = vadd.f32 %v7317, %v7401
  %v7418 = vadd.f32 %v7318, %v7402
  %v7419 = vadd.f32 %v7319, %v7403
  %v7420 = vadd.f32 %v7320, %v7404
  %v7421 = vadd.f32 %v7321, %v7405
  %v7422 = vadd.f32 %v7322, %v7406
  %v7423 = vadd.f32 %v7323, %v7407
  %v7424 = vadd.f32 %v7324, %v7408
  %v7425 = vadd.f32 %v7325, %v7409
  %v7426 = vadd.f32 %v7326, %v7410
  %v7427 = vadd.f32 %v7327, %v7411
  %v7428 = vadd.f32 %v7328, %v7412
  %v7429 = vadd.f32 %v7329, %v7413
  %7430 = vset.pattern.permute.xlu0 5
  %7431 = vperm.xlu0 %7430, %v6894
  %v7432 = vpop.permute.xlu0 %7431
  %7434 = vset.pattern.permute.xlu0 5
  %7435 = vperm.xlu0 %7434, %v6895
  %v7436 = vpop.permute.xlu0 %7435
  %7438 = vset.pattern.permute.xlu0 5
  %7439 = vperm.xlu0 %7438, %v6896
  %v7440 = vpop.permute.xlu0 %7439
  %7442 = vset.pattern.permute.xlu0 5
  %7443 = vperm.xlu0 %7442, %v6897
  %v7444 = vpop.permute.xlu0 %7443
  %7446 = vset.pattern.permute.xlu0 5
  %7447 = vperm.xlu0 %7446, %v6898
  %v7448 = vpop.permute.xlu0 %7447
  %7450 = vset.pattern.permute.xlu0 5
  %7451 = vperm.xlu0 %7450, %v6899
  %v7452 = vpop.permute.xlu0 %7451
  %7454 = vset.pattern.permute.xlu0 5
  %7455 = vperm.xlu0 %7454, %v6900
  %v7456 = vpop.permute.xlu0 %7455
  %7458 = vset.pattern.permute.xlu0 5
  %7459 = vperm.xlu0 %7458, %v6901
  %v7460 = vpop.permute.xlu0 %7459
  %7462 = vset.pattern.permute.xlu0 5
  %7463 = vperm.xlu0 %7462, %v6902
  %v7464 = vpop.permute.xlu0 %7463
  %7466 = vset.pattern.permute.xlu0 5
  %7467 = vperm.xlu0 %7466, %v6903
  %v7468 = vpop.permute.xlu0 %7467
  %7470 = vset.pattern.permute.xlu0 5
  %7471 = vperm.xlu0 %7470, %v6904
  %v7472 = vpop.permute.xlu0 %7471
  %7474 = vset.pattern.permute.xlu0 5
  %7475 = vperm.xlu0 %7474, %v6905
  %v7476 = vpop.permute.xlu0 %7475
  %7478 = vset.pattern.permute.xlu0 5
  %7479 = vperm.xlu0 %7478, %v6906
  %v7480 = vpop.permute.xlu0 %7479
  %7482 = vset.pattern.permute.xlu0 5
  %7483 = vperm.xlu0 %7482, %v6907
  %v7484 = vpop.permute.xlu0 %7483
  %7486 = vset.pattern.permute.xlu0 5
  %7487 = vperm.xlu0 %7486, %v6908
  %v7488 = vpop.permute.xlu0 %7487
  %7490 = vset.pattern.permute.xlu0 5
  %7491 = vperm.xlu0 %7490, %v6909
  %v7492 = vpop.permute.xlu0 %7491
  %v7494 = vlaneseq
  %v7495 = vshrl.u32 %v7494, 7
  %v7496 = vsub.s32 5, %v7495
  %v7497 = vrot.slane %v6910, %v7496
  %v7498 = vmul.f32 %v7432, %v7497
  %v7499 = vmul.f32 %v7436, %v7497
  %v7500 = vmul.f32 %v7440, %v7497
  %v7501 = vmul.f32 %v7444, %v7497
  %v7502 = vmul.f32 %v7448, %v7497
  %v7503 = vmul.f32 %v7452, %v7497
  %v7504 = vmul.f32 %v7456, %v7497
  %v7505 = vmul.f32 %v7460, %v7497
  %v7506 = vmul.f32 %v7464, %v7497
  %v7507 = vmul.f32 %v7468, %v7497
  %v7508 = vmul.f32 %v7472, %v7497
  %v7509 = vmul.f32 %v7476, %v7497
  %v7510 = vmul.f32 %v7480, %v7497
  %v7511 = vmul.f32 %v7484, %v7497
  %v7512 = vmul.f32 %v7488, %v7497
  %v7513 = vmul.f32 %v7492, %v7497
  %v7514 = vadd.f32 %v7414, %v7498
  %v7515 = vadd.f32 %v7415, %v7499
  %v7516 = vadd.f32 %v7416, %v7500
  %v7517 = vadd.f32 %v7417, %v7501
  %v7518 = vadd.f32 %v7418, %v7502
  %v7519 = vadd.f32 %v7419, %v7503
  %v7520 = vadd.f32 %v7420, %v7504
  %v7521 = vadd.f32 %v7421, %v7505
  %v7522 = vadd.f32 %v7422, %v7506
  %v7523 = vadd.f32 %v7423, %v7507
  %v7524 = vadd.f32 %v7424, %v7508
  %v7525 = vadd.f32 %v7425, %v7509
  %v7526 = vadd.f32 %v7426, %v7510
  %v7527 = vadd.f32 %v7427, %v7511
  %v7528 = vadd.f32 %v7428, %v7512
  %v7529 = vadd.f32 %v7429, %v7513
  %7530 = vset.pattern.permute.xlu0 6
  %7531 = vperm.xlu0 %7530, %v6894
  %v7532 = vpop.permute.xlu0 %7531
  %7534 = vset.pattern.permute.xlu0 6
  %7535 = vperm.xlu0 %7534, %v6895
  %v7536 = vpop.permute.xlu0 %7535
  %7538 = vset.pattern.permute.xlu0 6
  %7539 = vperm.xlu0 %7538, %v6896
  %v7540 = vpop.permute.xlu0 %7539
  %7542 = vset.pattern.permute.xlu0 6
  %7543 = vperm.xlu0 %7542, %v6897
  %v7544 = vpop.permute.xlu0 %7543
  %7546 = vset.pattern.permute.xlu0 6
  %7547 = vperm.xlu0 %7546, %v6898
  %v7548 = vpop.permute.xlu0 %7547
  %7550 = vset.pattern.permute.xlu0 6
  %7551 = vperm.xlu0 %7550, %v6899
  %v7552 = vpop.permute.xlu0 %7551
  %7554 = vset.pattern.permute.xlu0 6
  %7555 = vperm.xlu0 %7554, %v6900
  %v7556 = vpop.permute.xlu0 %7555
  %7558 = vset.pattern.permute.xlu0 6
  %7559 = vperm.xlu0 %7558, %v6901
  %v7560 = vpop.permute.xlu0 %7559
  %7562 = vset.pattern.permute.xlu0 6
  %7563 = vperm.xlu0 %7562, %v6902
  %v7564 = vpop.permute.xlu0 %7563
  %7566 = vset.pattern.permute.xlu0 6
  %7567 = vperm.xlu0 %7566, %v6903
  %v7568 = vpop.permute.xlu0 %7567
  %7570 = vset.pattern.permute.xlu0 6
  %7571 = vperm.xlu0 %7570, %v6904
  %v7572 = vpop.permute.xlu0 %7571
  %7574 = vset.pattern.permute.xlu0 6
  %7575 = vperm.xlu0 %7574, %v6905
  %v7576 = vpop.permute.xlu0 %7575
  %7578 = vset.pattern.permute.xlu0 6
  %7579 = vperm.xlu0 %7578, %v6906
  %v7580 = vpop.permute.xlu0 %7579
  %7582 = vset.pattern.permute.xlu0 6
  %7583 = vperm.xlu0 %7582, %v6907
  %v7584 = vpop.permute.xlu0 %7583
  %7586 = vset.pattern.permute.xlu0 6
  %7587 = vperm.xlu0 %7586, %v6908
  %v7588 = vpop.permute.xlu0 %7587
  %7590 = vset.pattern.permute.xlu0 6
  %7591 = vperm.xlu0 %7590, %v6909
  %v7592 = vpop.permute.xlu0 %7591
  %v7594 = vlaneseq
  %v7595 = vshrl.u32 %v7594, 7
  %v7596 = vsub.s32 6, %v7595
  %v7597 = vrot.slane %v6910, %v7596
  %v7598 = vmul.f32 %v7532, %v7597
  %v7599 = vmul.f32 %v7536, %v7597
  %v7600 = vmul.f32 %v7540, %v7597
  %v7601 = vmul.f32 %v7544, %v7597
  %v7602 = vmul.f32 %v7548, %v7597
  %v7603 = vmul.f32 %v7552, %v7597
  %v7604 = vmul.f32 %v7556, %v7597
  %v7605 = vmul.f32 %v7560, %v7597
  %v7606 = vmul.f32 %v7564, %v7597
  %v7607 = vmul.f32 %v7568, %v7597
  %v7608 = vmul.f32 %v7572, %v7597
  %v7609 = vmul.f32 %v7576, %v7597
  %v7610 = vmul.f32 %v7580, %v7597
  %v7611 = vmul.f32 %v7584, %v7597
  %v7612 = vmul.f32 %v7588, %v7597
  %v7613 = vmul.f32 %v7592, %v7597
  %v7614 = vadd.f32 %v7514, %v7598
  %v7615 = vadd.f32 %v7515, %v7599
  %v7616 = vadd.f32 %v7516, %v7600
  %v7617 = vadd.f32 %v7517, %v7601
  %v7618 = vadd.f32 %v7518, %v7602
  %v7619 = vadd.f32 %v7519, %v7603
  %v7620 = vadd.f32 %v7520, %v7604
  %v7621 = vadd.f32 %v7521, %v7605
  %v7622 = vadd.f32 %v7522, %v7606
  %v7623 = vadd.f32 %v7523, %v7607
  %v7624 = vadd.f32 %v7524, %v7608
  %v7625 = vadd.f32 %v7525, %v7609
  %v7626 = vadd.f32 %v7526, %v7610
  %v7627 = vadd.f32 %v7527, %v7611
  %v7628 = vadd.f32 %v7528, %v7612
  %v7629 = vadd.f32 %v7529, %v7613
  %7630 = vset.pattern.permute.xlu0 7
  %7631 = vperm.xlu0 %7630, %v6894
  %v7632 = vpop.permute.xlu0 %7631
  %7634 = vset.pattern.permute.xlu0 7
  %7635 = vperm.xlu0 %7634, %v6895
  %v7636 = vpop.permute.xlu0 %7635
  %7638 = vset.pattern.permute.xlu0 7
  %7639 = vperm.xlu0 %7638, %v6896
  %v7640 = vpop.permute.xlu0 %7639
  %7642 = vset.pattern.permute.xlu0 7
  %7643 = vperm.xlu0 %7642, %v6897
  %v7644 = vpop.permute.xlu0 %7643
  %7646 = vset.pattern.permute.xlu0 7
  %7647 = vperm.xlu0 %7646, %v6898
  %v7648 = vpop.permute.xlu0 %7647
  %7650 = vset.pattern.permute.xlu0 7
  %7651 = vperm.xlu0 %7650, %v6899
  %v7652 = vpop.permute.xlu0 %7651
  %7654 = vset.pattern.permute.xlu0 7
  %7655 = vperm.xlu0 %7654, %v6900
  %v7656 = vpop.permute.xlu0 %7655
  %7658 = vset.pattern.permute.xlu0 7
  %7659 = vperm.xlu0 %7658, %v6901
  %v7660 = vpop.permute.xlu0 %7659
  %7662 = vset.pattern.permute.xlu0 7
  %7663 = vperm.xlu0 %7662, %v6902
  %v7664 = vpop.permute.xlu0 %7663
  %7666 = vset.pattern.permute.xlu0 7
  %7667 = vperm.xlu0 %7666, %v6903
  %v7668 = vpop.permute.xlu0 %7667
  %7670 = vset.pattern.permute.xlu0 7
  %7671 = vperm.xlu0 %7670, %v6904
  %v7672 = vpop.permute.xlu0 %7671
  %7674 = vset.pattern.permute.xlu0 7
  %7675 = vperm.xlu0 %7674, %v6905
  %v7676 = vpop.permute.xlu0 %7675
  %7678 = vset.pattern.permute.xlu0 7
  %7679 = vperm.xlu0 %7678, %v6906
  %v7680 = vpop.permute.xlu0 %7679
  %7682 = vset.pattern.permute.xlu0 7
  %7683 = vperm.xlu0 %7682, %v6907
  %v7684 = vpop.permute.xlu0 %7683
  %7686 = vset.pattern.permute.xlu0 7
  %7687 = vperm.xlu0 %7686, %v6908
  %v7688 = vpop.permute.xlu0 %7687
  %7690 = vset.pattern.permute.xlu0 7
  %7691 = vperm.xlu0 %7690, %v6909
  %v7692 = vpop.permute.xlu0 %7691
  %v7694 = vlaneseq
  %v7695 = vshrl.u32 %v7694, 7
  %v7696 = vsub.s32 7, %v7695
  %v7697 = vrot.slane %v6910, %v7696
  %v7698 = vmul.f32 %v7632, %v7697
  %v7699 = vmul.f32 %v7636, %v7697
  %v7700 = vmul.f32 %v7640, %v7697
  %v7701 = vmul.f32 %v7644, %v7697
  %v7702 = vmul.f32 %v7648, %v7697
  %v7703 = vmul.f32 %v7652, %v7697
  %v7704 = vmul.f32 %v7656, %v7697
  %v7705 = vmul.f32 %v7660, %v7697
  %v7706 = vmul.f32 %v7664, %v7697
  %v7707 = vmul.f32 %v7668, %v7697
  %v7708 = vmul.f32 %v7672, %v7697
  %v7709 = vmul.f32 %v7676, %v7697
  %v7710 = vmul.f32 %v7680, %v7697
  %v7711 = vmul.f32 %v7684, %v7697
  %v7712 = vmul.f32 %v7688, %v7697
  %v7713 = vmul.f32 %v7692, %v7697
  %v7714 = vadd.f32 %v7614, %v7698
  %v7715 = vadd.f32 %v7615, %v7699
  %v7716 = vadd.f32 %v7616, %v7700
  %v7717 = vadd.f32 %v7617, %v7701
  %v7718 = vadd.f32 %v7618, %v7702
  %v7719 = vadd.f32 %v7619, %v7703
  %v7720 = vadd.f32 %v7620, %v7704
  %v7721 = vadd.f32 %v7621, %v7705
  %v7722 = vadd.f32 %v7622, %v7706
  %v7723 = vadd.f32 %v7623, %v7707
  %v7724 = vadd.f32 %v7624, %v7708
  %v7725 = vadd.f32 %v7625, %v7709
  %v7726 = vadd.f32 %v7626, %v7710
  %v7727 = vadd.f32 %v7627, %v7711
  %v7728 = vadd.f32 %v7628, %v7712
  %v7729 = vadd.f32 %v7629, %v7713
  %v7731 = vlaneseq
  %v7732 = vshrl.u32 %v7731, 7
  %v7733 = vsub.s32 0, %v7732
  %v7734 = vrot.slane %v6912, %v7733
  %v7736 = vadd.f32 %v7714, %v7734
  %v7737 = vadd.f32 %v7715, %v7734
  %v7738 = vadd.f32 %v7716, %v7734
  %v7739 = vadd.f32 %v7717, %v7734
  %v7740 = vadd.f32 %v7718, %v7734
  %v7741 = vadd.f32 %v7719, %v7734
  %v7742 = vadd.f32 %v7720, %v7734
  %v7743 = vadd.f32 %v7721, %v7734
  %v7744 = vadd.f32 %v7722, %v7734
  %v7745 = vadd.f32 %v7723, %v7734
  %v7746 = vadd.f32 %v7724, %v7734
  %v7747 = vadd.f32 %v7725, %v7734
  %v7748 = vadd.f32 %v7726, %v7734
  %v7749 = vadd.f32 %v7727, %v7734
  %v7750 = vadd.f32 %v7728, %v7734
  %v7751 = vadd.f32 %v7729, %v7734
  %vm7752 = vcmp.ge.f32.partialorder %v7736, 0.0
  %vm7753 = vcmp.ge.f32.partialorder %v7737, 0.0
  %vm7754 = vcmp.ge.f32.partialorder %v7738, 0.0
  %vm7755 = vcmp.ge.f32.partialorder %v7739, 0.0
  %vm7756 = vcmp.ge.f32.partialorder %v7740, 0.0
  %vm7757 = vcmp.ge.f32.partialorder %v7741, 0.0
  %vm7758 = vcmp.ge.f32.partialorder %v7742, 0.0
  %vm7759 = vcmp.ge.f32.partialorder %v7743, 0.0
  %vm7760 = vcmp.ge.f32.partialorder %v7744, 0.0
  %vm7761 = vcmp.ge.f32.partialorder %v7745, 0.0
  %vm7762 = vcmp.ge.f32.partialorder %v7746, 0.0
  %vm7763 = vcmp.ge.f32.partialorder %v7747, 0.0
  %vm7764 = vcmp.ge.f32.partialorder %v7748, 0.0
  %vm7765 = vcmp.ge.f32.partialorder %v7749, 0.0
  %vm7766 = vcmp.ge.f32.partialorder %v7750, 0.0
  %vm7767 = vcmp.ge.f32.partialorder %v7751, 0.0
  %v7769 = vlaneseq
  %v7770 = vshrl.u32 %v7769, 7
  %v7771 = vsub.s32 0, %v7770
  %v7772 = vrot.slane %v6913, %v7771
  %v7774 = vmul.f32 %v7772, %v7736
  %v7775 = vmul.f32 %v7772, %v7737
  %v7776 = vmul.f32 %v7772, %v7738
  %v7777 = vmul.f32 %v7772, %v7739
  %v7778 = vmul.f32 %v7772, %v7740
  %v7779 = vmul.f32 %v7772, %v7741
  %v7780 = vmul.f32 %v7772, %v7742
  %v7781 = vmul.f32 %v7772, %v7743
  %v7782 = vmul.f32 %v7772, %v7744
  %v7783 = vmul.f32 %v7772, %v7745
  %v7784 = vmul.f32 %v7772, %v7746
  %v7785 = vmul.f32 %v7772, %v7747
  %v7786 = vmul.f32 %v7772, %v7748
  %v7787 = vmul.f32 %v7772, %v7749
  %v7788 = vmul.f32 %v7772, %v7750
  %v7789 = vmul.f32 %v7772, %v7751
  %v7790 = vsel %vm7752, %v7736, %v7774
  %v7791 = vsel %vm7753, %v7737, %v7775
  %v7792 = vsel %vm7754, %v7738, %v7776
  %v7793 = vsel %vm7755, %v7739, %v7777
  %v7794 = vsel %vm7756, %v7740, %v7778
  %v7795 = vsel %vm7757, %v7741, %v7779
  %v7796 = vsel %vm7758, %v7742, %v7780
  %v7797 = vsel %vm7759, %v7743, %v7781
  %v7798 = vsel %vm7760, %v7744, %v7782
  %v7799 = vsel %vm7761, %v7745, %v7783
  %v7800 = vsel %vm7762, %v7746, %v7784
  %v7801 = vsel %vm7763, %v7747, %v7785
  %v7802 = vsel %vm7764, %v7748, %v7786
  %v7803 = vsel %vm7765, %v7749, %v7787
  %v7804 = vsel %vm7766, %v7750, %v7788
  %v7805 = vsel %vm7767, %v7751, %v7789
  %v7806 = vlaneseq
  %v7807 = vshrl.u32 %v7806, 7
  %v7808 = vsub.s32 0, %v7807
  %v7809 = vrot.slane %v6911, %v7808
  %v7810 = vmul.f32 %v6917, %v7809
  %v7811 = vmul.f32 %v6922, %v7809
  %v7812 = vmul.f32 %v6927, %v7809
  %v7813 = vmul.f32 %v6932, %v7809
  %v7814 = vmul.f32 %v6937, %v7809
  %v7815 = vmul.f32 %v6942, %v7809
  %v7816 = vmul.f32 %v6947, %v7809
  %v7817 = vmul.f32 %v6952, %v7809
  %v7818 = vmul.f32 %v6957, %v7809
  %v7819 = vmul.f32 %v6962, %v7809
  %v7820 = vmul.f32 %v6967, %v7809
  %v7821 = vmul.f32 %v6972, %v7809
  %v7822 = vmul.f32 %v6977, %v7809
  %v7823 = vmul.f32 %v6982, %v7809
  %v7824 = vmul.f32 %v6987, %v7809
  %v7825 = vmul.f32 %v6992, %v7809
  %v7826 = vadd.f32 %v7810, 0.0
  %v7827 = vadd.f32 %v7811, 0.0
  %v7828 = vadd.f32 %v7812, 0.0
  %v7829 = vadd.f32 %v7813, 0.0
  %v7830 = vadd.f32 %v7814, 0.0
  %v7831 = vadd.f32 %v7815, 0.0
  %v7832 = vadd.f32 %v7816, 0.0
  %v7833 = vadd.f32 %v7817, 0.0
  %v7834 = vadd.f32 %v7818, 0.0
  %v7835 = vadd.f32 %v7819, 0.0
  %v7836 = vadd.f32 %v7820, 0.0
  %v7837 = vadd.f32 %v7821, 0.0
  %v7838 = vadd.f32 %v7822, 0.0
  %v7839 = vadd.f32 %v7823, 0.0
  %v7840 = vadd.f32 %v7824, 0.0
  %v7841 = vadd.f32 %v7825, 0.0
  %v7842 = vlaneseq
  %v7843 = vshrl.u32 %v7842, 7
  %v7844 = vsub.s32 1, %v7843
  %v7845 = vrot.slane %v6911, %v7844
  %v7846 = vmul.f32 %v7032, %v7845
  %v7847 = vmul.f32 %v7036, %v7845
  %v7848 = vmul.f32 %v7040, %v7845
  %v7849 = vmul.f32 %v7044, %v7845
  %v7850 = vmul.f32 %v7048, %v7845
  %v7851 = vmul.f32 %v7052, %v7845
  %v7852 = vmul.f32 %v7056, %v7845
  %v7853 = vmul.f32 %v7060, %v7845
  %v7854 = vmul.f32 %v7064, %v7845
  %v7855 = vmul.f32 %v7068, %v7845
  %v7856 = vmul.f32 %v7072, %v7845
  %v7857 = vmul.f32 %v7076, %v7845
  %v7858 = vmul.f32 %v7080, %v7845
  %v7859 = vmul.f32 %v7084, %v7845
  %v7860 = vmul.f32 %v7088, %v7845
  %v7861 = vmul.f32 %v7092, %v7845
  %v7862 = vadd.f32 %v7826, %v7846
  %v7863 = vadd.f32 %v7827, %v7847
  %v7864 = vadd.f32 %v7828, %v7848
  %v7865 = vadd.f32 %v7829, %v7849
  %v7866 = vadd.f32 %v7830, %v7850
  %v7867 = vadd.f32 %v7831, %v7851
  %v7868 = vadd.f32 %v7832, %v7852
  %v7869 = vadd.f32 %v7833, %v7853
  %v7870 = vadd.f32 %v7834, %v7854
  %v7871 = vadd.f32 %v7835, %v7855
  %v7872 = vadd.f32 %v7836, %v7856
  %v7873 = vadd.f32 %v7837, %v7857
  %v7874 = vadd.f32 %v7838, %v7858
  %v7875 = vadd.f32 %v7839, %v7859
  %v7876 = vadd.f32 %v7840, %v7860
  %v7877 = vadd.f32 %v7841, %v7861
  %v7878 = vlaneseq
  %v7879 = vshrl.u32 %v7878, 7
  %v7880 = vsub.s32 2, %v7879
  %v7881 = vrot.slane %v6911, %v7880
  %v7882 = vmul.f32 %v7132, %v7881
  %v7883 = vmul.f32 %v7136, %v7881
  %v7884 = vmul.f32 %v7140, %v7881
  %v7885 = vmul.f32 %v7144, %v7881
  %v7886 = vmul.f32 %v7148, %v7881
  %v7887 = vmul.f32 %v7152, %v7881
  %v7888 = vmul.f32 %v7156, %v7881
  %v7889 = vmul.f32 %v7160, %v7881
  %v7890 = vmul.f32 %v7164, %v7881
  %v7891 = vmul.f32 %v7168, %v7881
  %v7892 = vmul.f32 %v7172, %v7881
  %v7893 = vmul.f32 %v7176, %v7881
  %v7894 = vmul.f32 %v7180, %v7881
  %v7895 = vmul.f32 %v7184, %v7881
  %v7896 = vmul.f32 %v7188, %v7881
  %v7897 = vmul.f32 %v7192, %v7881
  %v7898 = vadd.f32 %v7862, %v7882
  %v7899 = vadd.f32 %v7863, %v7883
  %v7900 = vadd.f32 %v7864, %v7884
  %v7901 = vadd.f32 %v7865, %v7885
  %v7902 = vadd.f32 %v7866, %v7886
  %v7903 = vadd.f32 %v7867, %v7887
  %v7904 = vadd.f32 %v7868, %v7888
  %v7905 = vadd.f32 %v7869, %v7889
  %v7906 = vadd.f32 %v7870, %v7890
  %v7907 = vadd.f32 %v7871, %v7891
  %v7908 = vadd.f32 %v7872, %v7892
  %v7909 = vadd.f32 %v7873, %v7893
  %v7910 = vadd.f32 %v7874, %v7894
  %v7911 = vadd.f32 %v7875, %v7895
  %v7912 = vadd.f32 %v7876, %v7896
  %v7913 = vadd.f32 %v7877, %v7897
  %v7914 = vlaneseq
  %v7915 = vshrl.u32 %v7914, 7
  %v7916 = vsub.s32 3, %v7915
  %v7917 = vrot.slane %v6911, %v7916
  %v7918 = vmul.f32 %v7232, %v7917
  %v7919 = vmul.f32 %v7236, %v7917
  %v7920 = vmul.f32 %v7240, %v7917
  %v7921 = vmul.f32 %v7244, %v7917
  %v7922 = vmul.f32 %v7248, %v7917
  %v7923 = vmul.f32 %v7252, %v7917
  %v7924 = vmul.f32 %v7256, %v7917
  %v7925 = vmul.f32 %v7260, %v7917
  %v7926 = vmul.f32 %v7264, %v7917
  %v7927 = vmul.f32 %v7268, %v7917
  %v7928 = vmul.f32 %v7272, %v7917
  %v7929 = vmul.f32 %v7276, %v7917
  %v7930 = vmul.f32 %v7280, %v7917
  %v7931 = vmul.f32 %v7284, %v7917
  %v7932 = vmul.f32 %v7288, %v7917
  %v7933 = vmul.f32 %v7292, %v7917
  %v7934 = vadd.f32 %v7898, %v7918
  %v7935 = vadd.f32 %v7899, %v7919
  %v7936 = vadd.f32 %v7900, %v7920
  %v7937 = vadd.f32 %v7901, %v7921
  %v7938 = vadd.f32 %v7902, %v7922
  %v7939 = vadd.f32 %v7903, %v7923
  %v7940 = vadd.f32 %v7904, %v7924
  %v7941 = vadd.f32 %v7905, %v7925
  %v7942 = vadd.f32 %v7906, %v7926
  %v7943 = vadd.f32 %v7907, %v7927
  %v7944 = vadd.f32 %v7908, %v7928
  %v7945 = vadd.f32 %v7909, %v7929
  %v7946 = vadd.f32 %v7910, %v7930
  %v7947 = vadd.f32 %v7911, %v7931
  %v7948 = vadd.f32 %v7912, %v7932
  %v7949 = vadd.f32 %v7913, %v7933
  %v7950 = vlaneseq
  %v7951 = vshrl.u32 %v7950, 7
  %v7952 = vsub.s32 4, %v7951
  %v7953 = vrot.slane %v6911, %v7952
  %v7954 = vmul.f32 %v7332, %v7953
  %v7955 = vmul.f32 %v7336, %v7953
  %v7956 = vmul.f32 %v7340, %v7953
  %v7957 = vmul.f32 %v7344, %v7953
  %v7958 = vmul.f32 %v7348, %v7953
  %v7959 = vmul.f32 %v7352, %v7953
  %v7960 = vmul.f32 %v7356, %v7953
  %v7961 = vmul.f32 %v7360, %v7953
  %v7962 = vmul.f32 %v7364, %v7953
  %v7963 = vmul.f32 %v7368, %v7953
  %v7964 = vmul.f32 %v7372, %v7953
  %v7965 = vmul.f32 %v7376, %v7953
  %v7966 = vmul.f32 %v7380, %v7953
  %v7967 = vmul.f32 %v7384, %v7953
  %v7968 = vmul.f32 %v7388, %v7953
  %v7969 = vmul.f32 %v7392, %v7953
  %v7970 = vadd.f32 %v7934, %v7954
  %v7971 = vadd.f32 %v7935, %v7955
  %v7972 = vadd.f32 %v7936, %v7956
  %v7973 = vadd.f32 %v7937, %v7957
  %v7974 = vadd.f32 %v7938, %v7958
  %v7975 = vadd.f32 %v7939, %v7959
  %v7976 = vadd.f32 %v7940, %v7960
  %v7977 = vadd.f32 %v7941, %v7961
  %v7978 = vadd.f32 %v7942, %v7962
  %v7979 = vadd.f32 %v7943, %v7963
  %v7980 = vadd.f32 %v7944, %v7964
  %v7981 = vadd.f32 %v7945, %v7965
  %v7982 = vadd.f32 %v7946, %v7966
  %v7983 = vadd.f32 %v7947, %v7967
  %v7984 = vadd.f32 %v7948, %v7968
  %v7985 = vadd.f32 %v7949, %v7969
  %v7986 = vlaneseq
  %v7987 = vshrl.u32 %v7986, 7
  %v7988 = vsub.s32 5, %v7987
  %v7989 = vrot.slane %v6911, %v7988
  %v7990 = vmul.f32 %v7432, %v7989
  %v7991 = vmul.f32 %v7436, %v7989
  %v7992 = vmul.f32 %v7440, %v7989
  %v7993 = vmul.f32 %v7444, %v7989
  %v7994 = vmul.f32 %v7448, %v7989
  %v7995 = vmul.f32 %v7452, %v7989
  %v7996 = vmul.f32 %v7456, %v7989
  %v7997 = vmul.f32 %v7460, %v7989
  %v7998 = vmul.f32 %v7464, %v7989
  %v7999 = vmul.f32 %v7468, %v7989
  %v8000 = vmul.f32 %v7472, %v7989
  %v8001 = vmul.f32 %v7476, %v7989
  %v8002 = vmul.f32 %v7480, %v7989
  %v8003 = vmul.f32 %v7484, %v7989
  %v8004 = vmul.f32 %v7488, %v7989
  %v8005 = vmul.f32 %v7492, %v7989
  %v8006 = vadd.f32 %v7970, %v7990
  %v8007 = vadd.f32 %v7971, %v7991
  %v8008 = vadd.f32 %v7972, %v7992
  %v8009 = vadd.f32 %v7973, %v7993
  %v8010 = vadd.f32 %v7974, %v7994
  %v8011 = vadd.f32 %v7975, %v7995
  %v8012 = vadd.f32 %v7976, %v7996
  %v8013 = vadd.f32 %v7977, %v7997
  %v8014 = vadd.f32 %v7978, %v7998
  %v8015 = vadd.f32 %v7979, %v7999
  %v8016 = vadd.f32 %v7980, %v8000
  %v8017 = vadd.f32 %v7981, %v8001
  %v8018 = vadd.f32 %v7982, %v8002
  %v8019 = vadd.f32 %v7983, %v8003
  %v8020 = vadd.f32 %v7984, %v8004
  %v8021 = vadd.f32 %v7985, %v8005
  %v8022 = vlaneseq
  %v8023 = vshrl.u32 %v8022, 7
  %v8024 = vsub.s32 6, %v8023
  %v8025 = vrot.slane %v6911, %v8024
  %v8026 = vmul.f32 %v7532, %v8025
  %v8027 = vmul.f32 %v7536, %v8025
  %v8028 = vmul.f32 %v7540, %v8025
  %v8029 = vmul.f32 %v7544, %v8025
  %v8030 = vmul.f32 %v7548, %v8025
  %v8031 = vmul.f32 %v7552, %v8025
  %v8032 = vmul.f32 %v7556, %v8025
  %v8033 = vmul.f32 %v7560, %v8025
  %v8034 = vmul.f32 %v7564, %v8025
  %v8035 = vmul.f32 %v7568, %v8025
  %v8036 = vmul.f32 %v7572, %v8025
  %v8037 = vmul.f32 %v7576, %v8025
  %v8038 = vmul.f32 %v7580, %v8025
  %v8039 = vmul.f32 %v7584, %v8025
  %v8040 = vmul.f32 %v7588, %v8025
  %v8041 = vmul.f32 %v7592, %v8025
  %v8042 = vadd.f32 %v8006, %v8026
  %v8043 = vadd.f32 %v8007, %v8027
  %v8044 = vadd.f32 %v8008, %v8028
  %v8045 = vadd.f32 %v8009, %v8029
  %v8046 = vadd.f32 %v8010, %v8030
  %v8047 = vadd.f32 %v8011, %v8031
  %v8048 = vadd.f32 %v8012, %v8032
  %v8049 = vadd.f32 %v8013, %v8033
  %v8050 = vadd.f32 %v8014, %v8034
  %v8051 = vadd.f32 %v8015, %v8035
  %v8052 = vadd.f32 %v8016, %v8036
  %v8053 = vadd.f32 %v8017, %v8037
  %v8054 = vadd.f32 %v8018, %v8038
  %v8055 = vadd.f32 %v8019, %v8039
  %v8056 = vadd.f32 %v8020, %v8040
  %v8057 = vadd.f32 %v8021, %v8041
  %v8058 = vlaneseq
  %v8059 = vshrl.u32 %v8058, 7
  %v8060 = vsub.s32 7, %v8059
  %v8061 = vrot.slane %v6911, %v8060
  %v8062 = vmul.f32 %v7632, %v8061
  %v8063 = vmul.f32 %v7636, %v8061
  %v8064 = vmul.f32 %v7640, %v8061
  %v8065 = vmul.f32 %v7644, %v8061
  %v8066 = vmul.f32 %v7648, %v8061
  %v8067 = vmul.f32 %v7652, %v8061
  %v8068 = vmul.f32 %v7656, %v8061
  %v8069 = vmul.f32 %v7660, %v8061
  %v8070 = vmul.f32 %v7664, %v8061
  %v8071 = vmul.f32 %v7668, %v8061
  %v8072 = vmul.f32 %v7672, %v8061
  %v8073 = vmul.f32 %v7676, %v8061
  %v8074 = vmul.f32 %v7680, %v8061
  %v8075 = vmul.f32 %v7684, %v8061
  %v8076 = vmul.f32 %v7688, %v8061
  %v8077 = vmul.f32 %v7692, %v8061
  %v8078 = vadd.f32 %v8042, %v8062
  %v8079 = vadd.f32 %v8043, %v8063
  %v8080 = vadd.f32 %v8044, %v8064
  %v8081 = vadd.f32 %v8045, %v8065
  %v8082 = vadd.f32 %v8046, %v8066
  %v8083 = vadd.f32 %v8047, %v8067
  %v8084 = vadd.f32 %v8048, %v8068
  %v8085 = vadd.f32 %v8049, %v8069
  %v8086 = vadd.f32 %v8050, %v8070
  %v8087 = vadd.f32 %v8051, %v8071
  %v8088 = vadd.f32 %v8052, %v8072
  %v8089 = vadd.f32 %v8053, %v8073
  %v8090 = vadd.f32 %v8054, %v8074
  %v8091 = vadd.f32 %v8055, %v8075
  %v8092 = vadd.f32 %v8056, %v8076
  %v8093 = vadd.f32 %v8057, %v8077
  %v8094 = vadd.f32 %v8078, %v7734
  %v8095 = vadd.f32 %v8079, %v7734
  %v8096 = vadd.f32 %v8080, %v7734
  %v8097 = vadd.f32 %v8081, %v7734
  %v8098 = vadd.f32 %v8082, %v7734
  %v8099 = vadd.f32 %v8083, %v7734
  %v8100 = vadd.f32 %v8084, %v7734
  %v8101 = vadd.f32 %v8085, %v7734
  %v8102 = vadd.f32 %v8086, %v7734
  %v8103 = vadd.f32 %v8087, %v7734
  %v8104 = vadd.f32 %v8088, %v7734
  %v8105 = vadd.f32 %v8089, %v7734
  %v8106 = vadd.f32 %v8090, %v7734
  %v8107 = vadd.f32 %v8091, %v7734
  %v8108 = vadd.f32 %v8092, %v7734
  %v8109 = vadd.f32 %v8093, %v7734
  %vm8110 = vcmp.ge.f32.partialorder %v8094, 0.0
  %vm8111 = vcmp.ge.f32.partialorder %v8095, 0.0
  %vm8112 = vcmp.ge.f32.partialorder %v8096, 0.0
  %vm8113 = vcmp.ge.f32.partialorder %v8097, 0.0
  %vm8114 = vcmp.ge.f32.partialorder %v8098, 0.0
  %vm8115 = vcmp.ge.f32.partialorder %v8099, 0.0
  %vm8116 = vcmp.ge.f32.partialorder %v8100, 0.0
  %vm8117 = vcmp.ge.f32.partialorder %v8101, 0.0
  %vm8118 = vcmp.ge.f32.partialorder %v8102, 0.0
  %vm8119 = vcmp.ge.f32.partialorder %v8103, 0.0
  %vm8120 = vcmp.ge.f32.partialorder %v8104, 0.0
  %vm8121 = vcmp.ge.f32.partialorder %v8105, 0.0
  %vm8122 = vcmp.ge.f32.partialorder %v8106, 0.0
  %vm8123 = vcmp.ge.f32.partialorder %v8107, 0.0
  %vm8124 = vcmp.ge.f32.partialorder %v8108, 0.0
  %vm8125 = vcmp.ge.f32.partialorder %v8109, 0.0
  %v8126 = vmul.f32 %v7772, %v8094
  %v8127 = vmul.f32 %v7772, %v8095
  %v8128 = vmul.f32 %v7772, %v8096
  %v8129 = vmul.f32 %v7772, %v8097
  %v8130 = vmul.f32 %v7772, %v8098
  %v8131 = vmul.f32 %v7772, %v8099
  %v8132 = vmul.f32 %v7772, %v8100
  %v8133 = vmul.f32 %v7772, %v8101
  %v8134 = vmul.f32 %v7772, %v8102
  %v8135 = vmul.f32 %v7772, %v8103
  %v8136 = vmul.f32 %v7772, %v8104
  %v8137 = vmul.f32 %v7772, %v8105
  %v8138 = vmul.f32 %v7772, %v8106
  %v8139 = vmul.f32 %v7772, %v8107
  %v8140 = vmul.f32 %v7772, %v8108
  %v8141 = vmul.f32 %v7772, %v8109
  %v8142 = vsel %vm8110, %v8094, %v8126
  %v8143 = vsel %vm8111, %v8095, %v8127
  %v8144 = vsel %vm8112, %v8096, %v8128
  %v8145 = vsel %vm8113, %v8097, %v8129
  %v8146 = vsel %vm8114, %v8098, %v8130
  %v8147 = vsel %vm8115, %v8099, %v8131
  %v8148 = vsel %vm8116, %v8100, %v8132
  %v8149 = vsel %vm8117, %v8101, %v8133
  %v8150 = vsel %vm8118, %v8102, %v8134
  %v8151 = vsel %vm8119, %v8103, %v8135
  %v8152 = vsel %vm8120, %v8104, %v8136
  %v8153 = vsel %vm8121, %v8105, %v8137
  %v8154 = vsel %vm8122, %v8106, %v8138
  %v8155 = vsel %vm8123, %v8107, %v8139
  %v8156 = vsel %vm8124, %v8108, %v8140
  %v8157 = vsel %vm8125, %v8109, %v8141
  %8159 = vset.pattern.permute.xlu0 0
  %8160 = vperm.xlu0 %8159, %v7790
  %v8161 = vpop.permute.xlu0 %8160
  %8164 = vset.pattern.permute.xlu0 0
  %8165 = vperm.xlu0 %8164, %v7791
  %v8166 = vpop.permute.xlu0 %8165
  %8169 = vset.pattern.permute.xlu0 0
  %8170 = vperm.xlu0 %8169, %v8142
  %v8171 = vpop.permute.xlu0 %8170
  %8174 = vset.pattern.permute.xlu0 0
  %8175 = vperm.xlu0 %8174, %v8143
  %v8176 = vpop.permute.xlu0 %8175
  %8179 = vset.pattern.permute.xlu0 0
  %8180 = vperm.xlu0 %8179, %v7792
  %v8181 = vpop.permute.xlu0 %8180
  %8184 = vset.pattern.permute.xlu0 0
  %8185 = vperm.xlu0 %8184, %v7793
  %v8186 = vpop.permute.xlu0 %8185
  %8189 = vset.pattern.permute.xlu0 0
  %8190 = vperm.xlu0 %8189, %v8144
  %v8191 = vpop.permute.xlu0 %8190
  %8194 = vset.pattern.permute.xlu0 0
  %8195 = vperm.xlu0 %8194, %v8145
  %v8196 = vpop.permute.xlu0 %8195
  %8199 = vset.pattern.permute.xlu0 0
  %8200 = vperm.xlu0 %8199, %v7794
  %v8201 = vpop.permute.xlu0 %8200
  %8204 = vset.pattern.permute.xlu0 0
  %8205 = vperm.xlu0 %8204, %v7795
  %v8206 = vpop.permute.xlu0 %8205
  %8209 = vset.pattern.permute.xlu0 0
  %8210 = vperm.xlu0 %8209, %v8146
  %v8211 = vpop.permute.xlu0 %8210
  %8214 = vset.pattern.permute.xlu0 0
  %8215 = vperm.xlu0 %8214, %v8147
  %v8216 = vpop.permute.xlu0 %8215
  %8219 = vset.pattern.permute.xlu0 0
  %8220 = vperm.xlu0 %8219, %v7796
  %v8221 = vpop.permute.xlu0 %8220
  %8224 = vset.pattern.permute.xlu0 0
  %8225 = vperm.xlu0 %8224, %v7797
  %v8226 = vpop.permute.xlu0 %8225
  %8229 = vset.pattern.permute.xlu0 0
  %8230 = vperm.xlu0 %8229, %v8148
  %v8231 = vpop.permute.xlu0 %8230
  %8234 = vset.pattern.permute.xlu0 0
  %8235 = vperm.xlu0 %8234, %v8149
  %v8236 = vpop.permute.xlu0 %8235
  %8239 = vset.pattern.permute.xlu0 0
  %8240 = vperm.xlu0 %8239, %v7798
  %v8241 = vpop.permute.xlu0 %8240
  %8244 = vset.pattern.permute.xlu0 0
  %8245 = vperm.xlu0 %8244, %v7799
  %v8246 = vpop.permute.xlu0 %8245
  %8249 = vset.pattern.permute.xlu0 0
  %8250 = vperm.xlu0 %8249, %v8150
  %v8251 = vpop.permute.xlu0 %8250
  %8254 = vset.pattern.permute.xlu0 0
  %8255 = vperm.xlu0 %8254, %v8151
  %v8256 = vpop.permute.xlu0 %8255
  %8259 = vset.pattern.permute.xlu0 0
  %8260 = vperm.xlu0 %8259, %v7800
  %v8261 = vpop.permute.xlu0 %8260
  %8264 = vset.pattern.permute.xlu0 0
  %8265 = vperm.xlu0 %8264, %v7801
  %v8266 = vpop.permute.xlu0 %8265
  %8269 = vset.pattern.permute.xlu0 0
  %8270 = vperm.xlu0 %8269, %v8152
  %v8271 = vpop.permute.xlu0 %8270
  %8274 = vset.pattern.permute.xlu0 0
  %8275 = vperm.xlu0 %8274, %v8153
  %v8276 = vpop.permute.xlu0 %8275
  %8279 = vset.pattern.permute.xlu0 0
  %8280 = vperm.xlu0 %8279, %v7802
  %v8281 = vpop.permute.xlu0 %8280
  %8284 = vset.pattern.permute.xlu0 0
  %8285 = vperm.xlu0 %8284, %v7803
  %v8286 = vpop.permute.xlu0 %8285
  %8289 = vset.pattern.permute.xlu0 0
  %8290 = vperm.xlu0 %8289, %v8154
  %v8291 = vpop.permute.xlu0 %8290
  %8294 = vset.pattern.permute.xlu0 0
  %8295 = vperm.xlu0 %8294, %v8155
  %v8296 = vpop.permute.xlu0 %8295
  %8299 = vset.pattern.permute.xlu0 0
  %8300 = vperm.xlu0 %8299, %v7804
  %v8301 = vpop.permute.xlu0 %8300
  %8304 = vset.pattern.permute.xlu0 0
  %8305 = vperm.xlu0 %8304, %v7805
  %v8306 = vpop.permute.xlu0 %8305
  %8309 = vset.pattern.permute.xlu0 0
  %8310 = vperm.xlu0 %8309, %v8156
  %v8311 = vpop.permute.xlu0 %8310
  %8314 = vset.pattern.permute.xlu0 0
  %8315 = vperm.xlu0 %8314, %v8157
  %v8316 = vpop.permute.xlu0 %8315
  %v8318 = vmul.f32 %v8161, %v6997
  %v8319 = vmul.f32 %v8166, %v6997
  %v8320 = vmul.f32 %v8171, %v6997
  %v8321 = vmul.f32 %v8176, %v6997
  %v8322 = vmul.f32 %v8181, %v6997
  %v8323 = vmul.f32 %v8186, %v6997
  %v8324 = vmul.f32 %v8191, %v6997
  %v8325 = vmul.f32 %v8196, %v6997
  %v8326 = vmul.f32 %v8201, %v6997
  %v8327 = vmul.f32 %v8206, %v6997
  %v8328 = vmul.f32 %v8211, %v6997
  %v8329 = vmul.f32 %v8216, %v6997
  %v8330 = vmul.f32 %v8221, %v6997
  %v8331 = vmul.f32 %v8226, %v6997
  %v8332 = vmul.f32 %v8231, %v6997
  %v8333 = vmul.f32 %v8236, %v6997
  %v8334 = vmul.f32 %v8241, %v6997
  %v8335 = vmul.f32 %v8246, %v6997
  %v8336 = vmul.f32 %v8251, %v6997
  %v8337 = vmul.f32 %v8256, %v6997
  %v8338 = vmul.f32 %v8261, %v6997
  %v8339 = vmul.f32 %v8266, %v6997
  %v8340 = vmul.f32 %v8271, %v6997
  %v8341 = vmul.f32 %v8276, %v6997
  %v8342 = vmul.f32 %v8281, %v6997
  %v8343 = vmul.f32 %v8286, %v6997
  %v8344 = vmul.f32 %v8291, %v6997
  %v8345 = vmul.f32 %v8296, %v6997
  %v8346 = vmul.f32 %v8301, %v6997
  %v8347 = vmul.f32 %v8306, %v6997
  %v8348 = vmul.f32 %v8311, %v6997
  %v8349 = vmul.f32 %v8316, %v6997
  %v8350 = vadd.f32 %v8318, 0.0
  %v8351 = vadd.f32 %v8319, 0.0
  %v8352 = vadd.f32 %v8320, 0.0
  %v8353 = vadd.f32 %v8321, 0.0
  %v8354 = vadd.f32 %v8322, 0.0
  %v8355 = vadd.f32 %v8323, 0.0
  %v8356 = vadd.f32 %v8324, 0.0
  %v8357 = vadd.f32 %v8325, 0.0
  %v8358 = vadd.f32 %v8326, 0.0
  %v8359 = vadd.f32 %v8327, 0.0
  %v8360 = vadd.f32 %v8328, 0.0
  %v8361 = vadd.f32 %v8329, 0.0
  %v8362 = vadd.f32 %v8330, 0.0
  %v8363 = vadd.f32 %v8331, 0.0
  %v8364 = vadd.f32 %v8332, 0.0
  %v8365 = vadd.f32 %v8333, 0.0
  %v8366 = vadd.f32 %v8334, 0.0
  %v8367 = vadd.f32 %v8335, 0.0
  %v8368 = vadd.f32 %v8336, 0.0
  %v8369 = vadd.f32 %v8337, 0.0
  %v8370 = vadd.f32 %v8338, 0.0
  %v8371 = vadd.f32 %v8339, 0.0
  %v8372 = vadd.f32 %v8340, 0.0
  %v8373 = vadd.f32 %v8341, 0.0
  %v8374 = vadd.f32 %v8342, 0.0
  %v8375 = vadd.f32 %v8343, 0.0
  %v8376 = vadd.f32 %v8344, 0.0
  %v8377 = vadd.f32 %v8345, 0.0
  %v8378 = vadd.f32 %v8346, 0.0
  %v8379 = vadd.f32 %v8347, 0.0
  %v8380 = vadd.f32 %v8348, 0.0
  %v8381 = vadd.f32 %v8349, 0.0
  %8382 = vset.pattern.permute.xlu0 1
  %8383 = vperm.xlu0 %8382, %v7790
  %v8384 = vpop.permute.xlu0 %8383
  %8386 = vset.pattern.permute.xlu0 1
  %8387 = vperm.xlu0 %8386, %v7791
  %v8388 = vpop.permute.xlu0 %8387
  %8390 = vset.pattern.permute.xlu0 1
  %8391 = vperm.xlu0 %8390, %v8142
  %v8392 = vpop.permute.xlu0 %8391
  %8394 = vset.pattern.permute.xlu0 1
  %8395 = vperm.xlu0 %8394, %v8143
  %v8396 = vpop.permute.xlu0 %8395
  %8398 = vset.pattern.permute.xlu0 1
  %8399 = vperm.xlu0 %8398, %v7792
  %v8400 = vpop.permute.xlu0 %8399
  %8402 = vset.pattern.permute.xlu0 1
  %8403 = vperm.xlu0 %8402, %v7793
  %v8404 = vpop.permute.xlu0 %8403
  %8406 = vset.pattern.permute.xlu0 1
  %8407 = vperm.xlu0 %8406, %v8144
  %v8408 = vpop.permute.xlu0 %8407
  %8410 = vset.pattern.permute.xlu0 1
  %8411 = vperm.xlu0 %8410, %v8145
  %v8412 = vpop.permute.xlu0 %8411
  %8414 = vset.pattern.permute.xlu0 1
  %8415 = vperm.xlu0 %8414, %v7794
  %v8416 = vpop.permute.xlu0 %8415
  %8418 = vset.pattern.permute.xlu0 1
  %8419 = vperm.xlu0 %8418, %v7795
  %v8420 = vpop.permute.xlu0 %8419
  %8422 = vset.pattern.permute.xlu0 1
  %8423 = vperm.xlu0 %8422, %v8146
  %v8424 = vpop.permute.xlu0 %8423
  %8426 = vset.pattern.permute.xlu0 1
  %8427 = vperm.xlu0 %8426, %v8147
  %v8428 = vpop.permute.xlu0 %8427
  %8430 = vset.pattern.permute.xlu0 1
  %8431 = vperm.xlu0 %8430, %v7796
  %v8432 = vpop.permute.xlu0 %8431
  %8434 = vset.pattern.permute.xlu0 1
  %8435 = vperm.xlu0 %8434, %v7797
  %v8436 = vpop.permute.xlu0 %8435
  %8438 = vset.pattern.permute.xlu0 1
  %8439 = vperm.xlu0 %8438, %v8148
  %v8440 = vpop.permute.xlu0 %8439
  %8442 = vset.pattern.permute.xlu0 1
  %8443 = vperm.xlu0 %8442, %v8149
  %v8444 = vpop.permute.xlu0 %8443
  %8446 = vset.pattern.permute.xlu0 1
  %8447 = vperm.xlu0 %8446, %v7798
  %v8448 = vpop.permute.xlu0 %8447
  %8450 = vset.pattern.permute.xlu0 1
  %8451 = vperm.xlu0 %8450, %v7799
  %v8452 = vpop.permute.xlu0 %8451
  %8454 = vset.pattern.permute.xlu0 1
  %8455 = vperm.xlu0 %8454, %v8150
  %v8456 = vpop.permute.xlu0 %8455
  %8458 = vset.pattern.permute.xlu0 1
  %8459 = vperm.xlu0 %8458, %v8151
  %v8460 = vpop.permute.xlu0 %8459
  %8462 = vset.pattern.permute.xlu0 1
  %8463 = vperm.xlu0 %8462, %v7800
  %v8464 = vpop.permute.xlu0 %8463
  %8466 = vset.pattern.permute.xlu0 1
  %8467 = vperm.xlu0 %8466, %v7801
  %v8468 = vpop.permute.xlu0 %8467
  %8470 = vset.pattern.permute.xlu0 1
  %8471 = vperm.xlu0 %8470, %v8152
  %v8472 = vpop.permute.xlu0 %8471
  %8474 = vset.pattern.permute.xlu0 1
  %8475 = vperm.xlu0 %8474, %v8153
  %v8476 = vpop.permute.xlu0 %8475
  %8478 = vset.pattern.permute.xlu0 1
  %8479 = vperm.xlu0 %8478, %v7802
  %v8480 = vpop.permute.xlu0 %8479
  %8482 = vset.pattern.permute.xlu0 1
  %8483 = vperm.xlu0 %8482, %v7803
  %v8484 = vpop.permute.xlu0 %8483
  %8486 = vset.pattern.permute.xlu0 1
  %8487 = vperm.xlu0 %8486, %v8154
  %v8488 = vpop.permute.xlu0 %8487
  %8490 = vset.pattern.permute.xlu0 1
  %8491 = vperm.xlu0 %8490, %v8155
  %v8492 = vpop.permute.xlu0 %8491
  %8494 = vset.pattern.permute.xlu0 1
  %8495 = vperm.xlu0 %8494, %v7804
  %v8496 = vpop.permute.xlu0 %8495
  %8498 = vset.pattern.permute.xlu0 1
  %8499 = vperm.xlu0 %8498, %v7805
  %v8500 = vpop.permute.xlu0 %8499
  %8502 = vset.pattern.permute.xlu0 1
  %8503 = vperm.xlu0 %8502, %v8156
  %v8504 = vpop.permute.xlu0 %8503
  %8506 = vset.pattern.permute.xlu0 1
  %8507 = vperm.xlu0 %8506, %v8157
  %v8508 = vpop.permute.xlu0 %8507
  %v8510 = vmul.f32 %v8384, %v7097
  %v8511 = vmul.f32 %v8388, %v7097
  %v8512 = vmul.f32 %v8392, %v7097
  %v8513 = vmul.f32 %v8396, %v7097
  %v8514 = vmul.f32 %v8400, %v7097
  %v8515 = vmul.f32 %v8404, %v7097
  %v8516 = vmul.f32 %v8408, %v7097
  %v8517 = vmul.f32 %v8412, %v7097
  %v8518 = vmul.f32 %v8416, %v7097
  %v8519 = vmul.f32 %v8420, %v7097
  %v8520 = vmul.f32 %v8424, %v7097
  %v8521 = vmul.f32 %v8428, %v7097
  %v8522 = vmul.f32 %v8432, %v7097
  %v8523 = vmul.f32 %v8436, %v7097
  %v8524 = vmul.f32 %v8440, %v7097
  %v8525 = vmul.f32 %v8444, %v7097
  %v8526 = vmul.f32 %v8448, %v7097
  %v8527 = vmul.f32 %v8452, %v7097
  %v8528 = vmul.f32 %v8456, %v7097
  %v8529 = vmul.f32 %v8460, %v7097
  %v8530 = vmul.f32 %v8464, %v7097
  %v8531 = vmul.f32 %v8468, %v7097
  %v8532 = vmul.f32 %v8472, %v7097
  %v8533 = vmul.f32 %v8476, %v7097
  %v8534 = vmul.f32 %v8480, %v7097
  %v8535 = vmul.f32 %v8484, %v7097
  %v8536 = vmul.f32 %v8488, %v7097
  %v8537 = vmul.f32 %v8492, %v7097
  %v8538 = vmul.f32 %v8496, %v7097
  %v8539 = vmul.f32 %v8500, %v7097
  %v8540 = vmul.f32 %v8504, %v7097
  %v8541 = vmul.f32 %v8508, %v7097
  %v8542 = vadd.f32 %v8350, %v8510
  %v8543 = vadd.f32 %v8351, %v8511
  %v8544 = vadd.f32 %v8352, %v8512
  %v8545 = vadd.f32 %v8353, %v8513
  %v8546 = vadd.f32 %v8354, %v8514
  %v8547 = vadd.f32 %v8355, %v8515
  %v8548 = vadd.f32 %v8356, %v8516
  %v8549 = vadd.f32 %v8357, %v8517
  %v8550 = vadd.f32 %v8358, %v8518
  %v8551 = vadd.f32 %v8359, %v8519
  %v8552 = vadd.f32 %v8360, %v8520
  %v8553 = vadd.f32 %v8361, %v8521
  %v8554 = vadd.f32 %v8362, %v8522
  %v8555 = vadd.f32 %v8363, %v8523
  %v8556 = vadd.f32 %v8364, %v8524
  %v8557 = vadd.f32 %v8365, %v8525
  %v8558 = vadd.f32 %v8366, %v8526
  %v8559 = vadd.f32 %v8367, %v8527
  %v8560 = vadd.f32 %v8368, %v8528
  %v8561 = vadd.f32 %v8369, %v8529
  %v8562 = vadd.f32 %v8370, %v8530
  %v8563 = vadd.f32 %v8371, %v8531
  %v8564 = vadd.f32 %v8372, %v8532
  %v8565 = vadd.f32 %v8373, %v8533
  %v8566 = vadd.f32 %v8374, %v8534
  %v8567 = vadd.f32 %v8375, %v8535
  %v8568 = vadd.f32 %v8376, %v8536
  %v8569 = vadd.f32 %v8377, %v8537
  %v8570 = vadd.f32 %v8378, %v8538
  %v8571 = vadd.f32 %v8379, %v8539
  %v8572 = vadd.f32 %v8380, %v8540
  %v8573 = vadd.f32 %v8381, %v8541
  %8574 = vset.pattern.permute.xlu0 2
  %8575 = vperm.xlu0 %8574, %v7790
  %v8576 = vpop.permute.xlu0 %8575
  %8578 = vset.pattern.permute.xlu0 2
  %8579 = vperm.xlu0 %8578, %v7791
  %v8580 = vpop.permute.xlu0 %8579
  %8582 = vset.pattern.permute.xlu0 2
  %8583 = vperm.xlu0 %8582, %v8142
  %v8584 = vpop.permute.xlu0 %8583
  %8586 = vset.pattern.permute.xlu0 2
  %8587 = vperm.xlu0 %8586, %v8143
  %v8588 = vpop.permute.xlu0 %8587
  %8590 = vset.pattern.permute.xlu0 2
  %8591 = vperm.xlu0 %8590, %v7792
  %v8592 = vpop.permute.xlu0 %8591
  %8594 = vset.pattern.permute.xlu0 2
  %8595 = vperm.xlu0 %8594, %v7793
  %v8596 = vpop.permute.xlu0 %8595
  %8598 = vset.pattern.permute.xlu0 2
  %8599 = vperm.xlu0 %8598, %v8144
  %v8600 = vpop.permute.xlu0 %8599
  %8602 = vset.pattern.permute.xlu0 2
  %8603 = vperm.xlu0 %8602, %v8145
  %v8604 = vpop.permute.xlu0 %8603
  %8606 = vset.pattern.permute.xlu0 2
  %8607 = vperm.xlu0 %8606, %v7794
  %v8608 = vpop.permute.xlu0 %8607
  %8610 = vset.pattern.permute.xlu0 2
  %8611 = vperm.xlu0 %8610, %v7795
  %v8612 = vpop.permute.xlu0 %8611
  %8614 = vset.pattern.permute.xlu0 2
  %8615 = vperm.xlu0 %8614, %v8146
  %v8616 = vpop.permute.xlu0 %8615
  %8618 = vset.pattern.permute.xlu0 2
  %8619 = vperm.xlu0 %8618, %v8147
  %v8620 = vpop.permute.xlu0 %8619
  %8622 = vset.pattern.permute.xlu0 2
  %8623 = vperm.xlu0 %8622, %v7796
  %v8624 = vpop.permute.xlu0 %8623
  %8626 = vset.pattern.permute.xlu0 2
  %8627 = vperm.xlu0 %8626, %v7797
  %v8628 = vpop.permute.xlu0 %8627
  %8630 = vset.pattern.permute.xlu0 2
  %8631 = vperm.xlu0 %8630, %v8148
  %v8632 = vpop.permute.xlu0 %8631
  %8634 = vset.pattern.permute.xlu0 2
  %8635 = vperm.xlu0 %8634, %v8149
  %v8636 = vpop.permute.xlu0 %8635
  %8638 = vset.pattern.permute.xlu0 2
  %8639 = vperm.xlu0 %8638, %v7798
  %v8640 = vpop.permute.xlu0 %8639
  %8642 = vset.pattern.permute.xlu0 2
  %8643 = vperm.xlu0 %8642, %v7799
  %v8644 = vpop.permute.xlu0 %8643
  %8646 = vset.pattern.permute.xlu0 2
  %8647 = vperm.xlu0 %8646, %v8150
  %v8648 = vpop.permute.xlu0 %8647
  %8650 = vset.pattern.permute.xlu0 2
  %8651 = vperm.xlu0 %8650, %v8151
  %v8652 = vpop.permute.xlu0 %8651
  %8654 = vset.pattern.permute.xlu0 2
  %8655 = vperm.xlu0 %8654, %v7800
  %v8656 = vpop.permute.xlu0 %8655
  %8658 = vset.pattern.permute.xlu0 2
  %8659 = vperm.xlu0 %8658, %v7801
  %v8660 = vpop.permute.xlu0 %8659
  %8662 = vset.pattern.permute.xlu0 2
  %8663 = vperm.xlu0 %8662, %v8152
  %v8664 = vpop.permute.xlu0 %8663
  %8666 = vset.pattern.permute.xlu0 2
  %8667 = vperm.xlu0 %8666, %v8153
  %v8668 = vpop.permute.xlu0 %8667
  %8670 = vset.pattern.permute.xlu0 2
  %8671 = vperm.xlu0 %8670, %v7802
  %v8672 = vpop.permute.xlu0 %8671
  %8674 = vset.pattern.permute.xlu0 2
  %8675 = vperm.xlu0 %8674, %v7803
  %v8676 = vpop.permute.xlu0 %8675
  %8678 = vset.pattern.permute.xlu0 2
  %8679 = vperm.xlu0 %8678, %v8154
  %v8680 = vpop.permute.xlu0 %8679
  %8682 = vset.pattern.permute.xlu0 2
  %8683 = vperm.xlu0 %8682, %v8155
  %v8684 = vpop.permute.xlu0 %8683
  %8686 = vset.pattern.permute.xlu0 2
  %8687 = vperm.xlu0 %8686, %v7804
  %v8688 = vpop.permute.xlu0 %8687
  %8690 = vset.pattern.permute.xlu0 2
  %8691 = vperm.xlu0 %8690, %v7805
  %v8692 = vpop.permute.xlu0 %8691
  %8694 = vset.pattern.permute.xlu0 2
  %8695 = vperm.xlu0 %8694, %v8156
  %v8696 = vpop.permute.xlu0 %8695
  %8698 = vset.pattern.permute.xlu0 2
  %8699 = vperm.xlu0 %8698, %v8157
  %v8700 = vpop.permute.xlu0 %8699
  %v8702 = vmul.f32 %v8576, %v7197
  %v8703 = vmul.f32 %v8580, %v7197
  %v8704 = vmul.f32 %v8584, %v7197
  %v8705 = vmul.f32 %v8588, %v7197
  %v8706 = vmul.f32 %v8592, %v7197
  %v8707 = vmul.f32 %v8596, %v7197
  %v8708 = vmul.f32 %v8600, %v7197
  %v8709 = vmul.f32 %v8604, %v7197
  %v8710 = vmul.f32 %v8608, %v7197
  %v8711 = vmul.f32 %v8612, %v7197
  %v8712 = vmul.f32 %v8616, %v7197
  %v8713 = vmul.f32 %v8620, %v7197
  %v8714 = vmul.f32 %v8624, %v7197
  %v8715 = vmul.f32 %v8628, %v7197
  %v8716 = vmul.f32 %v8632, %v7197
  %v8717 = vmul.f32 %v8636, %v7197
  %v8718 = vmul.f32 %v8640, %v7197
  %v8719 = vmul.f32 %v8644, %v7197
  %v8720 = vmul.f32 %v8648, %v7197
  %v8721 = vmul.f32 %v8652, %v7197
  %v8722 = vmul.f32 %v8656, %v7197
  %v8723 = vmul.f32 %v8660, %v7197
  %v8724 = vmul.f32 %v8664, %v7197
  %v8725 = vmul.f32 %v8668, %v7197
  %v8726 = vmul.f32 %v8672, %v7197
  %v8727 = vmul.f32 %v8676, %v7197
  %v8728 = vmul.f32 %v8680, %v7197
  %v8729 = vmul.f32 %v8684, %v7197
  %v8730 = vmul.f32 %v8688, %v7197
  %v8731 = vmul.f32 %v8692, %v7197
  %v8732 = vmul.f32 %v8696, %v7197
  %v8733 = vmul.f32 %v8700, %v7197
  %v8734 = vadd.f32 %v8542, %v8702
  %v8735 = vadd.f32 %v8543, %v8703
  %v8736 = vadd.f32 %v8544, %v8704
  %v8737 = vadd.f32 %v8545, %v8705
  %v8738 = vadd.f32 %v8546, %v8706
  %v8739 = vadd.f32 %v8547, %v8707
  %v8740 = vadd.f32 %v8548, %v8708
  %v8741 = vadd.f32 %v8549, %v8709
  %v8742 = vadd.f32 %v8550, %v8710
  %v8743 = vadd.f32 %v8551, %v8711
  %v8744 = vadd.f32 %v8552, %v8712
  %v8745 = vadd.f32 %v8553, %v8713
  %v8746 = vadd.f32 %v8554, %v8714
  %v8747 = vadd.f32 %v8555, %v8715
  %v8748 = vadd.f32 %v8556, %v8716
  %v8749 = vadd.f32 %v8557, %v8717
  %v8750 = vadd.f32 %v8558, %v8718
  %v8751 = vadd.f32 %v8559, %v8719
  %v8752 = vadd.f32 %v8560, %v8720
  %v8753 = vadd.f32 %v8561, %v8721
  %v8754 = vadd.f32 %v8562, %v8722
  %v8755 = vadd.f32 %v8563, %v8723
  %v8756 = vadd.f32 %v8564, %v8724
  %v8757 = vadd.f32 %v8565, %v8725
  %v8758 = vadd.f32 %v8566, %v8726
  %v8759 = vadd.f32 %v8567, %v8727
  %v8760 = vadd.f32 %v8568, %v8728
  %v8761 = vadd.f32 %v8569, %v8729
  %v8762 = vadd.f32 %v8570, %v8730
  %v8763 = vadd.f32 %v8571, %v8731
  %v8764 = vadd.f32 %v8572, %v8732
  %v8765 = vadd.f32 %v8573, %v8733
  %8766 = vset.pattern.permute.xlu0 3
  %8767 = vperm.xlu0 %8766, %v7790
  %v8768 = vpop.permute.xlu0 %8767
  %8770 = vset.pattern.permute.xlu0 3
  %8771 = vperm.xlu0 %8770, %v7791
  %v8772 = vpop.permute.xlu0 %8771
  %8774 = vset.pattern.permute.xlu0 3
  %8775 = vperm.xlu0 %8774, %v8142
  %v8776 = vpop.permute.xlu0 %8775
  %8778 = vset.pattern.permute.xlu0 3
  %8779 = vperm.xlu0 %8778, %v8143
  %v8780 = vpop.permute.xlu0 %8779
  %8782 = vset.pattern.permute.xlu0 3
  %8783 = vperm.xlu0 %8782, %v7792
  %v8784 = vpop.permute.xlu0 %8783
  %8786 = vset.pattern.permute.xlu0 3
  %8787 = vperm.xlu0 %8786, %v7793
  %v8788 = vpop.permute.xlu0 %8787
  %8790 = vset.pattern.permute.xlu0 3
  %8791 = vperm.xlu0 %8790, %v8144
  %v8792 = vpop.permute.xlu0 %8791
  %8794 = vset.pattern.permute.xlu0 3
  %8795 = vperm.xlu0 %8794, %v8145
  %v8796 = vpop.permute.xlu0 %8795
  %8798 = vset.pattern.permute.xlu0 3
  %8799 = vperm.xlu0 %8798, %v7794
  %v8800 = vpop.permute.xlu0 %8799
  %8802 = vset.pattern.permute.xlu0 3
  %8803 = vperm.xlu0 %8802, %v7795
  %v8804 = vpop.permute.xlu0 %8803
  %8806 = vset.pattern.permute.xlu0 3
  %8807 = vperm.xlu0 %8806, %v8146
  %v8808 = vpop.permute.xlu0 %8807
  %8810 = vset.pattern.permute.xlu0 3
  %8811 = vperm.xlu0 %8810, %v8147
  %v8812 = vpop.permute.xlu0 %8811
  %8814 = vset.pattern.permute.xlu0 3
  %8815 = vperm.xlu0 %8814, %v7796
  %v8816 = vpop.permute.xlu0 %8815
  %8818 = vset.pattern.permute.xlu0 3
  %8819 = vperm.xlu0 %8818, %v7797
  %v8820 = vpop.permute.xlu0 %8819
  %8822 = vset.pattern.permute.xlu0 3
  %8823 = vperm.xlu0 %8822, %v8148
  %v8824 = vpop.permute.xlu0 %8823
  %8826 = vset.pattern.permute.xlu0 3
  %8827 = vperm.xlu0 %8826, %v8149
  %v8828 = vpop.permute.xlu0 %8827
  %8830 = vset.pattern.permute.xlu0 3
  %8831 = vperm.xlu0 %8830, %v7798
  %v8832 = vpop.permute.xlu0 %8831
  %8834 = vset.pattern.permute.xlu0 3
  %8835 = vperm.xlu0 %8834, %v7799
  %v8836 = vpop.permute.xlu0 %8835
  %8838 = vset.pattern.permute.xlu0 3
  %8839 = vperm.xlu0 %8838, %v8150
  %v8840 = vpop.permute.xlu0 %8839
  %8842 = vset.pattern.permute.xlu0 3
  %8843 = vperm.xlu0 %8842, %v8151
  %v8844 = vpop.permute.xlu0 %8843
  %8846 = vset.pattern.permute.xlu0 3
  %8847 = vperm.xlu0 %8846, %v7800
  %v8848 = vpop.permute.xlu0 %8847
  %8850 = vset.pattern.permute.xlu0 3
  %8851 = vperm.xlu0 %8850, %v7801
  %v8852 = vpop.permute.xlu0 %8851
  %8854 = vset.pattern.permute.xlu0 3
  %8855 = vperm.xlu0 %8854, %v8152
  %v8856 = vpop.permute.xlu0 %8855
  %8858 = vset.pattern.permute.xlu0 3
  %8859 = vperm.xlu0 %8858, %v8153
  %v8860 = vpop.permute.xlu0 %8859
  %8862 = vset.pattern.permute.xlu0 3
  %8863 = vperm.xlu0 %8862, %v7802
  %v8864 = vpop.permute.xlu0 %8863
  %8866 = vset.pattern.permute.xlu0 3
  %8867 = vperm.xlu0 %8866, %v7803
  %v8868 = vpop.permute.xlu0 %8867
  %8870 = vset.pattern.permute.xlu0 3
  %8871 = vperm.xlu0 %8870, %v8154
  %v8872 = vpop.permute.xlu0 %8871
  %8874 = vset.pattern.permute.xlu0 3
  %8875 = vperm.xlu0 %8874, %v8155
  %v8876 = vpop.permute.xlu0 %8875
  %8878 = vset.pattern.permute.xlu0 3
  %8879 = vperm.xlu0 %8878, %v7804
  %v8880 = vpop.permute.xlu0 %8879
  %8882 = vset.pattern.permute.xlu0 3
  %8883 = vperm.xlu0 %8882, %v7805
  %v8884 = vpop.permute.xlu0 %8883
  %8886 = vset.pattern.permute.xlu0 3
  %8887 = vperm.xlu0 %8886, %v8156
  %v8888 = vpop.permute.xlu0 %8887
  %8890 = vset.pattern.permute.xlu0 3
  %8891 = vperm.xlu0 %8890, %v8157
  %v8892 = vpop.permute.xlu0 %8891
  %v8894 = vmul.f32 %v8768, %v7297
  %v8895 = vmul.f32 %v8772, %v7297
  %v8896 = vmul.f32 %v8776, %v7297
  %v8897 = vmul.f32 %v8780, %v7297
  %v8898 = vmul.f32 %v8784, %v7297
  %v8899 = vmul.f32 %v8788, %v7297
  %v8900 = vmul.f32 %v8792, %v7297
  %v8901 = vmul.f32 %v8796, %v7297
  %v8902 = vmul.f32 %v8800, %v7297
  %v8903 = vmul.f32 %v8804, %v7297
  %v8904 = vmul.f32 %v8808, %v7297
  %v8905 = vmul.f32 %v8812, %v7297
  %v8906 = vmul.f32 %v8816, %v7297
  %v8907 = vmul.f32 %v8820, %v7297
  %v8908 = vmul.f32 %v8824, %v7297
  %v8909 = vmul.f32 %v8828, %v7297
  %v8910 = vmul.f32 %v8832, %v7297
  %v8911 = vmul.f32 %v8836, %v7297
  %v8912 = vmul.f32 %v8840, %v7297
  %v8913 = vmul.f32 %v8844, %v7297
  %v8914 = vmul.f32 %v8848, %v7297
  %v8915 = vmul.f32 %v8852, %v7297
  %v8916 = vmul.f32 %v8856, %v7297
  %v8917 = vmul.f32 %v8860, %v7297
  %v8918 = vmul.f32 %v8864, %v7297
  %v8919 = vmul.f32 %v8868, %v7297
  %v8920 = vmul.f32 %v8872, %v7297
  %v8921 = vmul.f32 %v8876, %v7297
  %v8922 = vmul.f32 %v8880, %v7297
  %v8923 = vmul.f32 %v8884, %v7297
  %v8924 = vmul.f32 %v8888, %v7297
  %v8925 = vmul.f32 %v8892, %v7297
  %v8926 = vadd.f32 %v8734, %v8894
  %v8927 = vadd.f32 %v8735, %v8895
  %v8928 = vadd.f32 %v8736, %v8896
  %v8929 = vadd.f32 %v8737, %v8897
  %v8930 = vadd.f32 %v8738, %v8898
  %v8931 = vadd.f32 %v8739, %v8899
  %v8932 = vadd.f32 %v8740, %v8900
  %v8933 = vadd.f32 %v8741, %v8901
  %v8934 = vadd.f32 %v8742, %v8902
  %v8935 = vadd.f32 %v8743, %v8903
  %v8936 = vadd.f32 %v8744, %v8904
  %v8937 = vadd.f32 %v8745, %v8905
  %v8938 = vadd.f32 %v8746, %v8906
  %v8939 = vadd.f32 %v8747, %v8907
  %v8940 = vadd.f32 %v8748, %v8908
  %v8941 = vadd.f32 %v8749, %v8909
  %v8942 = vadd.f32 %v8750, %v8910
  %v8943 = vadd.f32 %v8751, %v8911
  %v8944 = vadd.f32 %v8752, %v8912
  %v8945 = vadd.f32 %v8753, %v8913
  %v8946 = vadd.f32 %v8754, %v8914
  %v8947 = vadd.f32 %v8755, %v8915
  %v8948 = vadd.f32 %v8756, %v8916
  %v8949 = vadd.f32 %v8757, %v8917
  %v8950 = vadd.f32 %v8758, %v8918
  %v8951 = vadd.f32 %v8759, %v8919
  %v8952 = vadd.f32 %v8760, %v8920
  %v8953 = vadd.f32 %v8761, %v8921
  %v8954 = vadd.f32 %v8762, %v8922
  %v8955 = vadd.f32 %v8763, %v8923
  %v8956 = vadd.f32 %v8764, %v8924
  %v8957 = vadd.f32 %v8765, %v8925
  %8958 = vset.pattern.permute.xlu0 4
  %8959 = vperm.xlu0 %8958, %v7790
  %v8960 = vpop.permute.xlu0 %8959
  %8962 = vset.pattern.permute.xlu0 4
  %8963 = vperm.xlu0 %8962, %v7791
  %v8964 = vpop.permute.xlu0 %8963
  %8966 = vset.pattern.permute.xlu0 4
  %8967 = vperm.xlu0 %8966, %v8142
  %v8968 = vpop.permute.xlu0 %8967
  %8970 = vset.pattern.permute.xlu0 4
  %8971 = vperm.xlu0 %8970, %v8143
  %v8972 = vpop.permute.xlu0 %8971
  %8974 = vset.pattern.permute.xlu0 4
  %8975 = vperm.xlu0 %8974, %v7792
  %v8976 = vpop.permute.xlu0 %8975
  %8978 = vset.pattern.permute.xlu0 4
  %8979 = vperm.xlu0 %8978, %v7793
  %v8980 = vpop.permute.xlu0 %8979
  %8982 = vset.pattern.permute.xlu0 4
  %8983 = vperm.xlu0 %8982, %v8144
  %v8984 = vpop.permute.xlu0 %8983
  %8986 = vset.pattern.permute.xlu0 4
  %8987 = vperm.xlu0 %8986, %v8145
  %v8988 = vpop.permute.xlu0 %8987
  %8990 = vset.pattern.permute.xlu0 4
  %8991 = vperm.xlu0 %8990, %v7794
  %v8992 = vpop.permute.xlu0 %8991
  %8994 = vset.pattern.permute.xlu0 4
  %8995 = vperm.xlu0 %8994, %v7795
  %v8996 = vpop.permute.xlu0 %8995
  %8998 = vset.pattern.permute.xlu0 4
  %8999 = vperm.xlu0 %8998, %v8146
  %v9000 = vpop.permute.xlu0 %8999
  %9002 = vset.pattern.permute.xlu0 4
  %9003 = vperm.xlu0 %9002, %v8147
  %v9004 = vpop.permute.xlu0 %9003
  %9006 = vset.pattern.permute.xlu0 4
  %9007 = vperm.xlu0 %9006, %v7796
  %v9008 = vpop.permute.xlu0 %9007
  %9010 = vset.pattern.permute.xlu0 4
  %9011 = vperm.xlu0 %9010, %v7797
  %v9012 = vpop.permute.xlu0 %9011
  %9014 = vset.pattern.permute.xlu0 4
  %9015 = vperm.xlu0 %9014, %v8148
  %v9016 = vpop.permute.xlu0 %9015
  %9018 = vset.pattern.permute.xlu0 4
  %9019 = vperm.xlu0 %9018, %v8149
  %v9020 = vpop.permute.xlu0 %9019
  %9022 = vset.pattern.permute.xlu0 4
  %9023 = vperm.xlu0 %9022, %v7798
  %v9024 = vpop.permute.xlu0 %9023
  %9026 = vset.pattern.permute.xlu0 4
  %9027 = vperm.xlu0 %9026, %v7799
  %v9028 = vpop.permute.xlu0 %9027
  %9030 = vset.pattern.permute.xlu0 4
  %9031 = vperm.xlu0 %9030, %v8150
  %v9032 = vpop.permute.xlu0 %9031
  %9034 = vset.pattern.permute.xlu0 4
  %9035 = vperm.xlu0 %9034, %v8151
  %v9036 = vpop.permute.xlu0 %9035
  %9038 = vset.pattern.permute.xlu0 4
  %9039 = vperm.xlu0 %9038, %v7800
  %v9040 = vpop.permute.xlu0 %9039
  %9042 = vset.pattern.permute.xlu0 4
  %9043 = vperm.xlu0 %9042, %v7801
  %v9044 = vpop.permute.xlu0 %9043
  %9046 = vset.pattern.permute.xlu0 4
  %9047 = vperm.xlu0 %9046, %v8152
  %v9048 = vpop.permute.xlu0 %9047
  %9050 = vset.pattern.permute.xlu0 4
  %9051 = vperm.xlu0 %9050, %v8153
  %v9052 = vpop.permute.xlu0 %9051
  %9054 = vset.pattern.permute.xlu0 4
  %9055 = vperm.xlu0 %9054, %v7802
  %v9056 = vpop.permute.xlu0 %9055
  %9058 = vset.pattern.permute.xlu0 4
  %9059 = vperm.xlu0 %9058, %v7803
  %v9060 = vpop.permute.xlu0 %9059
  %9062 = vset.pattern.permute.xlu0 4
  %9063 = vperm.xlu0 %9062, %v8154
  %v9064 = vpop.permute.xlu0 %9063
  %9066 = vset.pattern.permute.xlu0 4
  %9067 = vperm.xlu0 %9066, %v8155
  %v9068 = vpop.permute.xlu0 %9067
  %9070 = vset.pattern.permute.xlu0 4
  %9071 = vperm.xlu0 %9070, %v7804
  %v9072 = vpop.permute.xlu0 %9071
  %9074 = vset.pattern.permute.xlu0 4
  %9075 = vperm.xlu0 %9074, %v7805
  %v9076 = vpop.permute.xlu0 %9075
  %9078 = vset.pattern.permute.xlu0 4
  %9079 = vperm.xlu0 %9078, %v8156
  %v9080 = vpop.permute.xlu0 %9079
  %9082 = vset.pattern.permute.xlu0 4
  %9083 = vperm.xlu0 %9082, %v8157
  %v9084 = vpop.permute.xlu0 %9083
  %v9086 = vmul.f32 %v8960, %v7397
  %v9087 = vmul.f32 %v8964, %v7397
  %v9088 = vmul.f32 %v8968, %v7397
  %v9089 = vmul.f32 %v8972, %v7397
  %v9090 = vmul.f32 %v8976, %v7397
  %v9091 = vmul.f32 %v8980, %v7397
  %v9092 = vmul.f32 %v8984, %v7397
  %v9093 = vmul.f32 %v8988, %v7397
  %v9094 = vmul.f32 %v8992, %v7397
  %v9095 = vmul.f32 %v8996, %v7397
  %v9096 = vmul.f32 %v9000, %v7397
  %v9097 = vmul.f32 %v9004, %v7397
  %v9098 = vmul.f32 %v9008, %v7397
  %v9099 = vmul.f32 %v9012, %v7397
  %v9100 = vmul.f32 %v9016, %v7397
  %v9101 = vmul.f32 %v9020, %v7397
  %v9102 = vmul.f32 %v9024, %v7397
  %v9103 = vmul.f32 %v9028, %v7397
  %v9104 = vmul.f32 %v9032, %v7397
  %v9105 = vmul.f32 %v9036, %v7397
  %v9106 = vmul.f32 %v9040, %v7397
  %v9107 = vmul.f32 %v9044, %v7397
  %v9108 = vmul.f32 %v9048, %v7397
  %v9109 = vmul.f32 %v9052, %v7397
  %v9110 = vmul.f32 %v9056, %v7397
  %v9111 = vmul.f32 %v9060, %v7397
  %v9112 = vmul.f32 %v9064, %v7397
  %v9113 = vmul.f32 %v9068, %v7397
  %v9114 = vmul.f32 %v9072, %v7397
  %v9115 = vmul.f32 %v9076, %v7397
  %v9116 = vmul.f32 %v9080, %v7397
  %v9117 = vmul.f32 %v9084, %v7397
  %v9118 = vadd.f32 %v8926, %v9086
  %v9119 = vadd.f32 %v8927, %v9087
  %v9120 = vadd.f32 %v8928, %v9088
  %v9121 = vadd.f32 %v8929, %v9089
  %v9122 = vadd.f32 %v8930, %v9090
  %v9123 = vadd.f32 %v8931, %v9091
  %v9124 = vadd.f32 %v8932, %v9092
  %v9125 = vadd.f32 %v8933, %v9093
  %v9126 = vadd.f32 %v8934, %v9094
  %v9127 = vadd.f32 %v8935, %v9095
  %v9128 = vadd.f32 %v8936, %v9096
  %v9129 = vadd.f32 %v8937, %v9097
  %v9130 = vadd.f32 %v8938, %v9098
  %v9131 = vadd.f32 %v8939, %v9099
  %v9132 = vadd.f32 %v8940, %v9100
  %v9133 = vadd.f32 %v8941, %v9101
  %v9134 = vadd.f32 %v8942, %v9102
  %v9135 = vadd.f32 %v8943, %v9103
  %v9136 = vadd.f32 %v8944, %v9104
  %v9137 = vadd.f32 %v8945, %v9105
  %v9138 = vadd.f32 %v8946, %v9106
  %v9139 = vadd.f32 %v8947, %v9107
  %v9140 = vadd.f32 %v8948, %v9108
  %v9141 = vadd.f32 %v8949, %v9109
  %v9142 = vadd.f32 %v8950, %v9110
  %v9143 = vadd.f32 %v8951, %v9111
  %v9144 = vadd.f32 %v8952, %v9112
  %v9145 = vadd.f32 %v8953, %v9113
  %v9146 = vadd.f32 %v8954, %v9114
  %v9147 = vadd.f32 %v8955, %v9115
  %v9148 = vadd.f32 %v8956, %v9116
  %v9149 = vadd.f32 %v8957, %v9117
  %9150 = vset.pattern.permute.xlu0 5
  %9151 = vperm.xlu0 %9150, %v7790
  %v9152 = vpop.permute.xlu0 %9151
  %9154 = vset.pattern.permute.xlu0 5
  %9155 = vperm.xlu0 %9154, %v7791
  %v9156 = vpop.permute.xlu0 %9155
  %9158 = vset.pattern.permute.xlu0 5
  %9159 = vperm.xlu0 %9158, %v8142
  %v9160 = vpop.permute.xlu0 %9159
  %9162 = vset.pattern.permute.xlu0 5
  %9163 = vperm.xlu0 %9162, %v8143
  %v9164 = vpop.permute.xlu0 %9163
  %9166 = vset.pattern.permute.xlu0 5
  %9167 = vperm.xlu0 %9166, %v7792
  %v9168 = vpop.permute.xlu0 %9167
  %9170 = vset.pattern.permute.xlu0 5
  %9171 = vperm.xlu0 %9170, %v7793
  %v9172 = vpop.permute.xlu0 %9171
  %9174 = vset.pattern.permute.xlu0 5
  %9175 = vperm.xlu0 %9174, %v8144
  %v9176 = vpop.permute.xlu0 %9175
  %9178 = vset.pattern.permute.xlu0 5
  %9179 = vperm.xlu0 %9178, %v8145
  %v9180 = vpop.permute.xlu0 %9179
  %9182 = vset.pattern.permute.xlu0 5
  %9183 = vperm.xlu0 %9182, %v7794
  %v9184 = vpop.permute.xlu0 %9183
  %9186 = vset.pattern.permute.xlu0 5
  %9187 = vperm.xlu0 %9186, %v7795
  %v9188 = vpop.permute.xlu0 %9187
  %9190 = vset.pattern.permute.xlu0 5
  %9191 = vperm.xlu0 %9190, %v8146
  %v9192 = vpop.permute.xlu0 %9191
  %9194 = vset.pattern.permute.xlu0 5
  %9195 = vperm.xlu0 %9194, %v8147
  %v9196 = vpop.permute.xlu0 %9195
  %9198 = vset.pattern.permute.xlu0 5
  %9199 = vperm.xlu0 %9198, %v7796
  %v9200 = vpop.permute.xlu0 %9199
  %9202 = vset.pattern.permute.xlu0 5
  %9203 = vperm.xlu0 %9202, %v7797
  %v9204 = vpop.permute.xlu0 %9203
  %9206 = vset.pattern.permute.xlu0 5
  %9207 = vperm.xlu0 %9206, %v8148
  %v9208 = vpop.permute.xlu0 %9207
  %9210 = vset.pattern.permute.xlu0 5
  %9211 = vperm.xlu0 %9210, %v8149
  %v9212 = vpop.permute.xlu0 %9211
  %9214 = vset.pattern.permute.xlu0 5
  %9215 = vperm.xlu0 %9214, %v7798
  %v9216 = vpop.permute.xlu0 %9215
  %9218 = vset.pattern.permute.xlu0 5
  %9219 = vperm.xlu0 %9218, %v7799
  %v9220 = vpop.permute.xlu0 %9219
  %9222 = vset.pattern.permute.xlu0 5
  %9223 = vperm.xlu0 %9222, %v8150
  %v9224 = vpop.permute.xlu0 %9223
  %9226 = vset.pattern.permute.xlu0 5
  %9227 = vperm.xlu0 %9226, %v8151
  %v9228 = vpop.permute.xlu0 %9227
  %9230 = vset.pattern.permute.xlu0 5
  %9231 = vperm.xlu0 %9230, %v7800
  %v9232 = vpop.permute.xlu0 %9231
  %9234 = vset.pattern.permute.xlu0 5
  %9235 = vperm.xlu0 %9234, %v7801
  %v9236 = vpop.permute.xlu0 %9235
  %9238 = vset.pattern.permute.xlu0 5
  %9239 = vperm.xlu0 %9238, %v8152
  %v9240 = vpop.permute.xlu0 %9239
  %9242 = vset.pattern.permute.xlu0 5
  %9243 = vperm.xlu0 %9242, %v8153
  %v9244 = vpop.permute.xlu0 %9243
  %9246 = vset.pattern.permute.xlu0 5
  %9247 = vperm.xlu0 %9246, %v7802
  %v9248 = vpop.permute.xlu0 %9247
  %9250 = vset.pattern.permute.xlu0 5
  %9251 = vperm.xlu0 %9250, %v7803
  %v9252 = vpop.permute.xlu0 %9251
  %9254 = vset.pattern.permute.xlu0 5
  %9255 = vperm.xlu0 %9254, %v8154
  %v9256 = vpop.permute.xlu0 %9255
  %9258 = vset.pattern.permute.xlu0 5
  %9259 = vperm.xlu0 %9258, %v8155
  %v9260 = vpop.permute.xlu0 %9259
  %9262 = vset.pattern.permute.xlu0 5
  %9263 = vperm.xlu0 %9262, %v7804
  %v9264 = vpop.permute.xlu0 %9263
  %9266 = vset.pattern.permute.xlu0 5
  %9267 = vperm.xlu0 %9266, %v7805
  %v9268 = vpop.permute.xlu0 %9267
  %9270 = vset.pattern.permute.xlu0 5
  %9271 = vperm.xlu0 %9270, %v8156
  %v9272 = vpop.permute.xlu0 %9271
  %9274 = vset.pattern.permute.xlu0 5
  %9275 = vperm.xlu0 %9274, %v8157
  %v9276 = vpop.permute.xlu0 %9275
  %v9278 = vmul.f32 %v9152, %v7497
  %v9279 = vmul.f32 %v9156, %v7497
  %v9280 = vmul.f32 %v9160, %v7497
  %v9281 = vmul.f32 %v9164, %v7497
  %v9282 = vmul.f32 %v9168, %v7497
  %v9283 = vmul.f32 %v9172, %v7497
  %v9284 = vmul.f32 %v9176, %v7497
  %v9285 = vmul.f32 %v9180, %v7497
  %v9286 = vmul.f32 %v9184, %v7497
  %v9287 = vmul.f32 %v9188, %v7497
  %v9288 = vmul.f32 %v9192, %v7497
  %v9289 = vmul.f32 %v9196, %v7497
  %v9290 = vmul.f32 %v9200, %v7497
  %v9291 = vmul.f32 %v9204, %v7497
  %v9292 = vmul.f32 %v9208, %v7497
  %v9293 = vmul.f32 %v9212, %v7497
  %v9294 = vmul.f32 %v9216, %v7497
  %v9295 = vmul.f32 %v9220, %v7497
  %v9296 = vmul.f32 %v9224, %v7497
  %v9297 = vmul.f32 %v9228, %v7497
  %v9298 = vmul.f32 %v9232, %v7497
  %v9299 = vmul.f32 %v9236, %v7497
  %v9300 = vmul.f32 %v9240, %v7497
  %v9301 = vmul.f32 %v9244, %v7497
  %v9302 = vmul.f32 %v9248, %v7497
  %v9303 = vmul.f32 %v9252, %v7497
  %v9304 = vmul.f32 %v9256, %v7497
  %v9305 = vmul.f32 %v9260, %v7497
  %v9306 = vmul.f32 %v9264, %v7497
  %v9307 = vmul.f32 %v9268, %v7497
  %v9308 = vmul.f32 %v9272, %v7497
  %v9309 = vmul.f32 %v9276, %v7497
  %v9310 = vadd.f32 %v9118, %v9278
  %v9311 = vadd.f32 %v9119, %v9279
  %v9312 = vadd.f32 %v9120, %v9280
  %v9313 = vadd.f32 %v9121, %v9281
  %v9314 = vadd.f32 %v9122, %v9282
  %v9315 = vadd.f32 %v9123, %v9283
  %v9316 = vadd.f32 %v9124, %v9284
  %v9317 = vadd.f32 %v9125, %v9285
  %v9318 = vadd.f32 %v9126, %v9286
  %v9319 = vadd.f32 %v9127, %v9287
  %v9320 = vadd.f32 %v9128, %v9288
  %v9321 = vadd.f32 %v9129, %v9289
  %v9322 = vadd.f32 %v9130, %v9290
  %v9323 = vadd.f32 %v9131, %v9291
  %v9324 = vadd.f32 %v9132, %v9292
  %v9325 = vadd.f32 %v9133, %v9293
  %v9326 = vadd.f32 %v9134, %v9294
  %v9327 = vadd.f32 %v9135, %v9295
  %v9328 = vadd.f32 %v9136, %v9296
  %v9329 = vadd.f32 %v9137, %v9297
  %v9330 = vadd.f32 %v9138, %v9298
  %v9331 = vadd.f32 %v9139, %v9299
  %v9332 = vadd.f32 %v9140, %v9300
  %v9333 = vadd.f32 %v9141, %v9301
  %v9334 = vadd.f32 %v9142, %v9302
  %v9335 = vadd.f32 %v9143, %v9303
  %v9336 = vadd.f32 %v9144, %v9304
  %v9337 = vadd.f32 %v9145, %v9305
  %v9338 = vadd.f32 %v9146, %v9306
  %v9339 = vadd.f32 %v9147, %v9307
  %v9340 = vadd.f32 %v9148, %v9308
  %v9341 = vadd.f32 %v9149, %v9309
  %9342 = vset.pattern.permute.xlu0 6
  %9343 = vperm.xlu0 %9342, %v7790
  %v9344 = vpop.permute.xlu0 %9343
  %9346 = vset.pattern.permute.xlu0 6
  %9347 = vperm.xlu0 %9346, %v7791
  %v9348 = vpop.permute.xlu0 %9347
  %9350 = vset.pattern.permute.xlu0 6
  %9351 = vperm.xlu0 %9350, %v8142
  %v9352 = vpop.permute.xlu0 %9351
  %9354 = vset.pattern.permute.xlu0 6
  %9355 = vperm.xlu0 %9354, %v8143
  %v9356 = vpop.permute.xlu0 %9355
  %9358 = vset.pattern.permute.xlu0 6
  %9359 = vperm.xlu0 %9358, %v7792
  %v9360 = vpop.permute.xlu0 %9359
  %9362 = vset.pattern.permute.xlu0 6
  %9363 = vperm.xlu0 %9362, %v7793
  %v9364 = vpop.permute.xlu0 %9363
  %9366 = vset.pattern.permute.xlu0 6
  %9367 = vperm.xlu0 %9366, %v8144
  %v9368 = vpop.permute.xlu0 %9367
  %9370 = vset.pattern.permute.xlu0 6
  %9371 = vperm.xlu0 %9370, %v8145
  %v9372 = vpop.permute.xlu0 %9371
  %9374 = vset.pattern.permute.xlu0 6
  %9375 = vperm.xlu0 %9374, %v7794
  %v9376 = vpop.permute.xlu0 %9375
  %9378 = vset.pattern.permute.xlu0 6
  %9379 = vperm.xlu0 %9378, %v7795
  %v9380 = vpop.permute.xlu0 %9379
  %9382 = vset.pattern.permute.xlu0 6
  %9383 = vperm.xlu0 %9382, %v8146
  %v9384 = vpop.permute.xlu0 %9383
  %9386 = vset.pattern.permute.xlu0 6
  %9387 = vperm.xlu0 %9386, %v8147
  %v9388 = vpop.permute.xlu0 %9387
  %9390 = vset.pattern.permute.xlu0 6
  %9391 = vperm.xlu0 %9390, %v7796
  %v9392 = vpop.permute.xlu0 %9391
  %9394 = vset.pattern.permute.xlu0 6
  %9395 = vperm.xlu0 %9394, %v7797
  %v9396 = vpop.permute.xlu0 %9395
  %9398 = vset.pattern.permute.xlu0 6
  %9399 = vperm.xlu0 %9398, %v8148
  %v9400 = vpop.permute.xlu0 %9399
  %9402 = vset.pattern.permute.xlu0 6
  %9403 = vperm.xlu0 %9402, %v8149
  %v9404 = vpop.permute.xlu0 %9403
  %9406 = vset.pattern.permute.xlu0 6
  %9407 = vperm.xlu0 %9406, %v7798
  %v9408 = vpop.permute.xlu0 %9407
  %9410 = vset.pattern.permute.xlu0 6
  %9411 = vperm.xlu0 %9410, %v7799
  %v9412 = vpop.permute.xlu0 %9411
  %9414 = vset.pattern.permute.xlu0 6
  %9415 = vperm.xlu0 %9414, %v8150
  %v9416 = vpop.permute.xlu0 %9415
  %9418 = vset.pattern.permute.xlu0 6
  %9419 = vperm.xlu0 %9418, %v8151
  %v9420 = vpop.permute.xlu0 %9419
  %9422 = vset.pattern.permute.xlu0 6
  %9423 = vperm.xlu0 %9422, %v7800
  %v9424 = vpop.permute.xlu0 %9423
  %9426 = vset.pattern.permute.xlu0 6
  %9427 = vperm.xlu0 %9426, %v7801
  %v9428 = vpop.permute.xlu0 %9427
  %9430 = vset.pattern.permute.xlu0 6
  %9431 = vperm.xlu0 %9430, %v8152
  %v9432 = vpop.permute.xlu0 %9431
  %9434 = vset.pattern.permute.xlu0 6
  %9435 = vperm.xlu0 %9434, %v8153
  %v9436 = vpop.permute.xlu0 %9435
  %9438 = vset.pattern.permute.xlu0 6
  %9439 = vperm.xlu0 %9438, %v7802
  %v9440 = vpop.permute.xlu0 %9439
  %9442 = vset.pattern.permute.xlu0 6
  %9443 = vperm.xlu0 %9442, %v7803
  %v9444 = vpop.permute.xlu0 %9443
  %9446 = vset.pattern.permute.xlu0 6
  %9447 = vperm.xlu0 %9446, %v8154
  %v9448 = vpop.permute.xlu0 %9447
  %9450 = vset.pattern.permute.xlu0 6
  %9451 = vperm.xlu0 %9450, %v8155
  %v9452 = vpop.permute.xlu0 %9451
  %9454 = vset.pattern.permute.xlu0 6
  %9455 = vperm.xlu0 %9454, %v7804
  %v9456 = vpop.permute.xlu0 %9455
  %9458 = vset.pattern.permute.xlu0 6
  %9459 = vperm.xlu0 %9458, %v7805
  %v9460 = vpop.permute.xlu0 %9459
  %9462 = vset.pattern.permute.xlu0 6
  %9463 = vperm.xlu0 %9462, %v8156
  %v9464 = vpop.permute.xlu0 %9463
  %9466 = vset.pattern.permute.xlu0 6
  %9467 = vperm.xlu0 %9466, %v8157
  %v9468 = vpop.permute.xlu0 %9467
  %v9470 = vmul.f32 %v9344, %v7597
  %v9471 = vmul.f32 %v9348, %v7597
  %v9472 = vmul.f32 %v9352, %v7597
  %v9473 = vmul.f32 %v9356, %v7597
  %v9474 = vmul.f32 %v9360, %v7597
  %v9475 = vmul.f32 %v9364, %v7597
  %v9476 = vmul.f32 %v9368, %v7597
  %v9477 = vmul.f32 %v9372, %v7597
  %v9478 = vmul.f32 %v9376, %v7597
  %v9479 = vmul.f32 %v9380, %v7597
  %v9480 = vmul.f32 %v9384, %v7597
  %v9481 = vmul.f32 %v9388, %v7597
  %v9482 = vmul.f32 %v9392, %v7597
  %v9483 = vmul.f32 %v9396, %v7597
  %v9484 = vmul.f32 %v9400, %v7597
  %v9485 = vmul.f32 %v9404, %v7597
  %v9486 = vmul.f32 %v9408, %v7597
  %v9487 = vmul.f32 %v9412, %v7597
  %v9488 = vmul.f32 %v9416, %v7597
  %v9489 = vmul.f32 %v9420, %v7597
  %v9490 = vmul.f32 %v9424, %v7597
  %v9491 = vmul.f32 %v9428, %v7597
  %v9492 = vmul.f32 %v9432, %v7597
  %v9493 = vmul.f32 %v9436, %v7597
  %v9494 = vmul.f32 %v9440, %v7597
  %v9495 = vmul.f32 %v9444, %v7597
  %v9496 = vmul.f32 %v9448, %v7597
  %v9497 = vmul.f32 %v9452, %v7597
  %v9498 = vmul.f32 %v9456, %v7597
  %v9499 = vmul.f32 %v9460, %v7597
  %v9500 = vmul.f32 %v9464, %v7597
  %v9501 = vmul.f32 %v9468, %v7597
  %v9502 = vadd.f32 %v9310, %v9470
  %v9503 = vadd.f32 %v9311, %v9471
  %v9504 = vadd.f32 %v9312, %v9472
  %v9505 = vadd.f32 %v9313, %v9473
  %v9506 = vadd.f32 %v9314, %v9474
  %v9507 = vadd.f32 %v9315, %v9475
  %v9508 = vadd.f32 %v9316, %v9476
  %v9509 = vadd.f32 %v9317, %v9477
  %v9510 = vadd.f32 %v9318, %v9478
  %v9511 = vadd.f32 %v9319, %v9479
  %v9512 = vadd.f32 %v9320, %v9480
  %v9513 = vadd.f32 %v9321, %v9481
  %v9514 = vadd.f32 %v9322, %v9482
  %v9515 = vadd.f32 %v9323, %v9483
  %v9516 = vadd.f32 %v9324, %v9484
  %v9517 = vadd.f32 %v9325, %v9485
  %v9518 = vadd.f32 %v9326, %v9486
  %v9519 = vadd.f32 %v9327, %v9487
  %v9520 = vadd.f32 %v9328, %v9488
  %v9521 = vadd.f32 %v9329, %v9489
  %v9522 = vadd.f32 %v9330, %v9490
  %v9523 = vadd.f32 %v9331, %v9491
  %v9524 = vadd.f32 %v9332, %v9492
  %v9525 = vadd.f32 %v9333, %v9493
  %v9526 = vadd.f32 %v9334, %v9494
  %v9527 = vadd.f32 %v9335, %v9495
  %v9528 = vadd.f32 %v9336, %v9496
  %v9529 = vadd.f32 %v9337, %v9497
  %v9530 = vadd.f32 %v9338, %v9498
  %v9531 = vadd.f32 %v9339, %v9499
  %v9532 = vadd.f32 %v9340, %v9500
  %v9533 = vadd.f32 %v9341, %v9501
  %9534 = vset.pattern.permute.xlu0 7
  %9535 = vperm.xlu0 %9534, %v7790
  %v9536 = vpop.permute.xlu0 %9535
  %9538 = vset.pattern.permute.xlu0 7
  %9539 = vperm.xlu0 %9538, %v7791
  %v9540 = vpop.permute.xlu0 %9539
  %9542 = vset.pattern.permute.xlu0 7
  %9543 = vperm.xlu0 %9542, %v8142
  %v9544 = vpop.permute.xlu0 %9543
  %9546 = vset.pattern.permute.xlu0 7
  %9547 = vperm.xlu0 %9546, %v8143
  %v9548 = vpop.permute.xlu0 %9547
  %9550 = vset.pattern.permute.xlu0 7
  %9551 = vperm.xlu0 %9550, %v7792
  %v9552 = vpop.permute.xlu0 %9551
  %9554 = vset.pattern.permute.xlu0 7
  %9555 = vperm.xlu0 %9554, %v7793
  %v9556 = vpop.permute.xlu0 %9555
  %9558 = vset.pattern.permute.xlu0 7
  %9559 = vperm.xlu0 %9558, %v8144
  %v9560 = vpop.permute.xlu0 %9559
  %9562 = vset.pattern.permute.xlu0 7
  %9563 = vperm.xlu0 %9562, %v8145
  %v9564 = vpop.permute.xlu0 %9563
  %9566 = vset.pattern.permute.xlu0 7
  %9567 = vperm.xlu0 %9566, %v7794
  %v9568 = vpop.permute.xlu0 %9567
  %9570 = vset.pattern.permute.xlu0 7
  %9571 = vperm.xlu0 %9570, %v7795
  %v9572 = vpop.permute.xlu0 %9571
  %9574 = vset.pattern.permute.xlu0 7
  %9575 = vperm.xlu0 %9574, %v8146
  %v9576 = vpop.permute.xlu0 %9575
  %9578 = vset.pattern.permute.xlu0 7
  %9579 = vperm.xlu0 %9578, %v8147
  %v9580 = vpop.permute.xlu0 %9579
  %9582 = vset.pattern.permute.xlu0 7
  %9583 = vperm.xlu0 %9582, %v7796
  %v9584 = vpop.permute.xlu0 %9583
  %9586 = vset.pattern.permute.xlu0 7
  %9587 = vperm.xlu0 %9586, %v7797
  %v9588 = vpop.permute.xlu0 %9587
  %9590 = vset.pattern.permute.xlu0 7
  %9591 = vperm.xlu0 %9590, %v8148
  %v9592 = vpop.permute.xlu0 %9591
  %9594 = vset.pattern.permute.xlu0 7
  %9595 = vperm.xlu0 %9594, %v8149
  %v9596 = vpop.permute.xlu0 %9595
  %9598 = vset.pattern.permute.xlu0 7
  %9599 = vperm.xlu0 %9598, %v7798
  %v9600 = vpop.permute.xlu0 %9599
  %9602 = vset.pattern.permute.xlu0 7
  %9603 = vperm.xlu0 %9602, %v7799
  %v9604 = vpop.permute.xlu0 %9603
  %9606 = vset.pattern.permute.xlu0 7
  %9607 = vperm.xlu0 %9606, %v8150
  %v9608 = vpop.permute.xlu0 %9607
  %9610 = vset.pattern.permute.xlu0 7
  %9611 = vperm.xlu0 %9610, %v8151
  %v9612 = vpop.permute.xlu0 %9611
  %9614 = vset.pattern.permute.xlu0 7
  %9615 = vperm.xlu0 %9614, %v7800
  %v9616 = vpop.permute.xlu0 %9615
  %9618 = vset.pattern.permute.xlu0 7
  %9619 = vperm.xlu0 %9618, %v7801
  %v9620 = vpop.permute.xlu0 %9619
  %9622 = vset.pattern.permute.xlu0 7
  %9623 = vperm.xlu0 %9622, %v8152
  %v9624 = vpop.permute.xlu0 %9623
  %9626 = vset.pattern.permute.xlu0 7
  %9627 = vperm.xlu0 %9626, %v8153
  %v9628 = vpop.permute.xlu0 %9627
  %9630 = vset.pattern.permute.xlu0 7
  %9631 = vperm.xlu0 %9630, %v7802
  %v9632 = vpop.permute.xlu0 %9631
  %9634 = vset.pattern.permute.xlu0 7
  %9635 = vperm.xlu0 %9634, %v7803
  %v9636 = vpop.permute.xlu0 %9635
  %9638 = vset.pattern.permute.xlu0 7
  %9639 = vperm.xlu0 %9638, %v8154
  %v9640 = vpop.permute.xlu0 %9639
  %9642 = vset.pattern.permute.xlu0 7
  %9643 = vperm.xlu0 %9642, %v8155
  %v9644 = vpop.permute.xlu0 %9643
  %9646 = vset.pattern.permute.xlu0 7
  %9647 = vperm.xlu0 %9646, %v7804
  %v9648 = vpop.permute.xlu0 %9647
  %9650 = vset.pattern.permute.xlu0 7
  %9651 = vperm.xlu0 %9650, %v7805
  %v9652 = vpop.permute.xlu0 %9651
  %9654 = vset.pattern.permute.xlu0 7
  %9655 = vperm.xlu0 %9654, %v8156
  %v9656 = vpop.permute.xlu0 %9655
  %9658 = vset.pattern.permute.xlu0 7
  %9659 = vperm.xlu0 %9658, %v8157
  %v9660 = vpop.permute.xlu0 %9659
  %v9662 = vmul.f32 %v9536, %v7697
  %v9663 = vmul.f32 %v9540, %v7697
  %v9664 = vmul.f32 %v9544, %v7697
  %v9665 = vmul.f32 %v9548, %v7697
  %v9666 = vmul.f32 %v9552, %v7697
  %v9667 = vmul.f32 %v9556, %v7697
  %v9668 = vmul.f32 %v9560, %v7697
  %v9669 = vmul.f32 %v9564, %v7697
  %v9670 = vmul.f32 %v9568, %v7697
  %v9671 = vmul.f32 %v9572, %v7697
  %v9672 = vmul.f32 %v9576, %v7697
  %v9673 = vmul.f32 %v9580, %v7697
  %v9674 = vmul.f32 %v9584, %v7697
  %v9675 = vmul.f32 %v9588, %v7697
  %v9676 = vmul.f32 %v9592, %v7697
  %v9677 = vmul.f32 %v9596, %v7697
  %v9678 = vmul.f32 %v9600, %v7697
  %v9679 = vmul.f32 %v9604, %v7697
  %v9680 = vmul.f32 %v9608, %v7697
  %v9681 = vmul.f32 %v9612, %v7697
  %v9682 = vmul.f32 %v9616, %v7697
  %v9683 = vmul.f32 %v9620, %v7697
  %v9684 = vmul.f32 %v9624, %v7697
  %v9685 = vmul.f32 %v9628, %v7697
  %v9686 = vmul.f32 %v9632, %v7697
  %v9687 = vmul.f32 %v9636, %v7697
  %v9688 = vmul.f32 %v9640, %v7697
  %v9689 = vmul.f32 %v9644, %v7697
  %v9690 = vmul.f32 %v9648, %v7697
  %v9691 = vmul.f32 %v9652, %v7697
  %v9692 = vmul.f32 %v9656, %v7697
  %v9693 = vmul.f32 %v9660, %v7697
  %v9694 = vadd.f32 %v9502, %v9662
  %v9695 = vadd.f32 %v9503, %v9663
  %v9696 = vadd.f32 %v9504, %v9664
  %v9697 = vadd.f32 %v9505, %v9665
  %v9698 = vadd.f32 %v9506, %v9666
  %v9699 = vadd.f32 %v9507, %v9667
  %v9700 = vadd.f32 %v9508, %v9668
  %v9701 = vadd.f32 %v9509, %v9669
  %v9702 = vadd.f32 %v9510, %v9670
  %v9703 = vadd.f32 %v9511, %v9671
  %v9704 = vadd.f32 %v9512, %v9672
  %v9705 = vadd.f32 %v9513, %v9673
  %v9706 = vadd.f32 %v9514, %v9674
  %v9707 = vadd.f32 %v9515, %v9675
  %v9708 = vadd.f32 %v9516, %v9676
  %v9709 = vadd.f32 %v9517, %v9677
  %v9710 = vadd.f32 %v9518, %v9678
  %v9711 = vadd.f32 %v9519, %v9679
  %v9712 = vadd.f32 %v9520, %v9680
  %v9713 = vadd.f32 %v9521, %v9681
  %v9714 = vadd.f32 %v9522, %v9682
  %v9715 = vadd.f32 %v9523, %v9683
  %v9716 = vadd.f32 %v9524, %v9684
  %v9717 = vadd.f32 %v9525, %v9685
  %v9718 = vadd.f32 %v9526, %v9686
  %v9719 = vadd.f32 %v9527, %v9687
  %v9720 = vadd.f32 %v9528, %v9688
  %v9721 = vadd.f32 %v9529, %v9689
  %v9722 = vadd.f32 %v9530, %v9690
  %v9723 = vadd.f32 %v9531, %v9691
  %v9724 = vadd.f32 %v9532, %v9692
  %v9725 = vadd.f32 %v9533, %v9693
  %v9726 = vadd.f32 %v9694, %v7734
  %v9727 = vadd.f32 %v9695, %v7734
  %v9728 = vadd.f32 %v9696, %v7734
  %v9729 = vadd.f32 %v9697, %v7734
  %v9730 = vadd.f32 %v9698, %v7734
  %v9731 = vadd.f32 %v9699, %v7734
  %v9732 = vadd.f32 %v9700, %v7734
  %v9733 = vadd.f32 %v9701, %v7734
  %v9734 = vadd.f32 %v9702, %v7734
  %v9735 = vadd.f32 %v9703, %v7734
  %v9736 = vadd.f32 %v9704, %v7734
  %v9737 = vadd.f32 %v9705, %v7734
  %v9738 = vadd.f32 %v9706, %v7734
  %v9739 = vadd.f32 %v9707, %v7734
  %v9740 = vadd.f32 %v9708, %v7734
  %v9741 = vadd.f32 %v9709, %v7734
  %v9742 = vadd.f32 %v9710, %v7734
  %v9743 = vadd.f32 %v9711, %v7734
  %v9744 = vadd.f32 %v9712, %v7734
  %v9745 = vadd.f32 %v9713, %v7734
  %v9746 = vadd.f32 %v9714, %v7734
  %v9747 = vadd.f32 %v9715, %v7734
  %v9748 = vadd.f32 %v9716, %v7734
  %v9749 = vadd.f32 %v9717, %v7734
  %v9750 = vadd.f32 %v9718, %v7734
  %v9751 = vadd.f32 %v9719, %v7734
  %v9752 = vadd.f32 %v9720, %v7734
  %v9753 = vadd.f32 %v9721, %v7734
  %v9754 = vadd.f32 %v9722, %v7734
  %v9755 = vadd.f32 %v9723, %v7734
  %v9756 = vadd.f32 %v9724, %v7734
  %v9757 = vadd.f32 %v9725, %v7734
  %vm9758 = vcmp.ge.f32.partialorder %v9726, 0.0
  %vm9759 = vcmp.ge.f32.partialorder %v9727, 0.0
  %vm9760 = vcmp.ge.f32.partialorder %v9728, 0.0
  %vm9761 = vcmp.ge.f32.partialorder %v9729, 0.0
  %vm9762 = vcmp.ge.f32.partialorder %v9730, 0.0
  %vm9763 = vcmp.ge.f32.partialorder %v9731, 0.0
  %vm9764 = vcmp.ge.f32.partialorder %v9732, 0.0
  %vm9765 = vcmp.ge.f32.partialorder %v9733, 0.0
  %vm9766 = vcmp.ge.f32.partialorder %v9734, 0.0
  %vm9767 = vcmp.ge.f32.partialorder %v9735, 0.0
  %vm9768 = vcmp.ge.f32.partialorder %v9736, 0.0
  %vm9769 = vcmp.ge.f32.partialorder %v9737, 0.0
  %vm9770 = vcmp.ge.f32.partialorder %v9738, 0.0
  %vm9771 = vcmp.ge.f32.partialorder %v9739, 0.0
  %vm9772 = vcmp.ge.f32.partialorder %v9740, 0.0
  %vm9773 = vcmp.ge.f32.partialorder %v9741, 0.0
  %vm9774 = vcmp.ge.f32.partialorder %v9742, 0.0
  %vm9775 = vcmp.ge.f32.partialorder %v9743, 0.0
  %vm9776 = vcmp.ge.f32.partialorder %v9744, 0.0
  %vm9777 = vcmp.ge.f32.partialorder %v9745, 0.0
  %vm9778 = vcmp.ge.f32.partialorder %v9746, 0.0
  %vm9779 = vcmp.ge.f32.partialorder %v9747, 0.0
  %vm9780 = vcmp.ge.f32.partialorder %v9748, 0.0
  %vm9781 = vcmp.ge.f32.partialorder %v9749, 0.0
  %vm9782 = vcmp.ge.f32.partialorder %v9750, 0.0
  %vm9783 = vcmp.ge.f32.partialorder %v9751, 0.0
  %vm9784 = vcmp.ge.f32.partialorder %v9752, 0.0
  %vm9785 = vcmp.ge.f32.partialorder %v9753, 0.0
  %vm9786 = vcmp.ge.f32.partialorder %v9754, 0.0
  %vm9787 = vcmp.ge.f32.partialorder %v9755, 0.0
  %vm9788 = vcmp.ge.f32.partialorder %v9756, 0.0
  %vm9789 = vcmp.ge.f32.partialorder %v9757, 0.0
  %v9790 = vmul.f32 %v7772, %v9726
  %v9791 = vmul.f32 %v7772, %v9727
  %v9792 = vmul.f32 %v7772, %v9728
  %v9793 = vmul.f32 %v7772, %v9729
  %v9794 = vmul.f32 %v7772, %v9730
  %v9795 = vmul.f32 %v7772, %v9731
  %v9796 = vmul.f32 %v7772, %v9732
  %v9797 = vmul.f32 %v7772, %v9733
  %v9798 = vmul.f32 %v7772, %v9734
  %v9799 = vmul.f32 %v7772, %v9735
  %v9800 = vmul.f32 %v7772, %v9736
  %v9801 = vmul.f32 %v7772, %v9737
  %v9802 = vmul.f32 %v7772, %v9738
  %v9803 = vmul.f32 %v7772, %v9739
  %v9804 = vmul.f32 %v7772, %v9740
  %v9805 = vmul.f32 %v7772, %v9741
  %v9806 = vmul.f32 %v7772, %v9742
  %v9807 = vmul.f32 %v7772, %v9743
  %v9808 = vmul.f32 %v7772, %v9744
  %v9809 = vmul.f32 %v7772, %v9745
  %v9810 = vmul.f32 %v7772, %v9746
  %v9811 = vmul.f32 %v7772, %v9747
  %v9812 = vmul.f32 %v7772, %v9748
  %v9813 = vmul.f32 %v7772, %v9749
  %v9814 = vmul.f32 %v7772, %v9750
  %v9815 = vmul.f32 %v7772, %v9751
  %v9816 = vmul.f32 %v7772, %v9752
  %v9817 = vmul.f32 %v7772, %v9753
  %v9818 = vmul.f32 %v7772, %v9754
  %v9819 = vmul.f32 %v7772, %v9755
  %v9820 = vmul.f32 %v7772, %v9756
  %v9821 = vmul.f32 %v7772, %v9757
  %v9822 = vsel %vm9758, %v9726, %v9790
  %v9823 = vsel %vm9759, %v9727, %v9791
  %v9824 = vsel %vm9760, %v9728, %v9792
  %v9825 = vsel %vm9761, %v9729, %v9793
  %v9826 = vsel %vm9762, %v9730, %v9794
  %v9827 = vsel %vm9763, %v9731, %v9795
  %v9828 = vsel %vm9764, %v9732, %v9796
  %v9829 = vsel %vm9765, %v9733, %v9797
  %v9830 = vsel %vm9766, %v9734, %v9798
  %v9831 = vsel %vm9767, %v9735, %v9799
  %v9832 = vsel %vm9768, %v9736, %v9800
  %v9833 = vsel %vm9769, %v9737, %v9801
  %v9834 = vsel %vm9770, %v9738, %v9802
  %v9835 = vsel %vm9771, %v9739, %v9803
  %v9836 = vsel %vm9772, %v9740, %v9804
  %v9837 = vsel %vm9773, %v9741, %v9805
  %v9838 = vsel %vm9774, %v9742, %v9806
  %v9839 = vsel %vm9775, %v9743, %v9807
  %v9840 = vsel %vm9776, %v9744, %v9808
  %v9841 = vsel %vm9777, %v9745, %v9809
  %v9842 = vsel %vm9778, %v9746, %v9810
  %v9843 = vsel %vm9779, %v9747, %v9811
  %v9844 = vsel %vm9780, %v9748, %v9812
  %v9845 = vsel %vm9781, %v9749, %v9813
  %v9846 = vsel %vm9782, %v9750, %v9814
  %v9847 = vsel %vm9783, %v9751, %v9815
  %v9848 = vsel %vm9784, %v9752, %v9816
  %v9849 = vsel %vm9785, %v9753, %v9817
  %v9850 = vsel %vm9786, %v9754, %v9818
  %v9851 = vsel %vm9787, %v9755, %v9819
  %v9852 = vsel %vm9788, %v9756, %v9820
  %v9853 = vsel %vm9789, %v9757, %v9821
  %v9854 = vmul.f32 %v8161, %v7809
  %v9855 = vmul.f32 %v8166, %v7809
  %v9856 = vmul.f32 %v8171, %v7809
  %v9857 = vmul.f32 %v8176, %v7809
  %v9858 = vmul.f32 %v8181, %v7809
  %v9859 = vmul.f32 %v8186, %v7809
  %v9860 = vmul.f32 %v8191, %v7809
  %v9861 = vmul.f32 %v8196, %v7809
  %v9862 = vmul.f32 %v8201, %v7809
  %v9863 = vmul.f32 %v8206, %v7809
  %v9864 = vmul.f32 %v8211, %v7809
  %v9865 = vmul.f32 %v8216, %v7809
  %v9866 = vmul.f32 %v8221, %v7809
  %v9867 = vmul.f32 %v8226, %v7809
  %v9868 = vmul.f32 %v8231, %v7809
  %v9869 = vmul.f32 %v8236, %v7809
  %v9870 = vmul.f32 %v8241, %v7809
  %v9871 = vmul.f32 %v8246, %v7809
  %v9872 = vmul.f32 %v8251, %v7809
  %v9873 = vmul.f32 %v8256, %v7809
  %v9874 = vmul.f32 %v8261, %v7809
  %v9875 = vmul.f32 %v8266, %v7809
  %v9876 = vmul.f32 %v8271, %v7809
  %v9877 = vmul.f32 %v8276, %v7809
  %v9878 = vmul.f32 %v8281, %v7809
  %v9879 = vmul.f32 %v8286, %v7809
  %v9880 = vmul.f32 %v8291, %v7809
  %v9881 = vmul.f32 %v8296, %v7809
  %v9882 = vmul.f32 %v8301, %v7809
  %v9883 = vmul.f32 %v8306, %v7809
  %v9884 = vmul.f32 %v8311, %v7809
  %v9885 = vmul.f32 %v8316, %v7809
  %v9886 = vadd.f32 %v9854, 0.0
  %v9887 = vadd.f32 %v9855, 0.0
  %v9888 = vadd.f32 %v9856, 0.0
  %v9889 = vadd.f32 %v9857, 0.0
  %v9890 = vadd.f32 %v9858, 0.0
  %v9891 = vadd.f32 %v9859, 0.0
  %v9892 = vadd.f32 %v9860, 0.0
  %v9893 = vadd.f32 %v9861, 0.0
  %v9894 = vadd.f32 %v9862, 0.0
  %v9895 = vadd.f32 %v9863, 0.0
  %v9896 = vadd.f32 %v9864, 0.0
  %v9897 = vadd.f32 %v9865, 0.0
  %v9898 = vadd.f32 %v9866, 0.0
  %v9899 = vadd.f32 %v9867, 0.0
  %v9900 = vadd.f32 %v9868, 0.0
  %v9901 = vadd.f32 %v9869, 0.0
  %v9902 = vadd.f32 %v9870, 0.0
  %v9903 = vadd.f32 %v9871, 0.0
  %v9904 = vadd.f32 %v9872, 0.0
  %v9905 = vadd.f32 %v9873, 0.0
  %v9906 = vadd.f32 %v9874, 0.0
  %v9907 = vadd.f32 %v9875, 0.0
  %v9908 = vadd.f32 %v9876, 0.0
  %v9909 = vadd.f32 %v9877, 0.0
  %v9910 = vadd.f32 %v9878, 0.0
  %v9911 = vadd.f32 %v9879, 0.0
  %v9912 = vadd.f32 %v9880, 0.0
  %v9913 = vadd.f32 %v9881, 0.0
  %v9914 = vadd.f32 %v9882, 0.0
  %v9915 = vadd.f32 %v9883, 0.0
  %v9916 = vadd.f32 %v9884, 0.0
  %v9917 = vadd.f32 %v9885, 0.0
  %v9918 = vmul.f32 %v8384, %v7845
  %v9919 = vmul.f32 %v8388, %v7845
  %v9920 = vmul.f32 %v8392, %v7845
  %v9921 = vmul.f32 %v8396, %v7845
  %v9922 = vmul.f32 %v8400, %v7845
  %v9923 = vmul.f32 %v8404, %v7845
  %v9924 = vmul.f32 %v8408, %v7845
  %v9925 = vmul.f32 %v8412, %v7845
  %v9926 = vmul.f32 %v8416, %v7845
  %v9927 = vmul.f32 %v8420, %v7845
  %v9928 = vmul.f32 %v8424, %v7845
  %v9929 = vmul.f32 %v8428, %v7845
  %v9930 = vmul.f32 %v8432, %v7845
  %v9931 = vmul.f32 %v8436, %v7845
  %v9932 = vmul.f32 %v8440, %v7845
  %v9933 = vmul.f32 %v8444, %v7845
  %v9934 = vmul.f32 %v8448, %v7845
  %v9935 = vmul.f32 %v8452, %v7845
  %v9936 = vmul.f32 %v8456, %v7845
  %v9937 = vmul.f32 %v8460, %v7845
  %v9938 = vmul.f32 %v8464, %v7845
  %v9939 = vmul.f32 %v8468, %v7845
  %v9940 = vmul.f32 %v8472, %v7845
  %v9941 = vmul.f32 %v8476, %v7845
  %v9942 = vmul.f32 %v8480, %v7845
  %v9943 = vmul.f32 %v8484, %v7845
  %v9944 = vmul.f32 %v8488, %v7845
  %v9945 = vmul.f32 %v8492, %v7845
  %v9946 = vmul.f32 %v8496, %v7845
  %v9947 = vmul.f32 %v8500, %v7845
  %v9948 = vmul.f32 %v8504, %v7845
  %v9949 = vmul.f32 %v8508, %v7845
  %v9950 = vadd.f32 %v9886, %v9918
  %v9951 = vadd.f32 %v9887, %v9919
  %v9952 = vadd.f32 %v9888, %v9920
  %v9953 = vadd.f32 %v9889, %v9921
  %v9954 = vadd.f32 %v9890, %v9922
  %v9955 = vadd.f32 %v9891, %v9923
  %v9956 = vadd.f32 %v9892, %v9924
  %v9957 = vadd.f32 %v9893, %v9925
  %v9958 = vadd.f32 %v9894, %v9926
  %v9959 = vadd.f32 %v9895, %v9927
  %v9960 = vadd.f32 %v9896, %v9928
  %v9961 = vadd.f32 %v9897, %v9929
  %v9962 = vadd.f32 %v9898, %v9930
  %v9963 = vadd.f32 %v9899, %v9931
  %v9964 = vadd.f32 %v9900, %v9932
  %v9965 = vadd.f32 %v9901, %v9933
  %v9966 = vadd.f32 %v9902, %v9934
  %v9967 = vadd.f32 %v9903, %v9935
  %v9968 = vadd.f32 %v9904, %v9936
  %v9969 = vadd.f32 %v9905, %v9937
  %v9970 = vadd.f32 %v9906, %v9938
  %v9971 = vadd.f32 %v9907, %v9939
  %v9972 = vadd.f32 %v9908, %v9940
  %v9973 = vadd.f32 %v9909, %v9941
  %v9974 = vadd.f32 %v9910, %v9942
  %v9975 = vadd.f32 %v9911, %v9943
  %v9976 = vadd.f32 %v9912, %v9944
  %v9977 = vadd.f32 %v9913, %v9945
  %v9978 = vadd.f32 %v9914, %v9946
  %v9979 = vadd.f32 %v9915, %v9947
  %v9980 = vadd.f32 %v9916, %v9948
  %v9981 = vadd.f32 %v9917, %v9949
  %v9982 = vmul.f32 %v8576, %v7881
  %v9983 = vmul.f32 %v8580, %v7881
  %v9984 = vmul.f32 %v8584, %v7881
  %v9985 = vmul.f32 %v8588, %v7881
  %v9986 = vmul.f32 %v8592, %v7881
  %v9987 = vmul.f32 %v8596, %v7881
  %v9988 = vmul.f32 %v8600, %v7881
  %v9989 = vmul.f32 %v8604, %v7881
  %v9990 = vmul.f32 %v8608, %v7881
  %v9991 = vmul.f32 %v8612, %v7881
  %v9992 = vmul.f32 %v8616, %v7881
  %v9993 = vmul.f32 %v8620, %v7881
  %v9994 = vmul.f32 %v8624, %v7881
  %v9995 = vmul.f32 %v8628, %v7881
  %v9996 = vmul.f32 %v8632, %v7881
  %v9997 = vmul.f32 %v8636, %v7881
  %v9998 = vmul.f32 %v8640, %v7881
  %v9999 = vmul.f32 %v8644, %v7881
  %v10000 = vmul.f32 %v8648, %v7881
  %v10001 = vmul.f32 %v8652, %v7881
  %v10002 = vmul.f32 %v8656, %v7881
  %v10003 = vmul.f32 %v8660, %v7881
  %v10004 = vmul.f32 %v8664, %v7881
  %v10005 = vmul.f32 %v8668, %v7881
  %v10006 = vmul.f32 %v8672, %v7881
  %v10007 = vmul.f32 %v8676, %v7881
  %v10008 = vmul.f32 %v8680, %v7881
  %v10009 = vmul.f32 %v8684, %v7881
  %v10010 = vmul.f32 %v8688, %v7881
  %v10011 = vmul.f32 %v8692, %v7881
  %v10012 = vmul.f32 %v8696, %v7881
  %v10013 = vmul.f32 %v8700, %v7881
  %v10014 = vadd.f32 %v9950, %v9982
  %v10015 = vadd.f32 %v9951, %v9983
  %v10016 = vadd.f32 %v9952, %v9984
  %v10017 = vadd.f32 %v9953, %v9985
  %v10018 = vadd.f32 %v9954, %v9986
  %v10019 = vadd.f32 %v9955, %v9987
  %v10020 = vadd.f32 %v9956, %v9988
  %v10021 = vadd.f32 %v9957, %v9989
  %v10022 = vadd.f32 %v9958, %v9990
  %v10023 = vadd.f32 %v9959, %v9991
  %v10024 = vadd.f32 %v9960, %v9992
  %v10025 = vadd.f32 %v9961, %v9993
  %v10026 = vadd.f32 %v9962, %v9994
  %v10027 = vadd.f32 %v9963, %v9995
  %v10028 = vadd.f32 %v9964, %v9996
  %v10029 = vadd.f32 %v9965, %v9997
  %v10030 = vadd.f32 %v9966, %v9998
  %v10031 = vadd.f32 %v9967, %v9999
  %v10032 = vadd.f32 %v9968, %v10000
  %v10033 = vadd.f32 %v9969, %v10001
  %v10034 = vadd.f32 %v9970, %v10002
  %v10035 = vadd.f32 %v9971, %v10003
  %v10036 = vadd.f32 %v9972, %v10004
  %v10037 = vadd.f32 %v9973, %v10005
  %v10038 = vadd.f32 %v9974, %v10006
  %v10039 = vadd.f32 %v9975, %v10007
  %v10040 = vadd.f32 %v9976, %v10008
  %v10041 = vadd.f32 %v9977, %v10009
  %v10042 = vadd.f32 %v9978, %v10010
  %v10043 = vadd.f32 %v9979, %v10011
  %v10044 = vadd.f32 %v9980, %v10012
  %v10045 = vadd.f32 %v9981, %v10013
  %v10046 = vmul.f32 %v8768, %v7917
  %v10047 = vmul.f32 %v8772, %v7917
  %v10048 = vmul.f32 %v8776, %v7917
  %v10049 = vmul.f32 %v8780, %v7917
  %v10050 = vmul.f32 %v8784, %v7917
  %v10051 = vmul.f32 %v8788, %v7917
  %v10052 = vmul.f32 %v8792, %v7917
  %v10053 = vmul.f32 %v8796, %v7917
  %v10054 = vmul.f32 %v8800, %v7917
  %v10055 = vmul.f32 %v8804, %v7917
  %v10056 = vmul.f32 %v8808, %v7917
  %v10057 = vmul.f32 %v8812, %v7917
  %v10058 = vmul.f32 %v8816, %v7917
  %v10059 = vmul.f32 %v8820, %v7917
  %v10060 = vmul.f32 %v8824, %v7917
  %v10061 = vmul.f32 %v8828, %v7917
  %v10062 = vmul.f32 %v8832, %v7917
  %v10063 = vmul.f32 %v8836, %v7917
  %v10064 = vmul.f32 %v8840, %v7917
  %v10065 = vmul.f32 %v8844, %v7917
  %v10066 = vmul.f32 %v8848, %v7917
  %v10067 = vmul.f32 %v8852, %v7917
  %v10068 = vmul.f32 %v8856, %v7917
  %v10069 = vmul.f32 %v8860, %v7917
  %v10070 = vmul.f32 %v8864, %v7917
  %v10071 = vmul.f32 %v8868, %v7917
  %v10072 = vmul.f32 %v8872, %v7917
  %v10073 = vmul.f32 %v8876, %v7917
  %v10074 = vmul.f32 %v8880, %v7917
  %v10075 = vmul.f32 %v8884, %v7917
  %v10076 = vmul.f32 %v8888, %v7917
  %v10077 = vmul.f32 %v8892, %v7917
  %v10078 = vadd.f32 %v10014, %v10046
  %v10079 = vadd.f32 %v10015, %v10047
  %v10080 = vadd.f32 %v10016, %v10048
  %v10081 = vadd.f32 %v10017, %v10049
  %v10082 = vadd.f32 %v10018, %v10050
  %v10083 = vadd.f32 %v10019, %v10051
  %v10084 = vadd.f32 %v10020, %v10052
  %v10085 = vadd.f32 %v10021, %v10053
  %v10086 = vadd.f32 %v10022, %v10054
  %v10087 = vadd.f32 %v10023, %v10055
  %v10088 = vadd.f32 %v10024, %v10056
  %v10089 = vadd.f32 %v10025, %v10057
  %v10090 = vadd.f32 %v10026, %v10058
  %v10091 = vadd.f32 %v10027, %v10059
  %v10092 = vadd.f32 %v10028, %v10060
  %v10093 = vadd.f32 %v10029, %v10061
  %v10094 = vadd.f32 %v10030, %v10062
  %v10095 = vadd.f32 %v10031, %v10063
  %v10096 = vadd.f32 %v10032, %v10064
  %v10097 = vadd.f32 %v10033, %v10065
  %v10098 = vadd.f32 %v10034, %v10066
  %v10099 = vadd.f32 %v10035, %v10067
  %v10100 = vadd.f32 %v10036, %v10068
  %v10101 = vadd.f32 %v10037, %v10069
  %v10102 = vadd.f32 %v10038, %v10070
  %v10103 = vadd.f32 %v10039, %v10071
  %v10104 = vadd.f32 %v10040, %v10072
  %v10105 = vadd.f32 %v10041, %v10073
  %v10106 = vadd.f32 %v10042, %v10074
  %v10107 = vadd.f32 %v10043, %v10075
  %v10108 = vadd.f32 %v10044, %v10076
  %v10109 = vadd.f32 %v10045, %v10077
  %v10110 = vmul.f32 %v8960, %v7953
  %v10111 = vmul.f32 %v8964, %v7953
  %v10112 = vmul.f32 %v8968, %v7953
  %v10113 = vmul.f32 %v8972, %v7953
  %v10114 = vmul.f32 %v8976, %v7953
  %v10115 = vmul.f32 %v8980, %v7953
  %v10116 = vmul.f32 %v8984, %v7953
  %v10117 = vmul.f32 %v8988, %v7953
  %v10118 = vmul.f32 %v8992, %v7953
  %v10119 = vmul.f32 %v8996, %v7953
  %v10120 = vmul.f32 %v9000, %v7953
  %v10121 = vmul.f32 %v9004, %v7953
  %v10122 = vmul.f32 %v9008, %v7953
  %v10123 = vmul.f32 %v9012, %v7953
  %v10124 = vmul.f32 %v9016, %v7953
  %v10125 = vmul.f32 %v9020, %v7953
  %v10126 = vmul.f32 %v9024, %v7953
  %v10127 = vmul.f32 %v9028, %v7953
  %v10128 = vmul.f32 %v9032, %v7953
  %v10129 = vmul.f32 %v9036, %v7953
  %v10130 = vmul.f32 %v9040, %v7953
  %v10131 = vmul.f32 %v9044, %v7953
  %v10132 = vmul.f32 %v9048, %v7953
  %v10133 = vmul.f32 %v9052, %v7953
  %v10134 = vmul.f32 %v9056, %v7953
  %v10135 = vmul.f32 %v9060, %v7953
  %v10136 = vmul.f32 %v9064, %v7953
  %v10137 = vmul.f32 %v9068, %v7953
  %v10138 = vmul.f32 %v9072, %v7953
  %v10139 = vmul.f32 %v9076, %v7953
  %v10140 = vmul.f32 %v9080, %v7953
  %v10141 = vmul.f32 %v9084, %v7953
  %v10142 = vadd.f32 %v10078, %v10110
  %v10143 = vadd.f32 %v10079, %v10111
  %v10144 = vadd.f32 %v10080, %v10112
  %v10145 = vadd.f32 %v10081, %v10113
  %v10146 = vadd.f32 %v10082, %v10114
  %v10147 = vadd.f32 %v10083, %v10115
  %v10148 = vadd.f32 %v10084, %v10116
  %v10149 = vadd.f32 %v10085, %v10117
  %v10150 = vadd.f32 %v10086, %v10118
  %v10151 = vadd.f32 %v10087, %v10119
  %v10152 = vadd.f32 %v10088, %v10120
  %v10153 = vadd.f32 %v10089, %v10121
  %v10154 = vadd.f32 %v10090, %v10122
  %v10155 = vadd.f32 %v10091, %v10123
  %v10156 = vadd.f32 %v10092, %v10124
  %v10157 = vadd.f32 %v10093, %v10125
  %v10158 = vadd.f32 %v10094, %v10126
  %v10159 = vadd.f32 %v10095, %v10127
  %v10160 = vadd.f32 %v10096, %v10128
  %v10161 = vadd.f32 %v10097, %v10129
  %v10162 = vadd.f32 %v10098, %v10130
  %v10163 = vadd.f32 %v10099, %v10131
  %v10164 = vadd.f32 %v10100, %v10132
  %v10165 = vadd.f32 %v10101, %v10133
  %v10166 = vadd.f32 %v10102, %v10134
  %v10167 = vadd.f32 %v10103, %v10135
  %v10168 = vadd.f32 %v10104, %v10136
  %v10169 = vadd.f32 %v10105, %v10137
  %v10170 = vadd.f32 %v10106, %v10138
  %v10171 = vadd.f32 %v10107, %v10139
  %v10172 = vadd.f32 %v10108, %v10140
  %v10173 = vadd.f32 %v10109, %v10141
  %v10174 = vmul.f32 %v9152, %v7989
  %v10175 = vmul.f32 %v9156, %v7989
  %v10176 = vmul.f32 %v9160, %v7989
  %v10177 = vmul.f32 %v9164, %v7989
  %v10178 = vmul.f32 %v9168, %v7989
  %v10179 = vmul.f32 %v9172, %v7989
  %v10180 = vmul.f32 %v9176, %v7989
  %v10181 = vmul.f32 %v9180, %v7989
  %v10182 = vmul.f32 %v9184, %v7989
  %v10183 = vmul.f32 %v9188, %v7989
  %v10184 = vmul.f32 %v9192, %v7989
  %v10185 = vmul.f32 %v9196, %v7989
  %v10186 = vmul.f32 %v9200, %v7989
  %v10187 = vmul.f32 %v9204, %v7989
  %v10188 = vmul.f32 %v9208, %v7989
  %v10189 = vmul.f32 %v9212, %v7989
  %v10190 = vmul.f32 %v9216, %v7989
  %v10191 = vmul.f32 %v9220, %v7989
  %v10192 = vmul.f32 %v9224, %v7989
  %v10193 = vmul.f32 %v9228, %v7989
  %v10194 = vmul.f32 %v9232, %v7989
  %v10195 = vmul.f32 %v9236, %v7989
  %v10196 = vmul.f32 %v9240, %v7989
  %v10197 = vmul.f32 %v9244, %v7989
  %v10198 = vmul.f32 %v9248, %v7989
  %v10199 = vmul.f32 %v9252, %v7989
  %v10200 = vmul.f32 %v9256, %v7989
  %v10201 = vmul.f32 %v9260, %v7989
  %v10202 = vmul.f32 %v9264, %v7989
  %v10203 = vmul.f32 %v9268, %v7989
  %v10204 = vmul.f32 %v9272, %v7989
  %v10205 = vmul.f32 %v9276, %v7989
  %v10206 = vadd.f32 %v10142, %v10174
  %v10207 = vadd.f32 %v10143, %v10175
  %v10208 = vadd.f32 %v10144, %v10176
  %v10209 = vadd.f32 %v10145, %v10177
  %v10210 = vadd.f32 %v10146, %v10178
  %v10211 = vadd.f32 %v10147, %v10179
  %v10212 = vadd.f32 %v10148, %v10180
  %v10213 = vadd.f32 %v10149, %v10181
  %v10214 = vadd.f32 %v10150, %v10182
  %v10215 = vadd.f32 %v10151, %v10183
  %v10216 = vadd.f32 %v10152, %v10184
  %v10217 = vadd.f32 %v10153, %v10185
  %v10218 = vadd.f32 %v10154, %v10186
  %v10219 = vadd.f32 %v10155, %v10187
  %v10220 = vadd.f32 %v10156, %v10188
  %v10221 = vadd.f32 %v10157, %v10189
  %v10222 = vadd.f32 %v10158, %v10190
  %v10223 = vadd.f32 %v10159, %v10191
  %v10224 = vadd.f32 %v10160, %v10192
  %v10225 = vadd.f32 %v10161, %v10193
  %v10226 = vadd.f32 %v10162, %v10194
  %v10227 = vadd.f32 %v10163, %v10195
  %v10228 = vadd.f32 %v10164, %v10196
  %v10229 = vadd.f32 %v10165, %v10197
  %v10230 = vadd.f32 %v10166, %v10198
  %v10231 = vadd.f32 %v10167, %v10199
  %v10232 = vadd.f32 %v10168, %v10200
  %v10233 = vadd.f32 %v10169, %v10201
  %v10234 = vadd.f32 %v10170, %v10202
  %v10235 = vadd.f32 %v10171, %v10203
  %v10236 = vadd.f32 %v10172, %v10204
  %v10237 = vadd.f32 %v10173, %v10205
  %v10238 = vmul.f32 %v9344, %v8025
  %v10239 = vmul.f32 %v9348, %v8025
  %v10240 = vmul.f32 %v9352, %v8025
  %v10241 = vmul.f32 %v9356, %v8025
  %v10242 = vmul.f32 %v9360, %v8025
  %v10243 = vmul.f32 %v9364, %v8025
  %v10244 = vmul.f32 %v9368, %v8025
  %v10245 = vmul.f32 %v9372, %v8025
  %v10246 = vmul.f32 %v9376, %v8025
  %v10247 = vmul.f32 %v9380, %v8025
  %v10248 = vmul.f32 %v9384, %v8025
  %v10249 = vmul.f32 %v9388, %v8025
  %v10250 = vmul.f32 %v9392, %v8025
  %v10251 = vmul.f32 %v9396, %v8025
  %v10252 = vmul.f32 %v9400, %v8025
  %v10253 = vmul.f32 %v9404, %v8025
  %v10254 = vmul.f32 %v9408, %v8025
  %v10255 = vmul.f32 %v9412, %v8025
  %v10256 = vmul.f32 %v9416, %v8025
  %v10257 = vmul.f32 %v9420, %v8025
  %v10258 = vmul.f32 %v9424, %v8025
  %v10259 = vmul.f32 %v9428, %v8025
  %v10260 = vmul.f32 %v9432, %v8025
  %v10261 = vmul.f32 %v9436, %v8025
  %v10262 = vmul.f32 %v9440, %v8025
  %v10263 = vmul.f32 %v9444, %v8025
  %v10264 = vmul.f32 %v9448, %v8025
  %v10265 = vmul.f32 %v9452, %v8025
  %v10266 = vmul.f32 %v9456, %v8025
  %v10267 = vmul.f32 %v9460, %v8025
  %v10268 = vmul.f32 %v9464, %v8025
  %v10269 = vmul.f32 %v9468, %v8025
  %v10270 = vadd.f32 %v10206, %v10238
  %v10271 = vadd.f32 %v10207, %v10239
  %v10272 = vadd.f32 %v10208, %v10240
  %v10273 = vadd.f32 %v10209, %v10241
  %v10274 = vadd.f32 %v10210, %v10242
  %v10275 = vadd.f32 %v10211, %v10243
  %v10276 = vadd.f32 %v10212, %v10244
  %v10277 = vadd.f32 %v10213, %v10245
  %v10278 = vadd.f32 %v10214, %v10246
  %v10279 = vadd.f32 %v10215, %v10247
  %v10280 = vadd.f32 %v10216, %v10248
  %v10281 = vadd.f32 %v10217, %v10249
  %v10282 = vadd.f32 %v10218, %v10250
  %v10283 = vadd.f32 %v10219, %v10251
  %v10284 = vadd.f32 %v10220, %v10252
  %v10285 = vadd.f32 %v10221, %v10253
  %v10286 = vadd.f32 %v10222, %v10254
  %v10287 = vadd.f32 %v10223, %v10255
  %v10288 = vadd.f32 %v10224, %v10256
  %v10289 = vadd.f32 %v10225, %v10257
  %v10290 = vadd.f32 %v10226, %v10258
  %v10291 = vadd.f32 %v10227, %v10259
  %v10292 = vadd.f32 %v10228, %v10260
  %v10293 = vadd.f32 %v10229, %v10261
  %v10294 = vadd.f32 %v10230, %v10262
  %v10295 = vadd.f32 %v10231, %v10263
  %v10296 = vadd.f32 %v10232, %v10264
  %v10297 = vadd.f32 %v10233, %v10265
  %v10298 = vadd.f32 %v10234, %v10266
  %v10299 = vadd.f32 %v10235, %v10267
  %v10300 = vadd.f32 %v10236, %v10268
  %v10301 = vadd.f32 %v10237, %v10269
  %v10302 = vmul.f32 %v9536, %v8061
  %v10303 = vmul.f32 %v9540, %v8061
  %v10304 = vmul.f32 %v9544, %v8061
  %v10305 = vmul.f32 %v9548, %v8061
  %v10306 = vmul.f32 %v9552, %v8061
  %v10307 = vmul.f32 %v9556, %v8061
  %v10308 = vmul.f32 %v9560, %v8061
  %v10309 = vmul.f32 %v9564, %v8061
  %v10310 = vmul.f32 %v9568, %v8061
  %v10311 = vmul.f32 %v9572, %v8061
  %v10312 = vmul.f32 %v9576, %v8061
  %v10313 = vmul.f32 %v9580, %v8061
  %v10314 = vmul.f32 %v9584, %v8061
  %v10315 = vmul.f32 %v9588, %v8061
  %v10316 = vmul.f32 %v9592, %v8061
  %v10317 = vmul.f32 %v9596, %v8061
  %v10318 = vmul.f32 %v9600, %v8061
  %v10319 = vmul.f32 %v9604, %v8061
  %v10320 = vmul.f32 %v9608, %v8061
  %v10321 = vmul.f32 %v9612, %v8061
  %v10322 = vmul.f32 %v9616, %v8061
  %v10323 = vmul.f32 %v9620, %v8061
  %v10324 = vmul.f32 %v9624, %v8061
  %v10325 = vmul.f32 %v9628, %v8061
  %v10326 = vmul.f32 %v9632, %v8061
  %v10327 = vmul.f32 %v9636, %v8061
  %v10328 = vmul.f32 %v9640, %v8061
  %v10329 = vmul.f32 %v9644, %v8061
  %v10330 = vmul.f32 %v9648, %v8061
  %v10331 = vmul.f32 %v9652, %v8061
  %v10332 = vmul.f32 %v9656, %v8061
  %v10333 = vmul.f32 %v9660, %v8061
  %v10334 = vadd.f32 %v10270, %v10302
  %v10335 = vadd.f32 %v10271, %v10303
  %v10336 = vadd.f32 %v10272, %v10304
  %v10337 = vadd.f32 %v10273, %v10305
  %v10338 = vadd.f32 %v10274, %v10306
  %v10339 = vadd.f32 %v10275, %v10307
  %v10340 = vadd.f32 %v10276, %v10308
  %v10341 = vadd.f32 %v10277, %v10309
  %v10342 = vadd.f32 %v10278, %v10310
  %v10343 = vadd.f32 %v10279, %v10311
  %v10344 = vadd.f32 %v10280, %v10312
  %v10345 = vadd.f32 %v10281, %v10313
  %v10346 = vadd.f32 %v10282, %v10314
  %v10347 = vadd.f32 %v10283, %v10315
  %v10348 = vadd.f32 %v10284, %v10316
  %v10349 = vadd.f32 %v10285, %v10317
  %v10350 = vadd.f32 %v10286, %v10318
  %v10351 = vadd.f32 %v10287, %v10319
  %v10352 = vadd.f32 %v10288, %v10320
  %v10353 = vadd.f32 %v10289, %v10321
  %v10354 = vadd.f32 %v10290, %v10322
  %v10355 = vadd.f32 %v10291, %v10323
  %v10356 = vadd.f32 %v10292, %v10324
  %v10357 = vadd.f32 %v10293, %v10325
  %v10358 = vadd.f32 %v10294, %v10326
  %v10359 = vadd.f32 %v10295, %v10327
  %v10360 = vadd.f32 %v10296, %v10328
  %v10361 = vadd.f32 %v10297, %v10329
  %v10362 = vadd.f32 %v10298, %v10330
  %v10363 = vadd.f32 %v10299, %v10331
  %v10364 = vadd.f32 %v10300, %v10332
  %v10365 = vadd.f32 %v10301, %v10333
  %v10366 = vadd.f32 %v10334, %v7734
  %v10367 = vadd.f32 %v10335, %v7734
  %v10368 = vadd.f32 %v10336, %v7734
  %v10369 = vadd.f32 %v10337, %v7734
  %v10370 = vadd.f32 %v10338, %v7734
  %v10371 = vadd.f32 %v10339, %v7734
  %v10372 = vadd.f32 %v10340, %v7734
  %v10373 = vadd.f32 %v10341, %v7734
  %v10374 = vadd.f32 %v10342, %v7734
  %v10375 = vadd.f32 %v10343, %v7734
  %v10376 = vadd.f32 %v10344, %v7734
  %v10377 = vadd.f32 %v10345, %v7734
  %v10378 = vadd.f32 %v10346, %v7734
  %v10379 = vadd.f32 %v10347, %v7734
  %v10380 = vadd.f32 %v10348, %v7734
  %v10381 = vadd.f32 %v10349, %v7734
  %v10382 = vadd.f32 %v10350, %v7734
  %v10383 = vadd.f32 %v10351, %v7734
  %v10384 = vadd.f32 %v10352, %v7734
  %v10385 = vadd.f32 %v10353, %v7734
  %v10386 = vadd.f32 %v10354, %v7734
  %v10387 = vadd.f32 %v10355, %v7734
  %v10388 = vadd.f32 %v10356, %v7734
  %v10389 = vadd.f32 %v10357, %v7734
  %v10390 = vadd.f32 %v10358, %v7734
  %v10391 = vadd.f32 %v10359, %v7734
  %v10392 = vadd.f32 %v10360, %v7734
  %v10393 = vadd.f32 %v10361, %v7734
  %v10394 = vadd.f32 %v10362, %v7734
  %v10395 = vadd.f32 %v10363, %v7734
  %v10396 = vadd.f32 %v10364, %v7734
  %v10397 = vadd.f32 %v10365, %v7734
  %vm10398 = vcmp.ge.f32.partialorder %v10366, 0.0
  %vm10399 = vcmp.ge.f32.partialorder %v10367, 0.0
  %vm10400 = vcmp.ge.f32.partialorder %v10368, 0.0
  %vm10401 = vcmp.ge.f32.partialorder %v10369, 0.0
  %vm10402 = vcmp.ge.f32.partialorder %v10370, 0.0
  %vm10403 = vcmp.ge.f32.partialorder %v10371, 0.0
  %vm10404 = vcmp.ge.f32.partialorder %v10372, 0.0
  %vm10405 = vcmp.ge.f32.partialorder %v10373, 0.0
  %vm10406 = vcmp.ge.f32.partialorder %v10374, 0.0
  %vm10407 = vcmp.ge.f32.partialorder %v10375, 0.0
  %vm10408 = vcmp.ge.f32.partialorder %v10376, 0.0
  %vm10409 = vcmp.ge.f32.partialorder %v10377, 0.0
  %vm10410 = vcmp.ge.f32.partialorder %v10378, 0.0
  %vm10411 = vcmp.ge.f32.partialorder %v10379, 0.0
  %vm10412 = vcmp.ge.f32.partialorder %v10380, 0.0
  %vm10413 = vcmp.ge.f32.partialorder %v10381, 0.0
  %vm10414 = vcmp.ge.f32.partialorder %v10382, 0.0
  %vm10415 = vcmp.ge.f32.partialorder %v10383, 0.0
  %vm10416 = vcmp.ge.f32.partialorder %v10384, 0.0
  %vm10417 = vcmp.ge.f32.partialorder %v10385, 0.0
  %vm10418 = vcmp.ge.f32.partialorder %v10386, 0.0
  %vm10419 = vcmp.ge.f32.partialorder %v10387, 0.0
  %vm10420 = vcmp.ge.f32.partialorder %v10388, 0.0
  %vm10421 = vcmp.ge.f32.partialorder %v10389, 0.0
  %vm10422 = vcmp.ge.f32.partialorder %v10390, 0.0
  %vm10423 = vcmp.ge.f32.partialorder %v10391, 0.0
  %vm10424 = vcmp.ge.f32.partialorder %v10392, 0.0
  %vm10425 = vcmp.ge.f32.partialorder %v10393, 0.0
  %vm10426 = vcmp.ge.f32.partialorder %v10394, 0.0
  %vm10427 = vcmp.ge.f32.partialorder %v10395, 0.0
  %vm10428 = vcmp.ge.f32.partialorder %v10396, 0.0
  %vm10429 = vcmp.ge.f32.partialorder %v10397, 0.0
  %v10430 = vmul.f32 %v7772, %v10366
  %v10431 = vmul.f32 %v7772, %v10367
  %v10432 = vmul.f32 %v7772, %v10368
  %v10433 = vmul.f32 %v7772, %v10369
  %v10434 = vmul.f32 %v7772, %v10370
  %v10435 = vmul.f32 %v7772, %v10371
  %v10436 = vmul.f32 %v7772, %v10372
  %v10437 = vmul.f32 %v7772, %v10373
  %v10438 = vmul.f32 %v7772, %v10374
  %v10439 = vmul.f32 %v7772, %v10375
  %v10440 = vmul.f32 %v7772, %v10376
  %v10441 = vmul.f32 %v7772, %v10377
  %v10442 = vmul.f32 %v7772, %v10378
  %v10443 = vmul.f32 %v7772, %v10379
  %v10444 = vmul.f32 %v7772, %v10380
  %v10445 = vmul.f32 %v7772, %v10381
  %v10446 = vmul.f32 %v7772, %v10382
  %v10447 = vmul.f32 %v7772, %v10383
  %v10448 = vmul.f32 %v7772, %v10384
  %v10449 = vmul.f32 %v7772, %v10385
  %v10450 = vmul.f32 %v7772, %v10386
  %v10451 = vmul.f32 %v7772, %v10387
  %v10452 = vmul.f32 %v7772, %v10388
  %v10453 = vmul.f32 %v7772, %v10389
  %v10454 = vmul.f32 %v7772, %v10390
  %v10455 = vmul.f32 %v7772, %v10391
  %v10456 = vmul.f32 %v7772, %v10392
  %v10457 = vmul.f32 %v7772, %v10393
  %v10458 = vmul.f32 %v7772, %v10394
  %v10459 = vmul.f32 %v7772, %v10395
  %v10460 = vmul.f32 %v7772, %v10396
  %v10461 = vmul.f32 %v7772, %v10397
  %v10462 = vsel %vm10398, %v10366, %v10430
  %v10463 = vsel %vm10399, %v10367, %v10431
  %v10464 = vsel %vm10400, %v10368, %v10432
  %v10465 = vsel %vm10401, %v10369, %v10433
  %v10466 = vsel %vm10402, %v10370, %v10434
  %v10467 = vsel %vm10403, %v10371, %v10435
  %v10468 = vsel %vm10404, %v10372, %v10436
  %v10469 = vsel %vm10405, %v10373, %v10437
  %v10470 = vsel %vm10406, %v10374, %v10438
  %v10471 = vsel %vm10407, %v10375, %v10439
  %v10472 = vsel %vm10408, %v10376, %v10440
  %v10473 = vsel %vm10409, %v10377, %v10441
  %v10474 = vsel %vm10410, %v10378, %v10442
  %v10475 = vsel %vm10411, %v10379, %v10443
  %v10476 = vsel %vm10412, %v10380, %v10444
  %v10477 = vsel %vm10413, %v10381, %v10445
  %v10478 = vsel %vm10414, %v10382, %v10446
  %v10479 = vsel %vm10415, %v10383, %v10447
  %v10480 = vsel %vm10416, %v10384, %v10448
  %v10481 = vsel %vm10417, %v10385, %v10449
  %v10482 = vsel %vm10418, %v10386, %v10450
  %v10483 = vsel %vm10419, %v10387, %v10451
  %v10484 = vsel %vm10420, %v10388, %v10452
  %v10485 = vsel %vm10421, %v10389, %v10453
  %v10486 = vsel %vm10422, %v10390, %v10454
  %v10487 = vsel %vm10423, %v10391, %v10455
  %v10488 = vsel %vm10424, %v10392, %v10456
  %v10489 = vsel %vm10425, %v10393, %v10457
  %v10490 = vsel %vm10426, %v10394, %v10458
  %v10491 = vsel %vm10427, %v10395, %v10459
  %v10492 = vsel %vm10428, %v10396, %v10460
  %v10493 = vsel %vm10429, %v10397, %v10461
  %10494 = vst.msk [vmem:[%s15] sm:$0xff] %vm3853, %v9822
  %10495 = vst.msk [vmem:[%s15 + $0x8] sm:$0xff] %vm3853, %v9823
  %10496 = vst.msk [vmem:[%s15 + $0x10] sm:$0xff] %vm3853, %v10462
  %10497 = vst.msk [vmem:[%s15 + $0x18] sm:$0xff] %vm3853, %v10463
  %10498 = vst.msk [vmem:[%s15 + $0x20] sm:$0xff] %vm3853, %v9824
  %10499 = vst.msk [vmem:[%s15 + $0x28] sm:$0xff] %vm3853, %v9825
  %10500 = vst.msk [vmem:[%s15 + $0x30] sm:$0xff] %vm3853, %v10464
  %10501 = vst.msk [vmem:[%s15 + $0x38] sm:$0xff] %vm3853, %v10465
  %10502 = vst.msk [vmem:[%s15 + $0x40] sm:$0xff] %vm3853, %v9826
  %10503 = vst.msk [vmem:[%s15 + $0x48] sm:$0xff] %vm3853, %v9827
  %10504 = vst.msk [vmem:[%s15 + $0x50] sm:$0xff] %vm3853, %v10466
  %10505 = vst.msk [vmem:[%s15 + $0x58] sm:$0xff] %vm3853, %v10467
  %10506 = vst.msk [vmem:[%s15 + $0x60] sm:$0xff] %vm3853, %v9828
  %10507 = vst.msk [vmem:[%s15 + $0x68] sm:$0xff] %vm3853, %v9829
  %10508 = vst.msk [vmem:[%s15 + $0x70] sm:$0xff] %vm3853, %v10468
  %10509 = vst.msk [vmem:[%s15 + $0x78] sm:$0xff] %vm3853, %v10469
  %10510 = vst.msk [vmem:[%s15 + $0x80] sm:$0xff] %vm3853, %v9830
  %10511 = vst.msk [vmem:[%s15 + $0x88] sm:$0xff] %vm3853, %v9831
  %10512 = vst.msk [vmem:[%s15 + $0x90] sm:$0xff] %vm3853, %v10470
  %10513 = vst.msk [vmem:[%s15 + $0x98] sm:$0xff] %vm3853, %v10471
  %10514 = vst.msk [vmem:[%s15 + $0xa0] sm:$0xff] %vm3853, %v9832
  %10515 = vst.msk [vmem:[%s15 + $0xa8] sm:$0xff] %vm3853, %v9833
  %10516 = vst.msk [vmem:[%s15 + $0xb0] sm:$0xff] %vm3853, %v10472
  %10517 = vst.msk [vmem:[%s15 + $0xb8] sm:$0xff] %vm3853, %v10473
  %10518 = vst.msk [vmem:[%s15 + $0xc0] sm:$0xff] %vm3853, %v9834
  %10519 = vst.msk [vmem:[%s15 + $0xc8] sm:$0xff] %vm3853, %v9835
  %10520 = vst.msk [vmem:[%s15 + $0xd0] sm:$0xff] %vm3853, %v10474
  %10521 = vst.msk [vmem:[%s15 + $0xd8] sm:$0xff] %vm3853, %v10475
  %10522 = vst.msk [vmem:[%s15 + $0xe0] sm:$0xff] %vm3853, %v9836
  %10523 = vst.msk [vmem:[%s15 + $0xe8] sm:$0xff] %vm3853, %v9837
  %10524 = vst.msk [vmem:[%s15 + $0xf0] sm:$0xff] %vm3853, %v10476
  %10525 = vst.msk [vmem:[%s15 + $0xf8] sm:$0xff] %vm3853, %v10477
  %10526 = vst.msk [vmem:[%s15 + $0x100] sm:$0xff] %vm3853, %v9838
  %10527 = vst.msk [vmem:[%s15 + $0x108] sm:$0xff] %vm3853, %v9839
  %10528 = vst.msk [vmem:[%s15 + $0x110] sm:$0xff] %vm3853, %v10478
  %10529 = vst.msk [vmem:[%s15 + $0x118] sm:$0xff] %vm3853, %v10479
  %10530 = vst.msk [vmem:[%s15 + $0x120] sm:$0xff] %vm3853, %v9840
  %10531 = vst.msk [vmem:[%s15 + $0x128] sm:$0xff] %vm3853, %v9841
  %10532 = vst.msk [vmem:[%s15 + $0x130] sm:$0xff] %vm3853, %v10480
  %10533 = vst.msk [vmem:[%s15 + $0x138] sm:$0xff] %vm3853, %v10481
  %10534 = vst.msk [vmem:[%s15 + $0x140] sm:$0xff] %vm3853, %v9842
  %10535 = vst.msk [vmem:[%s15 + $0x148] sm:$0xff] %vm3853, %v9843
  %10536 = vst.msk [vmem:[%s15 + $0x150] sm:$0xff] %vm3853, %v10482
  %10537 = vst.msk [vmem:[%s15 + $0x158] sm:$0xff] %vm3853, %v10483
  %10538 = vst.msk [vmem:[%s15 + $0x160] sm:$0xff] %vm3853, %v9844
  %10539 = vst.msk [vmem:[%s15 + $0x168] sm:$0xff] %vm3853, %v9845
  %10540 = vst.msk [vmem:[%s15 + $0x170] sm:$0xff] %vm3853, %v10484
  %10541 = vst.msk [vmem:[%s15 + $0x178] sm:$0xff] %vm3853, %v10485
  %10542 = vst.msk [vmem:[%s15 + $0x180] sm:$0xff] %vm3853, %v9846
  %10543 = vst.msk [vmem:[%s15 + $0x188] sm:$0xff] %vm3853, %v9847
  %10544 = vst.msk [vmem:[%s15 + $0x190] sm:$0xff] %vm3853, %v10486
  %10545 = vst.msk [vmem:[%s15 + $0x198] sm:$0xff] %vm3853, %v10487
  %10546 = vst.msk [vmem:[%s15 + $0x1a0] sm:$0xff] %vm3853, %v9848
  %10547 = vst.msk [vmem:[%s15 + $0x1a8] sm:$0xff] %vm3853, %v9849
  %10548 = vst.msk [vmem:[%s15 + $0x1b0] sm:$0xff] %vm3853, %v10488
  %10549 = vst.msk [vmem:[%s15 + $0x1b8] sm:$0xff] %vm3853, %v10489
  %10550 = vst.msk [vmem:[%s15 + $0x1c0] sm:$0xff] %vm3853, %v9850
  %10551 = vst.msk [vmem:[%s15 + $0x1c8] sm:$0xff] %vm3853, %v9851
  %10552 = vst.msk [vmem:[%s15 + $0x1d0] sm:$0xff] %vm3853, %v10490
  %10553 = vst.msk [vmem:[%s15 + $0x1d8] sm:$0xff] %vm3853, %v10491
  %10554 = vst.msk [vmem:[%s15 + $0x1e0] sm:$0xff] %vm3853, %v9852
  %10555 = vst.msk [vmem:[%s15 + $0x1e8] sm:$0xff] %vm3853, %v9853
  %10556 = vst.msk [vmem:[%s15 + $0x1f0] sm:$0xff] %vm3853, %v10492
  %10557 = vst.msk [vmem:[%s15 + $0x1f8] sm:$0xff] %vm3853, %v10493
  // Predicated region
  $region62: #{att_mechanism_forward_pallas.1} parent=0 // pred_check
    _
  $region63: #{att_mechanism_forward_pallas.1} parent=0 // pred_check_branch
    %10559 = sbr.rel (0) target = $region65
  $region64: #{att_mechanism_forward_pallas.1} parent=0 // pred_region
    _
  $region65: #{att_mechanism_forward_pallas.1} parent=0 // pred_fallthru
    _
  // Predicated region
  $region66: #{att_mechanism_forward_pallas.1} parent=0 // pred_check
    _
  $region67: #{att_mechanism_forward_pallas.1} parent=0 // pred_check_branch
    %10561 = sbr.rel (0) target = $region69
  $region68: #{att_mechanism_forward_pallas.1} parent=0 // pred_region
    _
  $region69: #{att_mechanism_forward_pallas.1} parent=0 // pred_fallthru
    _

</llo_original>
